<compile_context>
chip_gen: v7x
topology: tpu7x:2x2x1
jax: 0.10.0
libtpu: 0.0.40
codegen_flags: <defaults>
</compile_context>

<pallas_src>
import functools

import jax
import jax.numpy as jnp
from jax import lax
from jax.experimental import pallas as pl
from jax.experimental.pallas import tpu as pltpu


# ----------------------------- fused Pallas kernel -----------------------------

def _mobtep_kernel(ts_ref, txt_ref, vis_ref,
                   tcn_w_ref, tcn_b_ref, fw_num_ref, vit_w_ref,
                   big_w_ref, kv_w_ref, bias_ref,
                   o_ref, *, T, L, Np):
    """big_w slab order: [txt_w, fw_vis, fw_txt, wq, wo@proj_w, proj_w].
       kv_w  slab order: [K_proto*scale, V_proto].
       bias  slab order: [txt_b, vit_b, fusion_b, proj_b]."""
    bf16 = jnp.bfloat16
    f32 = jnp.float32
    B = o_ref.shape[0]                       # rows of this batch tile

    bias = bias_ref[...]                     # [4, D] f32, tiny
    txt_b, vit_b, fusion_b, proj_b = bias[0:1], bias[1:2], bias[2:3], bias[3:4]

    def pool(reps):
        # [B, B*reps] mean-pooling matrix (1/reps folded in); built from 2-D
        # iotas so the encoders never need a 2-D<->3-D reshape or axis-1 reduce.
        r = lax.broadcasted_iota(jnp.int32, (B, B * reps), 0)
        c = lax.broadcasted_iota(jnp.int32, (B, B * reps), 1)
        lo = r * reps
        sel = (c >= lo) & (c < lo + reps)
        return jnp.where(sel, 1.0 / reps, 0.0).astype(bf16)

    # --- TCNEncoder: causal dilated conv as im2col matmul + ReLU + mean pool over T
    h = jnp.dot(ts_ref[...], tcn_w_ref[...], preferred_element_type=f32) + tcn_b_ref[...]
    numeric = jnp.dot(pool(T), jnp.maximum(h, 0.0).astype(bf16),
                      preferred_element_type=f32)                      # [B, Et]

    # --- text token encoder: linear + ReLU + mean pool over L tokens
    ht = jnp.dot(txt_ref[...], big_w_ref[0], preferred_element_type=f32) + txt_b
    text_emb = jnp.dot(pool(L), jnp.maximum(ht, 0.0).astype(bf16),
                       preferred_element_type=f32)                     # [B, D]

    # --- ViT-style visual encoder: patch projection + ReLU + mean pool over patches
    hv = jnp.dot(vis_ref[...], vit_w_ref[...], preferred_element_type=f32) + vit_b
    vis_emb = jnp.dot(pool(Np), jnp.maximum(hv, 0.0).astype(bf16),
                      preferred_element_type=f32)                      # [B, D]

    # --- LinearFusion: concat([numeric, visual, text]) @ W  ->  three partial matmuls
    fused = (jnp.dot(numeric.astype(bf16), fw_num_ref[...], preferred_element_type=f32)
             + jnp.dot(vis_emb.astype(bf16), big_w_ref[1], preferred_element_type=f32)
             + jnp.dot(text_emb.astype(bf16), big_w_ref[2], preferred_element_type=f32)
             + fusion_b)                                               # [B, D]
    fused_b = fused.astype(bf16)

    # --- CrossAttentionWithPrototypes (prototype K/V precomputed; 1/sqrt(D) folded into K)
    q = jnp.dot(fused_b, big_w_ref[3], preferred_element_type=f32)     # [B, D]
    s = lax.dot_general(q.astype(bf16), kv_w_ref[0],
                        dimension_numbers=(((1,), (1,)), ((), ())),
                        preferred_element_type=f32)                    # [B, P]
    s = s - jnp.max(s, axis=-1, keepdims=True)
    e = jnp.exp(s)
    probs = e * pl.reciprocal(jnp.sum(e, axis=-1, keepdims=True), approx=True)
    ctx = jnp.dot(probs.astype(bf16), kv_w_ref[1], preferred_element_type=f32)  # [B, D]

    # --- residual + final projection, de-chained:
    #     (ctx @ Wo + fused) @ Wp + b  ==  ctx @ (Wo @ Wp) + fused @ Wp + b
    o_ref[...] = (jnp.dot(ctx.astype(bf16), big_w_ref[4], preferred_element_type=f32)
                  + jnp.dot(fused_b, big_w_ref[5], preferred_element_type=f32)
                  + proj_b)


def _mobtep_fused_call(ts_flat, txt_flat, vis_flat, dp, *, B, T, L, Np):
    D = dp['big_w'].shape[-1]
    Et = dp['tcn_w'].shape[-1]
    P = dp['kv_w'].shape[1]

    # Row tile over batch; weights stay VMEM-resident across all tiles.
    tile_b = 128 if (B > 128 and B % 128 == 0) else B
    grid = (B // tile_b,)

    def row_spec(rows_per_b, cols):
        return pl.BlockSpec((tile_b * rows_per_b, cols), lambda i: (i, 0))

    def const_spec(arr):
        return pl.BlockSpec(arr.shape, lambda i, _n=arr.ndim: (0,) * _n)

    weights = (dp['tcn_w'], dp['tcn_b'], dp['fw_num'], dp['vit_w'],
               dp['big_w'], dp['kv_w'], dp['bias'])
    args = (ts_flat, txt_flat, vis_flat) + weights

    flops = 2 * (
        ts_flat.shape[0] * ts_flat.shape[1] * Et          # TCN im2col matmul
        + txt_flat.shape[0] * txt_flat.shape[1] * D       # text token head
        + vis_flat.shape[0] * vis_flat.shape[1] * D       # patch projection
        + B * (Et + 2 * D) * D                            # fusion
        + B * D * D                                       # Wq
        + 2 * B * P * D                                   # scores + context
        + 2 * B * D * D)                                  # Wo@Wp + Wp
    bytes_accessed = sum(int(a.size) * a.dtype.itemsize for a in args) + B * D * 4

    return pl.pallas_call(
        functools.partial(_mobtep_kernel, T=T, L=L, Np=Np),
        out_shape=jax.ShapeDtypeStruct((B, D), jnp.float32),
        grid=grid,
        in_specs=[row_spec(T, ts_flat.shape[1]),
                  row_spec(L, txt_flat.shape[1]),
                  row_spec(Np, vis_flat.shape[1])]
                 + [const_spec(w) for w in weights],
        out_specs=pl.BlockSpec((tile_b, D), lambda i: (i, 0)),
        compiler_params=pltpu.CompilerParams(
            dimension_semantics=("parallel",),          # second TC on v7x when grid > 1
            vmem_limit_bytes=32 * 1024 * 1024),         # ~7.3 MB weights x2 buffers + activations
        cost_estimate=pl.CostEstimate(flops=int(flops),
                                      transcendentals=int(B * P),
                                      bytes_accessed=int(bytes_accessed)),
    )(*args)


# ----------------------------- parameters -----------------------------

def init_params(key, *, tcn_emb=64, d_model=768, n_proto=8,
                ts_channels=4, patch_dim=48, text_dim=768, kernel_size=3):
    ks = jax.random.split(key, 10)

    def w(k, shape, scale):
        return jax.random.normal(k, shape, jnp.float32) * scale

    return dict(
        tcn_w=w(ks[0], (kernel_size, ts_channels, tcn_emb), 0.1),
        tcn_b=jnp.zeros((tcn_emb,), jnp.float32),
        vit_w=w(ks[1], (patch_dim, d_model), 0.05),
        vit_b=jnp.zeros((d_model,), jnp.float32),
        txt_w=w(ks[2], (text_dim, d_model), 0.03),
        txt_b=jnp.zeros((d_model,), jnp.float32),
        fusion_w=w(ks[3], (tcn_emb + 2 * d_model, d_model), 0.02),
        fusion_b=jnp.zeros((d_model,), jnp.float32),
        protos=w(ks[4], (n_proto, d_model), 0.05),
        wq=w(ks[5], (d_model, d_model), 0.03),
        wk=w(ks[6], (d_model, d_model), 0.03),
        wv=w(ks[7], (d_model, d_model), 0.03),
        wo=w(ks[8], (d_model, d_model), 0.03),
        proj_w=w(ks[9], (d_model, d_model), 0.03),
        proj_b=jnp.zeros((d_model,), jnp.float32),
    )


def prepare_inference_params(p, *, tcn_emb=64, d_model=768):
    """One-time conversion: bf16 weights, packed DMA slabs, folded constants."""
    bf = lambda a: a.astype(jnp.bfloat16)
    K, C, E = p['tcn_w'].shape
    scale = 1.0 / float(d_model) ** 0.5
    kp = (p['protos'] @ p['wk']) * scale          # attention scale folded into K
    vp = p['protos'] @ p['wv']
    wo_proj = p['wo'] @ p['proj_w']               # fold Wo chain with final projection
    fw = p['fusion_w']                            # rows: [numeric | visual | text]
    big_w = jnp.stack([p['txt_w'],
                       fw[tcn_emb:tcn_emb + d_model],
                       fw[tcn_emb + d_model:],
                       p['wq'], wo_proj, p['proj_w']], axis=0)      # [6, D, D]
    bias = jnp.stack([p['txt_b'], p['vit_b'], p['fusion_b'], p['proj_b']], axis=0)
    return dict(
        tcn_w=bf(p['tcn_w'].reshape(K * C, E)),
        tcn_b=p['tcn_b'].reshape(1, -1),
        fw_num=bf(fw[:tcn_emb]),
        vit_w=bf(p['vit_w']),
        big_w=bf(big_w),
        kv_w=bf(jnp.stack([kp, vp], axis=0)),     # [2, P, D]
        bias=bias,                                # [4, D] f32
    )


# ----------------------------- forward -----------------------------

def mobtep_forward(dparams, ts_input, text_tokens, visual_input, generate_text=False,
                   *, kernel_size=3, dilation=2, patch=4):
    if generate_text:
        # TODO(synk): GPT-2 LM head + beam-search caption generation (pretrained
        # weights + autoregressive decode loop) has no Pallas equivalent here.
        raise NotImplementedError("generate_text path not supported in this kernel")

    # TCNEncoder glue: causal left pad + dilated-tap im2col -> [B*T, K*C] bf16
    B, C, T = ts_input.shape
    x = jnp.transpose(ts_input, (0, 2, 1))                      # [B, T, C]
    pad = (kernel_size - 1) * dilation
    xp = jnp.pad(x, ((0, 0), (pad, 0), (0, 0)))
    taps = [xp[:, k * dilation:k * dilation + T, :] for k in range(kernel_size)]
    ts_flat = (jnp.concatenate(taps, axis=-1)
               .reshape(B * T, kernel_size * C).astype(jnp.bfloat16))

    # TODO(synk): SentenceBERT tokenizer + pretrained transformer weights cannot be
    # reproduced in-script; text_tokens are precomputed [B, L, 768] token features,
    # encoded by a deterministic linear + ReLU + mean-pool head in the fused kernel.
    L = text_tokens.shape[1]
    txt_flat = text_tokens.reshape(B * L, text_tokens.shape[2]).astype(jnp.bfloat16)

    # ViTEncoder glue: patchify NCHW image into 4x4 patches -> [B*Np, C*p*p] bf16
    Bv, Cv, H, W = visual_input.shape
    pz = patch
    patches = visual_input.reshape(Bv, Cv, H // pz, pz, W // pz, pz)
    patches = jnp.transpose(patches, (0, 2, 4, 1, 3, 5))
    Np = (H // pz) * (W // pz)
    vis_flat = patches.reshape(Bv * Np, Cv * pz * pz).astype(jnp.bfloat16)

    # Single fused Pallas kernel: encoders -> fusion -> prototype attention -> projection
    return _mobtep_fused_call(ts_flat, txt_flat, vis_flat, dparams,
                              B=B, T=T, L=L, Np=Np)


# ----------------------------- demo -----------------------------

if __name__ == "__main__":
    key = jax.random.PRNGKey(0)
    kp_, k1, k2, k3 = jax.random.split(key, 4)
    params = init_params(kp_)
    dparams = prepare_inference_params(params)

    B = 2
    ts_input = jax.random.normal(k1, (B, 4, 16), jnp.float32)          # [B, C, T]
    text_tokens = jax.random.normal(k2, (B, 8, 768), jnp.float32)      # [B, L, D]
    visual_input = jax.random.normal(k3, (B, 3, 16, 16), jnp.float32)  # NCHW

    out = jax.jit(mobtep_forward)(dparams, ts_input, text_tokens, visual_input)
    out = jax.block_until_ready(out)
    assert out.shape == (B, 768) and out.dtype == jnp.float32
    print("KERNEL_OK")
</pallas_src>

<mosaic_0001>
module attributes {stable_mosaic.version = 11 : i64} {
  func.func @_mobtep_kernel(%arg0: i32, %arg1: memref<32x12xbf16, #tpu.memory_space<vmem>>, %arg2: memref<16x768xbf16, #tpu.memory_space<vmem>>, %arg3: memref<32x48xbf16, #tpu.memory_space<vmem>>, %arg4: memref<12x64xbf16, #tpu.memory_space<vmem>>, %arg5: memref<1x64xf32, #tpu.memory_space<vmem>>, %arg6: memref<64x768xbf16, #tpu.memory_space<vmem>>, %arg7: memref<48x768xbf16, #tpu.memory_space<vmem>>, %arg8: memref<6x768x768xbf16, #tpu.memory_space<vmem>>, %arg9: memref<2x8x768xbf16, #tpu.memory_space<vmem>>, %arg10: memref<4x768xf32, #tpu.memory_space<vmem>>, %arg11: memref<2x768xf32, #tpu.memory_space<vmem>>) attributes {dimension_semantics = [#tpu.dimension_semantics<parallel>], iteration_bounds = array<i64: 1>, scalar_prefetch = 0 : i64, scratch_operands = 0 : i64, tpu.core_type = #tpu.core_type<tc>, window_params = [{transform_indices = @transform_0, window_bounds = array<i64: 32, 12>}, {transform_indices = @transform_1, window_bounds = array<i64: 16, 768>}, {transform_indices = @transform_2, window_bounds = array<i64: 32, 48>}, {pipeline_mode = #tpu.pipeline_mode<synchronous>, transform_indices = @transform_3, window_bounds = array<i64: 12, 64>}, {pipeline_mode = #tpu.pipeline_mode<synchronous>, transform_indices = @transform_4, window_bounds = array<i64: 1, 64>}, {pipeline_mode = #tpu.pipeline_mode<synchronous>, transform_indices = @transform_5, window_bounds = array<i64: 64, 768>}, {pipeline_mode = #tpu.pipeline_mode<synchronous>, transform_indices = @transform_6, window_bounds = array<i64: 48, 768>}, {pipeline_mode = #tpu.pipeline_mode<synchronous>, transform_indices = @transform_7, window_bounds = array<i64: 6, 768, 768>}, {pipeline_mode = #tpu.pipeline_mode<synchronous>, transform_indices = @transform_8, window_bounds = array<i64: 2, 8, 768>}, {pipeline_mode = #tpu.pipeline_mode<synchronous>, transform_indices = @transform_9, window_bounds = array<i64: 4, 768>}, {transform_indices = @transform_10, window_bounds = array<i64: 2, 768>}]} {
    %c0 = arith.constant 0 : index
    %c0_0 = arith.constant 0 : index
    %0 = vector.load %arg10[%c0, %c0_0] : memref<4x768xf32, #tpu.memory_space<vmem>>, vector<4x768xf32>
    %1 = vector.extract_strided_slice %0 {offsets = [0, 0], sizes = [1, 768], strides = [1, 1]} : vector<4x768xf32> to vector<1x768xf32>
    %2 = vector.extract_strided_slice %0 {offsets = [1, 0], sizes = [1, 768], strides = [1, 1]} : vector<4x768xf32> to vector<1x768xf32>
    %3 = vector.extract_strided_slice %0 {offsets = [2, 0], sizes = [1, 768], strides = [1, 1]} : vector<4x768xf32> to vector<1x768xf32>
    %4 = vector.extract_strided_slice %0 {offsets = [3, 0], sizes = [1, 768], strides = [1, 1]} : vector<4x768xf32> to vector<1x768xf32>
    %c0_1 = arith.constant 0 : index
    %c0_2 = arith.constant 0 : index
    %5 = vector.load %arg1[%c0_1, %c0_2] : memref<32x12xbf16, #tpu.memory_space<vmem>>, vector<32x12xbf16>
    %c0_3 = arith.constant 0 : index
    %c0_4 = arith.constant 0 : index
    %6 = vector.load %arg4[%c0_3, %c0_4] : memref<12x64xbf16, #tpu.memory_space<vmem>>, vector<12x64xbf16>
    %cst = arith.constant dense<0.000000e+00> : vector<32x64xf32>
    %7 = tpu.matmul %5, %6, %cst {dimension_numbers = #tpu.dot_dimension_numbers<[1], [0], [0], [1], [0, 0, 1, 1], [], []>} : vector<32x12xbf16>, vector<12x64xbf16>, vector<32x64xf32> -> vector<32x64xf32>
    %c0_5 = arith.constant 0 : index
    %c0_6 = arith.constant 0 : index
    %8 = vector.load %arg5[%c0_5, %c0_6] : memref<1x64xf32, #tpu.memory_space<vmem>>, vector<1x64xf32>
    %9 = vector.broadcast %8 : vector<1x64xf32> to vector<32x64xf32>
    %10 = arith.addf %7, %9 : vector<32x64xf32>
    %11 = tpu.iota {dimensions = array<i32: 0>} : vector<2x32xi32>
    %12 = tpu.iota {dimensions = array<i32: 1>} : vector<2x32xi32>
    %c16_i32 = arith.constant 16 : i32
    %13 = vector.broadcast %c16_i32 : i32 to vector<2x32xi32>
    %14 = arith.muli %11, %13 : vector<2x32xi32>
    %15 = arith.cmpi sge, %12, %14 : vector<2x32xi32>
    %c16_i32_7 = arith.constant 16 : i32
    %16 = vector.broadcast %c16_i32_7 : i32 to vector<2x32xi32>
    %17 = arith.addi %14, %16 : vector<2x32xi32>
    %18 = arith.cmpi slt, %12, %17 : vector<2x32xi32>
    %19 = arith.andi %15, %18 : vector<2x32xi1>
    %cst_8 = arith.constant 6.250000e-02 : f32
    %cst_9 = arith.constant 0.000000e+00 : f32
    %20 = vector.broadcast %cst_8 : f32 to vector<2x32xf32>
    %21 = vector.broadcast %cst_9 : f32 to vector<2x32xf32>
    %22 = arith.select %19, %20, %21 : vector<2x32xi1>, vector<2x32xf32>
    %23 = arith.truncf %22 : vector<2x32xf32> to vector<2x32xbf16>
    %cst_10 = arith.constant 0.000000e+00 : f32
    %24 = vector.broadcast %cst_10 : f32 to vector<32x64xf32>
    %25 = arith.maximumf %10, %24 : vector<32x64xf32>
    %26 = arith.truncf %25 : vector<32x64xf32> to vector<32x64xbf16>
    %cst_11 = arith.constant dense<0.000000e+00> : vector<2x64xf32>
    %27 = tpu.matmul %23, %26, %cst_11 {dimension_numbers = #tpu.dot_dimension_numbers<[1], [0], [0], [1], [0, 0, 1, 1], [], []>} : vector<2x32xbf16>, vector<32x64xbf16>, vector<2x64xf32> -> vector<2x64xf32>
    %c0_12 = arith.constant 0 : index
    %c0_13 = arith.constant 0 : index
    %28 = vector.load %arg2[%c0_12, %c0_13] : memref<16x768xbf16, #tpu.memory_space<vmem>>, vector<16x768xbf16>
    %c0_14 = arith.constant 0 : index
    %c0_15 = arith.constant 0 : index
    %c0_16 = arith.constant 0 : index
    %29 = vector.load %arg8[%c0_14, %c0_15, %c0_16] : memref<6x768x768xbf16, #tpu.memory_space<vmem>>, vector<1x768x768xbf16>
    %30 = vector.shape_cast %29 : vector<1x768x768xbf16> to vector<768x768xbf16>
    %cst_17 = arith.constant dense<0.000000e+00> : vector<16x768xf32>
    %31 = tpu.matmul %28, %30, %cst_17 {dimension_numbers = #tpu.dot_dimension_numbers<[1], [0], [0], [1], [0, 0, 1, 1], [], []>} : vector<16x768xbf16>, vector<768x768xbf16>, vector<16x768xf32> -> vector<16x768xf32>
    %32 = vector.broadcast %1 : vector<1x768xf32> to vector<16x768xf32>
    %33 = arith.addf %31, %32 : vector<16x768xf32>
    %34 = tpu.iota {dimensions = array<i32: 0>} : vector<2x16xi32>
    %35 = tpu.iota {dimensions = array<i32: 1>} : vector<2x16xi32>
    %c8_i32 = arith.constant 8 : i32
    %36 = vector.broadcast %c8_i32 : i32 to vector<2x16xi32>
    %37 = arith.muli %34, %36 : vector<2x16xi32>
    %38 = arith.cmpi sge, %35, %37 : vector<2x16xi32>
    %c8_i32_18 = arith.constant 8 : i32
    %39 = vector.broadcast %c8_i32_18 : i32 to vector<2x16xi32>
    %40 = arith.addi %37, %39 : vector<2x16xi32>
    %41 = arith.cmpi slt, %35, %40 : vector<2x16xi32>
    %42 = arith.andi %38, %41 : vector<2x16xi1>
    %cst_19 = arith.constant 1.250000e-01 : f32
    %cst_20 = arith.constant 0.000000e+00 : f32
    %43 = vector.broadcast %cst_19 : f32 to vector<2x16xf32>
    %44 = vector.broadcast %cst_20 : f32 to vector<2x16xf32>
    %45 = arith.select %42, %43, %44 : vector<2x16xi1>, vector<2x16xf32>
    %46 = arith.truncf %45 : vector<2x16xf32> to vector<2x16xbf16>
    %cst_21 = arith.constant 0.000000e+00 : f32
    %47 = vector.broadcast %cst_21 : f32 to vector<16x768xf32>
    %48 = arith.maximumf %33, %47 : vector<16x768xf32>
    %49 = arith.truncf %48 : vector<16x768xf32> to vector<16x768xbf16>
    %cst_22 = arith.constant dense<0.000000e+00> : vector<2x768xf32>
    %50 = tpu.matmul %46, %49, %cst_22 {dimension_numbers = #tpu.dot_dimension_numbers<[1], [0], [0], [1], [0, 0, 1, 1], [], []>} : vector<2x16xbf16>, vector<16x768xbf16>, vector<2x768xf32> -> vector<2x768xf32>
    %c0_23 = arith.constant 0 : index
    %c0_24 = arith.constant 0 : index
    %51 = vector.load %arg3[%c0_23, %c0_24] : memref<32x48xbf16, #tpu.memory_space<vmem>>, vector<32x48xbf16>
    %c0_25 = arith.constant 0 : index
    %c0_26 = arith.constant 0 : index
    %52 = vector.load %arg7[%c0_25, %c0_26] : memref<48x768xbf16, #tpu.memory_space<vmem>>, vector<48x768xbf16>
    %cst_27 = arith.constant dense<0.000000e+00> : vector<32x768xf32>
    %53 = tpu.matmul %51, %52, %cst_27 {dimension_numbers = #tpu.dot_dimension_numbers<[1], [0], [0], [1], [0, 0, 1, 1], [], []>} : vector<32x48xbf16>, vector<48x768xbf16>, vector<32x768xf32> -> vector<32x768xf32>
    %54 = vector.broadcast %2 : vector<1x768xf32> to vector<32x768xf32>
    %55 = arith.addf %53, %54 : vector<32x768xf32>
    %56 = tpu.iota {dimensions = array<i32: 0>} : vector<2x32xi32>
    %57 = tpu.iota {dimensions = array<i32: 1>} : vector<2x32xi32>
    %c16_i32_28 = arith.constant 16 : i32
    %58 = vector.broadcast %c16_i32_28 : i32 to vector<2x32xi32>
    %59 = arith.muli %56, %58 : vector<2x32xi32>
    %60 = arith.cmpi sge, %57, %59 : vector<2x32xi32>
    %c16_i32_29 = arith.constant 16 : i32
    %61 = vector.broadcast %c16_i32_29 : i32 to vector<2x32xi32>
    %62 = arith.addi %59, %61 : vector<2x32xi32>
    %63 = arith.cmpi slt, %57, %62 : vector<2x32xi32>
    %64 = arith.andi %60, %63 : vector<2x32xi1>
    %cst_30 = arith.constant 6.250000e-02 : f32
    %cst_31 = arith.constant 0.000000e+00 : f32
    %65 = vector.broadcast %cst_30 : f32 to vector<2x32xf32>
    %66 = vector.broadcast %cst_31 : f32 to vector<2x32xf32>
    %67 = arith.select %64, %65, %66 : vector<2x32xi1>, vector<2x32xf32>
    %68 = arith.truncf %67 : vector<2x32xf32> to vector<2x32xbf16>
    %cst_32 = arith.constant 0.000000e+00 : f32
    %69 = vector.broadcast %cst_32 : f32 to vector<32x768xf32>
    %70 = arith.maximumf %55, %69 : vector<32x768xf32>
    %71 = arith.truncf %70 : vector<32x768xf32> to vector<32x768xbf16>
    %cst_33 = arith.constant dense<0.000000e+00> : vector<2x768xf32>
    %72 = tpu.matmul %68, %71, %cst_33 {dimension_numbers = #tpu.dot_dimension_numbers<[1], [0], [0], [1], [0, 0, 1, 1], [], []>} : vector<2x32xbf16>, vector<32x768xbf16>, vector<2x768xf32> -> vector<2x768xf32>
    %73 = arith.truncf %27 : vector<2x64xf32> to vector<2x64xbf16>
    %c0_34 = arith.constant 0 : index
    %c0_35 = arith.constant 0 : index
    %74 = vector.load %arg6[%c0_34, %c0_35] : memref<64x768xbf16, #tpu.memory_space<vmem>>, vector<64x768xbf16>
    %cst_36 = arith.constant dense<0.000000e+00> : vector<2x768xf32>
    %75 = tpu.matmul %73, %74, %cst_36 {dimension_numbers = #tpu.dot_dimension_numbers<[1], [0], [0], [1], [0, 0, 1, 1], [], []>} : vector<2x64xbf16>, vector<64x768xbf16>, vector<2x768xf32> -> vector<2x768xf32>
    %76 = arith.truncf %72 : vector<2x768xf32> to vector<2x768xbf16>
    %c1 = arith.constant 1 : index
    %c0_37 = arith.constant 0 : index
    %c0_38 = arith.constant 0 : index
    %77 = vector.load %arg8[%c1, %c0_37, %c0_38] : memref<6x768x768xbf16, #tpu.memory_space<vmem>>, vector<1x768x768xbf16>
    %78 = vector.shape_cast %77 : vector<1x768x768xbf16> to vector<768x768xbf16>
    %cst_39 = arith.constant dense<0.000000e+00> : vector<2x768xf32>
    %79 = tpu.matmul %76, %78, %cst_39 {dimension_numbers = #tpu.dot_dimension_numbers<[1], [0], [0], [1], [0, 0, 1, 1], [], []>} : vector<2x768xbf16>, vector<768x768xbf16>, vector<2x768xf32> -> vector<2x768xf32>
    %80 = arith.addf %75, %79 : vector<2x768xf32>
    %81 = arith.truncf %50 : vector<2x768xf32> to vector<2x768xbf16>
    %c2 = arith.constant 2 : index
    %c0_40 = arith.constant 0 : index
    %c0_41 = arith.constant 0 : index
    %82 = vector.load %arg8[%c2, %c0_40, %c0_41] : memref<6x768x768xbf16, #tpu.memory_space<vmem>>, vector<1x768x768xbf16>
    %83 = vector.shape_cast %82 : vector<1x768x768xbf16> to vector<768x768xbf16>
    %cst_42 = arith.constant dense<0.000000e+00> : vector<2x768xf32>
    %84 = tpu.matmul %81, %83, %cst_42 {dimension_numbers = #tpu.dot_dimension_numbers<[1], [0], [0], [1], [0, 0, 1, 1], [], []>} : vector<2x768xbf16>, vector<768x768xbf16>, vector<2x768xf32> -> vector<2x768xf32>
    %85 = arith.addf %80, %84 : vector<2x768xf32>
    %86 = vector.broadcast %3 : vector<1x768xf32> to vector<2x768xf32>
    %87 = arith.addf %85, %86 : vector<2x768xf32>
    %88 = arith.truncf %87 : vector<2x768xf32> to vector<2x768xbf16>
    %c3 = arith.constant 3 : index
    %c0_43 = arith.constant 0 : index
    %c0_44 = arith.constant 0 : index
    %89 = vector.load %arg8[%c3, %c0_43, %c0_44] : memref<6x768x768xbf16, #tpu.memory_space<vmem>>, vector<1x768x768xbf16>
    %90 = vector.shape_cast %89 : vector<1x768x768xbf16> to vector<768x768xbf16>
    %cst_45 = arith.constant dense<0.000000e+00> : vector<2x768xf32>
    %91 = tpu.matmul %88, %90, %cst_45 {dimension_numbers = #tpu.dot_dimension_numbers<[1], [0], [0], [1], [0, 0, 1, 1], [], []>} : vector<2x768xbf16>, vector<768x768xbf16>, vector<2x768xf32> -> vector<2x768xf32>
    %92 = arith.truncf %91 : vector<2x768xf32> to vector<2x768xbf16>
    %c0_46 = arith.constant 0 : index
    %c0_47 = arith.constant 0 : index
    %c0_48 = arith.constant 0 : index
    %93 = vector.load %arg9[%c0_46, %c0_47, %c0_48] : memref<2x8x768xbf16, #tpu.memory_space<vmem>>, vector<1x8x768xbf16>
    %94 = vector.shape_cast %93 : vector<1x8x768xbf16> to vector<8x768xbf16>
    %cst_49 = arith.constant dense<0.000000e+00> : vector<2x8xf32>
    %95 = tpu.matmul %92, %94, %cst_49 {dimension_numbers = #tpu.dot_dimension_numbers<[1], [1], [0], [0], [0, 0, 1, 0], [], []>} : vector<2x768xbf16>, vector<8x768xbf16>, vector<2x8xf32> -> vector<2x8xf32>
    %cst_50 = arith.constant dense<0xFF800000> : vector<2xf32>
    %96 = vector.multi_reduction <maximumf>, %95, %cst_50 [1] : vector<2x8xf32> to vector<2xf32>
    %97 = vector.shape_cast %96 : vector<2xf32> to vector<2x1xf32>
    %98 = vector.broadcast %97 : vector<2x1xf32> to vector<2x8xf32>
    %99 = arith.subf %95, %98 : vector<2x8xf32>
    %100 = math.exp %99 : vector<2x8xf32>
    %cst_51 = arith.constant dense<0.000000e+00> : vector<2xf32>
    %101 = vector.multi_reduction <add>, %100, %cst_51 [1] : vector<2x8xf32> to vector<2xf32>
    %102 = vector.shape_cast %101 : vector<2xf32> to vector<2x1xf32>
    %103 = tpu.reciprocal %102 {approx = true} : vector<2x1xf32> -> vector<2x1xf32>
    %104 = vector.broadcast %103 : vector<2x1xf32> to vector<2x8xf32>
    %105 = arith.mulf %100, %104 : vector<2x8xf32>
    %106 = arith.truncf %105 : vector<2x8xf32> to vector<2x8xbf16>
    %c1_52 = arith.constant 1 : index
    %c0_53 = arith.constant 0 : index
    %c0_54 = arith.constant 0 : index
    %107 = vector.load %arg9[%c1_52, %c0_53, %c0_54] : memref<2x8x768xbf16, #tpu.memory_space<vmem>>, vector<1x8x768xbf16>
    %108 = vector.shape_cast %107 : vector<1x8x768xbf16> to vector<8x768xbf16>
    %cst_55 = arith.constant dense<0.000000e+00> : vector<2x768xf32>
    %109 = tpu.matmul %106, %108, %cst_55 {dimension_numbers = #tpu.dot_dimension_numbers<[1], [0], [0], [1], [0, 0, 1, 1], [], []>} : vector<2x8xbf16>, vector<8x768xbf16>, vector<2x768xf32> -> vector<2x768xf32>
    %110 = arith.truncf %109 : vector<2x768xf32> to vector<2x768xbf16>
    %c4 = arith.constant 4 : index
    %c0_56 = arith.constant 0 : index
    %c0_57 = arith.constant 0 : index
    %111 = vector.load %arg8[%c4, %c0_56, %c0_57] : memref<6x768x768xbf16, #tpu.memory_space<vmem>>, vector<1x768x768xbf16>
    %112 = vector.shape_cast %111 : vector<1x768x768xbf16> to vector<768x768xbf16>
    %cst_58 = arith.constant dense<0.000000e+00> : vector<2x768xf32>
    %113 = tpu.matmul %110, %112, %cst_58 {dimension_numbers = #tpu.dot_dimension_numbers<[1], [0], [0], [1], [0, 0, 1, 1], [], []>} : vector<2x768xbf16>, vector<768x768xbf16>, vector<2x768xf32> -> vector<2x768xf32>
    %c5 = arith.constant 5 : index
    %c0_59 = arith.constant 0 : index
    %c0_60 = arith.constant 0 : index
    %114 = vector.load %arg8[%c5, %c0_59, %c0_60] : memref<6x768x768xbf16, #tpu.memory_space<vmem>>, vector<1x768x768xbf16>
    %115 = vector.shape_cast %114 : vector<1x768x768xbf16> to vector<768x768xbf16>
    %cst_61 = arith.constant dense<0.000000e+00> : vector<2x768xf32>
    %116 = tpu.matmul %88, %115, %cst_61 {dimension_numbers = #tpu.dot_dimension_numbers<[1], [0], [0], [1], [0, 0, 1, 1], [], []>} : vector<2x768xbf16>, vector<768x768xbf16>, vector<2x768xf32> -> vector<2x768xf32>
    %117 = arith.addf %113, %116 : vector<2x768xf32>
    %118 = vector.broadcast %4 : vector<1x768xf32> to vector<2x768xf32>
    %119 = arith.addf %117, %118 : vector<2x768xf32>
    %c0_62 = arith.constant 0 : index
    %c0_63 = arith.constant 0 : index
    %120 = vector.load %arg11[%c0_62, %c0_63] : memref<2x768xf32, #tpu.memory_space<vmem>>, vector<2x768xf32>
    tpu.vector_store %arg11[%c0_62, %c0_63], %119 {strides = array<i32>} : memref<2x768xf32, #tpu.memory_space<vmem>>, vector<2x768xf32>,
    return
  }
  func.func @transform_0(%arg0: i32) -> (i32, i32) {
    %c0_i32 = arith.constant 0 : i32
    %c0_i32_0 = arith.constant 0 : i32
    return %arg0, %c0_i32 : i32, i32
  }
  func.func @transform_1(%arg0: i32) -> (i32, i32) {
    %c0_i32 = arith.constant 0 : i32
    %c0_i32_0 = arith.constant 0 : i32
    return %arg0, %c0_i32 : i32, i32
  }
  func.func @transform_2(%arg0: i32) -> (i32, i32) {
    %c0_i32 = arith.constant 0 : i32
    %c0_i32_0 = arith.constant 0 : i32
    return %arg0, %c0_i32 : i32, i32
  }
  func.func @transform_3(%arg0: i32) -> (i32, i32) {
    %c0_i32 = arith.constant 0 : i32
    %c0_i32_0 = arith.constant 0 : i32
    %c0_i32_1 = arith.constant 0 : i32
    return %c0_i32, %c0_i32_0 : i32, i32
  }
  func.func @transform_4(%arg0: i32) -> (i32, i32) {
    %c0_i32 = arith.constant 0 : i32
    %c0_i32_0 = arith.constant 0 : i32
    %c0_i32_1 = arith.constant 0 : i32
    return %c0_i32, %c0_i32_0 : i32, i32
  }
  func.func @transform_5(%arg0: i32) -> (i32, i32) {
    %c0_i32 = arith.constant 0 : i32
    %c0_i32_0 = arith.constant 0 : i32
    %c0_i32_1 = arith.constant 0 : i32
    return %c0_i32, %c0_i32_0 : i32, i32
  }
  func.func @transform_6(%arg0: i32) -> (i32, i32) {
    %c0_i32 = arith.constant 0 : i32
    %c0_i32_0 = arith.constant 0 : i32
    %c0_i32_1 = arith.constant 0 : i32
    return %c0_i32, %c0_i32_0 : i32, i32
  }
  func.func @transform_7(%arg0: i32) -> (i32, i32, i32) {
    %c0_i32 = arith.constant 0 : i32
    %c0_i32_0 = arith.constant 0 : i32
    %c0_i32_1 = arith.constant 0 : i32
    %c0_i32_2 = arith.constant 0 : i32
    return %c0_i32, %c0_i32_0, %c0_i32_1 : i32, i32, i32
  }
  func.func @transform_8(%arg0: i32) -> (i32, i32, i32) {
    %c0_i32 = arith.constant 0 : i32
    %c0_i32_0 = arith.constant 0 : i32
    %c0_i32_1 = arith.constant 0 : i32
    %c0_i32_2 = arith.constant 0 : i32
    return %c0_i32, %c0_i32_0, %c0_i32_1 : i32, i32, i32
  }
  func.func @transform_9(%arg0: i32) -> (i32, i32) {
    %c0_i32 = arith.constant 0 : i32
    %c0_i32_0 = arith.constant 0 : i32
    %c0_i32_1 = arith.constant 0 : i32
    return %c0_i32, %c0_i32_0 : i32, i32
  }
  func.func @transform_10(%arg0: i32) -> (i32, i32) {
    %c0_i32 = arith.constant 0 : i32
    %c0_i32_0 = arith.constant 0 : i32
    return %arg0, %c0_i32 : i32, i32
  }
}

</mosaic_0001>

<llo_original>
// kernel: mobtep_forward.1
$region0: #{mobtep_forward.1}
  #allocation0 [shape = 'u32[]', space=smem, size = 0x4, offset = 0x4, fixed_abs, tag = 'smem constant byte address 0x4 - core index']
  #allocation1 [shape = 'u32[144,128]{1,0:T(1,128)}', space=vmem, size = 0x12000, scoped, tag = 'internal scratch']
  %s0 = inlined_call_operand.vmem [shape: bf16[32,12], index: 0, kind: input, shape index: {}]
  %s1 = inlined_call_operand.vmem [shape: bf16[16,768], index: 1, kind: input, shape index: {}]
  %s2 = inlined_call_operand.vmem [shape: bf16[32,48], index: 2, kind: input, shape index: {}]
  %s3 = inlined_call_operand.hbm [shape: bf16[12,64], index: 3, kind: input, shape index: {}]
  %s4 = inlined_call_operand.hbm [shape: f32[1,64], index: 4, kind: input, shape index: {}]
  %s5 = inlined_call_operand.hbm [shape: bf16[64,768], index: 5, kind: input, shape index: {}]
  %s6 = inlined_call_operand.hbm [shape: bf16[48,768], index: 6, kind: input, shape index: {}]
  %s7 = inlined_call_operand.hbm [shape: bf16[6,768,768], index: 7, kind: input, shape index: {}]
  %s8 = inlined_call_operand.hbm [shape: bf16[2,8,768], index: 8, kind: input, shape index: {}]
  %s9 = inlined_call_operand.hbm [shape: f32[4,768], index: 9, kind: input, shape index: {}]
  %s10 = inlined_call_operand.hbm [shape: f32[2,768], index: 10, kind: output, shape index: {}]
  %s11 = sld [smem:[#allocation0]]
  $region78: #{mobtep_forward.1} parent=0
    _
  %s13 = ssub.s32 1, %s11
  %s14 = scalar_select 0, %s13, %s11
  $region1: #{mobtep_forward.1} parent=0
    #allocation2 [shape = 'u8[4096]{0}', space=vmem, size = 0x1000, scoped, tag = 'input window, operand 3, single buffered']
    #allocation3 [shape = 's32[1]{0}', space=sflag, size = 0x4, scoped, tag = 'scoped memory for mobtep_forward.1']
    #allocation4 [shape = 's32[1]{0}', space=sflag, size = 0x4, scoped, tag = 'scoped memory for mobtep_forward.1']
    #allocation5 [shape = 'u8[512]{0}', space=vmem, size = 0x400, scoped, tag = 'input window, operand 4, single buffered']
    #allocation6 [shape = 's32[1]{0}', space=sflag, size = 0x4, scoped, tag = 'scoped memory for mobtep_forward.1']
    #allocation7 [shape = 'u8[98304]{0}', space=vmem, size = 0x18000, scoped, tag = 'input window, operand 5, single buffered']
    #allocation8 [shape = 'u8[73728]{0}', space=vmem, size = 0x12000, scoped, tag = 'input window, operand 6, single buffered']
    #allocation9 [shape = 's32[1]{0}', space=sflag, size = 0x4, scoped, tag = 'scoped memory for mobtep_forward.1']
    #allocation10 [shape = 'u8[7077888]{0}', space=vmem, size = 0x6c0000, scoped, tag = 'input window, operand 7, single buffered']
    #allocation11 [shape = 'u8[24576]{0}', space=vmem, size = 0x6000, scoped, tag = 'input window, operand 8, single buffered']
    #allocation12 [shape = 's32[1]{0}', space=sflag, size = 0x4, scoped, tag = 'scoped memory for mobtep_forward.1']
    #allocation13 [shape = 'u8[12288]{0}', space=vmem, size = 0x3000, scoped, tag = 'input window, operand 9, single buffered']
    #allocation14 [shape = 'u8[6144]{0}', space=vmem, size = 0x1800, scoped, tag = 'output window, operand 0, single buffered']
    %15 = vsyncpa [#allocation3], 0
    %16 = vsyncpa [#allocation6], 0
    %17 = vsyncpa [#allocation9], 0
    %18 = vsyncpa [#allocation12], 0
    %19 = vsyncpa [#allocation4], 0
    // Predicated region
    $region2: #{mobtep_forward.1} parent=1 // pred_check
      _
    $region3: #{mobtep_forward.1} parent=1 // pred_check_branch
      %21 = sbr.rel (0) target = $region5
    $region4: #{mobtep_forward.1} parent=1 // pred_region
      _
    $region5: #{mobtep_forward.1} parent=1 // pred_fallthru
      _
    // Predicated region
    $region6: #{mobtep_forward.1} parent=1 // pred_check
      _
    $region7: #{mobtep_forward.1} parent=1 // pred_check_branch
      %23 = sbr.rel (0) target = $region9
    $region8: #{mobtep_forward.1} parent=1 // pred_region
      _
    $region9: #{mobtep_forward.1} parent=1 // pred_fallthru
      _
    // Predicated region
    $region10: #{mobtep_forward.1} parent=1 // pred_check
      _
    $region11: #{mobtep_forward.1} parent=1 // pred_check_branch
      %25 = sbr.rel (0) target = $region13
    $region12: #{mobtep_forward.1} parent=1 // pred_region
      _
    $region13: #{mobtep_forward.1} parent=1 // pred_fallthru
      _
    // Predicated region
    $region14: #{mobtep_forward.1} parent=1 // pred_check
      _
    $region15: #{mobtep_forward.1} parent=1 // pred_check_branch
      %27 = sbr.rel (0) target = $region17
    $region16: #{mobtep_forward.1} parent=1 // pred_region
      %s29 = ssub.s32 128, 128
      %30 = vsyncadd [#allocation3], %s29
      %s31 = sshll.u32 [#allocation2], 4
      %s32 = int_to_ptr.vmem [resolvable:$true] %s31
      %37 = dma.hbm_to_vmem [thread:$0]  %s3, 128, %s32, [#allocation3], 64, 64, 4
    $region17: #{mobtep_forward.1} parent=1 // pred_fallthru
      _
    // Predicated region
    $region18: #{mobtep_forward.1} parent=1 // pred_check
      _
    $region19: #{mobtep_forward.1} parent=1 // pred_check_branch
      %39 = sbr.rel (0) target = $region21
    $region20: #{mobtep_forward.1} parent=1 // pred_region
      %s41 = ssub.s32 16, 16
      %42 = vsyncadd [#allocation6], %s41
      %s44 = sshll.u32 [#allocation5], 4
      %s45 = int_to_ptr.vmem [resolvable:$true] %s44
      %47 = dma.hbm_to_vmem [thread:$0]  %s4, 16, %s45, [#allocation6]
    $region21: #{mobtep_forward.1} parent=1 // pred_fallthru
      _
    // Predicated region
    $region22: #{mobtep_forward.1} parent=1 // pred_check
      _
    $region23: #{mobtep_forward.1} parent=1 // pred_check_branch
      %49 = sbr.rel (0) target = $region25
    $region24: #{mobtep_forward.1} parent=1 // pred_region
      %s51 = ssub.s32 3072, 3072
      %52 = vsyncadd [#allocation6], %s51
      %s53 = sshll.u32 [#allocation7], 4
      %s54 = int_to_ptr.vmem [resolvable:$true] %s53
      %59 = dma.hbm_to_vmem [thread:$0]  %s5, 3072, %s54, [#allocation6], 384, 384, 24
    $region25: #{mobtep_forward.1} parent=1 // pred_fallthru
      _
    // Predicated region
    $region26: #{mobtep_forward.1} parent=1 // pred_check
      _
    $region27: #{mobtep_forward.1} parent=1 // pred_check_branch
      %61 = sbr.rel (0) target = $region29
    $region28: #{mobtep_forward.1} parent=1 // pred_region
      %s63 = ssub.s32 2304, 2304
      %64 = vsyncadd [#allocation9], %s63
      %s65 = sshll.u32 [#allocation8], 4
      %s66 = int_to_ptr.vmem [resolvable:$true] %s65
      %71 = dma.hbm_to_vmem [thread:$0]  %s6, 2304, %s66, [#allocation9], 384, 384, 24
    $region29: #{mobtep_forward.1} parent=1 // pred_fallthru
      _
    // Predicated region
    $region30: #{mobtep_forward.1} parent=1 // pred_check
      _
    $region31: #{mobtep_forward.1} parent=1 // pred_check_branch
      %73 = sbr.rel (0) target = $region33
    $region32: #{mobtep_forward.1} parent=1 // pred_region
      %s75 = ssub.s32 221184, 221184
      %76 = vsyncadd [#allocation9], %s75
      %s77 = sshll.u32 [#allocation10], 4
      %s78 = int_to_ptr.vmem [resolvable:$true] %s77
      %83 = dma.hbm_to_vmem [thread:$0]  %s7, 221184, %s78, [#allocation9], 384, 384, 24
    $region33: #{mobtep_forward.1} parent=1 // pred_fallthru
      _
    // Predicated region
    $region34: #{mobtep_forward.1} parent=1 // pred_check
      _
    $region35: #{mobtep_forward.1} parent=1 // pred_check_branch
      %85 = sbr.rel (0) target = $region37
    $region36: #{mobtep_forward.1} parent=1 // pred_region
      %s87 = ssub.s32 768, 768
      %88 = vsyncadd [#allocation12], %s87
      %s89 = sshll.u32 [#allocation11], 4
      %s90 = int_to_ptr.vmem [resolvable:$true] %s89
      %95 = dma.hbm_to_vmem [thread:$0]  %s8, 768, %s90, [#allocation12], 384, 384, 24
    $region37: #{mobtep_forward.1} parent=1 // pred_fallthru
      _
    // Predicated region
    $region38: #{mobtep_forward.1} parent=1 // pred_check
      _
    $region39: #{mobtep_forward.1} parent=1 // pred_check_branch
      %97 = sbr.rel (0) target = $region41
    $region40: #{mobtep_forward.1} parent=1 // pred_region
      %s99 = ssub.s32 384, 384
      %100 = vsyncadd [#allocation12], %s99
      %s102 = sshll.u32 [#allocation13], 4
      %s103 = int_to_ptr.vmem [resolvable:$true] %s102
      %105 = dma.hbm_to_vmem [thread:$0]  %s9, 384, %s103, [#allocation12]
    $region41: #{mobtep_forward.1} parent=1 // pred_fallthru
      _
    // Predicated region
    $region42: #{mobtep_forward.1} parent=1 // pred_check
      _
    $region43: #{mobtep_forward.1} parent=1 // pred_check_branch
      %107 = sbr.rel (0) target = $region45
    $region44: #{mobtep_forward.1} parent=1 // pred_region
      %108 = dma.done [#allocation3], 128
    $region45: #{mobtep_forward.1} parent=1 // pred_fallthru
      _
    // Predicated region
    $region46: #{mobtep_forward.1} parent=1 // pred_check
      _
    $region47: #{mobtep_forward.1} parent=1 // pred_check_branch
      %110 = sbr.rel (0) target = $region49
    $region48: #{mobtep_forward.1} parent=1 // pred_region
      %111 = dma.done [#allocation6], 16
    $region49: #{mobtep_forward.1} parent=1 // pred_fallthru
      _
    // Predicated region
    $region50: #{mobtep_forward.1} parent=1 // pred_check
      _
    $region51: #{mobtep_forward.1} parent=1 // pred_check_branch
      %113 = sbr.rel (0) target = $region53
    $region52: #{mobtep_forward.1} parent=1 // pred_region
      %114 = dma.done [#allocation6], 3072
    $region53: #{mobtep_forward.1} parent=1 // pred_fallthru
      _
    // Predicated region
    $region54: #{mobtep_forward.1} parent=1 // pred_check
      _
    $region55: #{mobtep_forward.1} parent=1 // pred_check_branch
      %116 = sbr.rel (0) target = $region57
    $region56: #{mobtep_forward.1} parent=1 // pred_region
      %117 = dma.done [#allocation9], 2304
    $region57: #{mobtep_forward.1} parent=1 // pred_fallthru
      _
    // Predicated region
    $region58: #{mobtep_forward.1} parent=1 // pred_check
      _
    $region59: #{mobtep_forward.1} parent=1 // pred_check_branch
      %119 = sbr.rel (0) target = $region61
    $region60: #{mobtep_forward.1} parent=1 // pred_region
      %120 = dma.done [#allocation9], 221184
    $region61: #{mobtep_forward.1} parent=1 // pred_fallthru
      _
    // Predicated region
    $region62: #{mobtep_forward.1} parent=1 // pred_check
      _
    $region63: #{mobtep_forward.1} parent=1 // pred_check_branch
      %122 = sbr.rel (0) target = $region65
    $region64: #{mobtep_forward.1} parent=1 // pred_region
      %123 = dma.done [#allocation12], 768
    $region65: #{mobtep_forward.1} parent=1 // pred_fallthru
      _
    // Predicated region
    $region66: #{mobtep_forward.1} parent=1 // pred_check
      _
    $region67: #{mobtep_forward.1} parent=1 // pred_check_branch
      %125 = sbr.rel (0) target = $region69
    $region68: #{mobtep_forward.1} parent=1 // pred_region
      %126 = dma.done [#allocation12], 384
    $region69: #{mobtep_forward.1} parent=1 // pred_fallthru
      _
    %v128 = vld [vmem:[#allocation13] sm:$0xff]
    %v129 = vld [vmem:[#allocation13 + $0x8] sm:$0xff]
    %v130 = vld [vmem:[#allocation13 + $0x10] sm:$0xff]
    %v131 = vld [vmem:[%s0] sm:$0xf]
    %v132 = vld [vmem:[%s0 + $0x4] sm:$0xf]
    %v133 = vld [vmem:[%s0 + $0x8] sm:$0xf]
    %v134 = vld [vmem:[%s0 + $0xc] sm:$0xf]
    %v135 = vld [vmem:[#allocation2] sm:$0xf]
    %v136 = vld [vmem:[#allocation2 + $0x4] sm:$0x3]
    %v137 = vld [vmem:[#allocation5] sm:$0x1]
    %v139 = vlaneseq
    %v140 = vshrl.u32 %v139, 7
    %v141 = vsub.s32 0, %v140
    %v142 = vrot.slane %v137, %v141
    %v148 = vunpack.c.l.b16 %v131
    %v149 = vunpack.c.l.b16 %v132
    %v150 = vunpack.c.l.b16 %v133
    %v151 = vunpack.c.l.b16 %v134
    %v152 = vpack.c.b16 %v149, %v148
    %v153 = vpack.c.b16 %v151, %v150
    %v156 = vunpack.c.l.b16 %v135
    %v157 = vunpack.c.l.b16 %v136
    %v158 = vpack.c.b16 %v157, %v156
    %vm159 = vcmask 97280
    %v161 = vsel %vm159, %v152, 0
    %v164 = vsel %vm159, %v153, 0
    %vm166 = vcmask 1045504
    %v168 = vsel %vm166, %v158, 0
    %170 = vmatprep.subr.bf16.mxu0 0
    %171 = vmatpush1.bf16.msra.mxu0 %v168
    %172 = vmatprep.subr.bf16.mxu0 0
    %173 = vmatpush1.bf16.msra.mxu0 0
    %174 = vmatprep.subr.bf16.mxu0 0
    %175 = vmatpush1.bf16.msra.mxu0 0
    %176 = vmatprep.subr.bf16.mxu0 0
    %177 = vmatpush1.bf16.msra.mxu0 0
    %178 = vmatprep.subr.bf16.mxu0 0
    %179 = vmatpush1.bf16.msra.mxu0 0
    %180 = vmatprep.subr.bf16.mxu0 0
    %181 = vmatpush1.bf16.msra.mxu0 0
    %182 = vmatprep.subr.bf16.mxu0 0
    %183 = vmatpush1.bf16.msra.mxu0 0
    %184 = vmatprep.subr.bf16.mxu0 0
    %185 = vmatpush1.bf16.msra.mxu0 0
    %186 = vmatprep.subr.bf16.mxu0 0
    %187 = vmatpush1.bf16.msra.mxu0 0
    %188 = vmatprep.subr.bf16.mxu0 0
    %189 = vmatpush1.bf16.msra.mxu0 0
    %190 = vmatprep.subr.bf16.mxu0 0
    %191 = vmatpush1.bf16.msra.mxu0 0
    %192 = vmatprep.subr.bf16.mxu0 0
    %193 = vmatpush1.bf16.msra.mxu0 0
    %194 = vmatprep.subr.bf16.mxu0 0
    %195 = vmatpush1.bf16.msra.mxu0 0
    %196 = vmatprep.subr.bf16.mxu0 0
    %197 = vmatpush1.bf16.msra.mxu0 0
    %198 = vmatprep.subr.bf16.mxu0 0
    %199 = vmatpush1.bf16.msra.mxu0 0
    %200 = vmatprep.subr.bf16.mxu0 0
    %201 = vmatpush1.bf16.msra.mxu0 0
    %202 = vmatprep.mubr.bf16.mxu0 0
    %203 = vmatmul.mubr.bf16.gmra.mrb[0].mxu0 %v161
    %v204 = vpop.f32.mrb[0].mxu0
    %v205 = vadd.f32 %v142, %v204
    %v206 = vpop.f32.mrb[0].mxu0
    %v207 = vpop.f32.mrb[0].mxu0
    %v208 = vadd.f32 %v142, %v207
    %v209 = vpop.f32.mrb[0].mxu0
    %210 = vmatprep.mubr.bf16.mxu0 0
    %211 = vmatmul.mubr.bf16.gmra.mrb[0].mxu0 %v164
    %v212 = vpop.f32.mrb[0].mxu0
    %v213 = vadd.f32 %v142, %v212
    %v214 = vpop.f32.mrb[0].mxu0
    %v215 = vpop.f32.mrb[0].mxu0
    %v216 = vadd.f32 %v142, %v215
    %v217 = vpop.f32.mrb[0].mxu0
    %218 = vdwg.mxu0
    %v219 = vlaneseq
    %v220 = vshrl.u32 %v219, 7
    %v221 = vlaneseq
    %v222 = vand.u32 %v221, 127
    %v223 = vmul.u32 %v220, 16
    %vm224 = vcmp.ge.s32.totalorder %v222, %v223
    %v225 = vadd.s32 %v223, 16
    %vm226 = vcmp.lt.s32.totalorder %v222, %v225
    %vm227 = vmand %vm224, %vm226
    %v228 = vsel %vm227, 0.0625, 0.0
    %v229 = vpack.c.bf16 %v228, %v228
    %v230 = vmax.f32 %v205, 0.0
    %v231 = vmax.f32 %v208, 0.0
    %v232 = vmax.f32 %v213, 0.0
    %v233 = vmax.f32 %v216, 0.0
    %v234 = vpack.c.bf16 %v231, %v230
    %v235 = vpack.c.bf16 %v233, %v232
    %vm236 = vcmask 261120
    %v238 = vsel %vm236, %v229, 0
    %240 = vmatprep.subr.bf16.mxu0 0
    %241 = vmatpush1.bf16.msra.mxu0 %v234
    %242 = vmatprep.subr.bf16.mxu0 0
    %243 = vmatpush1.bf16.msra.mxu0 %v235
    %244 = vmatprep.subr.bf16.mxu0 0
    %245 = vmatpush1.bf16.msra.mxu0 0
    %246 = vmatprep.subr.bf16.mxu0 0
    %247 = vmatpush1.bf16.msra.mxu0 0
    %248 = vmatprep.subr.bf16.mxu0 0
    %249 = vmatpush1.bf16.msra.mxu0 0
    %250 = vmatprep.subr.bf16.mxu0 0
    %251 = vmatpush1.bf16.msra.mxu0 0
    %252 = vmatprep.subr.bf16.mxu0 0
    %253 = vmatpush1.bf16.msra.mxu0 0
    %254 = vmatprep.subr.bf16.mxu0 0
    %255 = vmatpush1.bf16.msra.mxu0 0
    %256 = vmatprep.subr.bf16.mxu0 0
    %257 = vmatpush1.bf16.msra.mxu0 0
    %258 = vmatprep.subr.bf16.mxu0 0
    %259 = vmatpush1.bf16.msra.mxu0 0
    %260 = vmatprep.subr.bf16.mxu0 0
    %261 = vmatpush1.bf16.msra.mxu0 0
    %262 = vmatprep.subr.bf16.mxu0 0
    %263 = vmatpush1.bf16.msra.mxu0 0
    %264 = vmatprep.subr.bf16.mxu0 0
    %265 = vmatpush1.bf16.msra.mxu0 0
    %266 = vmatprep.subr.bf16.mxu0 0
    %267 = vmatpush1.bf16.msra.mxu0 0
    %268 = vmatprep.subr.bf16.mxu0 0
    %269 = vmatpush1.bf16.msra.mxu0 0
    %270 = vmatprep.subr.bf16.mxu0 0
    %271 = vmatpush1.bf16.msra.mxu0 0
    %272 = vmatprep.mubr.bf16.mxu0 0
    %273 = vmatmul.mubr.bf16.gmra.mrb[0].mxu0 %v238
    %v274 = vpop.f32.mrb[0].mxu0
    %v275 = vadd.f32 0.0, %v274
    %v276 = vpop.f32.mrb[0].mxu0
    %v277 = vpop.f32.mrb[0].mxu0
    %v278 = vpop.f32.mrb[0].mxu0
    %279 = vdwg.mxu0
    %v280 = vld [vmem:[%s1] sm:$0xff]
    %v281 = vld [vmem:[%s1 + $0x8] sm:$0xff]
    %v282 = vld [vmem:[%s1 + $0x10] sm:$0xff]
    %v283 = vld [vmem:[%s1 + $0x18] sm:$0xff]
    %v284 = vld [vmem:[%s1 + $0x20] sm:$0xff]
    %v285 = vld [vmem:[%s1 + $0x28] sm:$0xff]
    %v286 = vld [vmem:[#allocation10] sm:$0xff]
    %v287 = vld [vmem:[#allocation10 + $0x8] sm:$0xff]
    %v288 = vld [vmem:[#allocation10 + $0x10] sm:$0xff]
    %v289 = vld [vmem:[#allocation10 + $0x18] sm:$0xff]
    %v290 = vld [vmem:[#allocation10 + $0x20] sm:$0xff]
    %v291 = vld [vmem:[#allocation10 + $0x28] sm:$0xff]
    %v292 = vld [vmem:[#allocation10 + $0x30] sm:$0xff]
    %v293 = vld [vmem:[#allocation10 + $0x38] sm:$0xff]
    %v294 = vld [vmem:[#allocation10 + $0x40] sm:$0xff]
    %v295 = vld [vmem:[#allocation10 + $0x48] sm:$0xff]
    %v296 = vld [vmem:[#allocation10 + $0x50] sm:$0xff]
    %v297 = vld [vmem:[#allocation10 + $0x58] sm:$0xff]
    %v298 = vld [vmem:[#allocation10 + $0x60] sm:$0xff]
    %v299 = vld [vmem:[#allocation10 + $0x68] sm:$0xff]
    %v300 = vld [vmem:[#allocation10 + $0x70] sm:$0xff]
    %v301 = vld [vmem:[#allocation10 + $0x78] sm:$0xff]
    %v302 = vld [vmem:[#allocation10 + $0x80] sm:$0xff]
    %v303 = vld [vmem:[#allocation10 + $0x88] sm:$0xff]
    %v304 = vld [vmem:[#allocation10 + $0x90] sm:$0xff]
    %v305 = vld [vmem:[#allocation10 + $0x98] sm:$0xff]
    %v306 = vld [vmem:[#allocation10 + $0xa0] sm:$0xff]
    %v307 = vld [vmem:[#allocation10 + $0xa8] sm:$0xff]
    %v308 = vld [vmem:[#allocation10 + $0xb0] sm:$0xff]
    %v309 = vld [vmem:[#allocation10 + $0xb8] sm:$0xff]
    %v310 = vld [vmem:[#allocation10 + $0xc0] sm:$0xff]
    %v311 = vld [vmem:[#allocation10 + $0xc8] sm:$0xff]
    %v312 = vld [vmem:[#allocation10 + $0xd0] sm:$0xff]
    %v313 = vld [vmem:[#allocation10 + $0xd8] sm:$0xff]
    %v314 = vld [vmem:[#allocation10 + $0xe0] sm:$0xff]
    %v315 = vld [vmem:[#allocation10 + $0xe8] sm:$0xff]
    %v316 = vld [vmem:[#allocation10 + $0xf0] sm:$0xff]
    %v317 = vld [vmem:[#allocation10 + $0xf8] sm:$0xff]
    %v318 = vld [vmem:[#allocation10 + $0x100] sm:$0xff]
    %v319 = vld [vmem:[#allocation10 + $0x108] sm:$0xff]
    %v320 = vld [vmem:[#allocation10 + $0x110] sm:$0xff]
    %v321 = vld [vmem:[#allocation10 + $0x118] sm:$0xff]
    %v322 = vld [vmem:[#allocation10 + $0x120] sm:$0xff]
    %v323 = vld [vmem:[#allocation10 + $0x128] sm:$0xff]
    %v324 = vld [vmem:[#allocation10 + $0x130] sm:$0xff]
    %v325 = vld [vmem:[#allocation10 + $0x138] sm:$0xff]
    %v326 = vld [vmem:[#allocation10 + $0x140] sm:$0xff]
    %v327 = vld [vmem:[#allocation10 + $0x148] sm:$0xff]
    %v328 = vld [vmem:[#allocation10 + $0x150] sm:$0xff]
    %v329 = vld [vmem:[#allocation10 + $0x158] sm:$0xff]
    %v330 = vld [vmem:[#allocation10 + $0x160] sm:$0xff]
    %v331 = vld [vmem:[#allocation10 + $0x168] sm:$0xff]
    %v332 = vld [vmem:[#allocation10 + $0x170] sm:$0xff]
    %v333 = vld [vmem:[#allocation10 + $0x178] sm:$0xff]
    %v334 = vld [vmem:[#allocation10 + $0x180] sm:$0xff]
    %v335 = vld [vmem:[#allocation10 + $0x188] sm:$0xff]
    %v336 = vld [vmem:[#allocation10 + $0x190] sm:$0xff]
    %v337 = vld [vmem:[#allocation10 + $0x198] sm:$0xff]
    %v338 = vld [vmem:[#allocation10 + $0x1a0] sm:$0xff]
    %v339 = vld [vmem:[#allocation10 + $0x1a8] sm:$0xff]
    %v340 = vld [vmem:[#allocation10 + $0x1b0] sm:$0xff]
    %v341 = vld [vmem:[#allocation10 + $0x1b8] sm:$0xff]
    %v342 = vld [vmem:[#allocation10 + $0x1c0] sm:$0xff]
    %v343 = vld [vmem:[#allocation10 + $0x1c8] sm:$0xff]
    %v344 = vld [vmem:[#allocation10 + $0x1d0] sm:$0xff]
    %v345 = vld [vmem:[#allocation10 + $0x1d8] sm:$0xff]
    %v346 = vld [vmem:[#allocation10 + $0x1e0] sm:$0xff]
    %v347 = vld [vmem:[#allocation10 + $0x1e8] sm:$0xff]
    %v348 = vld [vmem:[#allocation10 + $0x1f0] sm:$0xff]
    %v349 = vld [vmem:[#allocation10 + $0x1f8] sm:$0xff]
    %v350 = vld [vmem:[#allocation10 + $0x200] sm:$0xff]
    %v351 = vld [vmem:[#allocation10 + $0x208] sm:$0xff]
    %v352 = vld [vmem:[#allocation10 + $0x210] sm:$0xff]
    %v353 = vld [vmem:[#allocation10 + $0x218] sm:$0xff]
    %v354 = vld [vmem:[#allocation10 + $0x220] sm:$0xff]
    %v355 = vld [vmem:[#allocation10 + $0x228] sm:$0xff]
    %v356 = vld [vmem:[#allocation10 + $0x230] sm:$0xff]
    %v357 = vld [vmem:[#allocation10 + $0x238] sm:$0xff]
    %v358 = vld [vmem:[#allocation10 + $0x240] sm:$0xff]
    %v359 = vld [vmem:[#allocation10 + $0x248] sm:$0xff]
    %v360 = vld [vmem:[#allocation10 + $0x250] sm:$0xff]
    %v361 = vld [vmem:[#allocation10 + $0x258] sm:$0xff]
    %v362 = vld [vmem:[#allocation10 + $0x260] sm:$0xff]
    %v363 = vld [vmem:[#allocation10 + $0x268] sm:$0xff]
    %v364 = vld [vmem:[#allocation10 + $0x270] sm:$0xff]
    %v365 = vld [vmem:[#allocation10 + $0x278] sm:$0xff]
    %v366 = vld [vmem:[#allocation10 + $0x280] sm:$0xff]
    %v367 = vld [vmem:[#allocation10 + $0x288] sm:$0xff]
    %v368 = vld [vmem:[#allocation10 + $0x290] sm:$0xff]
    %v369 = vld [vmem:[#allocation10 + $0x298] sm:$0xff]
    %v370 = vld [vmem:[#allocation10 + $0x2a0] sm:$0xff]
    %v371 = vld [vmem:[#allocation10 + $0x2a8] sm:$0xff]
    %v372 = vld [vmem:[#allocation10 + $0x2b0] sm:$0xff]
    %v373 = vld [vmem:[#allocation10 + $0x2b8] sm:$0xff]
    %v374 = vld [vmem:[#allocation10 + $0x2c0] sm:$0xff]
    %v375 = vld [vmem:[#allocation10 + $0x2c8] sm:$0xff]
    %v376 = vld [vmem:[#allocation10 + $0x2d0] sm:$0xff]
    %v377 = vld [vmem:[#allocation10 + $0x2d8] sm:$0xff]
    %v378 = vld [vmem:[#allocation10 + $0x2e0] sm:$0xff]
    %v379 = vld [vmem:[#allocation10 + $0x2e8] sm:$0xff]
    %v380 = vld [vmem:[#allocation10 + $0x2f0] sm:$0xff]
    %v381 = vld [vmem:[#allocation10 + $0x2f8] sm:$0xff]
    %v382 = vld [vmem:[#allocation10 + $0x300] sm:$0xff]
    %v383 = vld [vmem:[#allocation10 + $0x308] sm:$0xff]
    %v384 = vld [vmem:[#allocation10 + $0x310] sm:$0xff]
    %v385 = vld [vmem:[#allocation10 + $0x318] sm:$0xff]
    %v386 = vld [vmem:[#allocation10 + $0x320] sm:$0xff]
    %v387 = vld [vmem:[#allocation10 + $0x328] sm:$0xff]
    %v388 = vld [vmem:[#allocation10 + $0x330] sm:$0xff]
    %v389 = vld [vmem:[#allocation10 + $0x338] sm:$0xff]
    %v390 = vld [vmem:[#allocation10 + $0x340] sm:$0xff]
    %v391 = vld [vmem:[#allocation10 + $0x348] sm:$0xff]
    %v392 = vld [vmem:[#allocation10 + $0x350] sm:$0xff]
    %v393 = vld [vmem:[#allocation10 + $0x358] sm:$0xff]
    %v394 = vld [vmem:[#allocation10 + $0x360] sm:$0xff]
    %v395 = vld [vmem:[#allocation10 + $0x368] sm:$0xff]
    %v396 = vld [vmem:[#allocation10 + $0x370] sm:$0xff]
    %v397 = vld [vmem:[#allocation10 + $0x378] sm:$0xff]
    %v398 = vld [vmem:[#allocation10 + $0x380] sm:$0xff]
    %v399 = vld [vmem:[#allocation10 + $0x388] sm:$0xff]
    %v400 = vld [vmem:[#allocation10 + $0x390] sm:$0xff]
    %v401 = vld [vmem:[#allocation10 + $0x398] sm:$0xff]
    %v402 = vld [vmem:[#allocation10 + $0x3a0] sm:$0xff]
    %v403 = vld [vmem:[#allocation10 + $0x3a8] sm:$0xff]
    %v404 = vld [vmem:[#allocation10 + $0x3b0] sm:$0xff]
    %v405 = vld [vmem:[#allocation10 + $0x3b8] sm:$0xff]
    %v406 = vld [vmem:[#allocation10 + $0x3c0] sm:$0xff]
    %v407 = vld [vmem:[#allocation10 + $0x3c8] sm:$0xff]
    %v408 = vld [vmem:[#allocation10 + $0x3d0] sm:$0xff]
    %v409 = vld [vmem:[#allocation10 + $0x3d8] sm:$0xff]
    %v410 = vld [vmem:[#allocation10 + $0x3e0] sm:$0xff]
    %v411 = vld [vmem:[#allocation10 + $0x3e8] sm:$0xff]
    %v412 = vld [vmem:[#allocation10 + $0x3f0] sm:$0xff]
    %v413 = vld [vmem:[#allocation10 + $0x3f8] sm:$0xff]
    %v414 = vld [vmem:[#allocation10 + $0x400] sm:$0xff]
    %v415 = vld [vmem:[#allocation10 + $0x408] sm:$0xff]
    %v416 = vld [vmem:[#allocation10 + $0x410] sm:$0xff]
    %v417 = vld [vmem:[#allocation10 + $0x418] sm:$0xff]
    %v418 = vld [vmem:[#allocation10 + $0x420] sm:$0xff]
    %v419 = vld [vmem:[#allocation10 + $0x428] sm:$0xff]
    %v420 = vld [vmem:[#allocation10 + $0x430] sm:$0xff]
    %v421 = vld [vmem:[#allocation10 + $0x438] sm:$0xff]
    %v422 = vld [vmem:[#allocation10 + $0x440] sm:$0xff]
    %v423 = vld [vmem:[#allocation10 + $0x448] sm:$0xff]
    %v424 = vld [vmem:[#allocation10 + $0x450] sm:$0xff]
    %v425 = vld [vmem:[#allocation10 + $0x458] sm:$0xff]
    %v426 = vld [vmem:[#allocation10 + $0x460] sm:$0xff]
    %v427 = vld [vmem:[#allocation10 + $0x468] sm:$0xff]
    %v428 = vld [vmem:[#allocation10 + $0x470] sm:$0xff]
    %v429 = vld [vmem:[#allocation10 + $0x478] sm:$0xff]
    %v430 = vld [vmem:[#allocation10 + $0x480] sm:$0xff]
    %v431 = vld [vmem:[#allocation10 + $0x488] sm:$0xff]
    %v432 = vld [vmem:[#allocation10 + $0x490] sm:$0xff]
    %v433 = vld [vmem:[#allocation10 + $0x498] sm:$0xff]
    %v434 = vld [vmem:[#allocation10 + $0x4a0] sm:$0xff]
    %v435 = vld [vmem:[#allocation10 + $0x4a8] sm:$0xff]
    %v436 = vld [vmem:[#allocation10 + $0x4b0] sm:$0xff]
    %v437 = vld [vmem:[#allocation10 + $0x4b8] sm:$0xff]
    %v438 = vld [vmem:[#allocation10 + $0x4c0] sm:$0xff]
    %v439 = vld [vmem:[#allocation10 + $0x4c8] sm:$0xff]
    %v440 = vld [vmem:[#allocation10 + $0x4d0] sm:$0xff]
    %v441 = vld [vmem:[#allocation10 + $0x4d8] sm:$0xff]
    %v442 = vld [vmem:[#allocation10 + $0x4e0] sm:$0xff]
    %v443 = vld [vmem:[#allocation10 + $0x4e8] sm:$0xff]
    %v444 = vld [vmem:[#allocation10 + $0x4f0] sm:$0xff]
    %v445 = vld [vmem:[#allocation10 + $0x4f8] sm:$0xff]
    %v446 = vld [vmem:[#allocation10 + $0x500] sm:$0xff]
    %v447 = vld [vmem:[#allocation10 + $0x508] sm:$0xff]
    %v448 = vld [vmem:[#allocation10 + $0x510] sm:$0xff]
    %v449 = vld [vmem:[#allocation10 + $0x518] sm:$0xff]
    %v450 = vld [vmem:[#allocation10 + $0x520] sm:$0xff]
    %v451 = vld [vmem:[#allocation10 + $0x528] sm:$0xff]
    %v452 = vld [vmem:[#allocation10 + $0x530] sm:$0xff]
    %v453 = vld [vmem:[#allocation10 + $0x538] sm:$0xff]
    %v454 = vld [vmem:[#allocation10 + $0x540] sm:$0xff]
    %v455 = vld [vmem:[#allocation10 + $0x548] sm:$0xff]
    %v456 = vld [vmem:[#allocation10 + $0x550] sm:$0xff]
    %v457 = vld [vmem:[#allocation10 + $0x558] sm:$0xff]
    %v458 = vld [vmem:[#allocation10 + $0x560] sm:$0xff]
    %v459 = vld [vmem:[#allocation10 + $0x568] sm:$0xff]
    %v460 = vld [vmem:[#allocation10 + $0x570] sm:$0xff]
    %v461 = vld [vmem:[#allocation10 + $0x578] sm:$0xff]
    %v462 = vld [vmem:[#allocation10 + $0x580] sm:$0xff]
    %v463 = vld [vmem:[#allocation10 + $0x588] sm:$0xff]
    %v464 = vld [vmem:[#allocation10 + $0x590] sm:$0xff]
    %v465 = vld [vmem:[#allocation10 + $0x598] sm:$0xff]
    %v466 = vld [vmem:[#allocation10 + $0x5a0] sm:$0xff]
    %v467 = vld [vmem:[#allocation10 + $0x5a8] sm:$0xff]
    %v468 = vld [vmem:[#allocation10 + $0x5b0] sm:$0xff]
    %v469 = vld [vmem:[#allocation10 + $0x5b8] sm:$0xff]
    %v470 = vld [vmem:[#allocation10 + $0x5c0] sm:$0xff]
    %v471 = vld [vmem:[#allocation10 + $0x5c8] sm:$0xff]
    %v472 = vld [vmem:[#allocation10 + $0x5d0] sm:$0xff]
    %v473 = vld [vmem:[#allocation10 + $0x5d8] sm:$0xff]
    %v474 = vld [vmem:[#allocation10 + $0x5e0] sm:$0xff]
    %v475 = vld [vmem:[#allocation10 + $0x5e8] sm:$0xff]
    %v476 = vld [vmem:[#allocation10 + $0x5f0] sm:$0xff]
    %v477 = vld [vmem:[#allocation10 + $0x5f8] sm:$0xff]
    %v478 = vld [vmem:[#allocation10 + $0x600] sm:$0xff]
    %v479 = vld [vmem:[#allocation10 + $0x608] sm:$0xff]
    %v480 = vld [vmem:[#allocation10 + $0x610] sm:$0xff]
    %v481 = vld [vmem:[#allocation10 + $0x618] sm:$0xff]
    %v482 = vld [vmem:[#allocation10 + $0x620] sm:$0xff]
    %v483 = vld [vmem:[#allocation10 + $0x628] sm:$0xff]
    %v484 = vld [vmem:[#allocation10 + $0x630] sm:$0xff]
    %v485 = vld [vmem:[#allocation10 + $0x638] sm:$0xff]
    %v486 = vld [vmem:[#allocation10 + $0x640] sm:$0xff]
    %v487 = vld [vmem:[#allocation10 + $0x648] sm:$0xff]
    %v488 = vld [vmem:[#allocation10 + $0x650] sm:$0xff]
    %v489 = vld [vmem:[#allocation10 + $0x658] sm:$0xff]
    %v490 = vld [vmem:[#allocation10 + $0x660] sm:$0xff]
    %v491 = vld [vmem:[#allocation10 + $0x668] sm:$0xff]
    %v492 = vld [vmem:[#allocation10 + $0x670] sm:$0xff]
    %v493 = vld [vmem:[#allocation10 + $0x678] sm:$0xff]
    %v494 = vld [vmem:[#allocation10 + $0x680] sm:$0xff]
    %v495 = vld [vmem:[#allocation10 + $0x688] sm:$0xff]
    %v496 = vld [vmem:[#allocation10 + $0x690] sm:$0xff]
    %v497 = vld [vmem:[#allocation10 + $0x698] sm:$0xff]
    %v498 = vld [vmem:[#allocation10 + $0x6a0] sm:$0xff]
    %v499 = vld [vmem:[#allocation10 + $0x6a8] sm:$0xff]
    %v500 = vld [vmem:[#allocation10 + $0x6b0] sm:$0xff]
    %v501 = vld [vmem:[#allocation10 + $0x6b8] sm:$0xff]
    %v502 = vld [vmem:[#allocation10 + $0x6c0] sm:$0xff]
    %v503 = vld [vmem:[#allocation10 + $0x6c8] sm:$0xff]
    %v504 = vld [vmem:[#allocation10 + $0x6d0] sm:$0xff]
    %v505 = vld [vmem:[#allocation10 + $0x6d8] sm:$0xff]
    %v506 = vld [vmem:[#allocation10 + $0x6e0] sm:$0xff]
    %v507 = vld [vmem:[#allocation10 + $0x6e8] sm:$0xff]
    %v508 = vld [vmem:[#allocation10 + $0x6f0] sm:$0xff]
    %v509 = vld [vmem:[#allocation10 + $0x6f8] sm:$0xff]
    %v510 = vld [vmem:[#allocation10 + $0x700] sm:$0xff]
    %v511 = vld [vmem:[#allocation10 + $0x708] sm:$0xff]
    %v512 = vld [vmem:[#allocation10 + $0x710] sm:$0xff]
    %v513 = vld [vmem:[#allocation10 + $0x718] sm:$0xff]
    %v514 = vld [vmem:[#allocation10 + $0x720] sm:$0xff]
    %v515 = vld [vmem:[#allocation10 + $0x728] sm:$0xff]
    %v516 = vld [vmem:[#allocation10 + $0x730] sm:$0xff]
    %v517 = vld [vmem:[#allocation10 + $0x738] sm:$0xff]
    %v518 = vld [vmem:[#allocation10 + $0x740] sm:$0xff]
    %v519 = vld [vmem:[#allocation10 + $0x748] sm:$0xff]
    %v520 = vld [vmem:[#allocation10 + $0x750] sm:$0xff]
    %v521 = vld [vmem:[#allocation10 + $0x758] sm:$0xff]
    %v522 = vld [vmem:[#allocation10 + $0x760] sm:$0xff]
    %v523 = vld [vmem:[#allocation10 + $0x768] sm:$0xff]
    %v524 = vld [vmem:[#allocation10 + $0x770] sm:$0xff]
    %v525 = vld [vmem:[#allocation10 + $0x778] sm:$0xff]
    %v526 = vld [vmem:[#allocation10 + $0x780] sm:$0xff]
    %v527 = vld [vmem:[#allocation10 + $0x788] sm:$0xff]
    %v528 = vld [vmem:[#allocation10 + $0x790] sm:$0xff]
    %v529 = vld [vmem:[#allocation10 + $0x798] sm:$0xff]
    %v530 = vld [vmem:[#allocation10 + $0x7a0] sm:$0xff]
    %v531 = vld [vmem:[#allocation10 + $0x7a8] sm:$0xff]
    %v532 = vld [vmem:[#allocation10 + $0x7b0] sm:$0xff]
    %v533 = vld [vmem:[#allocation10 + $0x7b8] sm:$0xff]
    %v534 = vld [vmem:[#allocation10 + $0x7c0] sm:$0xff]
    %v535 = vld [vmem:[#allocation10 + $0x7c8] sm:$0xff]
    %v536 = vld [vmem:[#allocation10 + $0x7d0] sm:$0xff]
    %v537 = vld [vmem:[#allocation10 + $0x7d8] sm:$0xff]
    %v538 = vld [vmem:[#allocation10 + $0x7e0] sm:$0xff]
    %v539 = vld [vmem:[#allocation10 + $0x7e8] sm:$0xff]
    %v540 = vld [vmem:[#allocation10 + $0x7f0] sm:$0xff]
    %v541 = vld [vmem:[#allocation10 + $0x7f8] sm:$0xff]
    %v542 = vld [vmem:[#allocation10 + $0x800] sm:$0xff]
    %v543 = vld [vmem:[#allocation10 + $0x808] sm:$0xff]
    %v544 = vld [vmem:[#allocation10 + $0x810] sm:$0xff]
    %v545 = vld [vmem:[#allocation10 + $0x818] sm:$0xff]
    %v546 = vld [vmem:[#allocation10 + $0x820] sm:$0xff]
    %v547 = vld [vmem:[#allocation10 + $0x828] sm:$0xff]
    %v548 = vld [vmem:[#allocation10 + $0x830] sm:$0xff]
    %v549 = vld [vmem:[#allocation10 + $0x838] sm:$0xff]
    %v550 = vld [vmem:[#allocation10 + $0x840] sm:$0xff]
    %v551 = vld [vmem:[#allocation10 + $0x848] sm:$0xff]
    %v552 = vld [vmem:[#allocation10 + $0x850] sm:$0xff]
    %v553 = vld [vmem:[#allocation10 + $0x858] sm:$0xff]
    %v554 = vld [vmem:[#allocation10 + $0x860] sm:$0xff]
    %v555 = vld [vmem:[#allocation10 + $0x868] sm:$0xff]
    %v556 = vld [vmem:[#allocation10 + $0x870] sm:$0xff]
    %v557 = vld [vmem:[#allocation10 + $0x878] sm:$0xff]
    %v558 = vld [vmem:[#allocation10 + $0x880] sm:$0xff]
    %v559 = vld [vmem:[#allocation10 + $0x888] sm:$0xff]
    %v560 = vld [vmem:[#allocation10 + $0x890] sm:$0xff]
    %v561 = vld [vmem:[#allocation10 + $0x898] sm:$0xff]
    %v562 = vld [vmem:[#allocation10 + $0x8a0] sm:$0xff]
    %v563 = vld [vmem:[#allocation10 + $0x8a8] sm:$0xff]
    %v564 = vld [vmem:[#allocation10 + $0x8b0] sm:$0xff]
    %v565 = vld [vmem:[#allocation10 + $0x8b8] sm:$0xff]
    %v566 = vld [vmem:[#allocation10 + $0x8c0] sm:$0xff]
    %v567 = vld [vmem:[#allocation10 + $0x8c8] sm:$0xff]
    %v568 = vld [vmem:[#allocation10 + $0x8d0] sm:$0xff]
    %v569 = vld [vmem:[#allocation10 + $0x8d8] sm:$0xff]
    %v570 = vld [vmem:[#allocation10 + $0x8e0] sm:$0xff]
    %v571 = vld [vmem:[#allocation10 + $0x8e8] sm:$0xff]
    %v572 = vld [vmem:[#allocation10 + $0x8f0] sm:$0xff]
    %v573 = vld [vmem:[#allocation10 + $0x8f8] sm:$0xff]
    %v577 = vlaneseq
    %v578 = vshrl.u32 %v577, 7
    %v579 = vsub.s32 0, %v578
    %v580 = vrot.slane %v128, %v579
    %v581 = vlaneseq
    %v582 = vshrl.u32 %v581, 7
    %v583 = vsub.s32 4, %v582
    %v584 = vrot.slane %v128, %v583
    %v585 = vlaneseq
    %v586 = vshrl.u32 %v585, 7
    %v587 = vsub.s32 0, %v586
    %v588 = vrot.slane %v129, %v587
    %v589 = vlaneseq
    %v590 = vshrl.u32 %v589, 7
    %v591 = vsub.s32 4, %v590
    %v592 = vrot.slane %v129, %v591
    %v593 = vlaneseq
    %v594 = vshrl.u32 %v593, 7
    %v595 = vsub.s32 0, %v594
    %v596 = vrot.slane %v130, %v595
    %v597 = vlaneseq
    %v598 = vshrl.u32 %v597, 7
    %v599 = vsub.s32 4, %v598
    %v600 = vrot.slane %v130, %v599
    %v607 = vlaneseq
    %v608 = vshrl.u32 %v607, 7
    %v609 = vsub.s32 0, %v608
    %v610 = vrot.slane %v580, %v609
    %v611 = vlaneseq
    %v612 = vshrl.u32 %v611, 7
    %v613 = vsub.s32 0, %v612
    %v614 = vrot.slane %v584, %v613
    %v615 = vlaneseq
    %v616 = vshrl.u32 %v615, 7
    %v617 = vsub.s32 0, %v616
    %v618 = vrot.slane %v588, %v617
    %v619 = vlaneseq
    %v620 = vshrl.u32 %v619, 7
    %v621 = vsub.s32 0, %v620
    %v622 = vrot.slane %v592, %v621
    %v623 = vlaneseq
    %v624 = vshrl.u32 %v623, 7
    %v625 = vsub.s32 0, %v624
    %v626 = vrot.slane %v596, %v625
    %v627 = vlaneseq
    %v628 = vshrl.u32 %v627, 7
    %v629 = vsub.s32 0, %v628
    %v630 = vrot.slane %v600, %v629
    %v637 = vunpack.c.l.b16 %v280
    %v638 = vunpack.c.h.b16 %v280
    %v639 = vunpack.c.l.b16 %v281
    %v640 = vunpack.c.h.b16 %v281
    %v641 = vunpack.c.l.b16 %v282
    %v642 = vunpack.c.h.b16 %v282
    %v643 = vunpack.c.l.b16 %v283
    %v644 = vunpack.c.h.b16 %v283
    %v645 = vunpack.c.l.b16 %v284
    %v646 = vunpack.c.h.b16 %v284
    %v647 = vunpack.c.l.b16 %v285
    %v648 = vunpack.c.h.b16 %v285
    %v649 = vpack.c.b16 %v643, %v637
    %v650 = vpack.c.b16 %v644, %v638
    %v651 = vpack.c.b16 %v645, %v639
    %v652 = vpack.c.b16 %v646, %v640
    %v653 = vpack.c.b16 %v647, %v641
    %v654 = vpack.c.b16 %v648, %v642
    %v949 = vunpack.c.l.b16 %v286
    %v950 = vunpack.c.h.b16 %v286
    %v951 = vunpack.c.l.b16 %v287
    %v952 = vunpack.c.h.b16 %v287
    %v953 = vunpack.c.l.b16 %v288
    %v954 = vunpack.c.h.b16 %v288
    %v955 = vunpack.c.l.b16 %v289
    %v956 = vunpack.c.h.b16 %v289
    %v957 = vunpack.c.l.b16 %v290
    %v958 = vunpack.c.h.b16 %v290
    %v959 = vunpack.c.l.b16 %v291
    %v960 = vunpack.c.h.b16 %v291
    %v961 = vunpack.c.l.b16 %v292
    %v962 = vunpack.c.h.b16 %v292
    %v963 = vunpack.c.l.b16 %v293
    %v964 = vunpack.c.h.b16 %v293
    %v965 = vunpack.c.l.b16 %v294
    %v966 = vunpack.c.h.b16 %v294
    %v967 = vunpack.c.l.b16 %v295
    %v968 = vunpack.c.h.b16 %v295
    %v969 = vunpack.c.l.b16 %v296
    %v970 = vunpack.c.h.b16 %v296
    %v971 = vunpack.c.l.b16 %v297
    %v972 = vunpack.c.h.b16 %v297
    %v973 = vunpack.c.l.b16 %v298
    %v974 = vunpack.c.h.b16 %v298
    %v975 = vunpack.c.l.b16 %v299
    %v976 = vunpack.c.h.b16 %v299
    %v977 = vunpack.c.l.b16 %v300
    %v978 = vunpack.c.h.b16 %v300
    %v979 = vunpack.c.l.b16 %v301
    %v980 = vunpack.c.h.b16 %v301
    %v981 = vunpack.c.l.b16 %v302
    %v982 = vunpack.c.h.b16 %v302
    %v983 = vunpack.c.l.b16 %v303
    %v984 = vunpack.c.h.b16 %v303
    %v985 = vunpack.c.l.b16 %v304
    %v986 = vunpack.c.h.b16 %v304
    %v987 = vunpack.c.l.b16 %v305
    %v988 = vunpack.c.h.b16 %v305
    %v989 = vunpack.c.l.b16 %v306
    %v990 = vunpack.c.h.b16 %v306
    %v991 = vunpack.c.l.b16 %v307
    %v992 = vunpack.c.h.b16 %v307
    %v993 = vunpack.c.l.b16 %v308
    %v994 = vunpack.c.h.b16 %v308
    %v995 = vunpack.c.l.b16 %v309
    %v996 = vunpack.c.h.b16 %v309
    %v997 = vunpack.c.l.b16 %v310
    %v998 = vunpack.c.h.b16 %v310
    %v999 = vunpack.c.l.b16 %v311
    %v1000 = vunpack.c.h.b16 %v311
    %v1001 = vunpack.c.l.b16 %v312
    %v1002 = vunpack.c.h.b16 %v312
    %v1003 = vunpack.c.l.b16 %v313
    %v1004 = vunpack.c.h.b16 %v313
    %v1005 = vunpack.c.l.b16 %v314
    %v1006 = vunpack.c.h.b16 %v314
    %v1007 = vunpack.c.l.b16 %v315
    %v1008 = vunpack.c.h.b16 %v315
    %v1009 = vunpack.c.l.b16 %v316
    %v1010 = vunpack.c.h.b16 %v316
    %v1011 = vunpack.c.l.b16 %v317
    %v1012 = vunpack.c.h.b16 %v317
    %v1013 = vunpack.c.l.b16 %v318
    %v1014 = vunpack.c.h.b16 %v318
    %v1015 = vunpack.c.l.b16 %v319
    %v1016 = vunpack.c.h.b16 %v319
    %v1017 = vunpack.c.l.b16 %v320
    %v1018 = vunpack.c.h.b16 %v320
    %v1019 = vunpack.c.l.b16 %v321
    %v1020 = vunpack.c.h.b16 %v321
    %v1021 = vunpack.c.l.b16 %v322
    %v1022 = vunpack.c.h.b16 %v322
    %v1023 = vunpack.c.l.b16 %v323
    %v1024 = vunpack.c.h.b16 %v323
    %v1025 = vunpack.c.l.b16 %v324
    %v1026 = vunpack.c.h.b16 %v324
    %v1027 = vunpack.c.l.b16 %v325
    %v1028 = vunpack.c.h.b16 %v325
    %v1029 = vunpack.c.l.b16 %v326
    %v1030 = vunpack.c.h.b16 %v326
    %v1031 = vunpack.c.l.b16 %v327
    %v1032 = vunpack.c.h.b16 %v327
    %v1033 = vunpack.c.l.b16 %v328
    %v1034 = vunpack.c.h.b16 %v328
    %v1035 = vunpack.c.l.b16 %v329
    %v1036 = vunpack.c.h.b16 %v329
    %v1037 = vunpack.c.l.b16 %v330
    %v1038 = vunpack.c.h.b16 %v330
    %v1039 = vunpack.c.l.b16 %v331
    %v1040 = vunpack.c.h.b16 %v331
    %v1041 = vunpack.c.l.b16 %v332
    %v1042 = vunpack.c.h.b16 %v332
    %v1043 = vunpack.c.l.b16 %v333
    %v1044 = vunpack.c.h.b16 %v333
    %v1045 = vunpack.c.l.b16 %v334
    %v1046 = vunpack.c.h.b16 %v334
    %v1047 = vunpack.c.l.b16 %v335
    %v1048 = vunpack.c.h.b16 %v335
    %v1049 = vunpack.c.l.b16 %v336
    %v1050 = vunpack.c.h.b16 %v336
    %v1051 = vunpack.c.l.b16 %v337
    %v1052 = vunpack.c.h.b16 %v337
    %v1053 = vunpack.c.l.b16 %v338
    %v1054 = vunpack.c.h.b16 %v338
    %v1055 = vunpack.c.l.b16 %v339
    %v1056 = vunpack.c.h.b16 %v339
    %v1057 = vunpack.c.l.b16 %v340
    %v1058 = vunpack.c.h.b16 %v340
    %v1059 = vunpack.c.l.b16 %v341
    %v1060 = vunpack.c.h.b16 %v341
    %v1061 = vunpack.c.l.b16 %v342
    %v1062 = vunpack.c.h.b16 %v342
    %v1063 = vunpack.c.l.b16 %v343
    %v1064 = vunpack.c.h.b16 %v343
    %v1065 = vunpack.c.l.b16 %v344
    %v1066 = vunpack.c.h.b16 %v344
    %v1067 = vunpack.c.l.b16 %v345
    %v1068 = vunpack.c.h.b16 %v345
    %v1069 = vunpack.c.l.b16 %v346
    %v1070 = vunpack.c.h.b16 %v346
    %v1071 = vunpack.c.l.b16 %v347
    %v1072 = vunpack.c.h.b16 %v347
    %v1073 = vunpack.c.l.b16 %v348
    %v1074 = vunpack.c.h.b16 %v348
    %v1075 = vunpack.c.l.b16 %v349
    %v1076 = vunpack.c.h.b16 %v349
    %v1077 = vunpack.c.l.b16 %v350
    %v1078 = vunpack.c.h.b16 %v350
    %v1079 = vunpack.c.l.b16 %v351
    %v1080 = vunpack.c.h.b16 %v351
    %v1081 = vunpack.c.l.b16 %v352
    %v1082 = vunpack.c.h.b16 %v352
    %v1083 = vunpack.c.l.b16 %v353
    %v1084 = vunpack.c.h.b16 %v353
    %v1085 = vunpack.c.l.b16 %v354
    %v1086 = vunpack.c.h.b16 %v354
    %v1087 = vunpack.c.l.b16 %v355
    %v1088 = vunpack.c.h.b16 %v355
    %v1089 = vunpack.c.l.b16 %v356
    %v1090 = vunpack.c.h.b16 %v356
    %v1091 = vunpack.c.l.b16 %v357
    %v1092 = vunpack.c.h.b16 %v357
    %v1093 = vunpack.c.l.b16 %v358
    %v1094 = vunpack.c.h.b16 %v358
    %v1095 = vunpack.c.l.b16 %v359
    %v1096 = vunpack.c.h.b16 %v359
    %v1097 = vunpack.c.l.b16 %v360
    %v1098 = vunpack.c.h.b16 %v360
    %v1099 = vunpack.c.l.b16 %v361
    %v1100 = vunpack.c.h.b16 %v361
    %v1101 = vunpack.c.l.b16 %v362
    %v1102 = vunpack.c.h.b16 %v362
    %v1103 = vunpack.c.l.b16 %v363
    %v1104 = vunpack.c.h.b16 %v363
    %v1105 = vunpack.c.l.b16 %v364
    %v1106 = vunpack.c.h.b16 %v364
    %v1107 = vunpack.c.l.b16 %v365
    %v1108 = vunpack.c.h.b16 %v365
    %v1109 = vunpack.c.l.b16 %v366
    %v1110 = vunpack.c.h.b16 %v366
    %v1111 = vunpack.c.l.b16 %v367
    %v1112 = vunpack.c.h.b16 %v367
    %v1113 = vunpack.c.l.b16 %v368
    %v1114 = vunpack.c.h.b16 %v368
    %v1115 = vunpack.c.l.b16 %v369
    %v1116 = vunpack.c.h.b16 %v369
    %v1117 = vunpack.c.l.b16 %v370
    %v1118 = vunpack.c.h.b16 %v370
    %v1119 = vunpack.c.l.b16 %v371
    %v1120 = vunpack.c.h.b16 %v371
    %v1121 = vunpack.c.l.b16 %v372
    %v1122 = vunpack.c.h.b16 %v372
    %v1123 = vunpack.c.l.b16 %v373
    %v1124 = vunpack.c.h.b16 %v373
    %v1125 = vunpack.c.l.b16 %v374
    %v1126 = vunpack.c.h.b16 %v374
    %v1127 = vunpack.c.l.b16 %v375
    %v1128 = vunpack.c.h.b16 %v375
    %v1129 = vunpack.c.l.b16 %v376
    %v1130 = vunpack.c.h.b16 %v376
    %v1131 = vunpack.c.l.b16 %v377
    %v1132 = vunpack.c.h.b16 %v377
    %v1133 = vunpack.c.l.b16 %v378
    %v1134 = vunpack.c.h.b16 %v378
    %v1135 = vunpack.c.l.b16 %v379
    %v1136 = vunpack.c.h.b16 %v379
    %v1137 = vunpack.c.l.b16 %v380
    %v1138 = vunpack.c.h.b16 %v380
    %v1139 = vunpack.c.l.b16 %v381
    %v1140 = vunpack.c.h.b16 %v381
    %v1141 = vunpack.c.l.b16 %v382
    %v1142 = vunpack.c.h.b16 %v382
    %v1143 = vunpack.c.l.b16 %v383
    %v1144 = vunpack.c.h.b16 %v383
    %v1145 = vunpack.c.l.b16 %v384
    %v1146 = vunpack.c.h.b16 %v384
    %v1147 = vunpack.c.l.b16 %v385
    %v1148 = vunpack.c.h.b16 %v385
    %v1149 = vunpack.c.l.b16 %v386
    %v1150 = vunpack.c.h.b16 %v386
    %v1151 = vunpack.c.l.b16 %v387
    %v1152 = vunpack.c.h.b16 %v387
    %v1153 = vunpack.c.l.b16 %v388
    %v1154 = vunpack.c.h.b16 %v388
    %v1155 = vunpack.c.l.b16 %v389
    %v1156 = vunpack.c.h.b16 %v389
    %v1157 = vunpack.c.l.b16 %v390
    %v1158 = vunpack.c.h.b16 %v390
    %v1159 = vunpack.c.l.b16 %v391
    %v1160 = vunpack.c.h.b16 %v391
    %v1161 = vunpack.c.l.b16 %v392
    %v1162 = vunpack.c.h.b16 %v392
    %v1163 = vunpack.c.l.b16 %v393
    %v1164 = vunpack.c.h.b16 %v393
    %v1165 = vunpack.c.l.b16 %v394
    %v1166 = vunpack.c.h.b16 %v394
    %v1167 = vunpack.c.l.b16 %v395
    %v1168 = vunpack.c.h.b16 %v395
    %v1169 = vunpack.c.l.b16 %v396
    %v1170 = vunpack.c.h.b16 %v396
    %v1171 = vunpack.c.l.b16 %v397
    %v1172 = vunpack.c.h.b16 %v397
    %v1173 = vunpack.c.l.b16 %v398
    %v1174 = vunpack.c.h.b16 %v398
    %v1175 = vunpack.c.l.b16 %v399
    %v1176 = vunpack.c.h.b16 %v399
    %v1177 = vunpack.c.l.b16 %v400
    %v1178 = vunpack.c.h.b16 %v400
    %v1179 = vunpack.c.l.b16 %v401
    %v1180 = vunpack.c.h.b16 %v401
    %v1181 = vunpack.c.l.b16 %v402
    %v1182 = vunpack.c.h.b16 %v402
    %v1183 = vunpack.c.l.b16 %v403
    %v1184 = vunpack.c.h.b16 %v403
    %v1185 = vunpack.c.l.b16 %v404
    %v1186 = vunpack.c.h.b16 %v404
    %v1187 = vunpack.c.l.b16 %v405
    %v1188 = vunpack.c.h.b16 %v405
    %v1189 = vunpack.c.l.b16 %v406
    %v1190 = vunpack.c.h.b16 %v406
    %v1191 = vunpack.c.l.b16 %v407
    %v1192 = vunpack.c.h.b16 %v407
    %v1193 = vunpack.c.l.b16 %v408
    %v1194 = vunpack.c.h.b16 %v408
    %v1195 = vunpack.c.l.b16 %v409
    %v1196 = vunpack.c.h.b16 %v409
    %v1197 = vunpack.c.l.b16 %v410
    %v1198 = vunpack.c.h.b16 %v410
    %v1199 = vunpack.c.l.b16 %v411
    %v1200 = vunpack.c.h.b16 %v411
    %v1201 = vunpack.c.l.b16 %v412
    %v1202 = vunpack.c.h.b16 %v412
    %v1203 = vunpack.c.l.b16 %v413
    %v1204 = vunpack.c.h.b16 %v413
    %v1205 = vunpack.c.l.b16 %v414
    %v1206 = vunpack.c.h.b16 %v414
    %v1207 = vunpack.c.l.b16 %v415
    %v1208 = vunpack.c.h.b16 %v415
    %v1209 = vunpack.c.l.b16 %v416
    %v1210 = vunpack.c.h.b16 %v416
    %v1211 = vunpack.c.l.b16 %v417
    %v1212 = vunpack.c.h.b16 %v417
    %v1213 = vunpack.c.l.b16 %v418
    %v1214 = vunpack.c.h.b16 %v418
    %v1215 = vunpack.c.l.b16 %v419
    %v1216 = vunpack.c.h.b16 %v419
    %v1217 = vunpack.c.l.b16 %v420
    %v1218 = vunpack.c.h.b16 %v420
    %v1219 = vunpack.c.l.b16 %v421
    %v1220 = vunpack.c.h.b16 %v421
    %v1221 = vunpack.c.l.b16 %v422
    %v1222 = vunpack.c.h.b16 %v422
    %v1223 = vunpack.c.l.b16 %v423
    %v1224 = vunpack.c.h.b16 %v423
    %v1225 = vunpack.c.l.b16 %v424
    %v1226 = vunpack.c.h.b16 %v424
    %v1227 = vunpack.c.l.b16 %v425
    %v1228 = vunpack.c.h.b16 %v425
    %v1229 = vunpack.c.l.b16 %v426
    %v1230 = vunpack.c.h.b16 %v426
    %v1231 = vunpack.c.l.b16 %v427
    %v1232 = vunpack.c.h.b16 %v427
    %v1233 = vunpack.c.l.b16 %v428
    %v1234 = vunpack.c.h.b16 %v428
    %v1235 = vunpack.c.l.b16 %v429
    %v1236 = vunpack.c.h.b16 %v429
    %v1237 = vunpack.c.l.b16 %v430
    %v1238 = vunpack.c.h.b16 %v430
    %v1239 = vunpack.c.l.b16 %v431
    %v1240 = vunpack.c.h.b16 %v431
    %v1241 = vunpack.c.l.b16 %v432
    %v1242 = vunpack.c.h.b16 %v432
    %v1243 = vunpack.c.l.b16 %v433
    %v1244 = vunpack.c.h.b16 %v433
    %v1245 = vunpack.c.l.b16 %v434
    %v1246 = vunpack.c.h.b16 %v434
    %v1247 = vunpack.c.l.b16 %v435
    %v1248 = vunpack.c.h.b16 %v435
    %v1249 = vunpack.c.l.b16 %v436
    %v1250 = vunpack.c.h.b16 %v436
    %v1251 = vunpack.c.l.b16 %v437
    %v1252 = vunpack.c.h.b16 %v437
    %v1253 = vunpack.c.l.b16 %v438
    %v1254 = vunpack.c.h.b16 %v438
    %v1255 = vunpack.c.l.b16 %v439
    %v1256 = vunpack.c.h.b16 %v439
    %v1257 = vunpack.c.l.b16 %v440
    %v1258 = vunpack.c.h.b16 %v440
    %v1259 = vunpack.c.l.b16 %v441
    %v1260 = vunpack.c.h.b16 %v441
    %v1261 = vunpack.c.l.b16 %v442
    %v1262 = vunpack.c.h.b16 %v442
    %v1263 = vunpack.c.l.b16 %v443
    %v1264 = vunpack.c.h.b16 %v443
    %v1265 = vunpack.c.l.b16 %v444
    %v1266 = vunpack.c.h.b16 %v444
    %v1267 = vunpack.c.l.b16 %v445
    %v1268 = vunpack.c.h.b16 %v445
    %v1269 = vunpack.c.l.b16 %v446
    %v1270 = vunpack.c.h.b16 %v446
    %v1271 = vunpack.c.l.b16 %v447
    %v1272 = vunpack.c.h.b16 %v447
    %v1273 = vunpack.c.l.b16 %v448
    %v1274 = vunpack.c.h.b16 %v448
    %v1275 = vunpack.c.l.b16 %v449
    %v1276 = vunpack.c.h.b16 %v449
    %v1277 = vunpack.c.l.b16 %v450
    %v1278 = vunpack.c.h.b16 %v450
    %v1279 = vunpack.c.l.b16 %v451
    %v1280 = vunpack.c.h.b16 %v451
    %v1281 = vunpack.c.l.b16 %v452
    %v1282 = vunpack.c.h.b16 %v452
    %v1283 = vunpack.c.l.b16 %v453
    %v1284 = vunpack.c.h.b16 %v453
    %v1285 = vunpack.c.l.b16 %v454
    %v1286 = vunpack.c.h.b16 %v454
    %v1287 = vunpack.c.l.b16 %v455
    %v1288 = vunpack.c.h.b16 %v455
    %v1289 = vunpack.c.l.b16 %v456
    %v1290 = vunpack.c.h.b16 %v456
    %v1291 = vunpack.c.l.b16 %v457
    %v1292 = vunpack.c.h.b16 %v457
    %v1293 = vunpack.c.l.b16 %v458
    %v1294 = vunpack.c.h.b16 %v458
    %v1295 = vunpack.c.l.b16 %v459
    %v1296 = vunpack.c.h.b16 %v459
    %v1297 = vunpack.c.l.b16 %v460
    %v1298 = vunpack.c.h.b16 %v460
    %v1299 = vunpack.c.l.b16 %v461
    %v1300 = vunpack.c.h.b16 %v461
    %v1301 = vunpack.c.l.b16 %v462
    %v1302 = vunpack.c.h.b16 %v462
    %v1303 = vunpack.c.l.b16 %v463
    %v1304 = vunpack.c.h.b16 %v463
    %v1305 = vunpack.c.l.b16 %v464
    %v1306 = vunpack.c.h.b16 %v464
    %v1307 = vunpack.c.l.b16 %v465
    %v1308 = vunpack.c.h.b16 %v465
    %v1309 = vunpack.c.l.b16 %v466
    %v1310 = vunpack.c.h.b16 %v466
    %v1311 = vunpack.c.l.b16 %v467
    %v1312 = vunpack.c.h.b16 %v467
    %v1313 = vunpack.c.l.b16 %v468
    %v1314 = vunpack.c.h.b16 %v468
    %v1315 = vunpack.c.l.b16 %v469
    %v1316 = vunpack.c.h.b16 %v469
    %v1317 = vunpack.c.l.b16 %v470
    %v1318 = vunpack.c.h.b16 %v470
    %v1319 = vunpack.c.l.b16 %v471
    %v1320 = vunpack.c.h.b16 %v471
    %v1321 = vunpack.c.l.b16 %v472
    %v1322 = vunpack.c.h.b16 %v472
    %v1323 = vunpack.c.l.b16 %v473
    %v1324 = vunpack.c.h.b16 %v473
    %v1325 = vunpack.c.l.b16 %v474
    %v1326 = vunpack.c.h.b16 %v474
    %v1327 = vunpack.c.l.b16 %v475
    %v1328 = vunpack.c.h.b16 %v475
    %v1329 = vunpack.c.l.b16 %v476
    %v1330 = vunpack.c.h.b16 %v476
    %v1331 = vunpack.c.l.b16 %v477
    %v1332 = vunpack.c.h.b16 %v477
    %v1333 = vunpack.c.l.b16 %v478
    %v1334 = vunpack.c.h.b16 %v478
    %v1335 = vunpack.c.l.b16 %v479
    %v1336 = vunpack.c.h.b16 %v479
    %v1337 = vunpack.c.l.b16 %v480
    %v1338 = vunpack.c.h.b16 %v480
    %v1339 = vunpack.c.l.b16 %v481
    %v1340 = vunpack.c.h.b16 %v481
    %v1341 = vunpack.c.l.b16 %v482
    %v1342 = vunpack.c.h.b16 %v482
    %v1343 = vunpack.c.l.b16 %v483
    %v1344 = vunpack.c.h.b16 %v483
    %v1345 = vunpack.c.l.b16 %v484
    %v1346 = vunpack.c.h.b16 %v484
    %v1347 = vunpack.c.l.b16 %v485
    %v1348 = vunpack.c.h.b16 %v485
    %v1349 = vunpack.c.l.b16 %v486
    %v1350 = vunpack.c.h.b16 %v486
    %v1351 = vunpack.c.l.b16 %v487
    %v1352 = vunpack.c.h.b16 %v487
    %v1353 = vunpack.c.l.b16 %v488
    %v1354 = vunpack.c.h.b16 %v488
    %v1355 = vunpack.c.l.b16 %v489
    %v1356 = vunpack.c.h.b16 %v489
    %v1357 = vunpack.c.l.b16 %v490
    %v1358 = vunpack.c.h.b16 %v490
    %v1359 = vunpack.c.l.b16 %v491
    %v1360 = vunpack.c.h.b16 %v491
    %v1361 = vunpack.c.l.b16 %v492
    %v1362 = vunpack.c.h.b16 %v492
    %v1363 = vunpack.c.l.b16 %v493
    %v1364 = vunpack.c.h.b16 %v493
    %v1365 = vunpack.c.l.b16 %v494
    %v1366 = vunpack.c.h.b16 %v494
    %v1367 = vunpack.c.l.b16 %v495
    %v1368 = vunpack.c.h.b16 %v495
    %v1369 = vunpack.c.l.b16 %v496
    %v1370 = vunpack.c.h.b16 %v496
    %v1371 = vunpack.c.l.b16 %v497
    %v1372 = vunpack.c.h.b16 %v497
    %v1373 = vunpack.c.l.b16 %v498
    %v1374 = vunpack.c.h.b16 %v498
    %v1375 = vunpack.c.l.b16 %v499
    %v1376 = vunpack.c.h.b16 %v499
    %v1377 = vunpack.c.l.b16 %v500
    %v1378 = vunpack.c.h.b16 %v500
    %v1379 = vunpack.c.l.b16 %v501
    %v1380 = vunpack.c.h.b16 %v501
    %v1381 = vunpack.c.l.b16 %v502
    %v1382 = vunpack.c.h.b16 %v502
    %v1383 = vunpack.c.l.b16 %v503
    %v1384 = vunpack.c.h.b16 %v503
    %v1385 = vunpack.c.l.b16 %v504
    %v1386 = vunpack.c.h.b16 %v504
    %v1387 = vunpack.c.l.b16 %v505
    %v1388 = vunpack.c.h.b16 %v505
    %v1389 = vunpack.c.l.b16 %v506
    %v1390 = vunpack.c.h.b16 %v506
    %v1391 = vunpack.c.l.b16 %v507
    %v1392 = vunpack.c.h.b16 %v507
    %v1393 = vunpack.c.l.b16 %v508
    %v1394 = vunpack.c.h.b16 %v508
    %v1395 = vunpack.c.l.b16 %v509
    %v1396 = vunpack.c.h.b16 %v509
    %v1397 = vunpack.c.l.b16 %v510
    %v1398 = vunpack.c.h.b16 %v510
    %v1399 = vunpack.c.l.b16 %v511
    %v1400 = vunpack.c.h.b16 %v511
    %v1401 = vunpack.c.l.b16 %v512
    %v1402 = vunpack.c.h.b16 %v512
    %v1403 = vunpack.c.l.b16 %v513
    %v1404 = vunpack.c.h.b16 %v513
    %v1405 = vunpack.c.l.b16 %v514
    %v1406 = vunpack.c.h.b16 %v514
    %v1407 = vunpack.c.l.b16 %v515
    %v1408 = vunpack.c.h.b16 %v515
    %v1409 = vunpack.c.l.b16 %v516
    %v1410 = vunpack.c.h.b16 %v516
    %v1411 = vunpack.c.l.b16 %v517
    %v1412 = vunpack.c.h.b16 %v517
    %v1413 = vunpack.c.l.b16 %v518
    %v1414 = vunpack.c.h.b16 %v518
    %v1415 = vunpack.c.l.b16 %v519
    %v1416 = vunpack.c.h.b16 %v519
    %v1417 = vunpack.c.l.b16 %v520
    %v1418 = vunpack.c.h.b16 %v520
    %v1419 = vunpack.c.l.b16 %v521
    %v1420 = vunpack.c.h.b16 %v521
    %v1421 = vunpack.c.l.b16 %v522
    %v1422 = vunpack.c.h.b16 %v522
    %v1423 = vunpack.c.l.b16 %v523
    %v1424 = vunpack.c.h.b16 %v523
    %v1425 = vunpack.c.l.b16 %v524
    %v1426 = vunpack.c.h.b16 %v524
    %v1427 = vunpack.c.l.b16 %v525
    %v1428 = vunpack.c.h.b16 %v525
    %v1429 = vunpack.c.l.b16 %v526
    %v1430 = vunpack.c.h.b16 %v526
    %v1431 = vunpack.c.l.b16 %v527
    %v1432 = vunpack.c.h.b16 %v527
    %v1433 = vunpack.c.l.b16 %v528
    %v1434 = vunpack.c.h.b16 %v528
    %v1435 = vunpack.c.l.b16 %v529
    %v1436 = vunpack.c.h.b16 %v529
    %v1437 = vunpack.c.l.b16 %v530
    %v1438 = vunpack.c.h.b16 %v530
    %v1439 = vunpack.c.l.b16 %v531
    %v1440 = vunpack.c.h.b16 %v531
    %v1441 = vunpack.c.l.b16 %v532
    %v1442 = vunpack.c.h.b16 %v532
    %v1443 = vunpack.c.l.b16 %v533
    %v1444 = vunpack.c.h.b16 %v533
    %v1445 = vunpack.c.l.b16 %v534
    %v1446 = vunpack.c.h.b16 %v534
    %v1447 = vunpack.c.l.b16 %v535
    %v1448 = vunpack.c.h.b16 %v535
    %v1449 = vunpack.c.l.b16 %v536
    %v1450 = vunpack.c.h.b16 %v536
    %v1451 = vunpack.c.l.b16 %v537
    %v1452 = vunpack.c.h.b16 %v537
    %v1453 = vunpack.c.l.b16 %v538
    %v1454 = vunpack.c.h.b16 %v538
    %v1455 = vunpack.c.l.b16 %v539
    %v1456 = vunpack.c.h.b16 %v539
    %v1457 = vunpack.c.l.b16 %v540
    %v1458 = vunpack.c.h.b16 %v540
    %v1459 = vunpack.c.l.b16 %v541
    %v1460 = vunpack.c.h.b16 %v541
    %v1461 = vunpack.c.l.b16 %v542
    %v1462 = vunpack.c.h.b16 %v542
    %v1463 = vunpack.c.l.b16 %v543
    %v1464 = vunpack.c.h.b16 %v543
    %v1465 = vunpack.c.l.b16 %v544
    %v1466 = vunpack.c.h.b16 %v544
    %v1467 = vunpack.c.l.b16 %v545
    %v1468 = vunpack.c.h.b16 %v545
    %v1469 = vunpack.c.l.b16 %v546
    %v1470 = vunpack.c.h.b16 %v546
    %v1471 = vunpack.c.l.b16 %v547
    %v1472 = vunpack.c.h.b16 %v547
    %v1473 = vunpack.c.l.b16 %v548
    %v1474 = vunpack.c.h.b16 %v548
    %v1475 = vunpack.c.l.b16 %v549
    %v1476 = vunpack.c.h.b16 %v549
    %v1477 = vunpack.c.l.b16 %v550
    %v1478 = vunpack.c.h.b16 %v550
    %v1479 = vunpack.c.l.b16 %v551
    %v1480 = vunpack.c.h.b16 %v551
    %v1481 = vunpack.c.l.b16 %v552
    %v1482 = vunpack.c.h.b16 %v552
    %v1483 = vunpack.c.l.b16 %v553
    %v1484 = vunpack.c.h.b16 %v553
    %v1485 = vunpack.c.l.b16 %v554
    %v1486 = vunpack.c.h.b16 %v554
    %v1487 = vunpack.c.l.b16 %v555
    %v1488 = vunpack.c.h.b16 %v555
    %v1489 = vunpack.c.l.b16 %v556
    %v1490 = vunpack.c.h.b16 %v556
    %v1491 = vunpack.c.l.b16 %v557
    %v1492 = vunpack.c.h.b16 %v557
    %v1493 = vunpack.c.l.b16 %v558
    %v1494 = vunpack.c.h.b16 %v558
    %v1495 = vunpack.c.l.b16 %v559
    %v1496 = vunpack.c.h.b16 %v559
    %v1497 = vunpack.c.l.b16 %v560
    %v1498 = vunpack.c.h.b16 %v560
    %v1499 = vunpack.c.l.b16 %v561
    %v1500 = vunpack.c.h.b16 %v561
    %v1501 = vunpack.c.l.b16 %v562
    %v1502 = vunpack.c.h.b16 %v562
    %v1503 = vunpack.c.l.b16 %v563
    %v1504 = vunpack.c.h.b16 %v563
    %v1505 = vunpack.c.l.b16 %v564
    %v1506 = vunpack.c.h.b16 %v564
    %v1507 = vunpack.c.l.b16 %v565
    %v1508 = vunpack.c.h.b16 %v565
    %v1509 = vunpack.c.l.b16 %v566
    %v1510 = vunpack.c.h.b16 %v566
    %v1511 = vunpack.c.l.b16 %v567
    %v1512 = vunpack.c.h.b16 %v567
    %v1513 = vunpack.c.l.b16 %v568
    %v1514 = vunpack.c.h.b16 %v568
    %v1515 = vunpack.c.l.b16 %v569
    %v1516 = vunpack.c.h.b16 %v569
    %v1517 = vunpack.c.l.b16 %v570
    %v1518 = vunpack.c.h.b16 %v570
    %v1519 = vunpack.c.l.b16 %v571
    %v1520 = vunpack.c.h.b16 %v571
    %v1521 = vunpack.c.l.b16 %v572
    %v1522 = vunpack.c.h.b16 %v572
    %v1523 = vunpack.c.l.b16 %v573
    %v1524 = vunpack.c.h.b16 %v573
    %v1525 = vpack.c.b16 %v955, %v949
    %v1526 = vpack.c.b16 %v956, %v950
    %v1527 = vpack.c.b16 %v957, %v951
    %v1528 = vpack.c.b16 %v958, %v952
    %v1529 = vpack.c.b16 %v959, %v953
    %v1530 = vpack.c.b16 %v960, %v954
    %v1531 = vpack.c.b16 %v967, %v961
    %v1532 = vpack.c.b16 %v968, %v962
    %v1533 = vpack.c.b16 %v969, %v963
    %v1534 = vpack.c.b16 %v970, %v964
    %v1535 = vpack.c.b16 %v971, %v965
    %v1536 = vpack.c.b16 %v972, %v966
    %v1537 = vpack.c.b16 %v979, %v973
    %v1538 = vpack.c.b16 %v980, %v974
    %v1539 = vpack.c.b16 %v981, %v975
    %v1540 = vpack.c.b16 %v982, %v976
    %v1541 = vpack.c.b16 %v983, %v977
    %v1542 = vpack.c.b16 %v984, %v978
    %v1543 = vpack.c.b16 %v991, %v985
    %v1544 = vpack.c.b16 %v992, %v986
    %v1545 = vpack.c.b16 %v993, %v987
    %v1546 = vpack.c.b16 %v994, %v988
    %v1547 = vpack.c.b16 %v995, %v989
    %v1548 = vpack.c.b16 %v996, %v990
    %v1549 = vpack.c.b16 %v1003, %v997
    %v1550 = vpack.c.b16 %v1004, %v998
    %v1551 = vpack.c.b16 %v1005, %v999
    %v1552 = vpack.c.b16 %v1006, %v1000
    %v1553 = vpack.c.b16 %v1007, %v1001
    %v1554 = vpack.c.b16 %v1008, %v1002
    %v1555 = vpack.c.b16 %v1015, %v1009
    %v1556 = vpack.c.b16 %v1016, %v1010
    %v1557 = vpack.c.b16 %v1017, %v1011
    %v1558 = vpack.c.b16 %v1018, %v1012
    %v1559 = vpack.c.b16 %v1019, %v1013
    %v1560 = vpack.c.b16 %v1020, %v1014
    %v1561 = vpack.c.b16 %v1027, %v1021
    %v1562 = vpack.c.b16 %v1028, %v1022
    %v1563 = vpack.c.b16 %v1029, %v1023
    %v1564 = vpack.c.b16 %v1030, %v1024
    %v1565 = vpack.c.b16 %v1031, %v1025
    %v1566 = vpack.c.b16 %v1032, %v1026
    %v1567 = vpack.c.b16 %v1039, %v1033
    %v1568 = vpack.c.b16 %v1040, %v1034
    %v1569 = vpack.c.b16 %v1041, %v1035
    %v1570 = vpack.c.b16 %v1042, %v1036
    %v1571 = vpack.c.b16 %v1043, %v1037
    %v1572 = vpack.c.b16 %v1044, %v1038
    %v1573 = vpack.c.b16 %v1051, %v1045
    %v1574 = vpack.c.b16 %v1052, %v1046
    %v1575 = vpack.c.b16 %v1053, %v1047
    %v1576 = vpack.c.b16 %v1054, %v1048
    %v1577 = vpack.c.b16 %v1055, %v1049
    %v1578 = vpack.c.b16 %v1056, %v1050
    %v1579 = vpack.c.b16 %v1063, %v1057
    %v1580 = vpack.c.b16 %v1064, %v1058
    %v1581 = vpack.c.b16 %v1065, %v1059
    %v1582 = vpack.c.b16 %v1066, %v1060
    %v1583 = vpack.c.b16 %v1067, %v1061
    %v1584 = vpack.c.b16 %v1068, %v1062
    %v1585 = vpack.c.b16 %v1075, %v1069
    %v1586 = vpack.c.b16 %v1076, %v1070
    %v1587 = vpack.c.b16 %v1077, %v1071
    %v1588 = vpack.c.b16 %v1078, %v1072
    %v1589 = vpack.c.b16 %v1079, %v1073
    %v1590 = vpack.c.b16 %v1080, %v1074
    %v1591 = vpack.c.b16 %v1087, %v1081
    %v1592 = vpack.c.b16 %v1088, %v1082
    %v1593 = vpack.c.b16 %v1089, %v1083
    %v1594 = vpack.c.b16 %v1090, %v1084
    %v1595 = vpack.c.b16 %v1091, %v1085
    %v1596 = vpack.c.b16 %v1092, %v1086
    %v1597 = vpack.c.b16 %v1099, %v1093
    %v1598 = vpack.c.b16 %v1100, %v1094
    %v1599 = vpack.c.b16 %v1101, %v1095
    %v1600 = vpack.c.b16 %v1102, %v1096
    %v1601 = vpack.c.b16 %v1103, %v1097
    %v1602 = vpack.c.b16 %v1104, %v1098
    %v1603 = vpack.c.b16 %v1111, %v1105
    %v1604 = vpack.c.b16 %v1112, %v1106
    %v1605 = vpack.c.b16 %v1113, %v1107
    %v1606 = vpack.c.b16 %v1114, %v1108
    %v1607 = vpack.c.b16 %v1115, %v1109
    %v1608 = vpack.c.b16 %v1116, %v1110
    %v1609 = vpack.c.b16 %v1123, %v1117
    %v1610 = vpack.c.b16 %v1124, %v1118
    %v1611 = vpack.c.b16 %v1125, %v1119
    %v1612 = vpack.c.b16 %v1126, %v1120
    %v1613 = vpack.c.b16 %v1127, %v1121
    %v1614 = vpack.c.b16 %v1128, %v1122
    %v1615 = vpack.c.b16 %v1135, %v1129
    %v1616 = vpack.c.b16 %v1136, %v1130
    %v1617 = vpack.c.b16 %v1137, %v1131
    %v1618 = vpack.c.b16 %v1138, %v1132
    %v1619 = vpack.c.b16 %v1139, %v1133
    %v1620 = vpack.c.b16 %v1140, %v1134
    %v1621 = vpack.c.b16 %v1147, %v1141
    %v1622 = vpack.c.b16 %v1148, %v1142
    %v1623 = vpack.c.b16 %v1149, %v1143
    %v1624 = vpack.c.b16 %v1150, %v1144
    %v1625 = vpack.c.b16 %v1151, %v1145
    %v1626 = vpack.c.b16 %v1152, %v1146
    %v1627 = vpack.c.b16 %v1159, %v1153
    %v1628 = vpack.c.b16 %v1160, %v1154
    %v1629 = vpack.c.b16 %v1161, %v1155
    %v1630 = vpack.c.b16 %v1162, %v1156
    %v1631 = vpack.c.b16 %v1163, %v1157
    %v1632 = vpack.c.b16 %v1164, %v1158
    %v1633 = vpack.c.b16 %v1171, %v1165
    %v1634 = vpack.c.b16 %v1172, %v1166
    %v1635 = vpack.c.b16 %v1173, %v1167
    %v1636 = vpack.c.b16 %v1174, %v1168
    %v1637 = vpack.c.b16 %v1175, %v1169
    %v1638 = vpack.c.b16 %v1176, %v1170
    %v1639 = vpack.c.b16 %v1183, %v1177
    %v1640 = vpack.c.b16 %v1184, %v1178
    %v1641 = vpack.c.b16 %v1185, %v1179
    %v1642 = vpack.c.b16 %v1186, %v1180
    %v1643 = vpack.c.b16 %v1187, %v1181
    %v1644 = vpack.c.b16 %v1188, %v1182
    %v1645 = vpack.c.b16 %v1195, %v1189
    %v1646 = vpack.c.b16 %v1196, %v1190
    %v1647 = vpack.c.b16 %v1197, %v1191
    %v1648 = vpack.c.b16 %v1198, %v1192
    %v1649 = vpack.c.b16 %v1199, %v1193
    %v1650 = vpack.c.b16 %v1200, %v1194
    %v1651 = vpack.c.b16 %v1207, %v1201
    %v1652 = vpack.c.b16 %v1208, %v1202
    %v1653 = vpack.c.b16 %v1209, %v1203
    %v1654 = vpack.c.b16 %v1210, %v1204
    %v1655 = vpack.c.b16 %v1211, %v1205
    %v1656 = vpack.c.b16 %v1212, %v1206
    %v1657 = vpack.c.b16 %v1219, %v1213
    %v1658 = vpack.c.b16 %v1220, %v1214
    %v1659 = vpack.c.b16 %v1221, %v1215
    %v1660 = vpack.c.b16 %v1222, %v1216
    %v1661 = vpack.c.b16 %v1223, %v1217
    %v1662 = vpack.c.b16 %v1224, %v1218
    %v1663 = vpack.c.b16 %v1231, %v1225
    %v1664 = vpack.c.b16 %v1232, %v1226
    %v1665 = vpack.c.b16 %v1233, %v1227
    %v1666 = vpack.c.b16 %v1234, %v1228
    %v1667 = vpack.c.b16 %v1235, %v1229
    %v1668 = vpack.c.b16 %v1236, %v1230
    %v1669 = vpack.c.b16 %v1243, %v1237
    %v1670 = vpack.c.b16 %v1244, %v1238
    %v1671 = vpack.c.b16 %v1245, %v1239
    %v1672 = vpack.c.b16 %v1246, %v1240
    %v1673 = vpack.c.b16 %v1247, %v1241
    %v1674 = vpack.c.b16 %v1248, %v1242
    %v1675 = vpack.c.b16 %v1255, %v1249
    %v1676 = vpack.c.b16 %v1256, %v1250
    %v1677 = vpack.c.b16 %v1257, %v1251
    %v1678 = vpack.c.b16 %v1258, %v1252
    %v1679 = vpack.c.b16 %v1259, %v1253
    %v1680 = vpack.c.b16 %v1260, %v1254
    %v1681 = vpack.c.b16 %v1267, %v1261
    %v1682 = vpack.c.b16 %v1268, %v1262
    %v1683 = vpack.c.b16 %v1269, %v1263
    %v1684 = vpack.c.b16 %v1270, %v1264
    %v1685 = vpack.c.b16 %v1271, %v1265
    %v1686 = vpack.c.b16 %v1272, %v1266
    %v1687 = vpack.c.b16 %v1279, %v1273
    %v1688 = vpack.c.b16 %v1280, %v1274
    %v1689 = vpack.c.b16 %v1281, %v1275
    %v1690 = vpack.c.b16 %v1282, %v1276
    %v1691 = vpack.c.b16 %v1283, %v1277
    %v1692 = vpack.c.b16 %v1284, %v1278
    %v1693 = vpack.c.b16 %v1291, %v1285
    %v1694 = vpack.c.b16 %v1292, %v1286
    %v1695 = vpack.c.b16 %v1293, %v1287
    %v1696 = vpack.c.b16 %v1294, %v1288
    %v1697 = vpack.c.b16 %v1295, %v1289
    %v1698 = vpack.c.b16 %v1296, %v1290
    %v1699 = vpack.c.b16 %v1303, %v1297
    %v1700 = vpack.c.b16 %v1304, %v1298
    %v1701 = vpack.c.b16 %v1305, %v1299
    %v1702 = vpack.c.b16 %v1306, %v1300
    %v1703 = vpack.c.b16 %v1307, %v1301
    %v1704 = vpack.c.b16 %v1308, %v1302
    %v1705 = vpack.c.b16 %v1315, %v1309
    %v1706 = vpack.c.b16 %v1316, %v1310
    %v1707 = vpack.c.b16 %v1317, %v1311
    %v1708 = vpack.c.b16 %v1318, %v1312
    %v1709 = vpack.c.b16 %v1319, %v1313
    %v1710 = vpack.c.b16 %v1320, %v1314
    %v1711 = vpack.c.b16 %v1327, %v1321
    %v1712 = vpack.c.b16 %v1328, %v1322
    %v1713 = vpack.c.b16 %v1329, %v1323
    %v1714 = vpack.c.b16 %v1330, %v1324
    %v1715 = vpack.c.b16 %v1331, %v1325
    %v1716 = vpack.c.b16 %v1332, %v1326
    %v1717 = vpack.c.b16 %v1339, %v1333
    %v1718 = vpack.c.b16 %v1340, %v1334
    %v1719 = vpack.c.b16 %v1341, %v1335
    %v1720 = vpack.c.b16 %v1342, %v1336
    %v1721 = vpack.c.b16 %v1343, %v1337
    %v1722 = vpack.c.b16 %v1344, %v1338
    %v1723 = vpack.c.b16 %v1351, %v1345
    %v1724 = vpack.c.b16 %v1352, %v1346
    %v1725 = vpack.c.b16 %v1353, %v1347
    %v1726 = vpack.c.b16 %v1354, %v1348
    %v1727 = vpack.c.b16 %v1355, %v1349
    %v1728 = vpack.c.b16 %v1356, %v1350
    %v1729 = vpack.c.b16 %v1363, %v1357
    %v1730 = vpack.c.b16 %v1364, %v1358
    %v1731 = vpack.c.b16 %v1365, %v1359
    %v1732 = vpack.c.b16 %v1366, %v1360
    %v1733 = vpack.c.b16 %v1367, %v1361
    %v1734 = vpack.c.b16 %v1368, %v1362
    %v1735 = vpack.c.b16 %v1375, %v1369
    %v1736 = vpack.c.b16 %v1376, %v1370
    %v1737 = vpack.c.b16 %v1377, %v1371
    %v1738 = vpack.c.b16 %v1378, %v1372
    %v1739 = vpack.c.b16 %v1379, %v1373
    %v1740 = vpack.c.b16 %v1380, %v1374
    %v1741 = vpack.c.b16 %v1387, %v1381
    %v1742 = vpack.c.b16 %v1388, %v1382
    %v1743 = vpack.c.b16 %v1389, %v1383
    %v1744 = vpack.c.b16 %v1390, %v1384
    %v1745 = vpack.c.b16 %v1391, %v1385
    %v1746 = vpack.c.b16 %v1392, %v1386
    %v1747 = vpack.c.b16 %v1399, %v1393
    %v1748 = vpack.c.b16 %v1400, %v1394
    %v1749 = vpack.c.b16 %v1401, %v1395
    %v1750 = vpack.c.b16 %v1402, %v1396
    %v1751 = vpack.c.b16 %v1403, %v1397
    %v1752 = vpack.c.b16 %v1404, %v1398
    %v1753 = vpack.c.b16 %v1411, %v1405
    %v1754 = vpack.c.b16 %v1412, %v1406
    %v1755 = vpack.c.b16 %v1413, %v1407
    %v1756 = vpack.c.b16 %v1414, %v1408
    %v1757 = vpack.c.b16 %v1415, %v1409
    %v1758 = vpack.c.b16 %v1416, %v1410
    %v1759 = vpack.c.b16 %v1423, %v1417
    %v1760 = vpack.c.b16 %v1424, %v1418
    %v1761 = vpack.c.b16 %v1425, %v1419
    %v1762 = vpack.c.b16 %v1426, %v1420
    %v1763 = vpack.c.b16 %v1427, %v1421
    %v1764 = vpack.c.b16 %v1428, %v1422
    %v1765 = vpack.c.b16 %v1435, %v1429
    %v1766 = vpack.c.b16 %v1436, %v1430
    %v1767 = vpack.c.b16 %v1437, %v1431
    %v1768 = vpack.c.b16 %v1438, %v1432
    %v1769 = vpack.c.b16 %v1439, %v1433
    %v1770 = vpack.c.b16 %v1440, %v1434
    %v1771 = vpack.c.b16 %v1447, %v1441
    %v1772 = vpack.c.b16 %v1448, %v1442
    %v1773 = vpack.c.b16 %v1449, %v1443
    %v1774 = vpack.c.b16 %v1450, %v1444
    %v1775 = vpack.c.b16 %v1451, %v1445
    %v1776 = vpack.c.b16 %v1452, %v1446
    %v1777 = vpack.c.b16 %v1459, %v1453
    %v1778 = vpack.c.b16 %v1460, %v1454
    %v1779 = vpack.c.b16 %v1461, %v1455
    %v1780 = vpack.c.b16 %v1462, %v1456
    %v1781 = vpack.c.b16 %v1463, %v1457
    %v1782 = vpack.c.b16 %v1464, %v1458
    %v1783 = vpack.c.b16 %v1471, %v1465
    %v1784 = vpack.c.b16 %v1472, %v1466
    %v1785 = vpack.c.b16 %v1473, %v1467
    %v1786 = vpack.c.b16 %v1474, %v1468
    %v1787 = vpack.c.b16 %v1475, %v1469
    %v1788 = vpack.c.b16 %v1476, %v1470
    %v1789 = vpack.c.b16 %v1483, %v1477
    %v1790 = vpack.c.b16 %v1484, %v1478
    %v1791 = vpack.c.b16 %v1485, %v1479
    %v1792 = vpack.c.b16 %v1486, %v1480
    %v1793 = vpack.c.b16 %v1487, %v1481
    %v1794 = vpack.c.b16 %v1488, %v1482
    %v1795 = vpack.c.b16 %v1495, %v1489
    %v1796 = vpack.c.b16 %v1496, %v1490
    %v1797 = vpack.c.b16 %v1497, %v1491
    %v1798 = vpack.c.b16 %v1498, %v1492
    %v1799 = vpack.c.b16 %v1499, %v1493
    %v1800 = vpack.c.b16 %v1500, %v1494
    %v1801 = vpack.c.b16 %v1507, %v1501
    %v1802 = vpack.c.b16 %v1508, %v1502
    %v1803 = vpack.c.b16 %v1509, %v1503
    %v1804 = vpack.c.b16 %v1510, %v1504
    %v1805 = vpack.c.b16 %v1511, %v1505
    %v1806 = vpack.c.b16 %v1512, %v1506
    %v1807 = vpack.c.b16 %v1519, %v1513
    %v1808 = vpack.c.b16 %v1520, %v1514
    %v1809 = vpack.c.b16 %v1521, %v1515
    %v1810 = vpack.c.b16 %v1522, %v1516
    %v1811 = vpack.c.b16 %v1523, %v1517
    %v1812 = vpack.c.b16 %v1524, %v1518
    %2101 = vmatprep.subr.bf16.mxu0 %v1526
    %2102 = vmatpush1.bf16.msra.mxu0 %v1525
    %2103 = vmatprep.subr.bf16.mxu0 %v1532
    %2104 = vmatpush1.bf16.msra.mxu0 %v1531
    %2105 = vmatprep.subr.bf16.mxu0 %v1538
    %2106 = vmatpush1.bf16.msra.mxu0 %v1537
    %2107 = vmatprep.subr.bf16.mxu0 %v1544
    %2108 = vmatpush1.bf16.msra.mxu0 %v1543
    %2109 = vmatprep.subr.bf16.mxu0 %v1550
    %2110 = vmatpush1.bf16.msra.mxu0 %v1549
    %2111 = vmatprep.subr.bf16.mxu0 %v1556
    %2112 = vmatpush1.bf16.msra.mxu0 %v1555
    %2113 = vmatprep.subr.bf16.mxu0 %v1562
    %2114 = vmatpush1.bf16.msra.mxu0 %v1561
    %2115 = vmatprep.subr.bf16.mxu0 %v1568
    %2116 = vmatpush1.bf16.msra.mxu0 %v1567
    %2117 = vmatprep.subr.bf16.mxu0 %v1574
    %2118 = vmatpush1.bf16.msra.mxu0 %v1573
    %2119 = vmatprep.subr.bf16.mxu0 %v1580
    %2120 = vmatpush1.bf16.msra.mxu0 %v1579
    %2121 = vmatprep.subr.bf16.mxu0 %v1586
    %2122 = vmatpush1.bf16.msra.mxu0 %v1585
    %2123 = vmatprep.subr.bf16.mxu0 %v1592
    %2124 = vmatpush1.bf16.msra.mxu0 %v1591
    %2125 = vmatprep.subr.bf16.mxu0 %v1598
    %2126 = vmatpush1.bf16.msra.mxu0 %v1597
    %2127 = vmatprep.subr.bf16.mxu0 %v1604
    %2128 = vmatpush1.bf16.msra.mxu0 %v1603
    %2129 = vmatprep.subr.bf16.mxu0 %v1610
    %2130 = vmatpush1.bf16.msra.mxu0 %v1609
    %2131 = vmatprep.subr.bf16.mxu0 %v1616
    %2132 = vmatpush1.bf16.msra.mxu0 %v1615
    %2133 = vmatprep.mubr.bf16.mxu0 %v650
    %2134 = vmatmul.mubr.bf16.gmra.mrb[0].mxu0 %v649
    %v2135 = vpop.f32.mrb[0].mxu0
    %v2136 = vadd.f32 %v610, %v2135
    %v2137 = vpop.f32.mrb[0].mxu0
    %v2138 = vadd.f32 %v614, %v2137
    %v2139 = vpop.f32.mrb[0].mxu0
    %v2140 = vadd.f32 %v610, %v2139
    %v2141 = vpop.f32.mrb[0].mxu0
    %v2142 = vadd.f32 %v614, %v2141
    %2143 = vdwg.mxu0
    %2144 = vmatprep.subr.bf16.mxu0 %v1622
    %2145 = vmatpush1.bf16.msra.mxu0 %v1621
    %2146 = vmatprep.subr.bf16.mxu0 %v1628
    %2147 = vmatpush1.bf16.msra.mxu0 %v1627
    %2148 = vmatprep.subr.bf16.mxu0 %v1634
    %2149 = vmatpush1.bf16.msra.mxu0 %v1633
    %2150 = vmatprep.subr.bf16.mxu0 %v1640
    %2151 = vmatpush1.bf16.msra.mxu0 %v1639
    %2152 = vmatprep.subr.bf16.mxu0 %v1646
    %2153 = vmatpush1.bf16.msra.mxu0 %v1645
    %2154 = vmatprep.subr.bf16.mxu0 %v1652
    %2155 = vmatpush1.bf16.msra.mxu0 %v1651
    %2156 = vmatprep.subr.bf16.mxu0 %v1658
    %2157 = vmatpush1.bf16.msra.mxu0 %v1657
    %2158 = vmatprep.subr.bf16.mxu0 %v1664
    %2159 = vmatpush1.bf16.msra.mxu0 %v1663
    %2160 = vmatprep.subr.bf16.mxu0 %v1670
    %2161 = vmatpush1.bf16.msra.mxu0 %v1669
    %2162 = vmatprep.subr.bf16.mxu0 %v1676
    %2163 = vmatpush1.bf16.msra.mxu0 %v1675
    %2164 = vmatprep.subr.bf16.mxu0 %v1682
    %2165 = vmatpush1.bf16.msra.mxu0 %v1681
    %2166 = vmatprep.subr.bf16.mxu0 %v1688
    %2167 = vmatpush1.bf16.msra.mxu0 %v1687
    %2168 = vmatprep.subr.bf16.mxu0 %v1694
    %2169 = vmatpush1.bf16.msra.mxu0 %v1693
    %2170 = vmatprep.subr.bf16.mxu0 %v1700
    %2171 = vmatpush1.bf16.msra.mxu0 %v1699
    %2172 = vmatprep.subr.bf16.mxu0 %v1706
    %2173 = vmatpush1.bf16.msra.mxu0 %v1705
    %2174 = vmatprep.subr.bf16.mxu0 %v1712
    %2175 = vmatpush1.bf16.msra.mxu0 %v1711
    %2176 = vmatprep.mubr.bf16.mxu0 %v652
    %2177 = vmatmul.mubr.bf16.gmra.mrb[0].mxu0 %v651
    %v2178 = vpop.f32.mrb[0].mxu0
    %v2179 = vadd.f32 %v2136, %v2178
    %v2180 = vpop.f32.mrb[0].mxu0
    %v2181 = vadd.f32 %v2138, %v2180
    %v2182 = vpop.f32.mrb[0].mxu0
    %v2183 = vadd.f32 %v2140, %v2182
    %v2184 = vpop.f32.mrb[0].mxu0
    %v2185 = vadd.f32 %v2142, %v2184
    %2186 = vdwg.mxu0
    %2187 = vmatprep.subr.bf16.mxu0 %v1718
    %2188 = vmatpush1.bf16.msra.mxu0 %v1717
    %2189 = vmatprep.subr.bf16.mxu0 %v1724
    %2190 = vmatpush1.bf16.msra.mxu0 %v1723
    %2191 = vmatprep.subr.bf16.mxu0 %v1730
    %2192 = vmatpush1.bf16.msra.mxu0 %v1729
    %2193 = vmatprep.subr.bf16.mxu0 %v1736
    %2194 = vmatpush1.bf16.msra.mxu0 %v1735
    %2195 = vmatprep.subr.bf16.mxu0 %v1742
    %2196 = vmatpush1.bf16.msra.mxu0 %v1741
    %2197 = vmatprep.subr.bf16.mxu0 %v1748
    %2198 = vmatpush1.bf16.msra.mxu0 %v1747
    %2199 = vmatprep.subr.bf16.mxu0 %v1754
    %2200 = vmatpush1.bf16.msra.mxu0 %v1753
    %2201 = vmatprep.subr.bf16.mxu0 %v1760
    %2202 = vmatpush1.bf16.msra.mxu0 %v1759
    %2203 = vmatprep.subr.bf16.mxu0 %v1766
    %2204 = vmatpush1.bf16.msra.mxu0 %v1765
    %2205 = vmatprep.subr.bf16.mxu0 %v1772
    %2206 = vmatpush1.bf16.msra.mxu0 %v1771
    %2207 = vmatprep.subr.bf16.mxu0 %v1778
    %2208 = vmatpush1.bf16.msra.mxu0 %v1777
    %2209 = vmatprep.subr.bf16.mxu0 %v1784
    %2210 = vmatpush1.bf16.msra.mxu0 %v1783
    %2211 = vmatprep.subr.bf16.mxu0 %v1790
    %2212 = vmatpush1.bf16.msra.mxu0 %v1789
    %2213 = vmatprep.subr.bf16.mxu0 %v1796
    %2214 = vmatpush1.bf16.msra.mxu0 %v1795
    %2215 = vmatprep.subr.bf16.mxu0 %v1802
    %2216 = vmatpush1.bf16.msra.mxu0 %v1801
    %2217 = vmatprep.subr.bf16.mxu0 %v1808
    %2218 = vmatpush1.bf16.msra.mxu0 %v1807
    %2219 = vmatprep.mubr.bf16.mxu0 %v654
    %2220 = vmatmul.mubr.bf16.gmra.mrb[0].mxu0 %v653
    %v2221 = vpop.f32.mrb[0].mxu0
    %v2222 = vadd.f32 %v2179, %v2221
    %v2223 = vpop.f32.mrb[0].mxu0
    %v2224 = vadd.f32 %v2181, %v2223
    %v2225 = vpop.f32.mrb[0].mxu0
    %v2226 = vadd.f32 %v2183, %v2225
    %v2227 = vpop.f32.mrb[0].mxu0
    %v2228 = vadd.f32 %v2185, %v2227
    %2229 = vdwg.mxu0
    %2230 = vmatprep.subr.bf16.mxu0 %v1528
    %2231 = vmatpush1.bf16.msra.mxu0 %v1527
    %2232 = vmatprep.subr.bf16.mxu0 %v1534
    %2233 = vmatpush1.bf16.msra.mxu0 %v1533
    %2234 = vmatprep.subr.bf16.mxu0 %v1540
    %2235 = vmatpush1.bf16.msra.mxu0 %v1539
    %2236 = vmatprep.subr.bf16.mxu0 %v1546
    %2237 = vmatpush1.bf16.msra.mxu0 %v1545
    %2238 = vmatprep.subr.bf16.mxu0 %v1552
    %2239 = vmatpush1.bf16.msra.mxu0 %v1551
    %2240 = vmatprep.subr.bf16.mxu0 %v1558
    %2241 = vmatpush1.bf16.msra.mxu0 %v1557
    %2242 = vmatprep.subr.bf16.mxu0 %v1564
    %2243 = vmatpush1.bf16.msra.mxu0 %v1563
    %2244 = vmatprep.subr.bf16.mxu0 %v1570
    %2245 = vmatpush1.bf16.msra.mxu0 %v1569
    %2246 = vmatprep.subr.bf16.mxu0 %v1576
    %2247 = vmatpush1.bf16.msra.mxu0 %v1575
    %2248 = vmatprep.subr.bf16.mxu0 %v1582
    %2249 = vmatpush1.bf16.msra.mxu0 %v1581
    %2250 = vmatprep.subr.bf16.mxu0 %v1588
    %2251 = vmatpush1.bf16.msra.mxu0 %v1587
    %2252 = vmatprep.subr.bf16.mxu0 %v1594
    %2253 = vmatpush1.bf16.msra.mxu0 %v1593
    %2254 = vmatprep.subr.bf16.mxu0 %v1600
    %2255 = vmatpush1.bf16.msra.mxu0 %v1599
    %2256 = vmatprep.subr.bf16.mxu0 %v1606
    %2257 = vmatpush1.bf16.msra.mxu0 %v1605
    %2258 = vmatprep.subr.bf16.mxu0 %v1612
    %2259 = vmatpush1.bf16.msra.mxu0 %v1611
    %2260 = vmatprep.subr.bf16.mxu0 %v1618
    %2261 = vmatpush1.bf16.msra.mxu0 %v1617
    %2262 = vmatprep.mubr.bf16.mxu0 %v650
    %2263 = vmatmul.mubr.bf16.gmra.mrb[0].mxu0 %v649
    %v2264 = vpop.f32.mrb[0].mxu0
    %v2265 = vadd.f32 %v618, %v2264
    %v2266 = vpop.f32.mrb[0].mxu0
    %v2267 = vadd.f32 %v622, %v2266
    %v2268 = vpop.f32.mrb[0].mxu0
    %v2269 = vadd.f32 %v618, %v2268
    %v2270 = vpop.f32.mrb[0].mxu0
    %v2271 = vadd.f32 %v622, %v2270
    %2272 = vdwg.mxu0
    %2273 = vmatprep.subr.bf16.mxu0 %v1624
    %2274 = vmatpush1.bf16.msra.mxu0 %v1623
    %2275 = vmatprep.subr.bf16.mxu0 %v1630
    %2276 = vmatpush1.bf16.msra.mxu0 %v1629
    %2277 = vmatprep.subr.bf16.mxu0 %v1636
    %2278 = vmatpush1.bf16.msra.mxu0 %v1635
    %2279 = vmatprep.subr.bf16.mxu0 %v1642
    %2280 = vmatpush1.bf16.msra.mxu0 %v1641
    %2281 = vmatprep.subr.bf16.mxu0 %v1648
    %2282 = vmatpush1.bf16.msra.mxu0 %v1647
    %2283 = vmatprep.subr.bf16.mxu0 %v1654
    %2284 = vmatpush1.bf16.msra.mxu0 %v1653
    %2285 = vmatprep.subr.bf16.mxu0 %v1660
    %2286 = vmatpush1.bf16.msra.mxu0 %v1659
    %2287 = vmatprep.subr.bf16.mxu0 %v1666
    %2288 = vmatpush1.bf16.msra.mxu0 %v1665
    %2289 = vmatprep.subr.bf16.mxu0 %v1672
    %2290 = vmatpush1.bf16.msra.mxu0 %v1671
    %2291 = vmatprep.subr.bf16.mxu0 %v1678
    %2292 = vmatpush1.bf16.msra.mxu0 %v1677
    %2293 = vmatprep.subr.bf16.mxu0 %v1684
    %2294 = vmatpush1.bf16.msra.mxu0 %v1683
    %2295 = vmatprep.subr.bf16.mxu0 %v1690
    %2296 = vmatpush1.bf16.msra.mxu0 %v1689
    %2297 = vmatprep.subr.bf16.mxu0 %v1696
    %2298 = vmatpush1.bf16.msra.mxu0 %v1695
    %2299 = vmatprep.subr.bf16.mxu0 %v1702
    %2300 = vmatpush1.bf16.msra.mxu0 %v1701
    %2301 = vmatprep.subr.bf16.mxu0 %v1708
    %2302 = vmatpush1.bf16.msra.mxu0 %v1707
    %2303 = vmatprep.subr.bf16.mxu0 %v1714
    %2304 = vmatpush1.bf16.msra.mxu0 %v1713
    %2305 = vmatprep.mubr.bf16.mxu0 %v652
    %2306 = vmatmul.mubr.bf16.gmra.mrb[0].mxu0 %v651
    %v2307 = vpop.f32.mrb[0].mxu0
    %v2308 = vadd.f32 %v2265, %v2307
    %v2309 = vpop.f32.mrb[0].mxu0
    %v2310 = vadd.f32 %v2267, %v2309
    %v2311 = vpop.f32.mrb[0].mxu0
    %v2312 = vadd.f32 %v2269, %v2311
    %v2313 = vpop.f32.mrb[0].mxu0
    %v2314 = vadd.f32 %v2271, %v2313
    %2315 = vdwg.mxu0
    %2316 = vmatprep.subr.bf16.mxu0 %v1720
    %2317 = vmatpush1.bf16.msra.mxu0 %v1719
    %2318 = vmatprep.subr.bf16.mxu0 %v1726
    %2319 = vmatpush1.bf16.msra.mxu0 %v1725
    %2320 = vmatprep.subr.bf16.mxu0 %v1732
    %2321 = vmatpush1.bf16.msra.mxu0 %v1731
    %2322 = vmatprep.subr.bf16.mxu0 %v1738
    %2323 = vmatpush1.bf16.msra.mxu0 %v1737
    %2324 = vmatprep.subr.bf16.mxu0 %v1744
    %2325 = vmatpush1.bf16.msra.mxu0 %v1743
    %2326 = vmatprep.subr.bf16.mxu0 %v1750
    %2327 = vmatpush1.bf16.msra.mxu0 %v1749
    %2328 = vmatprep.subr.bf16.mxu0 %v1756
    %2329 = vmatpush1.bf16.msra.mxu0 %v1755
    %2330 = vmatprep.subr.bf16.mxu0 %v1762
    %2331 = vmatpush1.bf16.msra.mxu0 %v1761
    %2332 = vmatprep.subr.bf16.mxu0 %v1768
    %2333 = vmatpush1.bf16.msra.mxu0 %v1767
    %2334 = vmatprep.subr.bf16.mxu0 %v1774
    %2335 = vmatpush1.bf16.msra.mxu0 %v1773
    %2336 = vmatprep.subr.bf16.mxu0 %v1780
    %2337 = vmatpush1.bf16.msra.mxu0 %v1779
    %2338 = vmatprep.subr.bf16.mxu0 %v1786
    %2339 = vmatpush1.bf16.msra.mxu0 %v1785
    %2340 = vmatprep.subr.bf16.mxu0 %v1792
    %2341 = vmatpush1.bf16.msra.mxu0 %v1791
    %2342 = vmatprep.subr.bf16.mxu0 %v1798
    %2343 = vmatpush1.bf16.msra.mxu0 %v1797
    %2344 = vmatprep.subr.bf16.mxu0 %v1804
    %2345 = vmatpush1.bf16.msra.mxu0 %v1803
    %2346 = vmatprep.subr.bf16.mxu0 %v1810
    %2347 = vmatpush1.bf16.msra.mxu0 %v1809
    %2348 = vmatprep.mubr.bf16.mxu0 %v654
    %2349 = vmatmul.mubr.bf16.gmra.mrb[0].mxu0 %v653
    %v2350 = vpop.f32.mrb[0].mxu0
    %v2351 = vadd.f32 %v2308, %v2350
    %v2352 = vpop.f32.mrb[0].mxu0
    %v2353 = vadd.f32 %v2310, %v2352
    %v2354 = vpop.f32.mrb[0].mxu0
    %v2355 = vadd.f32 %v2312, %v2354
    %v2356 = vpop.f32.mrb[0].mxu0
    %v2357 = vadd.f32 %v2314, %v2356
    %2358 = vdwg.mxu0
    %2359 = vmatprep.subr.bf16.mxu0 %v1530
    %2360 = vmatpush1.bf16.msra.mxu0 %v1529
    %2361 = vmatprep.subr.bf16.mxu0 %v1536
    %2362 = vmatpush1.bf16.msra.mxu0 %v1535
    %2363 = vmatprep.subr.bf16.mxu0 %v1542
    %2364 = vmatpush1.bf16.msra.mxu0 %v1541
    %2365 = vmatprep.subr.bf16.mxu0 %v1548
    %2366 = vmatpush1.bf16.msra.mxu0 %v1547
    %2367 = vmatprep.subr.bf16.mxu0 %v1554
    %2368 = vmatpush1.bf16.msra.mxu0 %v1553
    %2369 = vmatprep.subr.bf16.mxu0 %v1560
    %2370 = vmatpush1.bf16.msra.mxu0 %v1559
    %2371 = vmatprep.subr.bf16.mxu0 %v1566
    %2372 = vmatpush1.bf16.msra.mxu0 %v1565
    %2373 = vmatprep.subr.bf16.mxu0 %v1572
    %2374 = vmatpush1.bf16.msra.mxu0 %v1571
    %2375 = vmatprep.subr.bf16.mxu0 %v1578
    %2376 = vmatpush1.bf16.msra.mxu0 %v1577
    %2377 = vmatprep.subr.bf16.mxu0 %v1584
    %2378 = vmatpush1.bf16.msra.mxu0 %v1583
    %2379 = vmatprep.subr.bf16.mxu0 %v1590
    %2380 = vmatpush1.bf16.msra.mxu0 %v1589
    %2381 = vmatprep.subr.bf16.mxu0 %v1596
    %2382 = vmatpush1.bf16.msra.mxu0 %v1595
    %2383 = vmatprep.subr.bf16.mxu0 %v1602
    %2384 = vmatpush1.bf16.msra.mxu0 %v1601
    %2385 = vmatprep.subr.bf16.mxu0 %v1608
    %2386 = vmatpush1.bf16.msra.mxu0 %v1607
    %2387 = vmatprep.subr.bf16.mxu0 %v1614
    %2388 = vmatpush1.bf16.msra.mxu0 %v1613
    %2389 = vmatprep.subr.bf16.mxu0 %v1620
    %2390 = vmatpush1.bf16.msra.mxu0 %v1619
    %2391 = vmatprep.mubr.bf16.mxu0 %v650
    %2392 = vmatmul.mubr.bf16.gmra.mrb[0].mxu0 %v649
    %v2393 = vpop.f32.mrb[0].mxu0
    %v2394 = vadd.f32 %v626, %v2393
    %v2395 = vpop.f32.mrb[0].mxu0
    %v2396 = vadd.f32 %v630, %v2395
    %v2397 = vpop.f32.mrb[0].mxu0
    %v2398 = vadd.f32 %v626, %v2397
    %v2399 = vpop.f32.mrb[0].mxu0
    %v2400 = vadd.f32 %v630, %v2399
    %2401 = vdwg.mxu0
    %2402 = vmatprep.subr.bf16.mxu0 %v1626
    %2403 = vmatpush1.bf16.msra.mxu0 %v1625
    %2404 = vmatprep.subr.bf16.mxu0 %v1632
    %2405 = vmatpush1.bf16.msra.mxu0 %v1631
    %2406 = vmatprep.subr.bf16.mxu0 %v1638
    %2407 = vmatpush1.bf16.msra.mxu0 %v1637
    %2408 = vmatprep.subr.bf16.mxu0 %v1644
    %2409 = vmatpush1.bf16.msra.mxu0 %v1643
    %2410 = vmatprep.subr.bf16.mxu0 %v1650
    %2411 = vmatpush1.bf16.msra.mxu0 %v1649
    %2412 = vmatprep.subr.bf16.mxu0 %v1656
    %2413 = vmatpush1.bf16.msra.mxu0 %v1655
    %2414 = vmatprep.subr.bf16.mxu0 %v1662
    %2415 = vmatpush1.bf16.msra.mxu0 %v1661
    %2416 = vmatprep.subr.bf16.mxu0 %v1668
    %2417 = vmatpush1.bf16.msra.mxu0 %v1667
    %2418 = vmatprep.subr.bf16.mxu0 %v1674
    %2419 = vmatpush1.bf16.msra.mxu0 %v1673
    %2420 = vmatprep.subr.bf16.mxu0 %v1680
    %2421 = vmatpush1.bf16.msra.mxu0 %v1679
    %2422 = vmatprep.subr.bf16.mxu0 %v1686
    %2423 = vmatpush1.bf16.msra.mxu0 %v1685
    %2424 = vmatprep.subr.bf16.mxu0 %v1692
    %2425 = vmatpush1.bf16.msra.mxu0 %v1691
    %2426 = vmatprep.subr.bf16.mxu0 %v1698
    %2427 = vmatpush1.bf16.msra.mxu0 %v1697
    %2428 = vmatprep.subr.bf16.mxu0 %v1704
    %2429 = vmatpush1.bf16.msra.mxu0 %v1703
    %2430 = vmatprep.subr.bf16.mxu0 %v1710
    %2431 = vmatpush1.bf16.msra.mxu0 %v1709
    %2432 = vmatprep.subr.bf16.mxu0 %v1716
    %2433 = vmatpush1.bf16.msra.mxu0 %v1715
    %2434 = vmatprep.mubr.bf16.mxu0 %v652
    %2435 = vmatmul.mubr.bf16.gmra.mrb[0].mxu0 %v651
    %v2436 = vpop.f32.mrb[0].mxu0
    %v2437 = vadd.f32 %v2394, %v2436
    %v2438 = vpop.f32.mrb[0].mxu0
    %v2439 = vadd.f32 %v2396, %v2438
    %v2440 = vpop.f32.mrb[0].mxu0
    %v2441 = vadd.f32 %v2398, %v2440
    %v2442 = vpop.f32.mrb[0].mxu0
    %v2443 = vadd.f32 %v2400, %v2442
    %2444 = vdwg.mxu0
    %2445 = vmatprep.subr.bf16.mxu0 %v1722
    %2446 = vmatpush1.bf16.msra.mxu0 %v1721
    %2447 = vmatprep.subr.bf16.mxu0 %v1728
    %2448 = vmatpush1.bf16.msra.mxu0 %v1727
    %2449 = vmatprep.subr.bf16.mxu0 %v1734
    %2450 = vmatpush1.bf16.msra.mxu0 %v1733
    %2451 = vmatprep.subr.bf16.mxu0 %v1740
    %2452 = vmatpush1.bf16.msra.mxu0 %v1739
    %2453 = vmatprep.subr.bf16.mxu0 %v1746
    %2454 = vmatpush1.bf16.msra.mxu0 %v1745
    %2455 = vmatprep.subr.bf16.mxu0 %v1752
    %2456 = vmatpush1.bf16.msra.mxu0 %v1751
    %2457 = vmatprep.subr.bf16.mxu0 %v1758
    %2458 = vmatpush1.bf16.msra.mxu0 %v1757
    %2459 = vmatprep.subr.bf16.mxu0 %v1764
    %2460 = vmatpush1.bf16.msra.mxu0 %v1763
    %2461 = vmatprep.subr.bf16.mxu0 %v1770
    %2462 = vmatpush1.bf16.msra.mxu0 %v1769
    %2463 = vmatprep.subr.bf16.mxu0 %v1776
    %2464 = vmatpush1.bf16.msra.mxu0 %v1775
    %2465 = vmatprep.subr.bf16.mxu0 %v1782
    %2466 = vmatpush1.bf16.msra.mxu0 %v1781
    %2467 = vmatprep.subr.bf16.mxu0 %v1788
    %2468 = vmatpush1.bf16.msra.mxu0 %v1787
    %2469 = vmatprep.subr.bf16.mxu0 %v1794
    %2470 = vmatpush1.bf16.msra.mxu0 %v1793
    %2471 = vmatprep.subr.bf16.mxu0 %v1800
    %2472 = vmatpush1.bf16.msra.mxu0 %v1799
    %2473 = vmatprep.subr.bf16.mxu0 %v1806
    %2474 = vmatpush1.bf16.msra.mxu0 %v1805
    %2475 = vmatprep.subr.bf16.mxu0 %v1812
    %2476 = vmatpush1.bf16.msra.mxu0 %v1811
    %2477 = vmatprep.mubr.bf16.mxu0 %v654
    %2478 = vmatmul.mubr.bf16.gmra.mrb[0].mxu0 %v653
    %v2479 = vpop.f32.mrb[0].mxu0
    %v2480 = vadd.f32 %v2437, %v2479
    %v2481 = vpop.f32.mrb[0].mxu0
    %v2482 = vadd.f32 %v2439, %v2481
    %v2483 = vpop.f32.mrb[0].mxu0
    %v2484 = vadd.f32 %v2441, %v2483
    %v2485 = vpop.f32.mrb[0].mxu0
    %v2486 = vadd.f32 %v2443, %v2485
    %2487 = vdwg.mxu0
    %v2488 = vmul.u32 %v220, 8
    %vm2489 = vcmp.ge.s32.totalorder %v222, %v2488
    %v2490 = vadd.s32 %v2488, 8
    %vm2491 = vcmp.lt.s32.totalorder %v222, %v2490
    %vm2492 = vmand %vm2489, %vm2491
    %v2493 = vsel %vm2492, 0.125, 0.0
    %v2494 = vpack.c.bf16 %v2493, %v2493
    %v2495 = vmax.f32 %v2222, 0.0
    %v2496 = vmax.f32 %v2224, 0.0
    %v2497 = vmax.f32 %v2351, 0.0
    %v2498 = vmax.f32 %v2353, 0.0
    %v2499 = vmax.f32 %v2480, 0.0
    %v2500 = vmax.f32 %v2482, 0.0
    %v2501 = vmax.f32 %v2226, 0.0
    %v2502 = vmax.f32 %v2228, 0.0
    %v2503 = vmax.f32 %v2355, 0.0
    %v2504 = vmax.f32 %v2357, 0.0
    %v2505 = vmax.f32 %v2484, 0.0
    %v2506 = vmax.f32 %v2486, 0.0
    %v2507 = vpack.c.bf16 %v2501, %v2495
    %v2508 = vpack.c.bf16 %v2502, %v2496
    %v2509 = vpack.c.bf16 %v2503, %v2497
    %v2510 = vpack.c.bf16 %v2504, %v2498
    %v2511 = vpack.c.bf16 %v2505, %v2499
    %v2512 = vpack.c.bf16 %v2506, %v2500
    %vm2513 = vcmask 130048
    %v2515 = vsel %vm2513, %v2494, 0
    %2517 = vmatprep.subr.bf16.mxu0 %v2508
    %2518 = vmatpush1.bf16.msra.mxu0 %v2507
    %2519 = vmatprep.subr.bf16.mxu0 0
    %2520 = vmatpush1.bf16.msra.mxu0 0
    %2521 = vmatprep.subr.bf16.mxu0 0
    %2522 = vmatpush1.bf16.msra.mxu0 0
    %2523 = vmatprep.subr.bf16.mxu0 0
    %2524 = vmatpush1.bf16.msra.mxu0 0
    %2525 = vmatprep.subr.bf16.mxu0 0
    %2526 = vmatpush1.bf16.msra.mxu0 0
    %2527 = vmatprep.subr.bf16.mxu0 0
    %2528 = vmatpush1.bf16.msra.mxu0 0
    %2529 = vmatprep.subr.bf16.mxu0 0
    %2530 = vmatpush1.bf16.msra.mxu0 0
    %2531 = vmatprep.subr.bf16.mxu0 0
    %2532 = vmatpush1.bf16.msra.mxu0 0
    %2533 = vmatprep.subr.bf16.mxu0 0
    %2534 = vmatpush1.bf16.msra.mxu0 0
    %2535 = vmatprep.subr.bf16.mxu0 0
    %2536 = vmatpush1.bf16.msra.mxu0 0
    %2537 = vmatprep.subr.bf16.mxu0 0
    %2538 = vmatpush1.bf16.msra.mxu0 0
    %2539 = vmatprep.subr.bf16.mxu0 0
    %2540 = vmatpush1.bf16.msra.mxu0 0
    %2541 = vmatprep.subr.bf16.mxu0 0
    %2542 = vmatpush1.bf16.msra.mxu0 0
    %2543 = vmatprep.subr.bf16.mxu0 0
    %2544 = vmatpush1.bf16.msra.mxu0 0
    %2545 = vmatprep.subr.bf16.mxu0 0
    %2546 = vmatpush1.bf16.msra.mxu0 0
    %2547 = vmatprep.subr.bf16.mxu0 0
    %2548 = vmatpush1.bf16.msra.mxu0 0
    %2549 = vmatprep.mubr.bf16.mxu0 0
    %2550 = vmatmul.mubr.bf16.gmra.mrb[0].mxu0 %v2515
    %v2551 = vpop.f32.mrb[0].mxu0
    %v2552 = vadd.f32 0.0, %v2551
    %v2553 = vpop.f32.mrb[0].mxu0
    %v2554 = vadd.f32 0.0, %v2553
    %v2555 = vpop.f32.mrb[0].mxu0
    %v2556 = vpop.f32.mrb[0].mxu0
    %2557 = vdwg.mxu0
    %2558 = vmatprep.subr.bf16.mxu0 %v2510
    %2559 = vmatpush1.bf16.msra.mxu0 %v2509
    %2560 = vmatprep.subr.bf16.mxu0 0
    %2561 = vmatpush1.bf16.msra.mxu0 0
    %2562 = vmatprep.subr.bf16.mxu0 0
    %2563 = vmatpush1.bf16.msra.mxu0 0
    %2564 = vmatprep.subr.bf16.mxu0 0
    %2565 = vmatpush1.bf16.msra.mxu0 0
    %2566 = vmatprep.subr.bf16.mxu0 0
    %2567 = vmatpush1.bf16.msra.mxu0 0
    %2568 = vmatprep.subr.bf16.mxu0 0
    %2569 = vmatpush1.bf16.msra.mxu0 0
    %2570 = vmatprep.subr.bf16.mxu0 0
    %2571 = vmatpush1.bf16.msra.mxu0 0
    %2572 = vmatprep.subr.bf16.mxu0 0
    %2573 = vmatpush1.bf16.msra.mxu0 0
    %2574 = vmatprep.subr.bf16.mxu0 0
    %2575 = vmatpush1.bf16.msra.mxu0 0
    %2576 = vmatprep.subr.bf16.mxu0 0
    %2577 = vmatpush1.bf16.msra.mxu0 0
    %2578 = vmatprep.subr.bf16.mxu0 0
    %2579 = vmatpush1.bf16.msra.mxu0 0
    %2580 = vmatprep.subr.bf16.mxu0 0
    %2581 = vmatpush1.bf16.msra.mxu0 0
    %2582 = vmatprep.subr.bf16.mxu0 0
    %2583 = vmatpush1.bf16.msra.mxu0 0
    %2584 = vmatprep.subr.bf16.mxu0 0
    %2585 = vmatpush1.bf16.msra.mxu0 0
    %2586 = vmatprep.subr.bf16.mxu0 0
    %2587 = vmatpush1.bf16.msra.mxu0 0
    %2588 = vmatprep.subr.bf16.mxu0 0
    %2589 = vmatpush1.bf16.msra.mxu0 0
    %2590 = vmatprep.mubr.bf16.mxu0 0
    %2591 = vmatmul.mubr.bf16.gmra.mrb[0].mxu0 %v2515
    %v2592 = vpop.f32.mrb[0].mxu0
    %v2593 = vadd.f32 0.0, %v2592
    %v2594 = vpop.f32.mrb[0].mxu0
    %v2595 = vadd.f32 0.0, %v2594
    %v2596 = vpop.f32.mrb[0].mxu0
    %v2597 = vpop.f32.mrb[0].mxu0
    %2598 = vdwg.mxu0
    %2599 = vmatprep.subr.bf16.mxu0 %v2512
    %2600 = vmatpush1.bf16.msra.mxu0 %v2511
    %2601 = vmatprep.subr.bf16.mxu0 0
    %2602 = vmatpush1.bf16.msra.mxu0 0
    %2603 = vmatprep.subr.bf16.mxu0 0
    %2604 = vmatpush1.bf16.msra.mxu0 0
    %2605 = vmatprep.subr.bf16.mxu0 0
    %2606 = vmatpush1.bf16.msra.mxu0 0
    %2607 = vmatprep.subr.bf16.mxu0 0
    %2608 = vmatpush1.bf16.msra.mxu0 0
    %2609 = vmatprep.subr.bf16.mxu0 0
    %2610 = vmatpush1.bf16.msra.mxu0 0
    %2611 = vmatprep.subr.bf16.mxu0 0
    %2612 = vmatpush1.bf16.msra.mxu0 0
    %2613 = vmatprep.subr.bf16.mxu0 0
    %2614 = vmatpush1.bf16.msra.mxu0 0
    %2615 = vmatprep.subr.bf16.mxu0 0
    %2616 = vmatpush1.bf16.msra.mxu0 0
    %2617 = vmatprep.subr.bf16.mxu0 0
    %2618 = vmatpush1.bf16.msra.mxu0 0
    %2619 = vmatprep.subr.bf16.mxu0 0
    %2620 = vmatpush1.bf16.msra.mxu0 0
    %2621 = vmatprep.subr.bf16.mxu0 0
    %2622 = vmatpush1.bf16.msra.mxu0 0
    %2623 = vmatprep.subr.bf16.mxu0 0
    %2624 = vmatpush1.bf16.msra.mxu0 0
    %2625 = vmatprep.subr.bf16.mxu0 0
    %2626 = vmatpush1.bf16.msra.mxu0 0
    %2627 = vmatprep.subr.bf16.mxu0 0
    %2628 = vmatpush1.bf16.msra.mxu0 0
    %2629 = vmatprep.subr.bf16.mxu0 0
    %2630 = vmatpush1.bf16.msra.mxu0 0
    %2631 = vmatprep.mubr.bf16.mxu0 0
    %2632 = vmatmul.mubr.bf16.gmra.mrb[0].mxu0 %v2515
    %v2633 = vpop.f32.mrb[0].mxu0
    %v2634 = vadd.f32 0.0, %v2633
    %v2635 = vpop.f32.mrb[0].mxu0
    %v2636 = vadd.f32 0.0, %v2635
    %v2637 = vpop.f32.mrb[0].mxu0
    %v2638 = vpop.f32.mrb[0].mxu0
    %2639 = vdwg.mxu0
    %v2640 = vld [vmem:[%s2] sm:$0xf]
    %v2641 = vld [vmem:[%s2 + $0x4] sm:$0xf]
    %v2642 = vld [vmem:[%s2 + $0x8] sm:$0xf]
    %v2643 = vld [vmem:[%s2 + $0xc] sm:$0xf]
    %v2644 = vld [vmem:[#allocation8] sm:$0xff]
    %v2645 = vld [vmem:[#allocation8 + $0x8] sm:$0xff]
    %v2646 = vld [vmem:[#allocation8 + $0x10] sm:$0xff]
    %v2647 = vld [vmem:[#allocation8 + $0x18] sm:$0xff]
    %v2648 = vld [vmem:[#allocation8 + $0x20] sm:$0xff]
    %v2649 = vld [vmem:[#allocation8 + $0x28] sm:$0xff]
    %v2650 = vld [vmem:[#allocation8 + $0x30] sm:$0xff]
    %v2651 = vld [vmem:[#allocation8 + $0x38] sm:$0xff]
    %v2652 = vld [vmem:[#allocation8 + $0x40] sm:$0xff]
    %v2653 = vld [vmem:[#allocation8 + $0x48] sm:$0xff]
    %v2654 = vld [vmem:[#allocation8 + $0x50] sm:$0xff]
    %v2655 = vld [vmem:[#allocation8 + $0x58] sm:$0xff]
    %v2656 = vld [vmem:[#allocation8 + $0x60] sm:$0xff]
    %v2657 = vld [vmem:[#allocation8 + $0x68] sm:$0xff]
    %v2658 = vld [vmem:[#allocation8 + $0x70] sm:$0xff]
    %v2659 = vld [vmem:[#allocation8 + $0x78] sm:$0xff]
    %v2660 = vld [vmem:[#allocation8 + $0x80] sm:$0xff]
    %v2661 = vld [vmem:[#allocation8 + $0x88] sm:$0xff]
    %v2662 = vlaneseq
    %v2663 = vshrl.u32 %v2662, 7
    %v2664 = vsub.s32 1, %v2663
    %v2665 = vrot.slane %v128, %v2664
    %v2666 = vlaneseq
    %v2667 = vshrl.u32 %v2666, 7
    %v2668 = vsub.s32 5, %v2667
    %v2669 = vrot.slane %v128, %v2668
    %v2670 = vlaneseq
    %v2671 = vshrl.u32 %v2670, 7
    %v2672 = vsub.s32 1, %v2671
    %v2673 = vrot.slane %v129, %v2672
    %v2674 = vlaneseq
    %v2675 = vshrl.u32 %v2674, 7
    %v2676 = vsub.s32 5, %v2675
    %v2677 = vrot.slane %v129, %v2676
    %v2678 = vlaneseq
    %v2679 = vshrl.u32 %v2678, 7
    %v2680 = vsub.s32 1, %v2679
    %v2681 = vrot.slane %v130, %v2680
    %v2682 = vlaneseq
    %v2683 = vshrl.u32 %v2682, 7
    %v2684 = vsub.s32 5, %v2683
    %v2685 = vrot.slane %v130, %v2684
    %v2692 = vlaneseq
    %v2693 = vshrl.u32 %v2692, 7
    %v2694 = vsub.s32 1, %v2693
    %v2695 = vrot.slane %v2665, %v2694
    %v2696 = vlaneseq
    %v2697 = vshrl.u32 %v2696, 7
    %v2698 = vsub.s32 1, %v2697
    %v2699 = vrot.slane %v2669, %v2698
    %v2700 = vlaneseq
    %v2701 = vshrl.u32 %v2700, 7
    %v2702 = vsub.s32 1, %v2701
    %v2703 = vrot.slane %v2673, %v2702
    %v2704 = vlaneseq
    %v2705 = vshrl.u32 %v2704, 7
    %v2706 = vsub.s32 1, %v2705
    %v2707 = vrot.slane %v2677, %v2706
    %v2708 = vlaneseq
    %v2709 = vshrl.u32 %v2708, 7
    %v2710 = vsub.s32 1, %v2709
    %v2711 = vrot.slane %v2681, %v2710
    %v2712 = vlaneseq
    %v2713 = vshrl.u32 %v2712, 7
    %v2714 = vsub.s32 1, %v2713
    %v2715 = vrot.slane %v2685, %v2714
    %v2720 = vunpack.c.l.b16 %v2640
    %v2721 = vunpack.c.l.b16 %v2641
    %v2722 = vunpack.c.l.b16 %v2642
    %v2723 = vunpack.c.l.b16 %v2643
    %v2724 = vpack.c.b16 %v2721, %v2720
    %v2725 = vpack.c.b16 %v2723, %v2722
    %v2744 = vunpack.c.l.b16 %v2644
    %v2745 = vunpack.c.h.b16 %v2644
    %v2746 = vunpack.c.l.b16 %v2645
    %v2747 = vunpack.c.h.b16 %v2645
    %v2748 = vunpack.c.l.b16 %v2646
    %v2749 = vunpack.c.h.b16 %v2646
    %v2750 = vunpack.c.l.b16 %v2647
    %v2751 = vunpack.c.h.b16 %v2647
    %v2752 = vunpack.c.l.b16 %v2648
    %v2753 = vunpack.c.h.b16 %v2648
    %v2754 = vunpack.c.l.b16 %v2649
    %v2755 = vunpack.c.h.b16 %v2649
    %v2756 = vunpack.c.l.b16 %v2650
    %v2757 = vunpack.c.h.b16 %v2650
    %v2758 = vunpack.c.l.b16 %v2651
    %v2759 = vunpack.c.h.b16 %v2651
    %v2760 = vunpack.c.l.b16 %v2652
    %v2761 = vunpack.c.h.b16 %v2652
    %v2762 = vunpack.c.l.b16 %v2653
    %v2763 = vunpack.c.h.b16 %v2653
    %v2764 = vunpack.c.l.b16 %v2654
    %v2765 = vunpack.c.h.b16 %v2654
    %v2766 = vunpack.c.l.b16 %v2655
    %v2767 = vunpack.c.h.b16 %v2655
    %v2768 = vunpack.c.l.b16 %v2656
    %v2769 = vunpack.c.h.b16 %v2656
    %v2770 = vunpack.c.l.b16 %v2657
    %v2771 = vunpack.c.h.b16 %v2657
    %v2772 = vunpack.c.l.b16 %v2658
    %v2773 = vunpack.c.h.b16 %v2658
    %v2774 = vunpack.c.l.b16 %v2659
    %v2775 = vunpack.c.h.b16 %v2659
    %v2776 = vunpack.c.l.b16 %v2660
    %v2777 = vunpack.c.h.b16 %v2660
    %v2778 = vunpack.c.l.b16 %v2661
    %v2779 = vunpack.c.h.b16 %v2661
    %v2780 = vpack.c.b16 %v2750, %v2744
    %v2781 = vpack.c.b16 %v2751, %v2745
    %v2782 = vpack.c.b16 %v2752, %v2746
    %v2783 = vpack.c.b16 %v2753, %v2747
    %v2784 = vpack.c.b16 %v2754, %v2748
    %v2785 = vpack.c.b16 %v2755, %v2749
    %v2786 = vpack.c.b16 %v2762, %v2756
    %v2787 = vpack.c.b16 %v2763, %v2757
    %v2788 = vpack.c.b16 %v2764, %v2758
    %v2789 = vpack.c.b16 %v2765, %v2759
    %v2790 = vpack.c.b16 %v2766, %v2760
    %v2791 = vpack.c.b16 %v2767, %v2761
    %v2792 = vpack.c.b16 %v2774, %v2768
    %v2793 = vpack.c.b16 %v2775, %v2769
    %v2794 = vpack.c.b16 %v2776, %v2770
    %v2795 = vpack.c.b16 %v2777, %v2771
    %v2796 = vpack.c.b16 %v2778, %v2772
    %v2797 = vpack.c.b16 %v2779, %v2773
    %vm2816 = vcmask 392192
    %v2818 = vsel %vm2816, %v2724, 0
    %v2821 = vsel %vm2816, %v2725, 0
    %2823 = vmatprep.subr.bf16.mxu0 %v2781
    %2824 = vmatpush1.bf16.msra.mxu0 %v2780
    %2825 = vmatprep.subr.bf16.mxu0 %v2787
    %2826 = vmatpush1.bf16.msra.mxu0 %v2786
    %2827 = vmatprep.subr.bf16.mxu0 %v2793
    %2828 = vmatpush1.bf16.msra.mxu0 %v2792
    %2829 = vmatprep.subr.bf16.mxu0 0
    %2830 = vmatpush1.bf16.msra.mxu0 0
    %2831 = vmatprep.subr.bf16.mxu0 0
    %2832 = vmatpush1.bf16.msra.mxu0 0
    %2833 = vmatprep.subr.bf16.mxu0 0
    %2834 = vmatpush1.bf16.msra.mxu0 0
    %2835 = vmatprep.subr.bf16.mxu0 0
    %2836 = vmatpush1.bf16.msra.mxu0 0
    %2837 = vmatprep.subr.bf16.mxu0 0
    %2838 = vmatpush1.bf16.msra.mxu0 0
    %2839 = vmatprep.subr.bf16.mxu0 0
    %2840 = vmatpush1.bf16.msra.mxu0 0
    %2841 = vmatprep.subr.bf16.mxu0 0
    %2842 = vmatpush1.bf16.msra.mxu0 0
    %2843 = vmatprep.subr.bf16.mxu0 0
    %2844 = vmatpush1.bf16.msra.mxu0 0
    %2845 = vmatprep.subr.bf16.mxu0 0
    %2846 = vmatpush1.bf16.msra.mxu0 0
    %2847 = vmatprep.subr.bf16.mxu0 0
    %2848 = vmatpush1.bf16.msra.mxu0 0
    %2849 = vmatprep.subr.bf16.mxu0 0
    %2850 = vmatpush1.bf16.msra.mxu0 0
    %2851 = vmatprep.subr.bf16.mxu0 0
    %2852 = vmatpush1.bf16.msra.mxu0 0
    %2853 = vmatprep.subr.bf16.mxu0 0
    %2854 = vmatpush1.bf16.msra.mxu0 0
    %2855 = vmatprep.mubr.bf16.mxu0 0
    %2856 = vmatmul.mubr.bf16.gmra.mrb[0].mxu0 %v2818
    %v2857 = vpop.f32.mrb[0].mxu0
    %v2858 = vadd.f32 %v2695, %v2857
    %v2859 = vpop.f32.mrb[0].mxu0
    %v2860 = vadd.f32 %v2699, %v2859
    %v2861 = vpop.f32.mrb[0].mxu0
    %v2862 = vadd.f32 %v2695, %v2861
    %v2863 = vpop.f32.mrb[0].mxu0
    %v2864 = vadd.f32 %v2699, %v2863
    %2865 = vmatprep.mubr.bf16.mxu0 0
    %2866 = vmatmul.mubr.bf16.gmra.mrb[0].mxu0 %v2821
    %v2867 = vpop.f32.mrb[0].mxu0
    %v2868 = vadd.f32 %v2695, %v2867
    %v2869 = vpop.f32.mrb[0].mxu0
    %v2870 = vadd.f32 %v2699, %v2869
    %v2871 = vpop.f32.mrb[0].mxu0
    %v2872 = vadd.f32 %v2695, %v2871
    %v2873 = vpop.f32.mrb[0].mxu0
    %v2874 = vadd.f32 %v2699, %v2873
    %2875 = vdwg.mxu0
    %2876 = vmatprep.subr.bf16.mxu0 %v2783
    %2877 = vmatpush1.bf16.msra.mxu0 %v2782
    %2878 = vmatprep.subr.bf16.mxu0 %v2789
    %2879 = vmatpush1.bf16.msra.mxu0 %v2788
    %2880 = vmatprep.subr.bf16.mxu0 %v2795
    %2881 = vmatpush1.bf16.msra.mxu0 %v2794
    %2882 = vmatprep.subr.bf16.mxu0 0
    %2883 = vmatpush1.bf16.msra.mxu0 0
    %2884 = vmatprep.subr.bf16.mxu0 0
    %2885 = vmatpush1.bf16.msra.mxu0 0
    %2886 = vmatprep.subr.bf16.mxu0 0
    %2887 = vmatpush1.bf16.msra.mxu0 0
    %2888 = vmatprep.subr.bf16.mxu0 0
    %2889 = vmatpush1.bf16.msra.mxu0 0
    %2890 = vmatprep.subr.bf16.mxu0 0
    %2891 = vmatpush1.bf16.msra.mxu0 0
    %2892 = vmatprep.subr.bf16.mxu0 0
    %2893 = vmatpush1.bf16.msra.mxu0 0
    %2894 = vmatprep.subr.bf16.mxu0 0
    %2895 = vmatpush1.bf16.msra.mxu0 0
    %2896 = vmatprep.subr.bf16.mxu0 0
    %2897 = vmatpush1.bf16.msra.mxu0 0
    %2898 = vmatprep.subr.bf16.mxu0 0
    %2899 = vmatpush1.bf16.msra.mxu0 0
    %2900 = vmatprep.subr.bf16.mxu0 0
    %2901 = vmatpush1.bf16.msra.mxu0 0
    %2902 = vmatprep.subr.bf16.mxu0 0
    %2903 = vmatpush1.bf16.msra.mxu0 0
    %2904 = vmatprep.subr.bf16.mxu0 0
    %2905 = vmatpush1.bf16.msra.mxu0 0
    %2906 = vmatprep.subr.bf16.mxu0 0
    %2907 = vmatpush1.bf16.msra.mxu0 0
    %2908 = vmatprep.mubr.bf16.mxu0 0
    %2909 = vmatmul.mubr.bf16.gmra.mrb[0].mxu0 %v2818
    %v2910 = vpop.f32.mrb[0].mxu0
    %v2911 = vadd.f32 %v2703, %v2910
    %v2912 = vpop.f32.mrb[0].mxu0
    %v2913 = vadd.f32 %v2707, %v2912
    %v2914 = vpop.f32.mrb[0].mxu0
    %v2915 = vadd.f32 %v2703, %v2914
    %v2916 = vpop.f32.mrb[0].mxu0
    %v2917 = vadd.f32 %v2707, %v2916
    %2918 = vmatprep.mubr.bf16.mxu0 0
    %2919 = vmatmul.mubr.bf16.gmra.mrb[0].mxu0 %v2821
    %v2920 = vpop.f32.mrb[0].mxu0
    %v2921 = vadd.f32 %v2703, %v2920
    %v2922 = vpop.f32.mrb[0].mxu0
    %v2923 = vadd.f32 %v2707, %v2922
    %v2924 = vpop.f32.mrb[0].mxu0
    %v2925 = vadd.f32 %v2703, %v2924
    %v2926 = vpop.f32.mrb[0].mxu0
    %v2927 = vadd.f32 %v2707, %v2926
    %2928 = vdwg.mxu0
    %2929 = vmatprep.subr.bf16.mxu0 %v2785
    %2930 = vmatpush1.bf16.msra.mxu0 %v2784
    %2931 = vmatprep.subr.bf16.mxu0 %v2791
    %2932 = vmatpush1.bf16.msra.mxu0 %v2790
    %2933 = vmatprep.subr.bf16.mxu0 %v2797
    %2934 = vmatpush1.bf16.msra.mxu0 %v2796
    %2935 = vmatprep.subr.bf16.mxu0 0
    %2936 = vmatpush1.bf16.msra.mxu0 0
    %2937 = vmatprep.subr.bf16.mxu0 0
    %2938 = vmatpush1.bf16.msra.mxu0 0
    %2939 = vmatprep.subr.bf16.mxu0 0
    %2940 = vmatpush1.bf16.msra.mxu0 0
    %2941 = vmatprep.subr.bf16.mxu0 0
    %2942 = vmatpush1.bf16.msra.mxu0 0
    %2943 = vmatprep.subr.bf16.mxu0 0
    %2944 = vmatpush1.bf16.msra.mxu0 0
    %2945 = vmatprep.subr.bf16.mxu0 0
    %2946 = vmatpush1.bf16.msra.mxu0 0
    %2947 = vmatprep.subr.bf16.mxu0 0
    %2948 = vmatpush1.bf16.msra.mxu0 0
    %2949 = vmatprep.subr.bf16.mxu0 0
    %2950 = vmatpush1.bf16.msra.mxu0 0
    %2951 = vmatprep.subr.bf16.mxu0 0
    %2952 = vmatpush1.bf16.msra.mxu0 0
    %2953 = vmatprep.subr.bf16.mxu0 0
    %2954 = vmatpush1.bf16.msra.mxu0 0
    %2955 = vmatprep.subr.bf16.mxu0 0
    %2956 = vmatpush1.bf16.msra.mxu0 0
    %2957 = vmatprep.subr.bf16.mxu0 0
    %2958 = vmatpush1.bf16.msra.mxu0 0
    %2959 = vmatprep.subr.bf16.mxu0 0
    %2960 = vmatpush1.bf16.msra.mxu0 0
    %2961 = vmatprep.mubr.bf16.mxu0 0
    %2962 = vmatmul.mubr.bf16.gmra.mrb[0].mxu0 %v2818
    %v2963 = vpop.f32.mrb[0].mxu0
    %v2964 = vadd.f32 %v2711, %v2963
    %v2965 = vpop.f32.mrb[0].mxu0
    %v2966 = vadd.f32 %v2715, %v2965
    %v2967 = vpop.f32.mrb[0].mxu0
    %v2968 = vadd.f32 %v2711, %v2967
    %v2969 = vpop.f32.mrb[0].mxu0
    %v2970 = vadd.f32 %v2715, %v2969
    %2971 = vmatprep.mubr.bf16.mxu0 0
    %2972 = vmatmul.mubr.bf16.gmra.mrb[0].mxu0 %v2821
    %v2973 = vpop.f32.mrb[0].mxu0
    %v2974 = vadd.f32 %v2711, %v2973
    %v2975 = vpop.f32.mrb[0].mxu0
    %v2976 = vadd.f32 %v2715, %v2975
    %v2977 = vpop.f32.mrb[0].mxu0
    %v2978 = vadd.f32 %v2711, %v2977
    %v2979 = vpop.f32.mrb[0].mxu0
    %v2980 = vadd.f32 %v2715, %v2979
    %2981 = vdwg.mxu0
    %v2982 = vmax.f32 %v2858, 0.0
    %v2983 = vmax.f32 %v2860, 0.0
    %v2984 = vmax.f32 %v2911, 0.0
    %v2985 = vmax.f32 %v2913, 0.0
    %v2986 = vmax.f32 %v2964, 0.0
    %v2987 = vmax.f32 %v2966, 0.0
    %v2988 = vmax.f32 %v2862, 0.0
    %v2989 = vmax.f32 %v2864, 0.0
    %v2990 = vmax.f32 %v2915, 0.0
    %v2991 = vmax.f32 %v2917, 0.0
    %v2992 = vmax.f32 %v2968, 0.0
    %v2993 = vmax.f32 %v2970, 0.0
    %v2994 = vmax.f32 %v2868, 0.0
    %v2995 = vmax.f32 %v2870, 0.0
    %v2996 = vmax.f32 %v2921, 0.0
    %v2997 = vmax.f32 %v2923, 0.0
    %v2998 = vmax.f32 %v2974, 0.0
    %v2999 = vmax.f32 %v2976, 0.0
    %v3000 = vmax.f32 %v2872, 0.0
    %v3001 = vmax.f32 %v2874, 0.0
    %v3002 = vmax.f32 %v2925, 0.0
    %v3003 = vmax.f32 %v2927, 0.0
    %v3004 = vmax.f32 %v2978, 0.0
    %v3005 = vmax.f32 %v2980, 0.0
    %v3006 = vpack.c.bf16 %v2988, %v2982
    %v3007 = vpack.c.bf16 %v2989, %v2983
    %v3008 = vpack.c.bf16 %v2990, %v2984
    %v3009 = vpack.c.bf16 %v2991, %v2985
    %v3010 = vpack.c.bf16 %v2992, %v2986
    %v3011 = vpack.c.bf16 %v2993, %v2987
    %v3012 = vpack.c.bf16 %v3000, %v2994
    %v3013 = vpack.c.bf16 %v3001, %v2995
    %v3014 = vpack.c.bf16 %v3002, %v2996
    %v3015 = vpack.c.bf16 %v3003, %v2997
    %v3016 = vpack.c.bf16 %v3004, %v2998
    %v3017 = vpack.c.bf16 %v3005, %v2999
    %3018 = vmatprep.subr.bf16.mxu0 %v3007
    %3019 = vmatpush1.bf16.msra.mxu0 %v3006
    %3020 = vmatprep.subr.bf16.mxu0 %v3013
    %3021 = vmatpush1.bf16.msra.mxu0 %v3012
    %3022 = vmatprep.subr.bf16.mxu0 0
    %3023 = vmatpush1.bf16.msra.mxu0 0
    %3024 = vmatprep.subr.bf16.mxu0 0
    %3025 = vmatpush1.bf16.msra.mxu0 0
    %3026 = vmatprep.subr.bf16.mxu0 0
    %3027 = vmatpush1.bf16.msra.mxu0 0
    %3028 = vmatprep.subr.bf16.mxu0 0
    %3029 = vmatpush1.bf16.msra.mxu0 0
    %3030 = vmatprep.subr.bf16.mxu0 0
    %3031 = vmatpush1.bf16.msra.mxu0 0
    %3032 = vmatprep.subr.bf16.mxu0 0
    %3033 = vmatpush1.bf16.msra.mxu0 0
    %3034 = vmatprep.subr.bf16.mxu0 0
    %3035 = vmatpush1.bf16.msra.mxu0 0
    %3036 = vmatprep.subr.bf16.mxu0 0
    %3037 = vmatpush1.bf16.msra.mxu0 0
    %3038 = vmatprep.subr.bf16.mxu0 0
    %3039 = vmatpush1.bf16.msra.mxu0 0
    %3040 = vmatprep.subr.bf16.mxu0 0
    %3041 = vmatpush1.bf16.msra.mxu0 0
    %3042 = vmatprep.subr.bf16.mxu0 0
    %3043 = vmatpush1.bf16.msra.mxu0 0
    %3044 = vmatprep.subr.bf16.mxu0 0
    %3045 = vmatpush1.bf16.msra.mxu0 0
    %3046 = vmatprep.subr.bf16.mxu0 0
    %3047 = vmatpush1.bf16.msra.mxu0 0
    %3048 = vmatprep.subr.bf16.mxu0 0
    %3049 = vmatpush1.bf16.msra.mxu0 0
    %3050 = vmatprep.mubr.bf16.mxu0 0
    %3051 = vmatmul.mubr.bf16.gmra.mrb[0].mxu0 %v238
    %v3052 = vpop.f32.mrb[0].mxu0
    %v3053 = vadd.f32 0.0, %v3052
    %v3054 = vpop.f32.mrb[0].mxu0
    %v3055 = vadd.f32 0.0, %v3054
    %v3056 = vpop.f32.mrb[0].mxu0
    %v3057 = vpop.f32.mrb[0].mxu0
    %3058 = vdwg.mxu0
    %3059 = vmatprep.subr.bf16.mxu0 %v3009
    %3060 = vmatpush1.bf16.msra.mxu0 %v3008
    %3061 = vmatprep.subr.bf16.mxu0 %v3015
    %3062 = vmatpush1.bf16.msra.mxu0 %v3014
    %3063 = vmatprep.subr.bf16.mxu0 0
    %3064 = vmatpush1.bf16.msra.mxu0 0
    %3065 = vmatprep.subr.bf16.mxu0 0
    %3066 = vmatpush1.bf16.msra.mxu0 0
    %3067 = vmatprep.subr.bf16.mxu0 0
    %3068 = vmatpush1.bf16.msra.mxu0 0
    %3069 = vmatprep.subr.bf16.mxu0 0
    %3070 = vmatpush1.bf16.msra.mxu0 0
    %3071 = vmatprep.subr.bf16.mxu0 0
    %3072 = vmatpush1.bf16.msra.mxu0 0
    %3073 = vmatprep.subr.bf16.mxu0 0
    %3074 = vmatpush1.bf16.msra.mxu0 0
    %3075 = vmatprep.subr.bf16.mxu0 0
    %3076 = vmatpush1.bf16.msra.mxu0 0
    %3077 = vmatprep.subr.bf16.mxu0 0
    %3078 = vmatpush1.bf16.msra.mxu0 0
    %3079 = vmatprep.subr.bf16.mxu0 0
    %3080 = vmatpush1.bf16.msra.mxu0 0
    %3081 = vmatprep.subr.bf16.mxu0 0
    %3082 = vmatpush1.bf16.msra.mxu0 0
    %3083 = vmatprep.subr.bf16.mxu0 0
    %3084 = vmatpush1.bf16.msra.mxu0 0
    %3085 = vmatprep.subr.bf16.mxu0 0
    %3086 = vmatpush1.bf16.msra.mxu0 0
    %3087 = vmatprep.subr.bf16.mxu0 0
    %3088 = vmatpush1.bf16.msra.mxu0 0
    %3089 = vmatprep.subr.bf16.mxu0 0
    %3090 = vmatpush1.bf16.msra.mxu0 0
    %3091 = vmatprep.mubr.bf16.mxu0 0
    %3092 = vmatmul.mubr.bf16.gmra.mrb[0].mxu0 %v238
    %v3093 = vpop.f32.mrb[0].mxu0
    %v3094 = vadd.f32 0.0, %v3093
    %v3095 = vpop.f32.mrb[0].mxu0
    %v3096 = vadd.f32 0.0, %v3095
    %v3097 = vpop.f32.mrb[0].mxu0
    %v3098 = vpop.f32.mrb[0].mxu0
    %3099 = vdwg.mxu0
    %3100 = vmatprep.subr.bf16.mxu0 %v3011
    %3101 = vmatpush1.bf16.msra.mxu0 %v3010
    %3102 = vmatprep.subr.bf16.mxu0 %v3017
    %3103 = vmatpush1.bf16.msra.mxu0 %v3016
    %3104 = vmatprep.subr.bf16.mxu0 0
    %3105 = vmatpush1.bf16.msra.mxu0 0
    %3106 = vmatprep.subr.bf16.mxu0 0
    %3107 = vmatpush1.bf16.msra.mxu0 0
    %3108 = vmatprep.subr.bf16.mxu0 0
    %3109 = vmatpush1.bf16.msra.mxu0 0
    %3110 = vmatprep.subr.bf16.mxu0 0
    %3111 = vmatpush1.bf16.msra.mxu0 0
    %3112 = vmatprep.subr.bf16.mxu0 0
    %3113 = vmatpush1.bf16.msra.mxu0 0
    %3114 = vmatprep.subr.bf16.mxu0 0
    %3115 = vmatpush1.bf16.msra.mxu0 0
    %3116 = vmatprep.subr.bf16.mxu0 0
    %3117 = vmatpush1.bf16.msra.mxu0 0
    %3118 = vmatprep.subr.bf16.mxu0 0
    %3119 = vmatpush1.bf16.msra.mxu0 0
    %3120 = vmatprep.subr.bf16.mxu0 0
    %3121 = vmatpush1.bf16.msra.mxu0 0
    %3122 = vmatprep.subr.bf16.mxu0 0
    %3123 = vmatpush1.bf16.msra.mxu0 0
    %3124 = vmatprep.subr.bf16.mxu0 0
    %3125 = vmatpush1.bf16.msra.mxu0 0
    %3126 = vmatprep.subr.bf16.mxu0 0
    %3127 = vmatpush1.bf16.msra.mxu0 0
    %3128 = vmatprep.subr.bf16.mxu0 0
    %3129 = vmatpush1.bf16.msra.mxu0 0
    %3130 = vmatprep.subr.bf16.mxu0 0
    %3131 = vmatpush1.bf16.msra.mxu0 0
    %3132 = vmatprep.mubr.bf16.mxu0 0
    %3133 = vmatmul.mubr.bf16.gmra.mrb[0].mxu0 %v238
    %v3134 = vpop.f32.mrb[0].mxu0
    %v3135 = vadd.f32 0.0, %v3134
    %v3136 = vpop.f32.mrb[0].mxu0
    %v3137 = vadd.f32 0.0, %v3136
    %v3138 = vpop.f32.mrb[0].mxu0
    %v3139 = vpop.f32.mrb[0].mxu0
    %3140 = vdwg.mxu0
    %v3141 = vpack.c.bf16 %v275, %v275
    %v3142 = vld [vmem:[#allocation7] sm:$0xff]
    %v3143 = vld [vmem:[#allocation7 + $0x8] sm:$0xff]
    %v3144 = vld [vmem:[#allocation7 + $0x10] sm:$0xff]
    %v3145 = vld [vmem:[#allocation7 + $0x18] sm:$0xff]
    %v3146 = vld [vmem:[#allocation7 + $0x20] sm:$0xff]
    %v3147 = vld [vmem:[#allocation7 + $0x28] sm:$0xff]
    %v3148 = vld [vmem:[#allocation7 + $0x30] sm:$0xff]
    %v3149 = vld [vmem:[#allocation7 + $0x38] sm:$0xff]
    %v3150 = vld [vmem:[#allocation7 + $0x40] sm:$0xff]
    %v3151 = vld [vmem:[#allocation7 + $0x48] sm:$0xff]
    %v3152 = vld [vmem:[#allocation7 + $0x50] sm:$0xff]
    %v3153 = vld [vmem:[#allocation7 + $0x58] sm:$0xff]
    %v3154 = vld [vmem:[#allocation7 + $0x60] sm:$0xff]
    %v3155 = vld [vmem:[#allocation7 + $0x68] sm:$0xff]
    %v3156 = vld [vmem:[#allocation7 + $0x70] sm:$0xff]
    %v3157 = vld [vmem:[#allocation7 + $0x78] sm:$0xff]
    %v3158 = vld [vmem:[#allocation7 + $0x80] sm:$0xff]
    %v3159 = vld [vmem:[#allocation7 + $0x88] sm:$0xff]
    %v3160 = vld [vmem:[#allocation7 + $0x90] sm:$0xff]
    %v3161 = vld [vmem:[#allocation7 + $0x98] sm:$0xff]
    %v3162 = vld [vmem:[#allocation7 + $0xa0] sm:$0xff]
    %v3163 = vld [vmem:[#allocation7 + $0xa8] sm:$0xff]
    %v3164 = vld [vmem:[#allocation7 + $0xb0] sm:$0xff]
    %v3165 = vld [vmem:[#allocation7 + $0xb8] sm:$0xff]
    %v3166 = vpack.c.bf16 %v3053, %v3053
    %v3167 = vpack.c.bf16 %v3055, %v3055
    %v3168 = vpack.c.bf16 %v3094, %v3094
    %v3169 = vpack.c.bf16 %v3096, %v3096
    %v3170 = vpack.c.bf16 %v3135, %v3135
    %v3171 = vpack.c.bf16 %v3137, %v3137
    %s3172 = scalar_lea.vmem [#allocation10], 2304
    %v3173 = vld [vmem:[%s3172] sm:$0xff]
    %v3174 = vld [vmem:[%s3172 + $0x8] sm:$0xff]
    %v3175 = vld [vmem:[%s3172 + $0x10] sm:$0xff]
    %v3176 = vld [vmem:[%s3172 + $0x18] sm:$0xff]
    %v3177 = vld [vmem:[%s3172 + $0x20] sm:$0xff]
    %v3178 = vld [vmem:[%s3172 + $0x28] sm:$0xff]
    %v3179 = vld [vmem:[%s3172 + $0x30] sm:$0xff]
    %v3180 = vld [vmem:[%s3172 + $0x38] sm:$0xff]
    %v3181 = vld [vmem:[%s3172 + $0x40] sm:$0xff]
    %v3182 = vld [vmem:[%s3172 + $0x48] sm:$0xff]
    %v3183 = vld [vmem:[%s3172 + $0x50] sm:$0xff]
    %v3184 = vld [vmem:[%s3172 + $0x58] sm:$0xff]
    %v3185 = vld [vmem:[%s3172 + $0x60] sm:$0xff]
    %v3186 = vld [vmem:[%s3172 + $0x68] sm:$0xff]
    %v3187 = vld [vmem:[%s3172 + $0x70] sm:$0xff]
    %v3188 = vld [vmem:[%s3172 + $0x78] sm:$0xff]
    %v3189 = vld [vmem:[%s3172 + $0x80] sm:$0xff]
    %v3190 = vld [vmem:[%s3172 + $0x88] sm:$0xff]
    %v3191 = vld [vmem:[%s3172 + $0x90] sm:$0xff]
    %v3192 = vld [vmem:[%s3172 + $0x98] sm:$0xff]
    %v3193 = vld [vmem:[%s3172 + $0xa0] sm:$0xff]
    %v3194 = vld [vmem:[%s3172 + $0xa8] sm:$0xff]
    %v3195 = vld [vmem:[%s3172 + $0xb0] sm:$0xff]
    %v3196 = vld [vmem:[%s3172 + $0xb8] sm:$0xff]
    %v3197 = vld [vmem:[%s3172 + $0xc0] sm:$0xff]
    %v3198 = vld [vmem:[%s3172 + $0xc8] sm:$0xff]
    %v3199 = vld [vmem:[%s3172 + $0xd0] sm:$0xff]
    %v3200 = vld [vmem:[%s3172 + $0xd8] sm:$0xff]
    %v3201 = vld [vmem:[%s3172 + $0xe0] sm:$0xff]
    %v3202 = vld [vmem:[%s3172 + $0xe8] sm:$0xff]
    %v3203 = vld [vmem:[%s3172 + $0xf0] sm:$0xff]
    %v3204 = vld [vmem:[%s3172 + $0xf8] sm:$0xff]
    %v3205 = vld [vmem:[%s3172 + $0x100] sm:$0xff]
    %v3206 = vld [vmem:[%s3172 + $0x108] sm:$0xff]
    %v3207 = vld [vmem:[%s3172 + $0x110] sm:$0xff]
    %v3208 = vld [vmem:[%s3172 + $0x118] sm:$0xff]
    %v3209 = vld [vmem:[%s3172 + $0x120] sm:$0xff]
    %v3210 = vld [vmem:[%s3172 + $0x128] sm:$0xff]
    %v3211 = vld [vmem:[%s3172 + $0x130] sm:$0xff]
    %v3212 = vld [vmem:[%s3172 + $0x138] sm:$0xff]
    %v3213 = vld [vmem:[%s3172 + $0x140] sm:$0xff]
    %v3214 = vld [vmem:[%s3172 + $0x148] sm:$0xff]
    %v3215 = vld [vmem:[%s3172 + $0x150] sm:$0xff]
    %v3216 = vld [vmem:[%s3172 + $0x158] sm:$0xff]
    %v3217 = vld [vmem:[%s3172 + $0x160] sm:$0xff]
    %v3218 = vld [vmem:[%s3172 + $0x168] sm:$0xff]
    %v3219 = vld [vmem:[%s3172 + $0x170] sm:$0xff]
    %v3220 = vld [vmem:[%s3172 + $0x178] sm:$0xff]
    %v3221 = vld [vmem:[%s3172 + $0x180] sm:$0xff]
    %v3222 = vld [vmem:[%s3172 + $0x188] sm:$0xff]
    %v3223 = vld [vmem:[%s3172 + $0x190] sm:$0xff]
    %v3224 = vld [vmem:[%s3172 + $0x198] sm:$0xff]
    %v3225 = vld [vmem:[%s3172 + $0x1a0] sm:$0xff]
    %v3226 = vld [vmem:[%s3172 + $0x1a8] sm:$0xff]
    %v3227 = vld [vmem:[%s3172 + $0x1b0] sm:$0xff]
    %v3228 = vld [vmem:[%s3172 + $0x1b8] sm:$0xff]
    %v3229 = vld [vmem:[%s3172 + $0x1c0] sm:$0xff]
    %v3230 = vld [vmem:[%s3172 + $0x1c8] sm:$0xff]
    %v3231 = vld [vmem:[%s3172 + $0x1d0] sm:$0xff]
    %v3232 = vld [vmem:[%s3172 + $0x1d8] sm:$0xff]
    %v3233 = vld [vmem:[%s3172 + $0x1e0] sm:$0xff]
    %v3234 = vld [vmem:[%s3172 + $0x1e8] sm:$0xff]
    %v3235 = vld [vmem:[%s3172 + $0x1f0] sm:$0xff]
    %v3236 = vld [vmem:[%s3172 + $0x1f8] sm:$0xff]
    %v3237 = vld [vmem:[%s3172 + $0x200] sm:$0xff]
    %v3238 = vld [vmem:[%s3172 + $0x208] sm:$0xff]
    %v3239 = vld [vmem:[%s3172 + $0x210] sm:$0xff]
    %v3240 = vld [vmem:[%s3172 + $0x218] sm:$0xff]
    %v3241 = vld [vmem:[%s3172 + $0x220] sm:$0xff]
    %v3242 = vld [vmem:[%s3172 + $0x228] sm:$0xff]
    %v3243 = vld [vmem:[%s3172 + $0x230] sm:$0xff]
    %v3244 = vld [vmem:[%s3172 + $0x238] sm:$0xff]
    %v3245 = vld [vmem:[%s3172 + $0x240] sm:$0xff]
    %v3246 = vld [vmem:[%s3172 + $0x248] sm:$0xff]
    %v3247 = vld [vmem:[%s3172 + $0x250] sm:$0xff]
    %v3248 = vld [vmem:[%s3172 + $0x258] sm:$0xff]
    %v3249 = vld [vmem:[%s3172 + $0x260] sm:$0xff]
    %v3250 = vld [vmem:[%s3172 + $0x268] sm:$0xff]
    %v3251 = vld [vmem:[%s3172 + $0x270] sm:$0xff]
    %v3252 = vld [vmem:[%s3172 + $0x278] sm:$0xff]
    %v3253 = vld [vmem:[%s3172 + $0x280] sm:$0xff]
    %v3254 = vld [vmem:[%s3172 + $0x288] sm:$0xff]
    %v3255 = vld [vmem:[%s3172 + $0x290] sm:$0xff]
    %v3256 = vld [vmem:[%s3172 + $0x298] sm:$0xff]
    %v3257 = vld [vmem:[%s3172 + $0x2a0] sm:$0xff]
    %v3258 = vld [vmem:[%s3172 + $0x2a8] sm:$0xff]
    %v3259 = vld [vmem:[%s3172 + $0x2b0] sm:$0xff]
    %v3260 = vld [vmem:[%s3172 + $0x2b8] sm:$0xff]
    %v3261 = vld [vmem:[%s3172 + $0x2c0] sm:$0xff]
    %v3262 = vld [vmem:[%s3172 + $0x2c8] sm:$0xff]
    %v3263 = vld [vmem:[%s3172 + $0x2d0] sm:$0xff]
    %v3264 = vld [vmem:[%s3172 + $0x2d8] sm:$0xff]
    %v3265 = vld [vmem:[%s3172 + $0x2e0] sm:$0xff]
    %v3266 = vld [vmem:[%s3172 + $0x2e8] sm:$0xff]
    %v3267 = vld [vmem:[%s3172 + $0x2f0] sm:$0xff]
    %v3268 = vld [vmem:[%s3172 + $0x2f8] sm:$0xff]
    %v3269 = vld [vmem:[%s3172 + $0x300] sm:$0xff]
    %v3270 = vld [vmem:[%s3172 + $0x308] sm:$0xff]
    %v3271 = vld [vmem:[%s3172 + $0x310] sm:$0xff]
    %v3272 = vld [vmem:[%s3172 + $0x318] sm:$0xff]
    %v3273 = vld [vmem:[%s3172 + $0x320] sm:$0xff]
    %v3274 = vld [vmem:[%s3172 + $0x328] sm:$0xff]
    %v3275 = vld [vmem:[%s3172 + $0x330] sm:$0xff]
    %v3276 = vld [vmem:[%s3172 + $0x338] sm:$0xff]
    %v3277 = vld [vmem:[%s3172 + $0x340] sm:$0xff]
    %v3278 = vld [vmem:[%s3172 + $0x348] sm:$0xff]
    %v3279 = vld [vmem:[%s3172 + $0x350] sm:$0xff]
    %v3280 = vld [vmem:[%s3172 + $0x358] sm:$0xff]
    %v3281 = vld [vmem:[%s3172 + $0x360] sm:$0xff]
    %v3282 = vld [vmem:[%s3172 + $0x368] sm:$0xff]
    %v3283 = vld [vmem:[%s3172 + $0x370] sm:$0xff]
    %v3284 = vld [vmem:[%s3172 + $0x378] sm:$0xff]
    %v3285 = vld [vmem:[%s3172 + $0x380] sm:$0xff]
    %v3286 = vld [vmem:[%s3172 + $0x388] sm:$0xff]
    %v3287 = vld [vmem:[%s3172 + $0x390] sm:$0xff]
    %v3288 = vld [vmem:[%s3172 + $0x398] sm:$0xff]
    %v3289 = vld [vmem:[%s3172 + $0x3a0] sm:$0xff]
    %v3290 = vld [vmem:[%s3172 + $0x3a8] sm:$0xff]
    %v3291 = vld [vmem:[%s3172 + $0x3b0] sm:$0xff]
    %v3292 = vld [vmem:[%s3172 + $0x3b8] sm:$0xff]
    %v3293 = vld [vmem:[%s3172 + $0x3c0] sm:$0xff]
    %v3294 = vld [vmem:[%s3172 + $0x3c8] sm:$0xff]
    %v3295 = vld [vmem:[%s3172 + $0x3d0] sm:$0xff]
    %v3296 = vld [vmem:[%s3172 + $0x3d8] sm:$0xff]
    %v3297 = vld [vmem:[%s3172 + $0x3e0] sm:$0xff]
    %v3298 = vld [vmem:[%s3172 + $0x3e8] sm:$0xff]
    %v3299 = vld [vmem:[%s3172 + $0x3f0] sm:$0xff]
    %v3300 = vld [vmem:[%s3172 + $0x3f8] sm:$0xff]
    %v3301 = vld [vmem:[%s3172 + $0x400] sm:$0xff]
    %v3302 = vld [vmem:[%s3172 + $0x408] sm:$0xff]
    %v3303 = vld [vmem:[%s3172 + $0x410] sm:$0xff]
    %v3304 = vld [vmem:[%s3172 + $0x418] sm:$0xff]
    %v3305 = vld [vmem:[%s3172 + $0x420] sm:$0xff]
    %v3306 = vld [vmem:[%s3172 + $0x428] sm:$0xff]
    %v3307 = vld [vmem:[%s3172 + $0x430] sm:$0xff]
    %v3308 = vld [vmem:[%s3172 + $0x438] sm:$0xff]
    %v3309 = vld [vmem:[%s3172 + $0x440] sm:$0xff]
    %v3310 = vld [vmem:[%s3172 + $0x448] sm:$0xff]
    %v3311 = vld [vmem:[%s3172 + $0x450] sm:$0xff]
    %v3312 = vld [vmem:[%s3172 + $0x458] sm:$0xff]
    %v3313 = vld [vmem:[%s3172 + $0x460] sm:$0xff]
    %v3314 = vld [vmem:[%s3172 + $0x468] sm:$0xff]
    %v3315 = vld [vmem:[%s3172 + $0x470] sm:$0xff]
    %v3316 = vld [vmem:[%s3172 + $0x478] sm:$0xff]
    %v3317 = vld [vmem:[%s3172 + $0x480] sm:$0xff]
    %v3318 = vld [vmem:[%s3172 + $0x488] sm:$0xff]
    %v3319 = vld [vmem:[%s3172 + $0x490] sm:$0xff]
    %v3320 = vld [vmem:[%s3172 + $0x498] sm:$0xff]
    %v3321 = vld [vmem:[%s3172 + $0x4a0] sm:$0xff]
    %v3322 = vld [vmem:[%s3172 + $0x4a8] sm:$0xff]
    %v3323 = vld [vmem:[%s3172 + $0x4b0] sm:$0xff]
    %v3324 = vld [vmem:[%s3172 + $0x4b8] sm:$0xff]
    %v3325 = vld [vmem:[%s3172 + $0x4c0] sm:$0xff]
    %v3326 = vld [vmem:[%s3172 + $0x4c8] sm:$0xff]
    %v3327 = vld [vmem:[%s3172 + $0x4d0] sm:$0xff]
    %v3328 = vld [vmem:[%s3172 + $0x4d8] sm:$0xff]
    %v3329 = vld [vmem:[%s3172 + $0x4e0] sm:$0xff]
    %v3330 = vld [vmem:[%s3172 + $0x4e8] sm:$0xff]
    %v3331 = vld [vmem:[%s3172 + $0x4f0] sm:$0xff]
    %v3332 = vld [vmem:[%s3172 + $0x4f8] sm:$0xff]
    %v3333 = vld [vmem:[%s3172 + $0x500] sm:$0xff]
    %v3334 = vld [vmem:[%s3172 + $0x508] sm:$0xff]
    %v3335 = vld [vmem:[%s3172 + $0x510] sm:$0xff]
    %v3336 = vld [vmem:[%s3172 + $0x518] sm:$0xff]
    %v3337 = vld [vmem:[%s3172 + $0x520] sm:$0xff]
    %v3338 = vld [vmem:[%s3172 + $0x528] sm:$0xff]
    %v3339 = vld [vmem:[%s3172 + $0x530] sm:$0xff]
    %v3340 = vld [vmem:[%s3172 + $0x538] sm:$0xff]
    %v3341 = vld [vmem:[%s3172 + $0x540] sm:$0xff]
    %v3342 = vld [vmem:[%s3172 + $0x548] sm:$0xff]
    %v3343 = vld [vmem:[%s3172 + $0x550] sm:$0xff]
    %v3344 = vld [vmem:[%s3172 + $0x558] sm:$0xff]
    %v3345 = vld [vmem:[%s3172 + $0x560] sm:$0xff]
    %v3346 = vld [vmem:[%s3172 + $0x568] sm:$0xff]
    %v3347 = vld [vmem:[%s3172 + $0x570] sm:$0xff]
    %v3348 = vld [vmem:[%s3172 + $0x578] sm:$0xff]
    %v3349 = vld [vmem:[%s3172 + $0x580] sm:$0xff]
    %v3350 = vld [vmem:[%s3172 + $0x588] sm:$0xff]
    %v3351 = vld [vmem:[%s3172 + $0x590] sm:$0xff]
    %v3352 = vld [vmem:[%s3172 + $0x598] sm:$0xff]
    %v3353 = vld [vmem:[%s3172 + $0x5a0] sm:$0xff]
    %v3354 = vld [vmem:[%s3172 + $0x5a8] sm:$0xff]
    %v3355 = vld [vmem:[%s3172 + $0x5b0] sm:$0xff]
    %v3356 = vld [vmem:[%s3172 + $0x5b8] sm:$0xff]
    %v3357 = vld [vmem:[%s3172 + $0x5c0] sm:$0xff]
    %v3358 = vld [vmem:[%s3172 + $0x5c8] sm:$0xff]
    %v3359 = vld [vmem:[%s3172 + $0x5d0] sm:$0xff]
    %v3360 = vld [vmem:[%s3172 + $0x5d8] sm:$0xff]
    %v3361 = vld [vmem:[%s3172 + $0x5e0] sm:$0xff]
    %v3362 = vld [vmem:[%s3172 + $0x5e8] sm:$0xff]
    %v3363 = vld [vmem:[%s3172 + $0x5f0] sm:$0xff]
    %v3364 = vld [vmem:[%s3172 + $0x5f8] sm:$0xff]
    %v3365 = vld [vmem:[%s3172 + $0x600] sm:$0xff]
    %v3366 = vld [vmem:[%s3172 + $0x608] sm:$0xff]
    %v3367 = vld [vmem:[%s3172 + $0x610] sm:$0xff]
    %v3368 = vld [vmem:[%s3172 + $0x618] sm:$0xff]
    %v3369 = vld [vmem:[%s3172 + $0x620] sm:$0xff]
    %v3370 = vld [vmem:[%s3172 + $0x628] sm:$0xff]
    %v3371 = vld [vmem:[%s3172 + $0x630] sm:$0xff]
    %v3372 = vld [vmem:[%s3172 + $0x638] sm:$0xff]
    %v3373 = vld [vmem:[%s3172 + $0x640] sm:$0xff]
    %v3374 = vld [vmem:[%s3172 + $0x648] sm:$0xff]
    %v3375 = vld [vmem:[%s3172 + $0x650] sm:$0xff]
    %v3376 = vld [vmem:[%s3172 + $0x658] sm:$0xff]
    %v3377 = vld [vmem:[%s3172 + $0x660] sm:$0xff]
    %v3378 = vld [vmem:[%s3172 + $0x668] sm:$0xff]
    %v3379 = vld [vmem:[%s3172 + $0x670] sm:$0xff]
    %v3380 = vld [vmem:[%s3172 + $0x678] sm:$0xff]
    %v3381 = vld [vmem:[%s3172 + $0x680] sm:$0xff]
    %v3382 = vld [vmem:[%s3172 + $0x688] sm:$0xff]
    %v3383 = vld [vmem:[%s3172 + $0x690] sm:$0xff]
    %v3384 = vld [vmem:[%s3172 + $0x698] sm:$0xff]
    %v3385 = vld [vmem:[%s3172 + $0x6a0] sm:$0xff]
    %v3386 = vld [vmem:[%s3172 + $0x6a8] sm:$0xff]
    %v3387 = vld [vmem:[%s3172 + $0x6b0] sm:$0xff]
    %v3388 = vld [vmem:[%s3172 + $0x6b8] sm:$0xff]
    %v3389 = vld [vmem:[%s3172 + $0x6c0] sm:$0xff]
    %v3390 = vld [vmem:[%s3172 + $0x6c8] sm:$0xff]
    %v3391 = vld [vmem:[%s3172 + $0x6d0] sm:$0xff]
    %v3392 = vld [vmem:[%s3172 + $0x6d8] sm:$0xff]
    %v3393 = vld [vmem:[%s3172 + $0x6e0] sm:$0xff]
    %v3394 = vld [vmem:[%s3172 + $0x6e8] sm:$0xff]
    %v3395 = vld [vmem:[%s3172 + $0x6f0] sm:$0xff]
    %v3396 = vld [vmem:[%s3172 + $0x6f8] sm:$0xff]
    %v3397 = vld [vmem:[%s3172 + $0x700] sm:$0xff]
    %v3398 = vld [vmem:[%s3172 + $0x708] sm:$0xff]
    %v3399 = vld [vmem:[%s3172 + $0x710] sm:$0xff]
    %v3400 = vld [vmem:[%s3172 + $0x718] sm:$0xff]
    %v3401 = vld [vmem:[%s3172 + $0x720] sm:$0xff]
    %v3402 = vld [vmem:[%s3172 + $0x728] sm:$0xff]
    %v3403 = vld [vmem:[%s3172 + $0x730] sm:$0xff]
    %v3404 = vld [vmem:[%s3172 + $0x738] sm:$0xff]
    %v3405 = vld [vmem:[%s3172 + $0x740] sm:$0xff]
    %v3406 = vld [vmem:[%s3172 + $0x748] sm:$0xff]
    %v3407 = vld [vmem:[%s3172 + $0x750] sm:$0xff]
    %v3408 = vld [vmem:[%s3172 + $0x758] sm:$0xff]
    %v3409 = vld [vmem:[%s3172 + $0x760] sm:$0xff]
    %v3410 = vld [vmem:[%s3172 + $0x768] sm:$0xff]
    %v3411 = vld [vmem:[%s3172 + $0x770] sm:$0xff]
    %v3412 = vld [vmem:[%s3172 + $0x778] sm:$0xff]
    %v3413 = vld [vmem:[%s3172 + $0x780] sm:$0xff]
    %v3414 = vld [vmem:[%s3172 + $0x788] sm:$0xff]
    %v3415 = vld [vmem:[%s3172 + $0x790] sm:$0xff]
    %v3416 = vld [vmem:[%s3172 + $0x798] sm:$0xff]
    %v3417 = vld [vmem:[%s3172 + $0x7a0] sm:$0xff]
    %v3418 = vld [vmem:[%s3172 + $0x7a8] sm:$0xff]
    %v3419 = vld [vmem:[%s3172 + $0x7b0] sm:$0xff]
    %v3420 = vld [vmem:[%s3172 + $0x7b8] sm:$0xff]
    %v3421 = vld [vmem:[%s3172 + $0x7c0] sm:$0xff]
    %v3422 = vld [vmem:[%s3172 + $0x7c8] sm:$0xff]
    %v3423 = vld [vmem:[%s3172 + $0x7d0] sm:$0xff]
    %v3424 = vld [vmem:[%s3172 + $0x7d8] sm:$0xff]
    %v3425 = vld [vmem:[%s3172 + $0x7e0] sm:$0xff]
    %v3426 = vld [vmem:[%s3172 + $0x7e8] sm:$0xff]
    %v3427 = vld [vmem:[%s3172 + $0x7f0] sm:$0xff]
    %v3428 = vld [vmem:[%s3172 + $0x7f8] sm:$0xff]
    %v3429 = vld [vmem:[%s3172 + $0x800] sm:$0xff]
    %v3430 = vld [vmem:[%s3172 + $0x808] sm:$0xff]
    %v3431 = vld [vmem:[%s3172 + $0x810] sm:$0xff]
    %v3432 = vld [vmem:[%s3172 + $0x818] sm:$0xff]
    %v3433 = vld [vmem:[%s3172 + $0x820] sm:$0xff]
    %v3434 = vld [vmem:[%s3172 + $0x828] sm:$0xff]
    %v3435 = vld [vmem:[%s3172 + $0x830] sm:$0xff]
    %v3436 = vld [vmem:[%s3172 + $0x838] sm:$0xff]
    %v3437 = vld [vmem:[%s3172 + $0x840] sm:$0xff]
    %v3438 = vld [vmem:[%s3172 + $0x848] sm:$0xff]
    %v3439 = vld [vmem:[%s3172 + $0x850] sm:$0xff]
    %v3440 = vld [vmem:[%s3172 + $0x858] sm:$0xff]
    %v3441 = vld [vmem:[%s3172 + $0x860] sm:$0xff]
    %v3442 = vld [vmem:[%s3172 + $0x868] sm:$0xff]
    %v3443 = vld [vmem:[%s3172 + $0x870] sm:$0xff]
    %v3444 = vld [vmem:[%s3172 + $0x878] sm:$0xff]
    %v3445 = vld [vmem:[%s3172 + $0x880] sm:$0xff]
    %v3446 = vld [vmem:[%s3172 + $0x888] sm:$0xff]
    %v3447 = vld [vmem:[%s3172 + $0x890] sm:$0xff]
    %v3448 = vld [vmem:[%s3172 + $0x898] sm:$0xff]
    %v3449 = vld [vmem:[%s3172 + $0x8a0] sm:$0xff]
    %v3450 = vld [vmem:[%s3172 + $0x8a8] sm:$0xff]
    %v3451 = vld [vmem:[%s3172 + $0x8b0] sm:$0xff]
    %v3452 = vld [vmem:[%s3172 + $0x8b8] sm:$0xff]
    %v3453 = vld [vmem:[%s3172 + $0x8c0] sm:$0xff]
    %v3454 = vld [vmem:[%s3172 + $0x8c8] sm:$0xff]
    %v3455 = vld [vmem:[%s3172 + $0x8d0] sm:$0xff]
    %v3456 = vld [vmem:[%s3172 + $0x8d8] sm:$0xff]
    %v3457 = vld [vmem:[%s3172 + $0x8e0] sm:$0xff]
    %v3458 = vld [vmem:[%s3172 + $0x8e8] sm:$0xff]
    %v3459 = vld [vmem:[%s3172 + $0x8f0] sm:$0xff]
    %v3460 = vld [vmem:[%s3172 + $0x8f8] sm:$0xff]
    %v3749 = vunpack.c.l.b16 %v3173
    %v3750 = vunpack.c.h.b16 %v3173
    %v3751 = vunpack.c.l.b16 %v3174
    %v3752 = vunpack.c.h.b16 %v3174
    %v3753 = vunpack.c.l.b16 %v3175
    %v3754 = vunpack.c.h.b16 %v3175
    %v3755 = vunpack.c.l.b16 %v3176
    %v3756 = vunpack.c.h.b16 %v3176
    %v3757 = vunpack.c.l.b16 %v3177
    %v3758 = vunpack.c.h.b16 %v3177
    %v3759 = vunpack.c.l.b16 %v3178
    %v3760 = vunpack.c.h.b16 %v3178
    %v3761 = vunpack.c.l.b16 %v3179
    %v3762 = vunpack.c.h.b16 %v3179
    %v3763 = vunpack.c.l.b16 %v3180
    %v3764 = vunpack.c.h.b16 %v3180
    %v3765 = vunpack.c.l.b16 %v3181
    %v3766 = vunpack.c.h.b16 %v3181
    %v3767 = vunpack.c.l.b16 %v3182
    %v3768 = vunpack.c.h.b16 %v3182
    %v3769 = vunpack.c.l.b16 %v3183
    %v3770 = vunpack.c.h.b16 %v3183
    %v3771 = vunpack.c.l.b16 %v3184
    %v3772 = vunpack.c.h.b16 %v3184
    %v3773 = vunpack.c.l.b16 %v3185
    %v3774 = vunpack.c.h.b16 %v3185
    %v3775 = vunpack.c.l.b16 %v3186
    %v3776 = vunpack.c.h.b16 %v3186
    %v3777 = vunpack.c.l.b16 %v3187
    %v3778 = vunpack.c.h.b16 %v3187
    %v3779 = vunpack.c.l.b16 %v3188
    %v3780 = vunpack.c.h.b16 %v3188
    %v3781 = vunpack.c.l.b16 %v3189
    %v3782 = vunpack.c.h.b16 %v3189
    %v3783 = vunpack.c.l.b16 %v3190
    %v3784 = vunpack.c.h.b16 %v3190
    %v3785 = vunpack.c.l.b16 %v3191
    %v3786 = vunpack.c.h.b16 %v3191
    %v3787 = vunpack.c.l.b16 %v3192
    %v3788 = vunpack.c.h.b16 %v3192
    %v3789 = vunpack.c.l.b16 %v3193
    %v3790 = vunpack.c.h.b16 %v3193
    %v3791 = vunpack.c.l.b16 %v3194
    %v3792 = vunpack.c.h.b16 %v3194
    %v3793 = vunpack.c.l.b16 %v3195
    %v3794 = vunpack.c.h.b16 %v3195
    %v3795 = vunpack.c.l.b16 %v3196
    %v3796 = vunpack.c.h.b16 %v3196
    %v3797 = vunpack.c.l.b16 %v3197
    %v3798 = vunpack.c.h.b16 %v3197
    %v3799 = vunpack.c.l.b16 %v3198
    %v3800 = vunpack.c.h.b16 %v3198
    %v3801 = vunpack.c.l.b16 %v3199
    %v3802 = vunpack.c.h.b16 %v3199
    %v3803 = vunpack.c.l.b16 %v3200
    %v3804 = vunpack.c.h.b16 %v3200
    %v3805 = vunpack.c.l.b16 %v3201
    %v3806 = vunpack.c.h.b16 %v3201
    %v3807 = vunpack.c.l.b16 %v3202
    %v3808 = vunpack.c.h.b16 %v3202
    %v3809 = vunpack.c.l.b16 %v3203
    %v3810 = vunpack.c.h.b16 %v3203
    %v3811 = vunpack.c.l.b16 %v3204
    %v3812 = vunpack.c.h.b16 %v3204
    %v3813 = vunpack.c.l.b16 %v3205
    %v3814 = vunpack.c.h.b16 %v3205
    %v3815 = vunpack.c.l.b16 %v3206
    %v3816 = vunpack.c.h.b16 %v3206
    %v3817 = vunpack.c.l.b16 %v3207
    %v3818 = vunpack.c.h.b16 %v3207
    %v3819 = vunpack.c.l.b16 %v3208
    %v3820 = vunpack.c.h.b16 %v3208
    %v3821 = vunpack.c.l.b16 %v3209
    %v3822 = vunpack.c.h.b16 %v3209
    %v3823 = vunpack.c.l.b16 %v3210
    %v3824 = vunpack.c.h.b16 %v3210
    %v3825 = vunpack.c.l.b16 %v3211
    %v3826 = vunpack.c.h.b16 %v3211
    %v3827 = vunpack.c.l.b16 %v3212
    %v3828 = vunpack.c.h.b16 %v3212
    %v3829 = vunpack.c.l.b16 %v3213
    %v3830 = vunpack.c.h.b16 %v3213
    %v3831 = vunpack.c.l.b16 %v3214
    %v3832 = vunpack.c.h.b16 %v3214
    %v3833 = vunpack.c.l.b16 %v3215
    %v3834 = vunpack.c.h.b16 %v3215
    %v3835 = vunpack.c.l.b16 %v3216
    %v3836 = vunpack.c.h.b16 %v3216
    %v3837 = vunpack.c.l.b16 %v3217
    %v3838 = vunpack.c.h.b16 %v3217
    %v3839 = vunpack.c.l.b16 %v3218
    %v3840 = vunpack.c.h.b16 %v3218
    %v3841 = vunpack.c.l.b16 %v3219
    %v3842 = vunpack.c.h.b16 %v3219
    %v3843 = vunpack.c.l.b16 %v3220
    %v3844 = vunpack.c.h.b16 %v3220
    %v3845 = vunpack.c.l.b16 %v3221
    %v3846 = vunpack.c.h.b16 %v3221
    %v3847 = vunpack.c.l.b16 %v3222
    %v3848 = vunpack.c.h.b16 %v3222
    %v3849 = vunpack.c.l.b16 %v3223
    %v3850 = vunpack.c.h.b16 %v3223
    %v3851 = vunpack.c.l.b16 %v3224
    %v3852 = vunpack.c.h.b16 %v3224
    %v3853 = vunpack.c.l.b16 %v3225
    %v3854 = vunpack.c.h.b16 %v3225
    %v3855 = vunpack.c.l.b16 %v3226
    %v3856 = vunpack.c.h.b16 %v3226
    %v3857 = vunpack.c.l.b16 %v3227
    %v3858 = vunpack.c.h.b16 %v3227
    %v3859 = vunpack.c.l.b16 %v3228
    %v3860 = vunpack.c.h.b16 %v3228
    %v3861 = vunpack.c.l.b16 %v3229
    %v3862 = vunpack.c.h.b16 %v3229
    %v3863 = vunpack.c.l.b16 %v3230
    %v3864 = vunpack.c.h.b16 %v3230
    %v3865 = vunpack.c.l.b16 %v3231
    %v3866 = vunpack.c.h.b16 %v3231
    %v3867 = vunpack.c.l.b16 %v3232
    %v3868 = vunpack.c.h.b16 %v3232
    %v3869 = vunpack.c.l.b16 %v3233
    %v3870 = vunpack.c.h.b16 %v3233
    %v3871 = vunpack.c.l.b16 %v3234
    %v3872 = vunpack.c.h.b16 %v3234
    %v3873 = vunpack.c.l.b16 %v3235
    %v3874 = vunpack.c.h.b16 %v3235
    %v3875 = vunpack.c.l.b16 %v3236
    %v3876 = vunpack.c.h.b16 %v3236
    %v3877 = vunpack.c.l.b16 %v3237
    %v3878 = vunpack.c.h.b16 %v3237
    %v3879 = vunpack.c.l.b16 %v3238
    %v3880 = vunpack.c.h.b16 %v3238
    %v3881 = vunpack.c.l.b16 %v3239
    %v3882 = vunpack.c.h.b16 %v3239
    %v3883 = vunpack.c.l.b16 %v3240
    %v3884 = vunpack.c.h.b16 %v3240
    %v3885 = vunpack.c.l.b16 %v3241
    %v3886 = vunpack.c.h.b16 %v3241
    %v3887 = vunpack.c.l.b16 %v3242
    %v3888 = vunpack.c.h.b16 %v3242
    %v3889 = vunpack.c.l.b16 %v3243
    %v3890 = vunpack.c.h.b16 %v3243
    %v3891 = vunpack.c.l.b16 %v3244
    %v3892 = vunpack.c.h.b16 %v3244
    %v3893 = vunpack.c.l.b16 %v3245
    %v3894 = vunpack.c.h.b16 %v3245
    %v3895 = vunpack.c.l.b16 %v3246
    %v3896 = vunpack.c.h.b16 %v3246
    %v3897 = vunpack.c.l.b16 %v3247
    %v3898 = vunpack.c.h.b16 %v3247
    %v3899 = vunpack.c.l.b16 %v3248
    %v3900 = vunpack.c.h.b16 %v3248
    %v3901 = vunpack.c.l.b16 %v3249
    %v3902 = vunpack.c.h.b16 %v3249
    %v3903 = vunpack.c.l.b16 %v3250
    %v3904 = vunpack.c.h.b16 %v3250
    %v3905 = vunpack.c.l.b16 %v3251
    %v3906 = vunpack.c.h.b16 %v3251
    %v3907 = vunpack.c.l.b16 %v3252
    %v3908 = vunpack.c.h.b16 %v3252
    %v3909 = vunpack.c.l.b16 %v3253
    %v3910 = vunpack.c.h.b16 %v3253
    %v3911 = vunpack.c.l.b16 %v3254
    %v3912 = vunpack.c.h.b16 %v3254
    %v3913 = vunpack.c.l.b16 %v3255
    %v3914 = vunpack.c.h.b16 %v3255
    %v3915 = vunpack.c.l.b16 %v3256
    %v3916 = vunpack.c.h.b16 %v3256
    %v3917 = vunpack.c.l.b16 %v3257
    %v3918 = vunpack.c.h.b16 %v3257
    %v3919 = vunpack.c.l.b16 %v3258
    %v3920 = vunpack.c.h.b16 %v3258
    %v3921 = vunpack.c.l.b16 %v3259
    %v3922 = vunpack.c.h.b16 %v3259
    %v3923 = vunpack.c.l.b16 %v3260
    %v3924 = vunpack.c.h.b16 %v3260
    %v3925 = vunpack.c.l.b16 %v3261
    %v3926 = vunpack.c.h.b16 %v3261
    %v3927 = vunpack.c.l.b16 %v3262
    %v3928 = vunpack.c.h.b16 %v3262
    %v3929 = vunpack.c.l.b16 %v3263
    %v3930 = vunpack.c.h.b16 %v3263
    %v3931 = vunpack.c.l.b16 %v3264
    %v3932 = vunpack.c.h.b16 %v3264
    %v3933 = vunpack.c.l.b16 %v3265
    %v3934 = vunpack.c.h.b16 %v3265
    %v3935 = vunpack.c.l.b16 %v3266
    %v3936 = vunpack.c.h.b16 %v3266
    %v3937 = vunpack.c.l.b16 %v3267
    %v3938 = vunpack.c.h.b16 %v3267
    %v3939 = vunpack.c.l.b16 %v3268
    %v3940 = vunpack.c.h.b16 %v3268
    %v3941 = vunpack.c.l.b16 %v3269
    %v3942 = vunpack.c.h.b16 %v3269
    %v3943 = vunpack.c.l.b16 %v3270
    %v3944 = vunpack.c.h.b16 %v3270
    %v3945 = vunpack.c.l.b16 %v3271
    %v3946 = vunpack.c.h.b16 %v3271
    %v3947 = vunpack.c.l.b16 %v3272
    %v3948 = vunpack.c.h.b16 %v3272
    %v3949 = vunpack.c.l.b16 %v3273
    %v3950 = vunpack.c.h.b16 %v3273
    %v3951 = vunpack.c.l.b16 %v3274
    %v3952 = vunpack.c.h.b16 %v3274
    %v3953 = vunpack.c.l.b16 %v3275
    %v3954 = vunpack.c.h.b16 %v3275
    %v3955 = vunpack.c.l.b16 %v3276
    %v3956 = vunpack.c.h.b16 %v3276
    %v3957 = vunpack.c.l.b16 %v3277
    %v3958 = vunpack.c.h.b16 %v3277
    %v3959 = vunpack.c.l.b16 %v3278
    %v3960 = vunpack.c.h.b16 %v3278
    %v3961 = vunpack.c.l.b16 %v3279
    %v3962 = vunpack.c.h.b16 %v3279
    %v3963 = vunpack.c.l.b16 %v3280
    %v3964 = vunpack.c.h.b16 %v3280
    %v3965 = vunpack.c.l.b16 %v3281
    %v3966 = vunpack.c.h.b16 %v3281
    %v3967 = vunpack.c.l.b16 %v3282
    %v3968 = vunpack.c.h.b16 %v3282
    %v3969 = vunpack.c.l.b16 %v3283
    %v3970 = vunpack.c.h.b16 %v3283
    %v3971 = vunpack.c.l.b16 %v3284
    %v3972 = vunpack.c.h.b16 %v3284
    %v3973 = vunpack.c.l.b16 %v3285
    %v3974 = vunpack.c.h.b16 %v3285
    %v3975 = vunpack.c.l.b16 %v3286
    %v3976 = vunpack.c.h.b16 %v3286
    %v3977 = vunpack.c.l.b16 %v3287
    %v3978 = vunpack.c.h.b16 %v3287
    %v3979 = vunpack.c.l.b16 %v3288
    %v3980 = vunpack.c.h.b16 %v3288
    %v3981 = vunpack.c.l.b16 %v3289
    %v3982 = vunpack.c.h.b16 %v3289
    %v3983 = vunpack.c.l.b16 %v3290
    %v3984 = vunpack.c.h.b16 %v3290
    %v3985 = vunpack.c.l.b16 %v3291
    %v3986 = vunpack.c.h.b16 %v3291
    %v3987 = vunpack.c.l.b16 %v3292
    %v3988 = vunpack.c.h.b16 %v3292
    %v3989 = vunpack.c.l.b16 %v3293
    %v3990 = vunpack.c.h.b16 %v3293
    %v3991 = vunpack.c.l.b16 %v3294
    %v3992 = vunpack.c.h.b16 %v3294
    %v3993 = vunpack.c.l.b16 %v3295
    %v3994 = vunpack.c.h.b16 %v3295
    %v3995 = vunpack.c.l.b16 %v3296
    %v3996 = vunpack.c.h.b16 %v3296
    %v3997 = vunpack.c.l.b16 %v3297
    %v3998 = vunpack.c.h.b16 %v3297
    %v3999 = vunpack.c.l.b16 %v3298
    %v4000 = vunpack.c.h.b16 %v3298
    %v4001 = vunpack.c.l.b16 %v3299
    %v4002 = vunpack.c.h.b16 %v3299
    %v4003 = vunpack.c.l.b16 %v3300
    %v4004 = vunpack.c.h.b16 %v3300
    %v4005 = vunpack.c.l.b16 %v3301
    %v4006 = vunpack.c.h.b16 %v3301
    %v4007 = vunpack.c.l.b16 %v3302
    %v4008 = vunpack.c.h.b16 %v3302
    %v4009 = vunpack.c.l.b16 %v3303
    %v4010 = vunpack.c.h.b16 %v3303
    %v4011 = vunpack.c.l.b16 %v3304
    %v4012 = vunpack.c.h.b16 %v3304
    %v4013 = vunpack.c.l.b16 %v3305
    %v4014 = vunpack.c.h.b16 %v3305
    %v4015 = vunpack.c.l.b16 %v3306
    %v4016 = vunpack.c.h.b16 %v3306
    %v4017 = vunpack.c.l.b16 %v3307
    %v4018 = vunpack.c.h.b16 %v3307
    %v4019 = vunpack.c.l.b16 %v3308
    %v4020 = vunpack.c.h.b16 %v3308
    %v4021 = vunpack.c.l.b16 %v3309
    %v4022 = vunpack.c.h.b16 %v3309
    %v4023 = vunpack.c.l.b16 %v3310
    %v4024 = vunpack.c.h.b16 %v3310
    %v4025 = vunpack.c.l.b16 %v3311
    %v4026 = vunpack.c.h.b16 %v3311
    %v4027 = vunpack.c.l.b16 %v3312
    %v4028 = vunpack.c.h.b16 %v3312
    %v4029 = vunpack.c.l.b16 %v3313
    %v4030 = vunpack.c.h.b16 %v3313
    %v4031 = vunpack.c.l.b16 %v3314
    %v4032 = vunpack.c.h.b16 %v3314
    %v4033 = vunpack.c.l.b16 %v3315
    %v4034 = vunpack.c.h.b16 %v3315
    %v4035 = vunpack.c.l.b16 %v3316
    %v4036 = vunpack.c.h.b16 %v3316
    %v4037 = vunpack.c.l.b16 %v3317
    %v4038 = vunpack.c.h.b16 %v3317
    %v4039 = vunpack.c.l.b16 %v3318
    %v4040 = vunpack.c.h.b16 %v3318
    %v4041 = vunpack.c.l.b16 %v3319
    %v4042 = vunpack.c.h.b16 %v3319
    %v4043 = vunpack.c.l.b16 %v3320
    %v4044 = vunpack.c.h.b16 %v3320
    %v4045 = vunpack.c.l.b16 %v3321
    %v4046 = vunpack.c.h.b16 %v3321
    %v4047 = vunpack.c.l.b16 %v3322
    %v4048 = vunpack.c.h.b16 %v3322
    %v4049 = vunpack.c.l.b16 %v3323
    %v4050 = vunpack.c.h.b16 %v3323
    %v4051 = vunpack.c.l.b16 %v3324
    %v4052 = vunpack.c.h.b16 %v3324
    %v4053 = vunpack.c.l.b16 %v3325
    %v4054 = vunpack.c.h.b16 %v3325
    %v4055 = vunpack.c.l.b16 %v3326
    %v4056 = vunpack.c.h.b16 %v3326
    %v4057 = vunpack.c.l.b16 %v3327
    %v4058 = vunpack.c.h.b16 %v3327
    %v4059 = vunpack.c.l.b16 %v3328
    %v4060 = vunpack.c.h.b16 %v3328
    %v4061 = vunpack.c.l.b16 %v3329
    %v4062 = vunpack.c.h.b16 %v3329
    %v4063 = vunpack.c.l.b16 %v3330
    %v4064 = vunpack.c.h.b16 %v3330
    %v4065 = vunpack.c.l.b16 %v3331
    %v4066 = vunpack.c.h.b16 %v3331
    %v4067 = vunpack.c.l.b16 %v3332
    %v4068 = vunpack.c.h.b16 %v3332
    %v4069 = vunpack.c.l.b16 %v3333
    %v4070 = vunpack.c.h.b16 %v3333
    %v4071 = vunpack.c.l.b16 %v3334
    %v4072 = vunpack.c.h.b16 %v3334
    %v4073 = vunpack.c.l.b16 %v3335
    %v4074 = vunpack.c.h.b16 %v3335
    %v4075 = vunpack.c.l.b16 %v3336
    %v4076 = vunpack.c.h.b16 %v3336
    %v4077 = vunpack.c.l.b16 %v3337
    %v4078 = vunpack.c.h.b16 %v3337
    %v4079 = vunpack.c.l.b16 %v3338
    %v4080 = vunpack.c.h.b16 %v3338
    %v4081 = vunpack.c.l.b16 %v3339
    %v4082 = vunpack.c.h.b16 %v3339
    %v4083 = vunpack.c.l.b16 %v3340
    %v4084 = vunpack.c.h.b16 %v3340
    %v4085 = vunpack.c.l.b16 %v3341
    %v4086 = vunpack.c.h.b16 %v3341
    %v4087 = vunpack.c.l.b16 %v3342
    %v4088 = vunpack.c.h.b16 %v3342
    %v4089 = vunpack.c.l.b16 %v3343
    %v4090 = vunpack.c.h.b16 %v3343
    %v4091 = vunpack.c.l.b16 %v3344
    %v4092 = vunpack.c.h.b16 %v3344
    %v4093 = vunpack.c.l.b16 %v3345
    %v4094 = vunpack.c.h.b16 %v3345
    %v4095 = vunpack.c.l.b16 %v3346
    %v4096 = vunpack.c.h.b16 %v3346
    %v4097 = vunpack.c.l.b16 %v3347
    %v4098 = vunpack.c.h.b16 %v3347
    %v4099 = vunpack.c.l.b16 %v3348
    %v4100 = vunpack.c.h.b16 %v3348
    %v4101 = vunpack.c.l.b16 %v3349
    %v4102 = vunpack.c.h.b16 %v3349
    %v4103 = vunpack.c.l.b16 %v3350
    %v4104 = vunpack.c.h.b16 %v3350
    %v4105 = vunpack.c.l.b16 %v3351
    %v4106 = vunpack.c.h.b16 %v3351
    %v4107 = vunpack.c.l.b16 %v3352
    %v4108 = vunpack.c.h.b16 %v3352
    %v4109 = vunpack.c.l.b16 %v3353
    %v4110 = vunpack.c.h.b16 %v3353
    %v4111 = vunpack.c.l.b16 %v3354
    %v4112 = vunpack.c.h.b16 %v3354
    %v4113 = vunpack.c.l.b16 %v3355
    %v4114 = vunpack.c.h.b16 %v3355
    %v4115 = vunpack.c.l.b16 %v3356
    %v4116 = vunpack.c.h.b16 %v3356
    %v4117 = vunpack.c.l.b16 %v3357
    %v4118 = vunpack.c.h.b16 %v3357
    %v4119 = vunpack.c.l.b16 %v3358
    %v4120 = vunpack.c.h.b16 %v3358
    %v4121 = vunpack.c.l.b16 %v3359
    %v4122 = vunpack.c.h.b16 %v3359
    %v4123 = vunpack.c.l.b16 %v3360
    %v4124 = vunpack.c.h.b16 %v3360
    %v4125 = vunpack.c.l.b16 %v3361
    %v4126 = vunpack.c.h.b16 %v3361
    %v4127 = vunpack.c.l.b16 %v3362
    %v4128 = vunpack.c.h.b16 %v3362
    %v4129 = vunpack.c.l.b16 %v3363
    %v4130 = vunpack.c.h.b16 %v3363
    %v4131 = vunpack.c.l.b16 %v3364
    %v4132 = vunpack.c.h.b16 %v3364
    %v4133 = vunpack.c.l.b16 %v3365
    %v4134 = vunpack.c.h.b16 %v3365
    %v4135 = vunpack.c.l.b16 %v3366
    %v4136 = vunpack.c.h.b16 %v3366
    %v4137 = vunpack.c.l.b16 %v3367
    %v4138 = vunpack.c.h.b16 %v3367
    %v4139 = vunpack.c.l.b16 %v3368
    %v4140 = vunpack.c.h.b16 %v3368
    %v4141 = vunpack.c.l.b16 %v3369
    %v4142 = vunpack.c.h.b16 %v3369
    %v4143 = vunpack.c.l.b16 %v3370
    %v4144 = vunpack.c.h.b16 %v3370
    %v4145 = vunpack.c.l.b16 %v3371
    %v4146 = vunpack.c.h.b16 %v3371
    %v4147 = vunpack.c.l.b16 %v3372
    %v4148 = vunpack.c.h.b16 %v3372
    %v4149 = vunpack.c.l.b16 %v3373
    %v4150 = vunpack.c.h.b16 %v3373
    %v4151 = vunpack.c.l.b16 %v3374
    %v4152 = vunpack.c.h.b16 %v3374
    %v4153 = vunpack.c.l.b16 %v3375
    %v4154 = vunpack.c.h.b16 %v3375
    %v4155 = vunpack.c.l.b16 %v3376
    %v4156 = vunpack.c.h.b16 %v3376
    %v4157 = vunpack.c.l.b16 %v3377
    %v4158 = vunpack.c.h.b16 %v3377
    %v4159 = vunpack.c.l.b16 %v3378
    %v4160 = vunpack.c.h.b16 %v3378
    %v4161 = vunpack.c.l.b16 %v3379
    %v4162 = vunpack.c.h.b16 %v3379
    %v4163 = vunpack.c.l.b16 %v3380
    %v4164 = vunpack.c.h.b16 %v3380
    %v4165 = vunpack.c.l.b16 %v3381
    %v4166 = vunpack.c.h.b16 %v3381
    %v4167 = vunpack.c.l.b16 %v3382
    %v4168 = vunpack.c.h.b16 %v3382
    %v4169 = vunpack.c.l.b16 %v3383
    %v4170 = vunpack.c.h.b16 %v3383
    %v4171 = vunpack.c.l.b16 %v3384
    %v4172 = vunpack.c.h.b16 %v3384
    %v4173 = vunpack.c.l.b16 %v3385
    %v4174 = vunpack.c.h.b16 %v3385
    %v4175 = vunpack.c.l.b16 %v3386
    %v4176 = vunpack.c.h.b16 %v3386
    %v4177 = vunpack.c.l.b16 %v3387
    %v4178 = vunpack.c.h.b16 %v3387
    %v4179 = vunpack.c.l.b16 %v3388
    %v4180 = vunpack.c.h.b16 %v3388
    %v4181 = vunpack.c.l.b16 %v3389
    %v4182 = vunpack.c.h.b16 %v3389
    %v4183 = vunpack.c.l.b16 %v3390
    %v4184 = vunpack.c.h.b16 %v3390
    %v4185 = vunpack.c.l.b16 %v3391
    %v4186 = vunpack.c.h.b16 %v3391
    %v4187 = vunpack.c.l.b16 %v3392
    %v4188 = vunpack.c.h.b16 %v3392
    %v4189 = vunpack.c.l.b16 %v3393
    %v4190 = vunpack.c.h.b16 %v3393
    %v4191 = vunpack.c.l.b16 %v3394
    %v4192 = vunpack.c.h.b16 %v3394
    %v4193 = vunpack.c.l.b16 %v3395
    %v4194 = vunpack.c.h.b16 %v3395
    %v4195 = vunpack.c.l.b16 %v3396
    %v4196 = vunpack.c.h.b16 %v3396
    %v4197 = vunpack.c.l.b16 %v3397
    %v4198 = vunpack.c.h.b16 %v3397
    %v4199 = vunpack.c.l.b16 %v3398
    %v4200 = vunpack.c.h.b16 %v3398
    %v4201 = vunpack.c.l.b16 %v3399
    %v4202 = vunpack.c.h.b16 %v3399
    %v4203 = vunpack.c.l.b16 %v3400
    %v4204 = vunpack.c.h.b16 %v3400
    %v4205 = vunpack.c.l.b16 %v3401
    %v4206 = vunpack.c.h.b16 %v3401
    %v4207 = vunpack.c.l.b16 %v3402
    %v4208 = vunpack.c.h.b16 %v3402
    %v4209 = vunpack.c.l.b16 %v3403
    %v4210 = vunpack.c.h.b16 %v3403
    %v4211 = vunpack.c.l.b16 %v3404
    %v4212 = vunpack.c.h.b16 %v3404
    %v4213 = vunpack.c.l.b16 %v3405
    %v4214 = vunpack.c.h.b16 %v3405
    %v4215 = vunpack.c.l.b16 %v3406
    %v4216 = vunpack.c.h.b16 %v3406
    %v4217 = vunpack.c.l.b16 %v3407
    %v4218 = vunpack.c.h.b16 %v3407
    %v4219 = vunpack.c.l.b16 %v3408
    %v4220 = vunpack.c.h.b16 %v3408
    %v4221 = vunpack.c.l.b16 %v3409
    %v4222 = vunpack.c.h.b16 %v3409
    %v4223 = vunpack.c.l.b16 %v3410
    %v4224 = vunpack.c.h.b16 %v3410
    %v4225 = vunpack.c.l.b16 %v3411
    %v4226 = vunpack.c.h.b16 %v3411
    %v4227 = vunpack.c.l.b16 %v3412
    %v4228 = vunpack.c.h.b16 %v3412
    %v4229 = vunpack.c.l.b16 %v3413
    %v4230 = vunpack.c.h.b16 %v3413
    %v4231 = vunpack.c.l.b16 %v3414
    %v4232 = vunpack.c.h.b16 %v3414
    %v4233 = vunpack.c.l.b16 %v3415
    %v4234 = vunpack.c.h.b16 %v3415
    %v4235 = vunpack.c.l.b16 %v3416
    %v4236 = vunpack.c.h.b16 %v3416
    %v4237 = vunpack.c.l.b16 %v3417
    %v4238 = vunpack.c.h.b16 %v3417
    %v4239 = vunpack.c.l.b16 %v3418
    %v4240 = vunpack.c.h.b16 %v3418
    %v4241 = vunpack.c.l.b16 %v3419
    %v4242 = vunpack.c.h.b16 %v3419
    %v4243 = vunpack.c.l.b16 %v3420
    %v4244 = vunpack.c.h.b16 %v3420
    %v4245 = vunpack.c.l.b16 %v3421
    %v4246 = vunpack.c.h.b16 %v3421
    %v4247 = vunpack.c.l.b16 %v3422
    %v4248 = vunpack.c.h.b16 %v3422
    %v4249 = vunpack.c.l.b16 %v3423
    %v4250 = vunpack.c.h.b16 %v3423
    %v4251 = vunpack.c.l.b16 %v3424
    %v4252 = vunpack.c.h.b16 %v3424
    %v4253 = vunpack.c.l.b16 %v3425
    %v4254 = vunpack.c.h.b16 %v3425
    %v4255 = vunpack.c.l.b16 %v3426
    %v4256 = vunpack.c.h.b16 %v3426
    %v4257 = vunpack.c.l.b16 %v3427
    %v4258 = vunpack.c.h.b16 %v3427
    %v4259 = vunpack.c.l.b16 %v3428
    %v4260 = vunpack.c.h.b16 %v3428
    %v4261 = vunpack.c.l.b16 %v3429
    %v4262 = vunpack.c.h.b16 %v3429
    %v4263 = vunpack.c.l.b16 %v3430
    %v4264 = vunpack.c.h.b16 %v3430
    %v4265 = vunpack.c.l.b16 %v3431
    %v4266 = vunpack.c.h.b16 %v3431
    %v4267 = vunpack.c.l.b16 %v3432
    %v4268 = vunpack.c.h.b16 %v3432
    %v4269 = vunpack.c.l.b16 %v3433
    %v4270 = vunpack.c.h.b16 %v3433
    %v4271 = vunpack.c.l.b16 %v3434
    %v4272 = vunpack.c.h.b16 %v3434
    %v4273 = vunpack.c.l.b16 %v3435
    %v4274 = vunpack.c.h.b16 %v3435
    %v4275 = vunpack.c.l.b16 %v3436
    %v4276 = vunpack.c.h.b16 %v3436
    %v4277 = vunpack.c.l.b16 %v3437
    %v4278 = vunpack.c.h.b16 %v3437
    %v4279 = vunpack.c.l.b16 %v3438
    %v4280 = vunpack.c.h.b16 %v3438
    %v4281 = vunpack.c.l.b16 %v3439
    %v4282 = vunpack.c.h.b16 %v3439
    %v4283 = vunpack.c.l.b16 %v3440
    %v4284 = vunpack.c.h.b16 %v3440
    %v4285 = vunpack.c.l.b16 %v3441
    %v4286 = vunpack.c.h.b16 %v3441
    %v4287 = vunpack.c.l.b16 %v3442
    %v4288 = vunpack.c.h.b16 %v3442
    %v4289 = vunpack.c.l.b16 %v3443
    %v4290 = vunpack.c.h.b16 %v3443
    %v4291 = vunpack.c.l.b16 %v3444
    %v4292 = vunpack.c.h.b16 %v3444
    %v4293 = vunpack.c.l.b16 %v3445
    %v4294 = vunpack.c.h.b16 %v3445
    %v4295 = vunpack.c.l.b16 %v3446
    %v4296 = vunpack.c.h.b16 %v3446
    %v4297 = vunpack.c.l.b16 %v3447
    %v4298 = vunpack.c.h.b16 %v3447
    %v4299 = vunpack.c.l.b16 %v3448
    %v4300 = vunpack.c.h.b16 %v3448
    %v4301 = vunpack.c.l.b16 %v3449
    %v4302 = vunpack.c.h.b16 %v3449
    %v4303 = vunpack.c.l.b16 %v3450
    %v4304 = vunpack.c.h.b16 %v3450
    %v4305 = vunpack.c.l.b16 %v3451
    %v4306 = vunpack.c.h.b16 %v3451
    %v4307 = vunpack.c.l.b16 %v3452
    %v4308 = vunpack.c.h.b16 %v3452
    %v4309 = vunpack.c.l.b16 %v3453
    %v4310 = vunpack.c.h.b16 %v3453
    %v4311 = vunpack.c.l.b16 %v3454
    %v4312 = vunpack.c.h.b16 %v3454
    %v4313 = vunpack.c.l.b16 %v3455
    %v4314 = vunpack.c.h.b16 %v3455
    %v4315 = vunpack.c.l.b16 %v3456
    %v4316 = vunpack.c.h.b16 %v3456
    %v4317 = vunpack.c.l.b16 %v3457
    %v4318 = vunpack.c.h.b16 %v3457
    %v4319 = vunpack.c.l.b16 %v3458
    %v4320 = vunpack.c.h.b16 %v3458
    %v4321 = vunpack.c.l.b16 %v3459
    %v4322 = vunpack.c.h.b16 %v3459
    %v4323 = vunpack.c.l.b16 %v3460
    %v4324 = vunpack.c.h.b16 %v3460
    %v4325 = vpack.c.b16 %v3755, %v3749
    %v4326 = vpack.c.b16 %v3756, %v3750
    %v4327 = vpack.c.b16 %v3757, %v3751
    %v4328 = vpack.c.b16 %v3758, %v3752
    %v4329 = vpack.c.b16 %v3759, %v3753
    %v4330 = vpack.c.b16 %v3760, %v3754
    %v4331 = vpack.c.b16 %v3767, %v3761
    %v4332 = vpack.c.b16 %v3768, %v3762
    %v4333 = vpack.c.b16 %v3769, %v3763
    %v4334 = vpack.c.b16 %v3770, %v3764
    %v4335 = vpack.c.b16 %v3771, %v3765
    %v4336 = vpack.c.b16 %v3772, %v3766
    %v4337 = vpack.c.b16 %v3779, %v3773
    %v4338 = vpack.c.b16 %v3780, %v3774
    %v4339 = vpack.c.b16 %v3781, %v3775
    %v4340 = vpack.c.b16 %v3782, %v3776
    %v4341 = vpack.c.b16 %v3783, %v3777
    %v4342 = vpack.c.b16 %v3784, %v3778
    %v4343 = vpack.c.b16 %v3791, %v3785
    %v4344 = vpack.c.b16 %v3792, %v3786
    %v4345 = vpack.c.b16 %v3793, %v3787
    %v4346 = vpack.c.b16 %v3794, %v3788
    %v4347 = vpack.c.b16 %v3795, %v3789
    %v4348 = vpack.c.b16 %v3796, %v3790
    %v4349 = vpack.c.b16 %v3803, %v3797
    %v4350 = vpack.c.b16 %v3804, %v3798
    %v4351 = vpack.c.b16 %v3805, %v3799
    %v4352 = vpack.c.b16 %v3806, %v3800
    %v4353 = vpack.c.b16 %v3807, %v3801
    %v4354 = vpack.c.b16 %v3808, %v3802
    %v4355 = vpack.c.b16 %v3815, %v3809
    %v4356 = vpack.c.b16 %v3816, %v3810
    %v4357 = vpack.c.b16 %v3817, %v3811
    %v4358 = vpack.c.b16 %v3818, %v3812
    %v4359 = vpack.c.b16 %v3819, %v3813
    %v4360 = vpack.c.b16 %v3820, %v3814
    %v4361 = vpack.c.b16 %v3827, %v3821
    %v4362 = vpack.c.b16 %v3828, %v3822
    %v4363 = vpack.c.b16 %v3829, %v3823
    %v4364 = vpack.c.b16 %v3830, %v3824
    %v4365 = vpack.c.b16 %v3831, %v3825
    %v4366 = vpack.c.b16 %v3832, %v3826
    %v4367 = vpack.c.b16 %v3839, %v3833
    %v4368 = vpack.c.b16 %v3840, %v3834
    %v4369 = vpack.c.b16 %v3841, %v3835
    %v4370 = vpack.c.b16 %v3842, %v3836
    %v4371 = vpack.c.b16 %v3843, %v3837
    %v4372 = vpack.c.b16 %v3844, %v3838
    %v4373 = vpack.c.b16 %v3851, %v3845
    %v4374 = vpack.c.b16 %v3852, %v3846
    %v4375 = vpack.c.b16 %v3853, %v3847
    %v4376 = vpack.c.b16 %v3854, %v3848
    %v4377 = vpack.c.b16 %v3855, %v3849
    %v4378 = vpack.c.b16 %v3856, %v3850
    %v4379 = vpack.c.b16 %v3863, %v3857
    %v4380 = vpack.c.b16 %v3864, %v3858
    %v4381 = vpack.c.b16 %v3865, %v3859
    %v4382 = vpack.c.b16 %v3866, %v3860
    %v4383 = vpack.c.b16 %v3867, %v3861
    %v4384 = vpack.c.b16 %v3868, %v3862
    %v4385 = vpack.c.b16 %v3875, %v3869
    %v4386 = vpack.c.b16 %v3876, %v3870
    %v4387 = vpack.c.b16 %v3877, %v3871
    %v4388 = vpack.c.b16 %v3878, %v3872
    %v4389 = vpack.c.b16 %v3879, %v3873
    %v4390 = vpack.c.b16 %v3880, %v3874
    %v4391 = vpack.c.b16 %v3887, %v3881
    %v4392 = vpack.c.b16 %v3888, %v3882
    %v4393 = vpack.c.b16 %v3889, %v3883
    %v4394 = vpack.c.b16 %v3890, %v3884
    %v4395 = vpack.c.b16 %v3891, %v3885
    %v4396 = vpack.c.b16 %v3892, %v3886
    %v4397 = vpack.c.b16 %v3899, %v3893
    %v4398 = vpack.c.b16 %v3900, %v3894
    %v4399 = vpack.c.b16 %v3901, %v3895
    %v4400 = vpack.c.b16 %v3902, %v3896
    %v4401 = vpack.c.b16 %v3903, %v3897
    %v4402 = vpack.c.b16 %v3904, %v3898
    %v4403 = vpack.c.b16 %v3911, %v3905
    %v4404 = vpack.c.b16 %v3912, %v3906
    %v4405 = vpack.c.b16 %v3913, %v3907
    %v4406 = vpack.c.b16 %v3914, %v3908
    %v4407 = vpack.c.b16 %v3915, %v3909
    %v4408 = vpack.c.b16 %v3916, %v3910
    %v4409 = vpack.c.b16 %v3923, %v3917
    %v4410 = vpack.c.b16 %v3924, %v3918
    %v4411 = vpack.c.b16 %v3925, %v3919
    %v4412 = vpack.c.b16 %v3926, %v3920
    %v4413 = vpack.c.b16 %v3927, %v3921
    %v4414 = vpack.c.b16 %v3928, %v3922
    %v4415 = vpack.c.b16 %v3935, %v3929
    %v4416 = vpack.c.b16 %v3936, %v3930
    %v4417 = vpack.c.b16 %v3937, %v3931
    %v4418 = vpack.c.b16 %v3938, %v3932
    %v4419 = vpack.c.b16 %v3939, %v3933
    %v4420 = vpack.c.b16 %v3940, %v3934
    %v4421 = vpack.c.b16 %v3947, %v3941
    %v4422 = vpack.c.b16 %v3948, %v3942
    %v4423 = vpack.c.b16 %v3949, %v3943
    %v4424 = vpack.c.b16 %v3950, %v3944
    %v4425 = vpack.c.b16 %v3951, %v3945
    %v4426 = vpack.c.b16 %v3952, %v3946
    %v4427 = vpack.c.b16 %v3959, %v3953
    %v4428 = vpack.c.b16 %v3960, %v3954
    %v4429 = vpack.c.b16 %v3961, %v3955
    %v4430 = vpack.c.b16 %v3962, %v3956
    %v4431 = vpack.c.b16 %v3963, %v3957
    %v4432 = vpack.c.b16 %v3964, %v3958
    %v4433 = vpack.c.b16 %v3971, %v3965
    %v4434 = vpack.c.b16 %v3972, %v3966
    %v4435 = vpack.c.b16 %v3973, %v3967
    %v4436 = vpack.c.b16 %v3974, %v3968
    %v4437 = vpack.c.b16 %v3975, %v3969
    %v4438 = vpack.c.b16 %v3976, %v3970
    %v4439 = vpack.c.b16 %v3983, %v3977
    %v4440 = vpack.c.b16 %v3984, %v3978
    %v4441 = vpack.c.b16 %v3985, %v3979
    %v4442 = vpack.c.b16 %v3986, %v3980
    %v4443 = vpack.c.b16 %v3987, %v3981
    %v4444 = vpack.c.b16 %v3988, %v3982
    %v4445 = vpack.c.b16 %v3995, %v3989
    %v4446 = vpack.c.b16 %v3996, %v3990
    %v4447 = vpack.c.b16 %v3997, %v3991
    %v4448 = vpack.c.b16 %v3998, %v3992
    %v4449 = vpack.c.b16 %v3999, %v3993
    %v4450 = vpack.c.b16 %v4000, %v3994
    %v4451 = vpack.c.b16 %v4007, %v4001
    %v4452 = vpack.c.b16 %v4008, %v4002
    %v4453 = vpack.c.b16 %v4009, %v4003
    %v4454 = vpack.c.b16 %v4010, %v4004
    %v4455 = vpack.c.b16 %v4011, %v4005
    %v4456 = vpack.c.b16 %v4012, %v4006
    %v4457 = vpack.c.b16 %v4019, %v4013
    %v4458 = vpack.c.b16 %v4020, %v4014
    %v4459 = vpack.c.b16 %v4021, %v4015
    %v4460 = vpack.c.b16 %v4022, %v4016
    %v4461 = vpack.c.b16 %v4023, %v4017
    %v4462 = vpack.c.b16 %v4024, %v4018
    %v4463 = vpack.c.b16 %v4031, %v4025
    %v4464 = vpack.c.b16 %v4032, %v4026
    %v4465 = vpack.c.b16 %v4033, %v4027
    %v4466 = vpack.c.b16 %v4034, %v4028
    %v4467 = vpack.c.b16 %v4035, %v4029
    %v4468 = vpack.c.b16 %v4036, %v4030
    %v4469 = vpack.c.b16 %v4043, %v4037
    %v4470 = vpack.c.b16 %v4044, %v4038
    %v4471 = vpack.c.b16 %v4045, %v4039
    %v4472 = vpack.c.b16 %v4046, %v4040
    %v4473 = vpack.c.b16 %v4047, %v4041
    %v4474 = vpack.c.b16 %v4048, %v4042
    %v4475 = vpack.c.b16 %v4055, %v4049
    %v4476 = vpack.c.b16 %v4056, %v4050
    %v4477 = vpack.c.b16 %v4057, %v4051
    %v4478 = vpack.c.b16 %v4058, %v4052
    %v4479 = vpack.c.b16 %v4059, %v4053
    %v4480 = vpack.c.b16 %v4060, %v4054
    %v4481 = vpack.c.b16 %v4067, %v4061
    %v4482 = vpack.c.b16 %v4068, %v4062
    %v4483 = vpack.c.b16 %v4069, %v4063
    %v4484 = vpack.c.b16 %v4070, %v4064
    %v4485 = vpack.c.b16 %v4071, %v4065
    %v4486 = vpack.c.b16 %v4072, %v4066
    %v4487 = vpack.c.b16 %v4079, %v4073
    %v4488 = vpack.c.b16 %v4080, %v4074
    %v4489 = vpack.c.b16 %v4081, %v4075
    %v4490 = vpack.c.b16 %v4082, %v4076
    %v4491 = vpack.c.b16 %v4083, %v4077
    %v4492 = vpack.c.b16 %v4084, %v4078
    %v4493 = vpack.c.b16 %v4091, %v4085
    %v4494 = vpack.c.b16 %v4092, %v4086
    %v4495 = vpack.c.b16 %v4093, %v4087
    %v4496 = vpack.c.b16 %v4094, %v4088
    %v4497 = vpack.c.b16 %v4095, %v4089
    %v4498 = vpack.c.b16 %v4096, %v4090
    %v4499 = vpack.c.b16 %v4103, %v4097
    %v4500 = vpack.c.b16 %v4104, %v4098
    %v4501 = vpack.c.b16 %v4105, %v4099
    %v4502 = vpack.c.b16 %v4106, %v4100
    %v4503 = vpack.c.b16 %v4107, %v4101
    %v4504 = vpack.c.b16 %v4108, %v4102
    %v4505 = vpack.c.b16 %v4115, %v4109
    %v4506 = vpack.c.b16 %v4116, %v4110
    %v4507 = vpack.c.b16 %v4117, %v4111
    %v4508 = vpack.c.b16 %v4118, %v4112
    %v4509 = vpack.c.b16 %v4119, %v4113
    %v4510 = vpack.c.b16 %v4120, %v4114
    %v4511 = vpack.c.b16 %v4127, %v4121
    %v4512 = vpack.c.b16 %v4128, %v4122
    %v4513 = vpack.c.b16 %v4129, %v4123
    %v4514 = vpack.c.b16 %v4130, %v4124
    %v4515 = vpack.c.b16 %v4131, %v4125
    %v4516 = vpack.c.b16 %v4132, %v4126
    %v4517 = vpack.c.b16 %v4139, %v4133
    %v4518 = vpack.c.b16 %v4140, %v4134
    %v4519 = vpack.c.b16 %v4141, %v4135
    %v4520 = vpack.c.b16 %v4142, %v4136
    %v4521 = vpack.c.b16 %v4143, %v4137
    %v4522 = vpack.c.b16 %v4144, %v4138
    %v4523 = vpack.c.b16 %v4151, %v4145
    %v4524 = vpack.c.b16 %v4152, %v4146
    %v4525 = vpack.c.b16 %v4153, %v4147
    %v4526 = vpack.c.b16 %v4154, %v4148
    %v4527 = vpack.c.b16 %v4155, %v4149
    %v4528 = vpack.c.b16 %v4156, %v4150
    %v4529 = vpack.c.b16 %v4163, %v4157
    %v4530 = vpack.c.b16 %v4164, %v4158
    %v4531 = vpack.c.b16 %v4165, %v4159
    %v4532 = vpack.c.b16 %v4166, %v4160
    %v4533 = vpack.c.b16 %v4167, %v4161
    %v4534 = vpack.c.b16 %v4168, %v4162
    %v4535 = vpack.c.b16 %v4175, %v4169
    %v4536 = vpack.c.b16 %v4176, %v4170
    %v4537 = vpack.c.b16 %v4177, %v4171
    %v4538 = vpack.c.b16 %v4178, %v4172
    %v4539 = vpack.c.b16 %v4179, %v4173
    %v4540 = vpack.c.b16 %v4180, %v4174
    %v4541 = vpack.c.b16 %v4187, %v4181
    %v4542 = vpack.c.b16 %v4188, %v4182
    %v4543 = vpack.c.b16 %v4189, %v4183
    %v4544 = vpack.c.b16 %v4190, %v4184
    %v4545 = vpack.c.b16 %v4191, %v4185
    %v4546 = vpack.c.b16 %v4192, %v4186
    %v4547 = vpack.c.b16 %v4199, %v4193
    %v4548 = vpack.c.b16 %v4200, %v4194
    %v4549 = vpack.c.b16 %v4201, %v4195
    %v4550 = vpack.c.b16 %v4202, %v4196
    %v4551 = vpack.c.b16 %v4203, %v4197
    %v4552 = vpack.c.b16 %v4204, %v4198
    %v4553 = vpack.c.b16 %v4211, %v4205
    %v4554 = vpack.c.b16 %v4212, %v4206
    %v4555 = vpack.c.b16 %v4213, %v4207
    %v4556 = vpack.c.b16 %v4214, %v4208
    %v4557 = vpack.c.b16 %v4215, %v4209
    %v4558 = vpack.c.b16 %v4216, %v4210
    %v4559 = vpack.c.b16 %v4223, %v4217
    %v4560 = vpack.c.b16 %v4224, %v4218
    %v4561 = vpack.c.b16 %v4225, %v4219
    %v4562 = vpack.c.b16 %v4226, %v4220
    %v4563 = vpack.c.b16 %v4227, %v4221
    %v4564 = vpack.c.b16 %v4228, %v4222
    %v4565 = vpack.c.b16 %v4235, %v4229
    %v4566 = vpack.c.b16 %v4236, %v4230
    %v4567 = vpack.c.b16 %v4237, %v4231
    %v4568 = vpack.c.b16 %v4238, %v4232
    %v4569 = vpack.c.b16 %v4239, %v4233
    %v4570 = vpack.c.b16 %v4240, %v4234
    %v4571 = vpack.c.b16 %v4247, %v4241
    %v4572 = vpack.c.b16 %v4248, %v4242
    %v4573 = vpack.c.b16 %v4249, %v4243
    %v4574 = vpack.c.b16 %v4250, %v4244
    %v4575 = vpack.c.b16 %v4251, %v4245
    %v4576 = vpack.c.b16 %v4252, %v4246
    %v4577 = vpack.c.b16 %v4259, %v4253
    %v4578 = vpack.c.b16 %v4260, %v4254
    %v4579 = vpack.c.b16 %v4261, %v4255
    %v4580 = vpack.c.b16 %v4262, %v4256
    %v4581 = vpack.c.b16 %v4263, %v4257
    %v4582 = vpack.c.b16 %v4264, %v4258
    %v4583 = vpack.c.b16 %v4271, %v4265
    %v4584 = vpack.c.b16 %v4272, %v4266
    %v4585 = vpack.c.b16 %v4273, %v4267
    %v4586 = vpack.c.b16 %v4274, %v4268
    %v4587 = vpack.c.b16 %v4275, %v4269
    %v4588 = vpack.c.b16 %v4276, %v4270
    %v4589 = vpack.c.b16 %v4283, %v4277
    %v4590 = vpack.c.b16 %v4284, %v4278
    %v4591 = vpack.c.b16 %v4285, %v4279
    %v4592 = vpack.c.b16 %v4286, %v4280
    %v4593 = vpack.c.b16 %v4287, %v4281
    %v4594 = vpack.c.b16 %v4288, %v4282
    %v4595 = vpack.c.b16 %v4295, %v4289
    %v4596 = vpack.c.b16 %v4296, %v4290
    %v4597 = vpack.c.b16 %v4297, %v4291
    %v4598 = vpack.c.b16 %v4298, %v4292
    %v4599 = vpack.c.b16 %v4299, %v4293
    %v4600 = vpack.c.b16 %v4300, %v4294
    %v4601 = vpack.c.b16 %v4307, %v4301
    %v4602 = vpack.c.b16 %v4308, %v4302
    %v4603 = vpack.c.b16 %v4309, %v4303
    %v4604 = vpack.c.b16 %v4310, %v4304
    %v4605 = vpack.c.b16 %v4311, %v4305
    %v4606 = vpack.c.b16 %v4312, %v4306
    %v4607 = vpack.c.b16 %v4319, %v4313
    %v4608 = vpack.c.b16 %v4320, %v4314
    %v4609 = vpack.c.b16 %v4321, %v4315
    %v4610 = vpack.c.b16 %v4322, %v4316
    %v4611 = vpack.c.b16 %v4323, %v4317
    %v4612 = vpack.c.b16 %v4324, %v4318
    %4901 = vmatprep.subr.bf16.mxu0 %v4326
    %4902 = vmatpush1.bf16.msra.mxu0 %v4325
    %4903 = vmatprep.subr.bf16.mxu0 %v4332
    %4904 = vmatpush1.bf16.msra.mxu0 %v4331
    %4905 = vmatprep.subr.bf16.mxu0 %v4338
    %4906 = vmatpush1.bf16.msra.mxu0 %v4337
    %4907 = vmatprep.subr.bf16.mxu0 %v4344
    %4908 = vmatpush1.bf16.msra.mxu0 %v4343
    %4909 = vmatprep.subr.bf16.mxu0 %v4350
    %4910 = vmatpush1.bf16.msra.mxu0 %v4349
    %4911 = vmatprep.subr.bf16.mxu0 %v4356
    %4912 = vmatpush1.bf16.msra.mxu0 %v4355
    %4913 = vmatprep.subr.bf16.mxu0 %v4362
    %4914 = vmatpush1.bf16.msra.mxu0 %v4361
    %4915 = vmatprep.subr.bf16.mxu0 %v4368
    %4916 = vmatpush1.bf16.msra.mxu0 %v4367
    %4917 = vmatprep.subr.bf16.mxu0 %v4374
    %4918 = vmatpush1.bf16.msra.mxu0 %v4373
    %4919 = vmatprep.subr.bf16.mxu0 %v4380
    %4920 = vmatpush1.bf16.msra.mxu0 %v4379
    %4921 = vmatprep.subr.bf16.mxu0 %v4386
    %4922 = vmatpush1.bf16.msra.mxu0 %v4385
    %4923 = vmatprep.subr.bf16.mxu0 %v4392
    %4924 = vmatpush1.bf16.msra.mxu0 %v4391
    %4925 = vmatprep.subr.bf16.mxu0 %v4398
    %4926 = vmatpush1.bf16.msra.mxu0 %v4397
    %4927 = vmatprep.subr.bf16.mxu0 %v4404
    %4928 = vmatpush1.bf16.msra.mxu0 %v4403
    %4929 = vmatprep.subr.bf16.mxu0 %v4410
    %4930 = vmatpush1.bf16.msra.mxu0 %v4409
    %4931 = vmatprep.subr.bf16.mxu0 %v4416
    %4932 = vmatpush1.bf16.msra.mxu0 %v4415
    %4933 = vmatprep.mubr.bf16.mxu0 %v3167
    %4934 = vmatmul.mubr.bf16.gmra.mrb[0].mxu0 %v3166
    %v4935 = vpop.f32.mrb[0].mxu0
    %v4936 = vadd.f32 0.0, %v4935
    %v4937 = vpop.f32.mrb[0].mxu0
    %v4938 = vadd.f32 0.0, %v4937
    %v4939 = vpop.f32.mrb[0].mxu0
    %v4940 = vpop.f32.mrb[0].mxu0
    %4941 = vdwg.mxu0
    %4942 = vmatprep.subr.bf16.mxu0 %v4422
    %4943 = vmatpush1.bf16.msra.mxu0 %v4421
    %4944 = vmatprep.subr.bf16.mxu0 %v4428
    %4945 = vmatpush1.bf16.msra.mxu0 %v4427
    %4946 = vmatprep.subr.bf16.mxu0 %v4434
    %4947 = vmatpush1.bf16.msra.mxu0 %v4433
    %4948 = vmatprep.subr.bf16.mxu0 %v4440
    %4949 = vmatpush1.bf16.msra.mxu0 %v4439
    %4950 = vmatprep.subr.bf16.mxu0 %v4446
    %4951 = vmatpush1.bf16.msra.mxu0 %v4445
    %4952 = vmatprep.subr.bf16.mxu0 %v4452
    %4953 = vmatpush1.bf16.msra.mxu0 %v4451
    %4954 = vmatprep.subr.bf16.mxu0 %v4458
    %4955 = vmatpush1.bf16.msra.mxu0 %v4457
    %4956 = vmatprep.subr.bf16.mxu0 %v4464
    %4957 = vmatpush1.bf16.msra.mxu0 %v4463
    %4958 = vmatprep.subr.bf16.mxu0 %v4470
    %4959 = vmatpush1.bf16.msra.mxu0 %v4469
    %4960 = vmatprep.subr.bf16.mxu0 %v4476
    %4961 = vmatpush1.bf16.msra.mxu0 %v4475
    %4962 = vmatprep.subr.bf16.mxu0 %v4482
    %4963 = vmatpush1.bf16.msra.mxu0 %v4481
    %4964 = vmatprep.subr.bf16.mxu0 %v4488
    %4965 = vmatpush1.bf16.msra.mxu0 %v4487
    %4966 = vmatprep.subr.bf16.mxu0 %v4494
    %4967 = vmatpush1.bf16.msra.mxu0 %v4493
    %4968 = vmatprep.subr.bf16.mxu0 %v4500
    %4969 = vmatpush1.bf16.msra.mxu0 %v4499
    %4970 = vmatprep.subr.bf16.mxu0 %v4506
    %4971 = vmatpush1.bf16.msra.mxu0 %v4505
    %4972 = vmatprep.subr.bf16.mxu0 %v4512
    %4973 = vmatpush1.bf16.msra.mxu0 %v4511
    %4974 = vmatprep.mubr.bf16.mxu0 %v3169
    %4975 = vmatmul.mubr.bf16.gmra.mrb[0].mxu0 %v3168
    %v4976 = vpop.f32.mrb[0].mxu0
    %v4977 = vadd.f32 %v4936, %v4976
    %v4978 = vpop.f32.mrb[0].mxu0
    %v4979 = vadd.f32 %v4938, %v4978
    %v4980 = vpop.f32.mrb[0].mxu0
    %v4981 = vpop.f32.mrb[0].mxu0
    %4982 = vdwg.mxu0
    %4983 = vmatprep.subr.bf16.mxu0 %v4518
    %4984 = vmatpush1.bf16.msra.mxu0 %v4517
    %4985 = vmatprep.subr.bf16.mxu0 %v4524
    %4986 = vmatpush1.bf16.msra.mxu0 %v4523
    %4987 = vmatprep.subr.bf16.mxu0 %v4530
    %4988 = vmatpush1.bf16.msra.mxu0 %v4529
    %4989 = vmatprep.subr.bf16.mxu0 %v4536
    %4990 = vmatpush1.bf16.msra.mxu0 %v4535
    %4991 = vmatprep.subr.bf16.mxu0 %v4542
    %4992 = vmatpush1.bf16.msra.mxu0 %v4541
    %4993 = vmatprep.subr.bf16.mxu0 %v4548
    %4994 = vmatpush1.bf16.msra.mxu0 %v4547
    %4995 = vmatprep.subr.bf16.mxu0 %v4554
    %4996 = vmatpush1.bf16.msra.mxu0 %v4553
    %4997 = vmatprep.subr.bf16.mxu0 %v4560
    %4998 = vmatpush1.bf16.msra.mxu0 %v4559
    %4999 = vmatprep.subr.bf16.mxu0 %v4566
    %5000 = vmatpush1.bf16.msra.mxu0 %v4565
    %5001 = vmatprep.subr.bf16.mxu0 %v4572
    %5002 = vmatpush1.bf16.msra.mxu0 %v4571
    %5003 = vmatprep.subr.bf16.mxu0 %v4578
    %5004 = vmatpush1.bf16.msra.mxu0 %v4577
    %5005 = vmatprep.subr.bf16.mxu0 %v4584
    %5006 = vmatpush1.bf16.msra.mxu0 %v4583
    %5007 = vmatprep.subr.bf16.mxu0 %v4590
    %5008 = vmatpush1.bf16.msra.mxu0 %v4589
    %5009 = vmatprep.subr.bf16.mxu0 %v4596
    %5010 = vmatpush1.bf16.msra.mxu0 %v4595
    %5011 = vmatprep.subr.bf16.mxu0 %v4602
    %5012 = vmatpush1.bf16.msra.mxu0 %v4601
    %5013 = vmatprep.subr.bf16.mxu0 %v4608
    %5014 = vmatpush1.bf16.msra.mxu0 %v4607
    %5015 = vmatprep.mubr.bf16.mxu0 %v3171
    %5016 = vmatmul.mubr.bf16.gmra.mrb[0].mxu0 %v3170
    %v5017 = vpop.f32.mrb[0].mxu0
    %v5018 = vadd.f32 %v4977, %v5017
    %v5019 = vpop.f32.mrb[0].mxu0
    %v5020 = vadd.f32 %v4979, %v5019
    %v5021 = vpop.f32.mrb[0].mxu0
    %v5022 = vpop.f32.mrb[0].mxu0
    %5023 = vdwg.mxu0
    %5024 = vmatprep.subr.bf16.mxu0 %v4328
    %5025 = vmatpush1.bf16.msra.mxu0 %v4327
    %5026 = vmatprep.subr.bf16.mxu0 %v4334
    %5027 = vmatpush1.bf16.msra.mxu0 %v4333
    %5028 = vmatprep.subr.bf16.mxu0 %v4340
    %5029 = vmatpush1.bf16.msra.mxu0 %v4339
    %5030 = vmatprep.subr.bf16.mxu0 %v4346
    %5031 = vmatpush1.bf16.msra.mxu0 %v4345
    %5032 = vmatprep.subr.bf16.mxu0 %v4352
    %5033 = vmatpush1.bf16.msra.mxu0 %v4351
    %5034 = vmatprep.subr.bf16.mxu0 %v4358
    %5035 = vmatpush1.bf16.msra.mxu0 %v4357
    %5036 = vmatprep.subr.bf16.mxu0 %v4364
    %5037 = vmatpush1.bf16.msra.mxu0 %v4363
    %5038 = vmatprep.subr.bf16.mxu0 %v4370
    %5039 = vmatpush1.bf16.msra.mxu0 %v4369
    %5040 = vmatprep.subr.bf16.mxu0 %v4376
    %5041 = vmatpush1.bf16.msra.mxu0 %v4375
    %5042 = vmatprep.subr.bf16.mxu0 %v4382
    %5043 = vmatpush1.bf16.msra.mxu0 %v4381
    %5044 = vmatprep.subr.bf16.mxu0 %v4388
    %5045 = vmatpush1.bf16.msra.mxu0 %v4387
    %5046 = vmatprep.subr.bf16.mxu0 %v4394
    %5047 = vmatpush1.bf16.msra.mxu0 %v4393
    %5048 = vmatprep.subr.bf16.mxu0 %v4400
    %5049 = vmatpush1.bf16.msra.mxu0 %v4399
    %5050 = vmatprep.subr.bf16.mxu0 %v4406
    %5051 = vmatpush1.bf16.msra.mxu0 %v4405
    %5052 = vmatprep.subr.bf16.mxu0 %v4412
    %5053 = vmatpush1.bf16.msra.mxu0 %v4411
    %5054 = vmatprep.subr.bf16.mxu0 %v4418
    %5055 = vmatpush1.bf16.msra.mxu0 %v4417
    %5056 = vmatprep.mubr.bf16.mxu0 %v3167
    %5057 = vmatmul.mubr.bf16.gmra.mrb[0].mxu0 %v3166
    %v5058 = vpop.f32.mrb[0].mxu0
    %v5059 = vadd.f32 0.0, %v5058
    %v5060 = vpop.f32.mrb[0].mxu0
    %v5061 = vadd.f32 0.0, %v5060
    %v5062 = vpop.f32.mrb[0].mxu0
    %v5063 = vpop.f32.mrb[0].mxu0
    %5064 = vdwg.mxu0
    %5065 = vmatprep.subr.bf16.mxu0 %v4424
    %5066 = vmatpush1.bf16.msra.mxu0 %v4423
    %5067 = vmatprep.subr.bf16.mxu0 %v4430
    %5068 = vmatpush1.bf16.msra.mxu0 %v4429
    %5069 = vmatprep.subr.bf16.mxu0 %v4436
    %5070 = vmatpush1.bf16.msra.mxu0 %v4435
    %5071 = vmatprep.subr.bf16.mxu0 %v4442
    %5072 = vmatpush1.bf16.msra.mxu0 %v4441
    %5073 = vmatprep.subr.bf16.mxu0 %v4448
    %5074 = vmatpush1.bf16.msra.mxu0 %v4447
    %5075 = vmatprep.subr.bf16.mxu0 %v4454
    %5076 = vmatpush1.bf16.msra.mxu0 %v4453
    %5077 = vmatprep.subr.bf16.mxu0 %v4460
    %5078 = vmatpush1.bf16.msra.mxu0 %v4459
    %5079 = vmatprep.subr.bf16.mxu0 %v4466
    %5080 = vmatpush1.bf16.msra.mxu0 %v4465
    %5081 = vmatprep.subr.bf16.mxu0 %v4472
    %5082 = vmatpush1.bf16.msra.mxu0 %v4471
    %5083 = vmatprep.subr.bf16.mxu0 %v4478
    %5084 = vmatpush1.bf16.msra.mxu0 %v4477
    %5085 = vmatprep.subr.bf16.mxu0 %v4484
    %5086 = vmatpush1.bf16.msra.mxu0 %v4483
    %5087 = vmatprep.subr.bf16.mxu0 %v4490
    %5088 = vmatpush1.bf16.msra.mxu0 %v4489
    %5089 = vmatprep.subr.bf16.mxu0 %v4496
    %5090 = vmatpush1.bf16.msra.mxu0 %v4495
    %5091 = vmatprep.subr.bf16.mxu0 %v4502
    %5092 = vmatpush1.bf16.msra.mxu0 %v4501
    %5093 = vmatprep.subr.bf16.mxu0 %v4508
    %5094 = vmatpush1.bf16.msra.mxu0 %v4507
    %5095 = vmatprep.subr.bf16.mxu0 %v4514
    %5096 = vmatpush1.bf16.msra.mxu0 %v4513
    %5097 = vmatprep.mubr.bf16.mxu0 %v3169
    %5098 = vmatmul.mubr.bf16.gmra.mrb[0].mxu0 %v3168
    %v5099 = vpop.f32.mrb[0].mxu0
    %v5100 = vadd.f32 %v5059, %v5099
    %v5101 = vpop.f32.mrb[0].mxu0
    %v5102 = vadd.f32 %v5061, %v5101
    %v5103 = vpop.f32.mrb[0].mxu0
    %v5104 = vpop.f32.mrb[0].mxu0
    %5105 = vdwg.mxu0
    %5106 = vmatprep.subr.bf16.mxu0 %v4520
    %5107 = vmatpush1.bf16.msra.mxu0 %v4519
    %5108 = vmatprep.subr.bf16.mxu0 %v4526
    %5109 = vmatpush1.bf16.msra.mxu0 %v4525
    %5110 = vmatprep.subr.bf16.mxu0 %v4532
    %5111 = vmatpush1.bf16.msra.mxu0 %v4531
    %5112 = vmatprep.subr.bf16.mxu0 %v4538
    %5113 = vmatpush1.bf16.msra.mxu0 %v4537
    %5114 = vmatprep.subr.bf16.mxu0 %v4544
    %5115 = vmatpush1.bf16.msra.mxu0 %v4543
    %5116 = vmatprep.subr.bf16.mxu0 %v4550
    %5117 = vmatpush1.bf16.msra.mxu0 %v4549
    %5118 = vmatprep.subr.bf16.mxu0 %v4556
    %5119 = vmatpush1.bf16.msra.mxu0 %v4555
    %5120 = vmatprep.subr.bf16.mxu0 %v4562
    %5121 = vmatpush1.bf16.msra.mxu0 %v4561
    %5122 = vmatprep.subr.bf16.mxu0 %v4568
    %5123 = vmatpush1.bf16.msra.mxu0 %v4567
    %5124 = vmatprep.subr.bf16.mxu0 %v4574
    %5125 = vmatpush1.bf16.msra.mxu0 %v4573
    %5126 = vmatprep.subr.bf16.mxu0 %v4580
    %5127 = vmatpush1.bf16.msra.mxu0 %v4579
    %5128 = vmatprep.subr.bf16.mxu0 %v4586
    %5129 = vmatpush1.bf16.msra.mxu0 %v4585
    %5130 = vmatprep.subr.bf16.mxu0 %v4592
    %5131 = vmatpush1.bf16.msra.mxu0 %v4591
    %5132 = vmatprep.subr.bf16.mxu0 %v4598
    %5133 = vmatpush1.bf16.msra.mxu0 %v4597
    %5134 = vmatprep.subr.bf16.mxu0 %v4604
    %5135 = vmatpush1.bf16.msra.mxu0 %v4603
    %5136 = vmatprep.subr.bf16.mxu0 %v4610
    %5137 = vmatpush1.bf16.msra.mxu0 %v4609
    %5138 = vmatprep.mubr.bf16.mxu0 %v3171
    %5139 = vmatmul.mubr.bf16.gmra.mrb[0].mxu0 %v3170
    %v5140 = vpop.f32.mrb[0].mxu0
    %v5141 = vadd.f32 %v5100, %v5140
    %v5142 = vpop.f32.mrb[0].mxu0
    %v5143 = vadd.f32 %v5102, %v5142
    %v5144 = vpop.f32.mrb[0].mxu0
    %v5145 = vpop.f32.mrb[0].mxu0
    %5146 = vdwg.mxu0
    %5147 = vmatprep.subr.bf16.mxu0 %v4330
    %5148 = vmatpush1.bf16.msra.mxu0 %v4329
    %5149 = vmatprep.subr.bf16.mxu0 %v4336
    %5150 = vmatpush1.bf16.msra.mxu0 %v4335
    %5151 = vmatprep.subr.bf16.mxu0 %v4342
    %5152 = vmatpush1.bf16.msra.mxu0 %v4341
    %5153 = vmatprep.subr.bf16.mxu0 %v4348
    %5154 = vmatpush1.bf16.msra.mxu0 %v4347
    %5155 = vmatprep.subr.bf16.mxu0 %v4354
    %5156 = vmatpush1.bf16.msra.mxu0 %v4353
    %5157 = vmatprep.subr.bf16.mxu0 %v4360
    %5158 = vmatpush1.bf16.msra.mxu0 %v4359
    %5159 = vmatprep.subr.bf16.mxu0 %v4366
    %5160 = vmatpush1.bf16.msra.mxu0 %v4365
    %5161 = vmatprep.subr.bf16.mxu0 %v4372
    %5162 = vmatpush1.bf16.msra.mxu0 %v4371
    %5163 = vmatprep.subr.bf16.mxu0 %v4378
    %5164 = vmatpush1.bf16.msra.mxu0 %v4377
    %5165 = vmatprep.subr.bf16.mxu0 %v4384
    %5166 = vmatpush1.bf16.msra.mxu0 %v4383
    %5167 = vmatprep.subr.bf16.mxu0 %v4390
    %5168 = vmatpush1.bf16.msra.mxu0 %v4389
    %5169 = vmatprep.subr.bf16.mxu0 %v4396
    %5170 = vmatpush1.bf16.msra.mxu0 %v4395
    %5171 = vmatprep.subr.bf16.mxu0 %v4402
    %5172 = vmatpush1.bf16.msra.mxu0 %v4401
    %5173 = vmatprep.subr.bf16.mxu0 %v4408
    %5174 = vmatpush1.bf16.msra.mxu0 %v4407
    %5175 = vmatprep.subr.bf16.mxu0 %v4414
    %5176 = vmatpush1.bf16.msra.mxu0 %v4413
    %5177 = vmatprep.subr.bf16.mxu0 %v4420
    %5178 = vmatpush1.bf16.msra.mxu0 %v4419
    %5179 = vmatprep.mubr.bf16.mxu0 %v3167
    %5180 = vmatmul.mubr.bf16.gmra.mrb[0].mxu0 %v3166
    %v5181 = vpop.f32.mrb[0].mxu0
    %v5182 = vadd.f32 0.0, %v5181
    %v5183 = vpop.f32.mrb[0].mxu0
    %v5184 = vadd.f32 0.0, %v5183
    %v5185 = vpop.f32.mrb[0].mxu0
    %v5186 = vpop.f32.mrb[0].mxu0
    %5187 = vdwg.mxu0
    %5188 = vmatprep.subr.bf16.mxu0 %v4426
    %5189 = vmatpush1.bf16.msra.mxu0 %v4425
    %5190 = vmatprep.subr.bf16.mxu0 %v4432
    %5191 = vmatpush1.bf16.msra.mxu0 %v4431
    %5192 = vmatprep.subr.bf16.mxu0 %v4438
    %5193 = vmatpush1.bf16.msra.mxu0 %v4437
    %5194 = vmatprep.subr.bf16.mxu0 %v4444
    %5195 = vmatpush1.bf16.msra.mxu0 %v4443
    %5196 = vmatprep.subr.bf16.mxu0 %v4450
    %5197 = vmatpush1.bf16.msra.mxu0 %v4449
    %5198 = vmatprep.subr.bf16.mxu0 %v4456
    %5199 = vmatpush1.bf16.msra.mxu0 %v4455
    %5200 = vmatprep.subr.bf16.mxu0 %v4462
    %5201 = vmatpush1.bf16.msra.mxu0 %v4461
    %5202 = vmatprep.subr.bf16.mxu0 %v4468
    %5203 = vmatpush1.bf16.msra.mxu0 %v4467
    %5204 = vmatprep.subr.bf16.mxu0 %v4474
    %5205 = vmatpush1.bf16.msra.mxu0 %v4473
    %5206 = vmatprep.subr.bf16.mxu0 %v4480
    %5207 = vmatpush1.bf16.msra.mxu0 %v4479
    %5208 = vmatprep.subr.bf16.mxu0 %v4486
    %5209 = vmatpush1.bf16.msra.mxu0 %v4485
    %5210 = vmatprep.subr.bf16.mxu0 %v4492
    %5211 = vmatpush1.bf16.msra.mxu0 %v4491
    %5212 = vmatprep.subr.bf16.mxu0 %v4498
    %5213 = vmatpush1.bf16.msra.mxu0 %v4497
    %5214 = vmatprep.subr.bf16.mxu0 %v4504
    %5215 = vmatpush1.bf16.msra.mxu0 %v4503
    %5216 = vmatprep.subr.bf16.mxu0 %v4510
    %5217 = vmatpush1.bf16.msra.mxu0 %v4509
    %5218 = vmatprep.subr.bf16.mxu0 %v4516
    %5219 = vmatpush1.bf16.msra.mxu0 %v4515
    %5220 = vmatprep.mubr.bf16.mxu0 %v3169
    %5221 = vmatmul.mubr.bf16.gmra.mrb[0].mxu0 %v3168
    %v5222 = vpop.f32.mrb[0].mxu0
    %v5223 = vadd.f32 %v5182, %v5222
    %v5224 = vpop.f32.mrb[0].mxu0
    %v5225 = vadd.f32 %v5184, %v5224
    %v5226 = vpop.f32.mrb[0].mxu0
    %v5227 = vpop.f32.mrb[0].mxu0
    %5228 = vdwg.mxu0
    %5229 = vmatprep.subr.bf16.mxu0 %v4522
    %5230 = vmatpush1.bf16.msra.mxu0 %v4521
    %5231 = vmatprep.subr.bf16.mxu0 %v4528
    %5232 = vmatpush1.bf16.msra.mxu0 %v4527
    %5233 = vmatprep.subr.bf16.mxu0 %v4534
    %5234 = vmatpush1.bf16.msra.mxu0 %v4533
    %5235 = vmatprep.subr.bf16.mxu0 %v4540
    %5236 = vmatpush1.bf16.msra.mxu0 %v4539
    %5237 = vmatprep.subr.bf16.mxu0 %v4546
    %5238 = vmatpush1.bf16.msra.mxu0 %v4545
    %5239 = vmatprep.subr.bf16.mxu0 %v4552
    %5240 = vmatpush1.bf16.msra.mxu0 %v4551
    %5241 = vmatprep.subr.bf16.mxu0 %v4558
    %5242 = vmatpush1.bf16.msra.mxu0 %v4557
    %5243 = vmatprep.subr.bf16.mxu0 %v4564
    %5244 = vmatpush1.bf16.msra.mxu0 %v4563
    %5245 = vmatprep.subr.bf16.mxu0 %v4570
    %5246 = vmatpush1.bf16.msra.mxu0 %v4569
    %5247 = vmatprep.subr.bf16.mxu0 %v4576
    %5248 = vmatpush1.bf16.msra.mxu0 %v4575
    %5249 = vmatprep.subr.bf16.mxu0 %v4582
    %5250 = vmatpush1.bf16.msra.mxu0 %v4581
    %5251 = vmatprep.subr.bf16.mxu0 %v4588
    %5252 = vmatpush1.bf16.msra.mxu0 %v4587
    %5253 = vmatprep.subr.bf16.mxu0 %v4594
    %5254 = vmatpush1.bf16.msra.mxu0 %v4593
    %5255 = vmatprep.subr.bf16.mxu0 %v4600
    %5256 = vmatpush1.bf16.msra.mxu0 %v4599
    %5257 = vmatprep.subr.bf16.mxu0 %v4606
    %5258 = vmatpush1.bf16.msra.mxu0 %v4605
    %5259 = vmatprep.subr.bf16.mxu0 %v4612
    %5260 = vmatpush1.bf16.msra.mxu0 %v4611
    %5261 = vmatprep.mubr.bf16.mxu0 %v3171
    %5262 = vmatmul.mubr.bf16.gmra.mrb[0].mxu0 %v3170
    %v5263 = vpop.f32.mrb[0].mxu0
    %v5264 = vadd.f32 %v5223, %v5263
    %v5265 = vpop.f32.mrb[0].mxu0
    %v5266 = vadd.f32 %v5225, %v5265
    %v5267 = vpop.f32.mrb[0].mxu0
    %v5268 = vpop.f32.mrb[0].mxu0
    %5269 = vdwg.mxu0
    %v5294 = vunpack.c.l.b16 %v3142
    %v5295 = vunpack.c.h.b16 %v3142
    %v5296 = vunpack.c.l.b16 %v3143
    %v5297 = vunpack.c.h.b16 %v3143
    %v5298 = vunpack.c.l.b16 %v3144
    %v5299 = vunpack.c.h.b16 %v3144
    %v5300 = vunpack.c.l.b16 %v3145
    %v5301 = vunpack.c.h.b16 %v3145
    %v5302 = vunpack.c.l.b16 %v3146
    %v5303 = vunpack.c.h.b16 %v3146
    %v5304 = vunpack.c.l.b16 %v3147
    %v5305 = vunpack.c.h.b16 %v3147
    %v5306 = vunpack.c.l.b16 %v3148
    %v5307 = vunpack.c.h.b16 %v3148
    %v5308 = vunpack.c.l.b16 %v3149
    %v5309 = vunpack.c.h.b16 %v3149
    %v5310 = vunpack.c.l.b16 %v3150
    %v5311 = vunpack.c.h.b16 %v3150
    %v5312 = vunpack.c.l.b16 %v3151
    %v5313 = vunpack.c.h.b16 %v3151
    %v5314 = vunpack.c.l.b16 %v3152
    %v5315 = vunpack.c.h.b16 %v3152
    %v5316 = vunpack.c.l.b16 %v3153
    %v5317 = vunpack.c.h.b16 %v3153
    %v5318 = vunpack.c.l.b16 %v3154
    %v5319 = vunpack.c.h.b16 %v3154
    %v5320 = vunpack.c.l.b16 %v3155
    %v5321 = vunpack.c.h.b16 %v3155
    %v5322 = vunpack.c.l.b16 %v3156
    %v5323 = vunpack.c.h.b16 %v3156
    %v5324 = vunpack.c.l.b16 %v3157
    %v5325 = vunpack.c.h.b16 %v3157
    %v5326 = vunpack.c.l.b16 %v3158
    %v5327 = vunpack.c.h.b16 %v3158
    %v5328 = vunpack.c.l.b16 %v3159
    %v5329 = vunpack.c.h.b16 %v3159
    %v5330 = vunpack.c.l.b16 %v3160
    %v5331 = vunpack.c.h.b16 %v3160
    %v5332 = vunpack.c.l.b16 %v3161
    %v5333 = vunpack.c.h.b16 %v3161
    %v5334 = vunpack.c.l.b16 %v3162
    %v5335 = vunpack.c.h.b16 %v3162
    %v5336 = vunpack.c.l.b16 %v3163
    %v5337 = vunpack.c.h.b16 %v3163
    %v5338 = vunpack.c.l.b16 %v3164
    %v5339 = vunpack.c.h.b16 %v3164
    %v5340 = vunpack.c.l.b16 %v3165
    %v5341 = vunpack.c.h.b16 %v3165
    %v5342 = vpack.c.b16 %v5300, %v5294
    %v5343 = vpack.c.b16 %v5301, %v5295
    %v5344 = vpack.c.b16 %v5302, %v5296
    %v5345 = vpack.c.b16 %v5303, %v5297
    %v5346 = vpack.c.b16 %v5304, %v5298
    %v5347 = vpack.c.b16 %v5305, %v5299
    %v5348 = vpack.c.b16 %v5312, %v5306
    %v5349 = vpack.c.b16 %v5313, %v5307
    %v5350 = vpack.c.b16 %v5314, %v5308
    %v5351 = vpack.c.b16 %v5315, %v5309
    %v5352 = vpack.c.b16 %v5316, %v5310
    %v5353 = vpack.c.b16 %v5317, %v5311
    %v5354 = vpack.c.b16 %v5324, %v5318
    %v5355 = vpack.c.b16 %v5325, %v5319
    %v5356 = vpack.c.b16 %v5326, %v5320
    %v5357 = vpack.c.b16 %v5327, %v5321
    %v5358 = vpack.c.b16 %v5328, %v5322
    %v5359 = vpack.c.b16 %v5329, %v5323
    %v5360 = vpack.c.b16 %v5336, %v5330
    %v5361 = vpack.c.b16 %v5337, %v5331
    %v5362 = vpack.c.b16 %v5338, %v5332
    %v5363 = vpack.c.b16 %v5339, %v5333
    %v5364 = vpack.c.b16 %v5340, %v5334
    %v5365 = vpack.c.b16 %v5341, %v5335
    %vm5390 = vcmask 523264
    %v5392 = vsel %vm5390, %v3141, 0
    %5394 = vmatprep.subr.bf16.mxu0 %v5343
    %5395 = vmatpush1.bf16.msra.mxu0 %v5342
    %5396 = vmatprep.subr.bf16.mxu0 %v5349
    %5397 = vmatpush1.bf16.msra.mxu0 %v5348
    %5398 = vmatprep.subr.bf16.mxu0 %v5355
    %5399 = vmatpush1.bf16.msra.mxu0 %v5354
    %5400 = vmatprep.subr.bf16.mxu0 %v5361
    %5401 = vmatpush1.bf16.msra.mxu0 %v5360
    %5402 = vmatprep.subr.bf16.mxu0 0
    %5403 = vmatpush1.bf16.msra.mxu0 0
    %5404 = vmatprep.subr.bf16.mxu0 0
    %5405 = vmatpush1.bf16.msra.mxu0 0
    %5406 = vmatprep.subr.bf16.mxu0 0
    %5407 = vmatpush1.bf16.msra.mxu0 0
    %5408 = vmatprep.subr.bf16.mxu0 0
    %5409 = vmatpush1.bf16.msra.mxu0 0
    %5410 = vmatprep.subr.bf16.mxu0 0
    %5411 = vmatpush1.bf16.msra.mxu0 0
    %5412 = vmatprep.subr.bf16.mxu0 0
    %5413 = vmatpush1.bf16.msra.mxu0 0
    %5414 = vmatprep.subr.bf16.mxu0 0
    %5415 = vmatpush1.bf16.msra.mxu0 0
    %5416 = vmatprep.subr.bf16.mxu0 0
    %5417 = vmatpush1.bf16.msra.mxu0 0
    %5418 = vmatprep.subr.bf16.mxu0 0
    %5419 = vmatpush1.bf16.msra.mxu0 0
    %5420 = vmatprep.subr.bf16.mxu0 0
    %5421 = vmatpush1.bf16.msra.mxu0 0
    %5422 = vmatprep.subr.bf16.mxu0 0
    %5423 = vmatpush1.bf16.msra.mxu0 0
    %5424 = vmatprep.subr.bf16.mxu0 0
    %5425 = vmatpush1.bf16.msra.mxu0 0
    %5426 = vmatprep.mubr.bf16.mxu0 0
    %5427 = vmatmul.mubr.bf16.gmra.mrb[0].mxu0 %v5392
    %v5428 = vpop.f32.mrb[0].mxu0
    %v5429 = vadd.f32 %v5018, %v5428
    %v5430 = vpop.f32.mrb[0].mxu0
    %v5431 = vadd.f32 %v5020, %v5430
    %v5432 = vpop.f32.mrb[0].mxu0
    %v5433 = vpop.f32.mrb[0].mxu0
    %5434 = vdwg.mxu0
    %5435 = vmatprep.subr.bf16.mxu0 %v5345
    %5436 = vmatpush1.bf16.msra.mxu0 %v5344
    %5437 = vmatprep.subr.bf16.mxu0 %v5351
    %5438 = vmatpush1.bf16.msra.mxu0 %v5350
    %5439 = vmatprep.subr.bf16.mxu0 %v5357
    %5440 = vmatpush1.bf16.msra.mxu0 %v5356
    %5441 = vmatprep.subr.bf16.mxu0 %v5363
    %5442 = vmatpush1.bf16.msra.mxu0 %v5362
    %5443 = vmatprep.subr.bf16.mxu0 0
    %5444 = vmatpush1.bf16.msra.mxu0 0
    %5445 = vmatprep.subr.bf16.mxu0 0
    %5446 = vmatpush1.bf16.msra.mxu0 0
    %5447 = vmatprep.subr.bf16.mxu0 0
    %5448 = vmatpush1.bf16.msra.mxu0 0
    %5449 = vmatprep.subr.bf16.mxu0 0
    %5450 = vmatpush1.bf16.msra.mxu0 0
    %5451 = vmatprep.subr.bf16.mxu0 0
    %5452 = vmatpush1.bf16.msra.mxu0 0
    %5453 = vmatprep.subr.bf16.mxu0 0
    %5454 = vmatpush1.bf16.msra.mxu0 0
    %5455 = vmatprep.subr.bf16.mxu0 0
    %5456 = vmatpush1.bf16.msra.mxu0 0
    %5457 = vmatprep.subr.bf16.mxu0 0
    %5458 = vmatpush1.bf16.msra.mxu0 0
    %5459 = vmatprep.subr.bf16.mxu0 0
    %5460 = vmatpush1.bf16.msra.mxu0 0
    %5461 = vmatprep.subr.bf16.mxu0 0
    %5462 = vmatpush1.bf16.msra.mxu0 0
    %5463 = vmatprep.subr.bf16.mxu0 0
    %5464 = vmatpush1.bf16.msra.mxu0 0
    %5465 = vmatprep.subr.bf16.mxu0 0
    %5466 = vmatpush1.bf16.msra.mxu0 0
    %5467 = vmatprep.mubr.bf16.mxu0 0
    %5468 = vmatmul.mubr.bf16.gmra.mrb[0].mxu0 %v5392
    %v5469 = vpop.f32.mrb[0].mxu0
    %v5470 = vadd.f32 %v5141, %v5469
    %v5471 = vpop.f32.mrb[0].mxu0
    %v5472 = vadd.f32 %v5143, %v5471
    %v5473 = vpop.f32.mrb[0].mxu0
    %v5474 = vpop.f32.mrb[0].mxu0
    %5475 = vdwg.mxu0
    %5476 = vmatprep.subr.bf16.mxu0 %v5347
    %5477 = vmatpush1.bf16.msra.mxu0 %v5346
    %5478 = vmatprep.subr.bf16.mxu0 %v5353
    %5479 = vmatpush1.bf16.msra.mxu0 %v5352
    %5480 = vmatprep.subr.bf16.mxu0 %v5359
    %5481 = vmatpush1.bf16.msra.mxu0 %v5358
    %5482 = vmatprep.subr.bf16.mxu0 %v5365
    %5483 = vmatpush1.bf16.msra.mxu0 %v5364
    %5484 = vmatprep.subr.bf16.mxu0 0
    %5485 = vmatpush1.bf16.msra.mxu0 0
    %5486 = vmatprep.subr.bf16.mxu0 0
    %5487 = vmatpush1.bf16.msra.mxu0 0
    %5488 = vmatprep.subr.bf16.mxu0 0
    %5489 = vmatpush1.bf16.msra.mxu0 0
    %5490 = vmatprep.subr.bf16.mxu0 0
    %5491 = vmatpush1.bf16.msra.mxu0 0
    %5492 = vmatprep.subr.bf16.mxu0 0
    %5493 = vmatpush1.bf16.msra.mxu0 0
    %5494 = vmatprep.subr.bf16.mxu0 0
    %5495 = vmatpush1.bf16.msra.mxu0 0
    %5496 = vmatprep.subr.bf16.mxu0 0
    %5497 = vmatpush1.bf16.msra.mxu0 0
    %5498 = vmatprep.subr.bf16.mxu0 0
    %5499 = vmatpush1.bf16.msra.mxu0 0
    %5500 = vmatprep.subr.bf16.mxu0 0
    %5501 = vmatpush1.bf16.msra.mxu0 0
    %5502 = vmatprep.subr.bf16.mxu0 0
    %5503 = vmatpush1.bf16.msra.mxu0 0
    %5504 = vmatprep.subr.bf16.mxu0 0
    %5505 = vmatpush1.bf16.msra.mxu0 0
    %5506 = vmatprep.subr.bf16.mxu0 0
    %5507 = vmatpush1.bf16.msra.mxu0 0
    %5508 = vmatprep.mubr.bf16.mxu0 0
    %5509 = vmatmul.mubr.bf16.gmra.mrb[0].mxu0 %v5392
    %v5510 = vpop.f32.mrb[0].mxu0
    %v5511 = vadd.f32 %v5264, %v5510
    %v5512 = vpop.f32.mrb[0].mxu0
    %v5513 = vadd.f32 %v5266, %v5512
    %v5514 = vpop.f32.mrb[0].mxu0
    %v5515 = vpop.f32.mrb[0].mxu0
    %5516 = vdwg.mxu0
    %v5517 = vpack.c.bf16 %v2552, %v2552
    %v5518 = vpack.c.bf16 %v2554, %v2554
    %v5519 = vpack.c.bf16 %v2593, %v2593
    %v5520 = vpack.c.bf16 %v2595, %v2595
    %v5521 = vpack.c.bf16 %v2634, %v2634
    %v5522 = vpack.c.bf16 %v2636, %v2636
    %s5523 = scalar_lea.vmem [#allocation10], 4608
    %v5524 = vld [vmem:[%s5523] sm:$0xff]
    %v5525 = vld [vmem:[%s5523 + $0x8] sm:$0xff]
    %v5526 = vld [vmem:[%s5523 + $0x10] sm:$0xff]
    %v5527 = vld [vmem:[%s5523 + $0x18] sm:$0xff]
    %v5528 = vld [vmem:[%s5523 + $0x20] sm:$0xff]
    %v5529 = vld [vmem:[%s5523 + $0x28] sm:$0xff]
    %v5530 = vld [vmem:[%s5523 + $0x30] sm:$0xff]
    %v5531 = vld [vmem:[%s5523 + $0x38] sm:$0xff]
    %v5532 = vld [vmem:[%s5523 + $0x40] sm:$0xff]
    %v5533 = vld [vmem:[%s5523 + $0x48] sm:$0xff]
    %v5534 = vld [vmem:[%s5523 + $0x50] sm:$0xff]
    %v5535 = vld [vmem:[%s5523 + $0x58] sm:$0xff]
    %v5536 = vld [vmem:[%s5523 + $0x60] sm:$0xff]
    %v5537 = vld [vmem:[%s5523 + $0x68] sm:$0xff]
    %v5538 = vld [vmem:[%s5523 + $0x70] sm:$0xff]
    %v5539 = vld [vmem:[%s5523 + $0x78] sm:$0xff]
    %v5540 = vld [vmem:[%s5523 + $0x80] sm:$0xff]
    %v5541 = vld [vmem:[%s5523 + $0x88] sm:$0xff]
    %v5542 = vld [vmem:[%s5523 + $0x90] sm:$0xff]
    %v5543 = vld [vmem:[%s5523 + $0x98] sm:$0xff]
    %v5544 = vld [vmem:[%s5523 + $0xa0] sm:$0xff]
    %v5545 = vld [vmem:[%s5523 + $0xa8] sm:$0xff]
    %v5546 = vld [vmem:[%s5523 + $0xb0] sm:$0xff]
    %v5547 = vld [vmem:[%s5523 + $0xb8] sm:$0xff]
    %v5548 = vld [vmem:[%s5523 + $0xc0] sm:$0xff]
    %v5549 = vld [vmem:[%s5523 + $0xc8] sm:$0xff]
    %v5550 = vld [vmem:[%s5523 + $0xd0] sm:$0xff]
    %v5551 = vld [vmem:[%s5523 + $0xd8] sm:$0xff]
    %v5552 = vld [vmem:[%s5523 + $0xe0] sm:$0xff]
    %v5553 = vld [vmem:[%s5523 + $0xe8] sm:$0xff]
    %v5554 = vld [vmem:[%s5523 + $0xf0] sm:$0xff]
    %v5555 = vld [vmem:[%s5523 + $0xf8] sm:$0xff]
    %v5556 = vld [vmem:[%s5523 + $0x100] sm:$0xff]
    %v5557 = vld [vmem:[%s5523 + $0x108] sm:$0xff]
    %v5558 = vld [vmem:[%s5523 + $0x110] sm:$0xff]
    %v5559 = vld [vmem:[%s5523 + $0x118] sm:$0xff]
    %v5560 = vld [vmem:[%s5523 + $0x120] sm:$0xff]
    %v5561 = vld [vmem:[%s5523 + $0x128] sm:$0xff]
    %v5562 = vld [vmem:[%s5523 + $0x130] sm:$0xff]
    %v5563 = vld [vmem:[%s5523 + $0x138] sm:$0xff]
    %v5564 = vld [vmem:[%s5523 + $0x140] sm:$0xff]
    %v5565 = vld [vmem:[%s5523 + $0x148] sm:$0xff]
    %v5566 = vld [vmem:[%s5523 + $0x150] sm:$0xff]
    %v5567 = vld [vmem:[%s5523 + $0x158] sm:$0xff]
    %v5568 = vld [vmem:[%s5523 + $0x160] sm:$0xff]
    %v5569 = vld [vmem:[%s5523 + $0x168] sm:$0xff]
    %v5570 = vld [vmem:[%s5523 + $0x170] sm:$0xff]
    %v5571 = vld [vmem:[%s5523 + $0x178] sm:$0xff]
    %v5572 = vld [vmem:[%s5523 + $0x180] sm:$0xff]
    %v5573 = vld [vmem:[%s5523 + $0x188] sm:$0xff]
    %v5574 = vld [vmem:[%s5523 + $0x190] sm:$0xff]
    %v5575 = vld [vmem:[%s5523 + $0x198] sm:$0xff]
    %v5576 = vld [vmem:[%s5523 + $0x1a0] sm:$0xff]
    %v5577 = vld [vmem:[%s5523 + $0x1a8] sm:$0xff]
    %v5578 = vld [vmem:[%s5523 + $0x1b0] sm:$0xff]
    %v5579 = vld [vmem:[%s5523 + $0x1b8] sm:$0xff]
    %v5580 = vld [vmem:[%s5523 + $0x1c0] sm:$0xff]
    %v5581 = vld [vmem:[%s5523 + $0x1c8] sm:$0xff]
    %v5582 = vld [vmem:[%s5523 + $0x1d0] sm:$0xff]
    %v5583 = vld [vmem:[%s5523 + $0x1d8] sm:$0xff]
    %v5584 = vld [vmem:[%s5523 + $0x1e0] sm:$0xff]
    %v5585 = vld [vmem:[%s5523 + $0x1e8] sm:$0xff]
    %v5586 = vld [vmem:[%s5523 + $0x1f0] sm:$0xff]
    %v5587 = vld [vmem:[%s5523 + $0x1f8] sm:$0xff]
    %v5588 = vld [vmem:[%s5523 + $0x200] sm:$0xff]
    %v5589 = vld [vmem:[%s5523 + $0x208] sm:$0xff]
    %v5590 = vld [vmem:[%s5523 + $0x210] sm:$0xff]
    %v5591 = vld [vmem:[%s5523 + $0x218] sm:$0xff]
    %v5592 = vld [vmem:[%s5523 + $0x220] sm:$0xff]
    %v5593 = vld [vmem:[%s5523 + $0x228] sm:$0xff]
    %v5594 = vld [vmem:[%s5523 + $0x230] sm:$0xff]
    %v5595 = vld [vmem:[%s5523 + $0x238] sm:$0xff]
    %v5596 = vld [vmem:[%s5523 + $0x240] sm:$0xff]
    %v5597 = vld [vmem:[%s5523 + $0x248] sm:$0xff]
    %v5598 = vld [vmem:[%s5523 + $0x250] sm:$0xff]
    %v5599 = vld [vmem:[%s5523 + $0x258] sm:$0xff]
    %v5600 = vld [vmem:[%s5523 + $0x260] sm:$0xff]
    %v5601 = vld [vmem:[%s5523 + $0x268] sm:$0xff]
    %v5602 = vld [vmem:[%s5523 + $0x270] sm:$0xff]
    %v5603 = vld [vmem:[%s5523 + $0x278] sm:$0xff]
    %v5604 = vld [vmem:[%s5523 + $0x280] sm:$0xff]
    %v5605 = vld [vmem:[%s5523 + $0x288] sm:$0xff]
    %v5606 = vld [vmem:[%s5523 + $0x290] sm:$0xff]
    %v5607 = vld [vmem:[%s5523 + $0x298] sm:$0xff]
    %v5608 = vld [vmem:[%s5523 + $0x2a0] sm:$0xff]
    %v5609 = vld [vmem:[%s5523 + $0x2a8] sm:$0xff]
    %v5610 = vld [vmem:[%s5523 + $0x2b0] sm:$0xff]
    %v5611 = vld [vmem:[%s5523 + $0x2b8] sm:$0xff]
    %v5612 = vld [vmem:[%s5523 + $0x2c0] sm:$0xff]
    %v5613 = vld [vmem:[%s5523 + $0x2c8] sm:$0xff]
    %v5614 = vld [vmem:[%s5523 + $0x2d0] sm:$0xff]
    %v5615 = vld [vmem:[%s5523 + $0x2d8] sm:$0xff]
    %v5616 = vld [vmem:[%s5523 + $0x2e0] sm:$0xff]
    %v5617 = vld [vmem:[%s5523 + $0x2e8] sm:$0xff]
    %v5618 = vld [vmem:[%s5523 + $0x2f0] sm:$0xff]
    %v5619 = vld [vmem:[%s5523 + $0x2f8] sm:$0xff]
    %v5620 = vld [vmem:[%s5523 + $0x300] sm:$0xff]
    %v5621 = vld [vmem:[%s5523 + $0x308] sm:$0xff]
    %v5622 = vld [vmem:[%s5523 + $0x310] sm:$0xff]
    %v5623 = vld [vmem:[%s5523 + $0x318] sm:$0xff]
    %v5624 = vld [vmem:[%s5523 + $0x320] sm:$0xff]
    %v5625 = vld [vmem:[%s5523 + $0x328] sm:$0xff]
    %v5626 = vld [vmem:[%s5523 + $0x330] sm:$0xff]
    %v5627 = vld [vmem:[%s5523 + $0x338] sm:$0xff]
    %v5628 = vld [vmem:[%s5523 + $0x340] sm:$0xff]
    %v5629 = vld [vmem:[%s5523 + $0x348] sm:$0xff]
    %v5630 = vld [vmem:[%s5523 + $0x350] sm:$0xff]
    %v5631 = vld [vmem:[%s5523 + $0x358] sm:$0xff]
    %v5632 = vld [vmem:[%s5523 + $0x360] sm:$0xff]
    %v5633 = vld [vmem:[%s5523 + $0x368] sm:$0xff]
    %v5634 = vld [vmem:[%s5523 + $0x370] sm:$0xff]
    %v5635 = vld [vmem:[%s5523 + $0x378] sm:$0xff]
    %v5636 = vld [vmem:[%s5523 + $0x380] sm:$0xff]
    %v5637 = vld [vmem:[%s5523 + $0x388] sm:$0xff]
    %v5638 = vld [vmem:[%s5523 + $0x390] sm:$0xff]
    %v5639 = vld [vmem:[%s5523 + $0x398] sm:$0xff]
    %v5640 = vld [vmem:[%s5523 + $0x3a0] sm:$0xff]
    %v5641 = vld [vmem:[%s5523 + $0x3a8] sm:$0xff]
    %v5642 = vld [vmem:[%s5523 + $0x3b0] sm:$0xff]
    %v5643 = vld [vmem:[%s5523 + $0x3b8] sm:$0xff]
    %v5644 = vld [vmem:[%s5523 + $0x3c0] sm:$0xff]
    %v5645 = vld [vmem:[%s5523 + $0x3c8] sm:$0xff]
    %v5646 = vld [vmem:[%s5523 + $0x3d0] sm:$0xff]
    %v5647 = vld [vmem:[%s5523 + $0x3d8] sm:$0xff]
    %v5648 = vld [vmem:[%s5523 + $0x3e0] sm:$0xff]
    %v5649 = vld [vmem:[%s5523 + $0x3e8] sm:$0xff]
    %v5650 = vld [vmem:[%s5523 + $0x3f0] sm:$0xff]
    %v5651 = vld [vmem:[%s5523 + $0x3f8] sm:$0xff]
    %v5652 = vld [vmem:[%s5523 + $0x400] sm:$0xff]
    %v5653 = vld [vmem:[%s5523 + $0x408] sm:$0xff]
    %v5654 = vld [vmem:[%s5523 + $0x410] sm:$0xff]
    %v5655 = vld [vmem:[%s5523 + $0x418] sm:$0xff]
    %v5656 = vld [vmem:[%s5523 + $0x420] sm:$0xff]
    %v5657 = vld [vmem:[%s5523 + $0x428] sm:$0xff]
    %v5658 = vld [vmem:[%s5523 + $0x430] sm:$0xff]
    %v5659 = vld [vmem:[%s5523 + $0x438] sm:$0xff]
    %v5660 = vld [vmem:[%s5523 + $0x440] sm:$0xff]
    %v5661 = vld [vmem:[%s5523 + $0x448] sm:$0xff]
    %v5662 = vld [vmem:[%s5523 + $0x450] sm:$0xff]
    %v5663 = vld [vmem:[%s5523 + $0x458] sm:$0xff]
    %v5664 = vld [vmem:[%s5523 + $0x460] sm:$0xff]
    %v5665 = vld [vmem:[%s5523 + $0x468] sm:$0xff]
    %v5666 = vld [vmem:[%s5523 + $0x470] sm:$0xff]
    %v5667 = vld [vmem:[%s5523 + $0x478] sm:$0xff]
    %v5668 = vld [vmem:[%s5523 + $0x480] sm:$0xff]
    %v5669 = vld [vmem:[%s5523 + $0x488] sm:$0xff]
    %v5670 = vld [vmem:[%s5523 + $0x490] sm:$0xff]
    %v5671 = vld [vmem:[%s5523 + $0x498] sm:$0xff]
    %v5672 = vld [vmem:[%s5523 + $0x4a0] sm:$0xff]
    %v5673 = vld [vmem:[%s5523 + $0x4a8] sm:$0xff]
    %v5674 = vld [vmem:[%s5523 + $0x4b0] sm:$0xff]
    %v5675 = vld [vmem:[%s5523 + $0x4b8] sm:$0xff]
    %v5676 = vld [vmem:[%s5523 + $0x4c0] sm:$0xff]
    %v5677 = vld [vmem:[%s5523 + $0x4c8] sm:$0xff]
    %v5678 = vld [vmem:[%s5523 + $0x4d0] sm:$0xff]
    %v5679 = vld [vmem:[%s5523 + $0x4d8] sm:$0xff]
    %v5680 = vld [vmem:[%s5523 + $0x4e0] sm:$0xff]
    %v5681 = vld [vmem:[%s5523 + $0x4e8] sm:$0xff]
    %v5682 = vld [vmem:[%s5523 + $0x4f0] sm:$0xff]
    %v5683 = vld [vmem:[%s5523 + $0x4f8] sm:$0xff]
    %v5684 = vld [vmem:[%s5523 + $0x500] sm:$0xff]
    %v5685 = vld [vmem:[%s5523 + $0x508] sm:$0xff]
    %v5686 = vld [vmem:[%s5523 + $0x510] sm:$0xff]
    %v5687 = vld [vmem:[%s5523 + $0x518] sm:$0xff]
    %v5688 = vld [vmem:[%s5523 + $0x520] sm:$0xff]
    %v5689 = vld [vmem:[%s5523 + $0x528] sm:$0xff]
    %v5690 = vld [vmem:[%s5523 + $0x530] sm:$0xff]
    %v5691 = vld [vmem:[%s5523 + $0x538] sm:$0xff]
    %v5692 = vld [vmem:[%s5523 + $0x540] sm:$0xff]
    %v5693 = vld [vmem:[%s5523 + $0x548] sm:$0xff]
    %v5694 = vld [vmem:[%s5523 + $0x550] sm:$0xff]
    %v5695 = vld [vmem:[%s5523 + $0x558] sm:$0xff]
    %v5696 = vld [vmem:[%s5523 + $0x560] sm:$0xff]
    %v5697 = vld [vmem:[%s5523 + $0x568] sm:$0xff]
    %v5698 = vld [vmem:[%s5523 + $0x570] sm:$0xff]
    %v5699 = vld [vmem:[%s5523 + $0x578] sm:$0xff]
    %v5700 = vld [vmem:[%s5523 + $0x580] sm:$0xff]
    %v5701 = vld [vmem:[%s5523 + $0x588] sm:$0xff]
    %v5702 = vld [vmem:[%s5523 + $0x590] sm:$0xff]
    %v5703 = vld [vmem:[%s5523 + $0x598] sm:$0xff]
    %v5704 = vld [vmem:[%s5523 + $0x5a0] sm:$0xff]
    %v5705 = vld [vmem:[%s5523 + $0x5a8] sm:$0xff]
    %v5706 = vld [vmem:[%s5523 + $0x5b0] sm:$0xff]
    %v5707 = vld [vmem:[%s5523 + $0x5b8] sm:$0xff]
    %v5708 = vld [vmem:[%s5523 + $0x5c0] sm:$0xff]
    %v5709 = vld [vmem:[%s5523 + $0x5c8] sm:$0xff]
    %v5710 = vld [vmem:[%s5523 + $0x5d0] sm:$0xff]
    %v5711 = vld [vmem:[%s5523 + $0x5d8] sm:$0xff]
    %v5712 = vld [vmem:[%s5523 + $0x5e0] sm:$0xff]
    %v5713 = vld [vmem:[%s5523 + $0x5e8] sm:$0xff]
    %v5714 = vld [vmem:[%s5523 + $0x5f0] sm:$0xff]
    %v5715 = vld [vmem:[%s5523 + $0x5f8] sm:$0xff]
    %v5716 = vld [vmem:[%s5523 + $0x600] sm:$0xff]
    %v5717 = vld [vmem:[%s5523 + $0x608] sm:$0xff]
    %v5718 = vld [vmem:[%s5523 + $0x610] sm:$0xff]
    %v5719 = vld [vmem:[%s5523 + $0x618] sm:$0xff]
    %v5720 = vld [vmem:[%s5523 + $0x620] sm:$0xff]
    %v5721 = vld [vmem:[%s5523 + $0x628] sm:$0xff]
    %v5722 = vld [vmem:[%s5523 + $0x630] sm:$0xff]
    %v5723 = vld [vmem:[%s5523 + $0x638] sm:$0xff]
    %v5724 = vld [vmem:[%s5523 + $0x640] sm:$0xff]
    %v5725 = vld [vmem:[%s5523 + $0x648] sm:$0xff]
    %v5726 = vld [vmem:[%s5523 + $0x650] sm:$0xff]
    %v5727 = vld [vmem:[%s5523 + $0x658] sm:$0xff]
    %v5728 = vld [vmem:[%s5523 + $0x660] sm:$0xff]
    %v5729 = vld [vmem:[%s5523 + $0x668] sm:$0xff]
    %v5730 = vld [vmem:[%s5523 + $0x670] sm:$0xff]
    %v5731 = vld [vmem:[%s5523 + $0x678] sm:$0xff]
    %v5732 = vld [vmem:[%s5523 + $0x680] sm:$0xff]
    %v5733 = vld [vmem:[%s5523 + $0x688] sm:$0xff]
    %v5734 = vld [vmem:[%s5523 + $0x690] sm:$0xff]
    %v5735 = vld [vmem:[%s5523 + $0x698] sm:$0xff]
    %v5736 = vld [vmem:[%s5523 + $0x6a0] sm:$0xff]
    %v5737 = vld [vmem:[%s5523 + $0x6a8] sm:$0xff]
    %v5738 = vld [vmem:[%s5523 + $0x6b0] sm:$0xff]
    %v5739 = vld [vmem:[%s5523 + $0x6b8] sm:$0xff]
    %v5740 = vld [vmem:[%s5523 + $0x6c0] sm:$0xff]
    %v5741 = vld [vmem:[%s5523 + $0x6c8] sm:$0xff]
    %v5742 = vld [vmem:[%s5523 + $0x6d0] sm:$0xff]
    %v5743 = vld [vmem:[%s5523 + $0x6d8] sm:$0xff]
    %v5744 = vld [vmem:[%s5523 + $0x6e0] sm:$0xff]
    %v5745 = vld [vmem:[%s5523 + $0x6e8] sm:$0xff]
    %v5746 = vld [vmem:[%s5523 + $0x6f0] sm:$0xff]
    %v5747 = vld [vmem:[%s5523 + $0x6f8] sm:$0xff]
    %v5748 = vld [vmem:[%s5523 + $0x700] sm:$0xff]
    %v5749 = vld [vmem:[%s5523 + $0x708] sm:$0xff]
    %v5750 = vld [vmem:[%s5523 + $0x710] sm:$0xff]
    %v5751 = vld [vmem:[%s5523 + $0x718] sm:$0xff]
    %v5752 = vld [vmem:[%s5523 + $0x720] sm:$0xff]
    %v5753 = vld [vmem:[%s5523 + $0x728] sm:$0xff]
    %v5754 = vld [vmem:[%s5523 + $0x730] sm:$0xff]
    %v5755 = vld [vmem:[%s5523 + $0x738] sm:$0xff]
    %v5756 = vld [vmem:[%s5523 + $0x740] sm:$0xff]
    %v5757 = vld [vmem:[%s5523 + $0x748] sm:$0xff]
    %v5758 = vld [vmem:[%s5523 + $0x750] sm:$0xff]
    %v5759 = vld [vmem:[%s5523 + $0x758] sm:$0xff]
    %v5760 = vld [vmem:[%s5523 + $0x760] sm:$0xff]
    %v5761 = vld [vmem:[%s5523 + $0x768] sm:$0xff]
    %v5762 = vld [vmem:[%s5523 + $0x770] sm:$0xff]
    %v5763 = vld [vmem:[%s5523 + $0x778] sm:$0xff]
    %v5764 = vld [vmem:[%s5523 + $0x780] sm:$0xff]
    %v5765 = vld [vmem:[%s5523 + $0x788] sm:$0xff]
    %v5766 = vld [vmem:[%s5523 + $0x790] sm:$0xff]
    %v5767 = vld [vmem:[%s5523 + $0x798] sm:$0xff]
    %v5768 = vld [vmem:[%s5523 + $0x7a0] sm:$0xff]
    %v5769 = vld [vmem:[%s5523 + $0x7a8] sm:$0xff]
    %v5770 = vld [vmem:[%s5523 + $0x7b0] sm:$0xff]
    %v5771 = vld [vmem:[%s5523 + $0x7b8] sm:$0xff]
    %v5772 = vld [vmem:[%s5523 + $0x7c0] sm:$0xff]
    %v5773 = vld [vmem:[%s5523 + $0x7c8] sm:$0xff]
    %v5774 = vld [vmem:[%s5523 + $0x7d0] sm:$0xff]
    %v5775 = vld [vmem:[%s5523 + $0x7d8] sm:$0xff]
    %v5776 = vld [vmem:[%s5523 + $0x7e0] sm:$0xff]
    %v5777 = vld [vmem:[%s5523 + $0x7e8] sm:$0xff]
    %v5778 = vld [vmem:[%s5523 + $0x7f0] sm:$0xff]
    %v5779 = vld [vmem:[%s5523 + $0x7f8] sm:$0xff]
    %v5780 = vld [vmem:[%s5523 + $0x800] sm:$0xff]
    %v5781 = vld [vmem:[%s5523 + $0x808] sm:$0xff]
    %v5782 = vld [vmem:[%s5523 + $0x810] sm:$0xff]
    %v5783 = vld [vmem:[%s5523 + $0x818] sm:$0xff]
    %v5784 = vld [vmem:[%s5523 + $0x820] sm:$0xff]
    %v5785 = vld [vmem:[%s5523 + $0x828] sm:$0xff]
    %v5786 = vld [vmem:[%s5523 + $0x830] sm:$0xff]
    %v5787 = vld [vmem:[%s5523 + $0x838] sm:$0xff]
    %v5788 = vld [vmem:[%s5523 + $0x840] sm:$0xff]
    %v5789 = vld [vmem:[%s5523 + $0x848] sm:$0xff]
    %v5790 = vld [vmem:[%s5523 + $0x850] sm:$0xff]
    %v5791 = vld [vmem:[%s5523 + $0x858] sm:$0xff]
    %v5792 = vld [vmem:[%s5523 + $0x860] sm:$0xff]
    %v5793 = vld [vmem:[%s5523 + $0x868] sm:$0xff]
    %v5794 = vld [vmem:[%s5523 + $0x870] sm:$0xff]
    %v5795 = vld [vmem:[%s5523 + $0x878] sm:$0xff]
    %v5796 = vld [vmem:[%s5523 + $0x880] sm:$0xff]
    %v5797 = vld [vmem:[%s5523 + $0x888] sm:$0xff]
    %v5798 = vld [vmem:[%s5523 + $0x890] sm:$0xff]
    %v5799 = vld [vmem:[%s5523 + $0x898] sm:$0xff]
    %v5800 = vld [vmem:[%s5523 + $0x8a0] sm:$0xff]
    %v5801 = vld [vmem:[%s5523 + $0x8a8] sm:$0xff]
    %v5802 = vld [vmem:[%s5523 + $0x8b0] sm:$0xff]
    %v5803 = vld [vmem:[%s5523 + $0x8b8] sm:$0xff]
    %v5804 = vld [vmem:[%s5523 + $0x8c0] sm:$0xff]
    %v5805 = vld [vmem:[%s5523 + $0x8c8] sm:$0xff]
    %v5806 = vld [vmem:[%s5523 + $0x8d0] sm:$0xff]
    %v5807 = vld [vmem:[%s5523 + $0x8d8] sm:$0xff]
    %v5808 = vld [vmem:[%s5523 + $0x8e0] sm:$0xff]
    %v5809 = vld [vmem:[%s5523 + $0x8e8] sm:$0xff]
    %v5810 = vld [vmem:[%s5523 + $0x8f0] sm:$0xff]
    %v5811 = vld [vmem:[%s5523 + $0x8f8] sm:$0xff]
    %v6100 = vunpack.c.l.b16 %v5524
    %v6101 = vunpack.c.h.b16 %v5524
    %v6102 = vunpack.c.l.b16 %v5525
    %v6103 = vunpack.c.h.b16 %v5525
    %v6104 = vunpack.c.l.b16 %v5526
    %v6105 = vunpack.c.h.b16 %v5526
    %v6106 = vunpack.c.l.b16 %v5527
    %v6107 = vunpack.c.h.b16 %v5527
    %v6108 = vunpack.c.l.b16 %v5528
    %v6109 = vunpack.c.h.b16 %v5528
    %v6110 = vunpack.c.l.b16 %v5529
    %v6111 = vunpack.c.h.b16 %v5529
    %v6112 = vunpack.c.l.b16 %v5530
    %v6113 = vunpack.c.h.b16 %v5530
    %v6114 = vunpack.c.l.b16 %v5531
    %v6115 = vunpack.c.h.b16 %v5531
    %v6116 = vunpack.c.l.b16 %v5532
    %v6117 = vunpack.c.h.b16 %v5532
    %v6118 = vunpack.c.l.b16 %v5533
    %v6119 = vunpack.c.h.b16 %v5533
    %v6120 = vunpack.c.l.b16 %v5534
    %v6121 = vunpack.c.h.b16 %v5534
    %v6122 = vunpack.c.l.b16 %v5535
    %v6123 = vunpack.c.h.b16 %v5535
    %v6124 = vunpack.c.l.b16 %v5536
    %v6125 = vunpack.c.h.b16 %v5536
    %v6126 = vunpack.c.l.b16 %v5537
    %v6127 = vunpack.c.h.b16 %v5537
    %v6128 = vunpack.c.l.b16 %v5538
    %v6129 = vunpack.c.h.b16 %v5538
    %v6130 = vunpack.c.l.b16 %v5539
    %v6131 = vunpack.c.h.b16 %v5539
    %v6132 = vunpack.c.l.b16 %v5540
    %v6133 = vunpack.c.h.b16 %v5540
    %v6134 = vunpack.c.l.b16 %v5541
    %v6135 = vunpack.c.h.b16 %v5541
    %v6136 = vunpack.c.l.b16 %v5542
    %v6137 = vunpack.c.h.b16 %v5542
    %v6138 = vunpack.c.l.b16 %v5543
    %v6139 = vunpack.c.h.b16 %v5543
    %v6140 = vunpack.c.l.b16 %v5544
    %v6141 = vunpack.c.h.b16 %v5544
    %v6142 = vunpack.c.l.b16 %v5545
    %v6143 = vunpack.c.h.b16 %v5545
    %v6144 = vunpack.c.l.b16 %v5546
    %v6145 = vunpack.c.h.b16 %v5546
    %v6146 = vunpack.c.l.b16 %v5547
    %v6147 = vunpack.c.h.b16 %v5547
    %v6148 = vunpack.c.l.b16 %v5548
    %v6149 = vunpack.c.h.b16 %v5548
    %v6150 = vunpack.c.l.b16 %v5549
    %v6151 = vunpack.c.h.b16 %v5549
    %v6152 = vunpack.c.l.b16 %v5550
    %v6153 = vunpack.c.h.b16 %v5550
    %v6154 = vunpack.c.l.b16 %v5551
    %v6155 = vunpack.c.h.b16 %v5551
    %v6156 = vunpack.c.l.b16 %v5552
    %v6157 = vunpack.c.h.b16 %v5552
    %v6158 = vunpack.c.l.b16 %v5553
    %v6159 = vunpack.c.h.b16 %v5553
    %v6160 = vunpack.c.l.b16 %v5554
    %v6161 = vunpack.c.h.b16 %v5554
    %v6162 = vunpack.c.l.b16 %v5555
    %v6163 = vunpack.c.h.b16 %v5555
    %v6164 = vunpack.c.l.b16 %v5556
    %v6165 = vunpack.c.h.b16 %v5556
    %v6166 = vunpack.c.l.b16 %v5557
    %v6167 = vunpack.c.h.b16 %v5557
    %v6168 = vunpack.c.l.b16 %v5558
    %v6169 = vunpack.c.h.b16 %v5558
    %v6170 = vunpack.c.l.b16 %v5559
    %v6171 = vunpack.c.h.b16 %v5559
    %v6172 = vunpack.c.l.b16 %v5560
    %v6173 = vunpack.c.h.b16 %v5560
    %v6174 = vunpack.c.l.b16 %v5561
    %v6175 = vunpack.c.h.b16 %v5561
    %v6176 = vunpack.c.l.b16 %v5562
    %v6177 = vunpack.c.h.b16 %v5562
    %v6178 = vunpack.c.l.b16 %v5563
    %v6179 = vunpack.c.h.b16 %v5563
    %v6180 = vunpack.c.l.b16 %v5564
    %v6181 = vunpack.c.h.b16 %v5564
    %v6182 = vunpack.c.l.b16 %v5565
    %v6183 = vunpack.c.h.b16 %v5565
    %v6184 = vunpack.c.l.b16 %v5566
    %v6185 = vunpack.c.h.b16 %v5566
    %v6186 = vunpack.c.l.b16 %v5567
    %v6187 = vunpack.c.h.b16 %v5567
    %v6188 = vunpack.c.l.b16 %v5568
    %v6189 = vunpack.c.h.b16 %v5568
    %v6190 = vunpack.c.l.b16 %v5569
    %v6191 = vunpack.c.h.b16 %v5569
    %v6192 = vunpack.c.l.b16 %v5570
    %v6193 = vunpack.c.h.b16 %v5570
    %v6194 = vunpack.c.l.b16 %v5571
    %v6195 = vunpack.c.h.b16 %v5571
    %v6196 = vunpack.c.l.b16 %v5572
    %v6197 = vunpack.c.h.b16 %v5572
    %v6198 = vunpack.c.l.b16 %v5573
    %v6199 = vunpack.c.h.b16 %v5573
    %v6200 = vunpack.c.l.b16 %v5574
    %v6201 = vunpack.c.h.b16 %v5574
    %v6202 = vunpack.c.l.b16 %v5575
    %v6203 = vunpack.c.h.b16 %v5575
    %v6204 = vunpack.c.l.b16 %v5576
    %v6205 = vunpack.c.h.b16 %v5576
    %v6206 = vunpack.c.l.b16 %v5577
    %v6207 = vunpack.c.h.b16 %v5577
    %v6208 = vunpack.c.l.b16 %v5578
    %v6209 = vunpack.c.h.b16 %v5578
    %v6210 = vunpack.c.l.b16 %v5579
    %v6211 = vunpack.c.h.b16 %v5579
    %v6212 = vunpack.c.l.b16 %v5580
    %v6213 = vunpack.c.h.b16 %v5580
    %v6214 = vunpack.c.l.b16 %v5581
    %v6215 = vunpack.c.h.b16 %v5581
    %v6216 = vunpack.c.l.b16 %v5582
    %v6217 = vunpack.c.h.b16 %v5582
    %v6218 = vunpack.c.l.b16 %v5583
    %v6219 = vunpack.c.h.b16 %v5583
    %v6220 = vunpack.c.l.b16 %v5584
    %v6221 = vunpack.c.h.b16 %v5584
    %v6222 = vunpack.c.l.b16 %v5585
    %v6223 = vunpack.c.h.b16 %v5585
    %v6224 = vunpack.c.l.b16 %v5586
    %v6225 = vunpack.c.h.b16 %v5586
    %v6226 = vunpack.c.l.b16 %v5587
    %v6227 = vunpack.c.h.b16 %v5587
    %v6228 = vunpack.c.l.b16 %v5588
    %v6229 = vunpack.c.h.b16 %v5588
    %v6230 = vunpack.c.l.b16 %v5589
    %v6231 = vunpack.c.h.b16 %v5589
    %v6232 = vunpack.c.l.b16 %v5590
    %v6233 = vunpack.c.h.b16 %v5590
    %v6234 = vunpack.c.l.b16 %v5591
    %v6235 = vunpack.c.h.b16 %v5591
    %v6236 = vunpack.c.l.b16 %v5592
    %v6237 = vunpack.c.h.b16 %v5592
    %v6238 = vunpack.c.l.b16 %v5593
    %v6239 = vunpack.c.h.b16 %v5593
    %v6240 = vunpack.c.l.b16 %v5594
    %v6241 = vunpack.c.h.b16 %v5594
    %v6242 = vunpack.c.l.b16 %v5595
    %v6243 = vunpack.c.h.b16 %v5595
    %v6244 = vunpack.c.l.b16 %v5596
    %v6245 = vunpack.c.h.b16 %v5596
    %v6246 = vunpack.c.l.b16 %v5597
    %v6247 = vunpack.c.h.b16 %v5597
    %v6248 = vunpack.c.l.b16 %v5598
    %v6249 = vunpack.c.h.b16 %v5598
    %v6250 = vunpack.c.l.b16 %v5599
    %v6251 = vunpack.c.h.b16 %v5599
    %v6252 = vunpack.c.l.b16 %v5600
    %v6253 = vunpack.c.h.b16 %v5600
    %v6254 = vunpack.c.l.b16 %v5601
    %v6255 = vunpack.c.h.b16 %v5601
    %v6256 = vunpack.c.l.b16 %v5602
    %v6257 = vunpack.c.h.b16 %v5602
    %v6258 = vunpack.c.l.b16 %v5603
    %v6259 = vunpack.c.h.b16 %v5603
    %v6260 = vunpack.c.l.b16 %v5604
    %v6261 = vunpack.c.h.b16 %v5604
    %v6262 = vunpack.c.l.b16 %v5605
    %v6263 = vunpack.c.h.b16 %v5605
    %v6264 = vunpack.c.l.b16 %v5606
    %v6265 = vunpack.c.h.b16 %v5606
    %v6266 = vunpack.c.l.b16 %v5607
    %v6267 = vunpack.c.h.b16 %v5607
    %v6268 = vunpack.c.l.b16 %v5608
    %v6269 = vunpack.c.h.b16 %v5608
    %v6270 = vunpack.c.l.b16 %v5609
    %v6271 = vunpack.c.h.b16 %v5609
    %v6272 = vunpack.c.l.b16 %v5610
    %v6273 = vunpack.c.h.b16 %v5610
    %v6274 = vunpack.c.l.b16 %v5611
    %v6275 = vunpack.c.h.b16 %v5611
    %v6276 = vunpack.c.l.b16 %v5612
    %v6277 = vunpack.c.h.b16 %v5612
    %v6278 = vunpack.c.l.b16 %v5613
    %v6279 = vunpack.c.h.b16 %v5613
    %v6280 = vunpack.c.l.b16 %v5614
    %v6281 = vunpack.c.h.b16 %v5614
    %v6282 = vunpack.c.l.b16 %v5615
    %v6283 = vunpack.c.h.b16 %v5615
    %v6284 = vunpack.c.l.b16 %v5616
    %v6285 = vunpack.c.h.b16 %v5616
    %v6286 = vunpack.c.l.b16 %v5617
    %v6287 = vunpack.c.h.b16 %v5617
    %v6288 = vunpack.c.l.b16 %v5618
    %v6289 = vunpack.c.h.b16 %v5618
    %v6290 = vunpack.c.l.b16 %v5619
    %v6291 = vunpack.c.h.b16 %v5619
    %v6292 = vunpack.c.l.b16 %v5620
    %v6293 = vunpack.c.h.b16 %v5620
    %v6294 = vunpack.c.l.b16 %v5621
    %v6295 = vunpack.c.h.b16 %v5621
    %v6296 = vunpack.c.l.b16 %v5622
    %v6297 = vunpack.c.h.b16 %v5622
    %v6298 = vunpack.c.l.b16 %v5623
    %v6299 = vunpack.c.h.b16 %v5623
    %v6300 = vunpack.c.l.b16 %v5624
    %v6301 = vunpack.c.h.b16 %v5624
    %v6302 = vunpack.c.l.b16 %v5625
    %v6303 = vunpack.c.h.b16 %v5625
    %v6304 = vunpack.c.l.b16 %v5626
    %v6305 = vunpack.c.h.b16 %v5626
    %v6306 = vunpack.c.l.b16 %v5627
    %v6307 = vunpack.c.h.b16 %v5627
    %v6308 = vunpack.c.l.b16 %v5628
    %v6309 = vunpack.c.h.b16 %v5628
    %v6310 = vunpack.c.l.b16 %v5629
    %v6311 = vunpack.c.h.b16 %v5629
    %v6312 = vunpack.c.l.b16 %v5630
    %v6313 = vunpack.c.h.b16 %v5630
    %v6314 = vunpack.c.l.b16 %v5631
    %v6315 = vunpack.c.h.b16 %v5631
    %v6316 = vunpack.c.l.b16 %v5632
    %v6317 = vunpack.c.h.b16 %v5632
    %v6318 = vunpack.c.l.b16 %v5633
    %v6319 = vunpack.c.h.b16 %v5633
    %v6320 = vunpack.c.l.b16 %v5634
    %v6321 = vunpack.c.h.b16 %v5634
    %v6322 = vunpack.c.l.b16 %v5635
    %v6323 = vunpack.c.h.b16 %v5635
    %v6324 = vunpack.c.l.b16 %v5636
    %v6325 = vunpack.c.h.b16 %v5636
    %v6326 = vunpack.c.l.b16 %v5637
    %v6327 = vunpack.c.h.b16 %v5637
    %v6328 = vunpack.c.l.b16 %v5638
    %v6329 = vunpack.c.h.b16 %v5638
    %v6330 = vunpack.c.l.b16 %v5639
    %v6331 = vunpack.c.h.b16 %v5639
    %v6332 = vunpack.c.l.b16 %v5640
    %v6333 = vunpack.c.h.b16 %v5640
    %v6334 = vunpack.c.l.b16 %v5641
    %v6335 = vunpack.c.h.b16 %v5641
    %v6336 = vunpack.c.l.b16 %v5642
    %v6337 = vunpack.c.h.b16 %v5642
    %v6338 = vunpack.c.l.b16 %v5643
    %v6339 = vunpack.c.h.b16 %v5643
    %v6340 = vunpack.c.l.b16 %v5644
    %v6341 = vunpack.c.h.b16 %v5644
    %v6342 = vunpack.c.l.b16 %v5645
    %v6343 = vunpack.c.h.b16 %v5645
    %v6344 = vunpack.c.l.b16 %v5646
    %v6345 = vunpack.c.h.b16 %v5646
    %v6346 = vunpack.c.l.b16 %v5647
    %v6347 = vunpack.c.h.b16 %v5647
    %v6348 = vunpack.c.l.b16 %v5648
    %v6349 = vunpack.c.h.b16 %v5648
    %v6350 = vunpack.c.l.b16 %v5649
    %v6351 = vunpack.c.h.b16 %v5649
    %v6352 = vunpack.c.l.b16 %v5650
    %v6353 = vunpack.c.h.b16 %v5650
    %v6354 = vunpack.c.l.b16 %v5651
    %v6355 = vunpack.c.h.b16 %v5651
    %v6356 = vunpack.c.l.b16 %v5652
    %v6357 = vunpack.c.h.b16 %v5652
    %v6358 = vunpack.c.l.b16 %v5653
    %v6359 = vunpack.c.h.b16 %v5653
    %v6360 = vunpack.c.l.b16 %v5654
    %v6361 = vunpack.c.h.b16 %v5654
    %v6362 = vunpack.c.l.b16 %v5655
    %v6363 = vunpack.c.h.b16 %v5655
    %v6364 = vunpack.c.l.b16 %v5656
    %v6365 = vunpack.c.h.b16 %v5656
    %v6366 = vunpack.c.l.b16 %v5657
    %v6367 = vunpack.c.h.b16 %v5657
    %v6368 = vunpack.c.l.b16 %v5658
    %v6369 = vunpack.c.h.b16 %v5658
    %v6370 = vunpack.c.l.b16 %v5659
    %v6371 = vunpack.c.h.b16 %v5659
    %v6372 = vunpack.c.l.b16 %v5660
    %v6373 = vunpack.c.h.b16 %v5660
    %v6374 = vunpack.c.l.b16 %v5661
    %v6375 = vunpack.c.h.b16 %v5661
    %v6376 = vunpack.c.l.b16 %v5662
    %v6377 = vunpack.c.h.b16 %v5662
    %v6378 = vunpack.c.l.b16 %v5663
    %v6379 = vunpack.c.h.b16 %v5663
    %v6380 = vunpack.c.l.b16 %v5664
    %v6381 = vunpack.c.h.b16 %v5664
    %v6382 = vunpack.c.l.b16 %v5665
    %v6383 = vunpack.c.h.b16 %v5665
    %v6384 = vunpack.c.l.b16 %v5666
    %v6385 = vunpack.c.h.b16 %v5666
    %v6386 = vunpack.c.l.b16 %v5667
    %v6387 = vunpack.c.h.b16 %v5667
    %v6388 = vunpack.c.l.b16 %v5668
    %v6389 = vunpack.c.h.b16 %v5668
    %v6390 = vunpack.c.l.b16 %v5669
    %v6391 = vunpack.c.h.b16 %v5669
    %v6392 = vunpack.c.l.b16 %v5670
    %v6393 = vunpack.c.h.b16 %v5670
    %v6394 = vunpack.c.l.b16 %v5671
    %v6395 = vunpack.c.h.b16 %v5671
    %v6396 = vunpack.c.l.b16 %v5672
    %v6397 = vunpack.c.h.b16 %v5672
    %v6398 = vunpack.c.l.b16 %v5673
    %v6399 = vunpack.c.h.b16 %v5673
    %v6400 = vunpack.c.l.b16 %v5674
    %v6401 = vunpack.c.h.b16 %v5674
    %v6402 = vunpack.c.l.b16 %v5675
    %v6403 = vunpack.c.h.b16 %v5675
    %v6404 = vunpack.c.l.b16 %v5676
    %v6405 = vunpack.c.h.b16 %v5676
    %v6406 = vunpack.c.l.b16 %v5677
    %v6407 = vunpack.c.h.b16 %v5677
    %v6408 = vunpack.c.l.b16 %v5678
    %v6409 = vunpack.c.h.b16 %v5678
    %v6410 = vunpack.c.l.b16 %v5679
    %v6411 = vunpack.c.h.b16 %v5679
    %v6412 = vunpack.c.l.b16 %v5680
    %v6413 = vunpack.c.h.b16 %v5680
    %v6414 = vunpack.c.l.b16 %v5681
    %v6415 = vunpack.c.h.b16 %v5681
    %v6416 = vunpack.c.l.b16 %v5682
    %v6417 = vunpack.c.h.b16 %v5682
    %v6418 = vunpack.c.l.b16 %v5683
    %v6419 = vunpack.c.h.b16 %v5683
    %v6420 = vunpack.c.l.b16 %v5684
    %v6421 = vunpack.c.h.b16 %v5684
    %v6422 = vunpack.c.l.b16 %v5685
    %v6423 = vunpack.c.h.b16 %v5685
    %v6424 = vunpack.c.l.b16 %v5686
    %v6425 = vunpack.c.h.b16 %v5686
    %v6426 = vunpack.c.l.b16 %v5687
    %v6427 = vunpack.c.h.b16 %v5687
    %v6428 = vunpack.c.l.b16 %v5688
    %v6429 = vunpack.c.h.b16 %v5688
    %v6430 = vunpack.c.l.b16 %v5689
    %v6431 = vunpack.c.h.b16 %v5689
    %v6432 = vunpack.c.l.b16 %v5690
    %v6433 = vunpack.c.h.b16 %v5690
    %v6434 = vunpack.c.l.b16 %v5691
    %v6435 = vunpack.c.h.b16 %v5691
    %v6436 = vunpack.c.l.b16 %v5692
    %v6437 = vunpack.c.h.b16 %v5692
    %v6438 = vunpack.c.l.b16 %v5693
    %v6439 = vunpack.c.h.b16 %v5693
    %v6440 = vunpack.c.l.b16 %v5694
    %v6441 = vunpack.c.h.b16 %v5694
    %v6442 = vunpack.c.l.b16 %v5695
    %v6443 = vunpack.c.h.b16 %v5695
    %v6444 = vunpack.c.l.b16 %v5696
    %v6445 = vunpack.c.h.b16 %v5696
    %v6446 = vunpack.c.l.b16 %v5697
    %v6447 = vunpack.c.h.b16 %v5697
    %v6448 = vunpack.c.l.b16 %v5698
    %v6449 = vunpack.c.h.b16 %v5698
    %v6450 = vunpack.c.l.b16 %v5699
    %v6451 = vunpack.c.h.b16 %v5699
    %v6452 = vunpack.c.l.b16 %v5700
    %v6453 = vunpack.c.h.b16 %v5700
    %v6454 = vunpack.c.l.b16 %v5701
    %v6455 = vunpack.c.h.b16 %v5701
    %v6456 = vunpack.c.l.b16 %v5702
    %v6457 = vunpack.c.h.b16 %v5702
    %v6458 = vunpack.c.l.b16 %v5703
    %v6459 = vunpack.c.h.b16 %v5703
    %v6460 = vunpack.c.l.b16 %v5704
    %v6461 = vunpack.c.h.b16 %v5704
    %v6462 = vunpack.c.l.b16 %v5705
    %v6463 = vunpack.c.h.b16 %v5705
    %v6464 = vunpack.c.l.b16 %v5706
    %v6465 = vunpack.c.h.b16 %v5706
    %v6466 = vunpack.c.l.b16 %v5707
    %v6467 = vunpack.c.h.b16 %v5707
    %v6468 = vunpack.c.l.b16 %v5708
    %v6469 = vunpack.c.h.b16 %v5708
    %v6470 = vunpack.c.l.b16 %v5709
    %v6471 = vunpack.c.h.b16 %v5709
    %v6472 = vunpack.c.l.b16 %v5710
    %v6473 = vunpack.c.h.b16 %v5710
    %v6474 = vunpack.c.l.b16 %v5711
    %v6475 = vunpack.c.h.b16 %v5711
    %v6476 = vunpack.c.l.b16 %v5712
    %v6477 = vunpack.c.h.b16 %v5712
    %v6478 = vunpack.c.l.b16 %v5713
    %v6479 = vunpack.c.h.b16 %v5713
    %v6480 = vunpack.c.l.b16 %v5714
    %v6481 = vunpack.c.h.b16 %v5714
    %v6482 = vunpack.c.l.b16 %v5715
    %v6483 = vunpack.c.h.b16 %v5715
    %v6484 = vunpack.c.l.b16 %v5716
    %v6485 = vunpack.c.h.b16 %v5716
    %v6486 = vunpack.c.l.b16 %v5717
    %v6487 = vunpack.c.h.b16 %v5717
    %v6488 = vunpack.c.l.b16 %v5718
    %v6489 = vunpack.c.h.b16 %v5718
    %v6490 = vunpack.c.l.b16 %v5719
    %v6491 = vunpack.c.h.b16 %v5719
    %v6492 = vunpack.c.l.b16 %v5720
    %v6493 = vunpack.c.h.b16 %v5720
    %v6494 = vunpack.c.l.b16 %v5721
    %v6495 = vunpack.c.h.b16 %v5721
    %v6496 = vunpack.c.l.b16 %v5722
    %v6497 = vunpack.c.h.b16 %v5722
    %v6498 = vunpack.c.l.b16 %v5723
    %v6499 = vunpack.c.h.b16 %v5723
    %v6500 = vunpack.c.l.b16 %v5724
    %v6501 = vunpack.c.h.b16 %v5724
    %v6502 = vunpack.c.l.b16 %v5725
    %v6503 = vunpack.c.h.b16 %v5725
    %v6504 = vunpack.c.l.b16 %v5726
    %v6505 = vunpack.c.h.b16 %v5726
    %v6506 = vunpack.c.l.b16 %v5727
    %v6507 = vunpack.c.h.b16 %v5727
    %v6508 = vunpack.c.l.b16 %v5728
    %v6509 = vunpack.c.h.b16 %v5728
    %v6510 = vunpack.c.l.b16 %v5729
    %v6511 = vunpack.c.h.b16 %v5729
    %v6512 = vunpack.c.l.b16 %v5730
    %v6513 = vunpack.c.h.b16 %v5730
    %v6514 = vunpack.c.l.b16 %v5731
    %v6515 = vunpack.c.h.b16 %v5731
    %v6516 = vunpack.c.l.b16 %v5732
    %v6517 = vunpack.c.h.b16 %v5732
    %v6518 = vunpack.c.l.b16 %v5733
    %v6519 = vunpack.c.h.b16 %v5733
    %v6520 = vunpack.c.l.b16 %v5734
    %v6521 = vunpack.c.h.b16 %v5734
    %v6522 = vunpack.c.l.b16 %v5735
    %v6523 = vunpack.c.h.b16 %v5735
    %v6524 = vunpack.c.l.b16 %v5736
    %v6525 = vunpack.c.h.b16 %v5736
    %v6526 = vunpack.c.l.b16 %v5737
    %v6527 = vunpack.c.h.b16 %v5737
    %v6528 = vunpack.c.l.b16 %v5738
    %v6529 = vunpack.c.h.b16 %v5738
    %v6530 = vunpack.c.l.b16 %v5739
    %v6531 = vunpack.c.h.b16 %v5739
    %v6532 = vunpack.c.l.b16 %v5740
    %v6533 = vunpack.c.h.b16 %v5740
    %v6534 = vunpack.c.l.b16 %v5741
    %v6535 = vunpack.c.h.b16 %v5741
    %v6536 = vunpack.c.l.b16 %v5742
    %v6537 = vunpack.c.h.b16 %v5742
    %v6538 = vunpack.c.l.b16 %v5743
    %v6539 = vunpack.c.h.b16 %v5743
    %v6540 = vunpack.c.l.b16 %v5744
    %v6541 = vunpack.c.h.b16 %v5744
    %v6542 = vunpack.c.l.b16 %v5745
    %v6543 = vunpack.c.h.b16 %v5745
    %v6544 = vunpack.c.l.b16 %v5746
    %v6545 = vunpack.c.h.b16 %v5746
    %v6546 = vunpack.c.l.b16 %v5747
    %v6547 = vunpack.c.h.b16 %v5747
    %v6548 = vunpack.c.l.b16 %v5748
    %v6549 = vunpack.c.h.b16 %v5748
    %v6550 = vunpack.c.l.b16 %v5749
    %v6551 = vunpack.c.h.b16 %v5749
    %v6552 = vunpack.c.l.b16 %v5750
    %v6553 = vunpack.c.h.b16 %v5750
    %v6554 = vunpack.c.l.b16 %v5751
    %v6555 = vunpack.c.h.b16 %v5751
    %v6556 = vunpack.c.l.b16 %v5752
    %v6557 = vunpack.c.h.b16 %v5752
    %v6558 = vunpack.c.l.b16 %v5753
    %v6559 = vunpack.c.h.b16 %v5753
    %v6560 = vunpack.c.l.b16 %v5754
    %v6561 = vunpack.c.h.b16 %v5754
    %v6562 = vunpack.c.l.b16 %v5755
    %v6563 = vunpack.c.h.b16 %v5755
    %v6564 = vunpack.c.l.b16 %v5756
    %v6565 = vunpack.c.h.b16 %v5756
    %v6566 = vunpack.c.l.b16 %v5757
    %v6567 = vunpack.c.h.b16 %v5757
    %v6568 = vunpack.c.l.b16 %v5758
    %v6569 = vunpack.c.h.b16 %v5758
    %v6570 = vunpack.c.l.b16 %v5759
    %v6571 = vunpack.c.h.b16 %v5759
    %v6572 = vunpack.c.l.b16 %v5760
    %v6573 = vunpack.c.h.b16 %v5760
    %v6574 = vunpack.c.l.b16 %v5761
    %v6575 = vunpack.c.h.b16 %v5761
    %v6576 = vunpack.c.l.b16 %v5762
    %v6577 = vunpack.c.h.b16 %v5762
    %v6578 = vunpack.c.l.b16 %v5763
    %v6579 = vunpack.c.h.b16 %v5763
    %v6580 = vunpack.c.l.b16 %v5764
    %v6581 = vunpack.c.h.b16 %v5764
    %v6582 = vunpack.c.l.b16 %v5765
    %v6583 = vunpack.c.h.b16 %v5765
    %v6584 = vunpack.c.l.b16 %v5766
    %v6585 = vunpack.c.h.b16 %v5766
    %v6586 = vunpack.c.l.b16 %v5767
    %v6587 = vunpack.c.h.b16 %v5767
    %v6588 = vunpack.c.l.b16 %v5768
    %v6589 = vunpack.c.h.b16 %v5768
    %v6590 = vunpack.c.l.b16 %v5769
    %v6591 = vunpack.c.h.b16 %v5769
    %v6592 = vunpack.c.l.b16 %v5770
    %v6593 = vunpack.c.h.b16 %v5770
    %v6594 = vunpack.c.l.b16 %v5771
    %v6595 = vunpack.c.h.b16 %v5771
    %v6596 = vunpack.c.l.b16 %v5772
    %v6597 = vunpack.c.h.b16 %v5772
    %v6598 = vunpack.c.l.b16 %v5773
    %v6599 = vunpack.c.h.b16 %v5773
    %v6600 = vunpack.c.l.b16 %v5774
    %v6601 = vunpack.c.h.b16 %v5774
    %v6602 = vunpack.c.l.b16 %v5775
    %v6603 = vunpack.c.h.b16 %v5775
    %v6604 = vunpack.c.l.b16 %v5776
    %v6605 = vunpack.c.h.b16 %v5776
    %v6606 = vunpack.c.l.b16 %v5777
    %v6607 = vunpack.c.h.b16 %v5777
    %v6608 = vunpack.c.l.b16 %v5778
    %v6609 = vunpack.c.h.b16 %v5778
    %v6610 = vunpack.c.l.b16 %v5779
    %v6611 = vunpack.c.h.b16 %v5779
    %v6612 = vunpack.c.l.b16 %v5780
    %v6613 = vunpack.c.h.b16 %v5780
    %v6614 = vunpack.c.l.b16 %v5781
    %v6615 = vunpack.c.h.b16 %v5781
    %v6616 = vunpack.c.l.b16 %v5782
    %v6617 = vunpack.c.h.b16 %v5782
    %v6618 = vunpack.c.l.b16 %v5783
    %v6619 = vunpack.c.h.b16 %v5783
    %v6620 = vunpack.c.l.b16 %v5784
    %v6621 = vunpack.c.h.b16 %v5784
    %v6622 = vunpack.c.l.b16 %v5785
    %v6623 = vunpack.c.h.b16 %v5785
    %v6624 = vunpack.c.l.b16 %v5786
    %v6625 = vunpack.c.h.b16 %v5786
    %v6626 = vunpack.c.l.b16 %v5787
    %v6627 = vunpack.c.h.b16 %v5787
    %v6628 = vunpack.c.l.b16 %v5788
    %v6629 = vunpack.c.h.b16 %v5788
    %v6630 = vunpack.c.l.b16 %v5789
    %v6631 = vunpack.c.h.b16 %v5789
    %v6632 = vunpack.c.l.b16 %v5790
    %v6633 = vunpack.c.h.b16 %v5790
    %v6634 = vunpack.c.l.b16 %v5791
    %v6635 = vunpack.c.h.b16 %v5791
    %v6636 = vunpack.c.l.b16 %v5792
    %v6637 = vunpack.c.h.b16 %v5792
    %v6638 = vunpack.c.l.b16 %v5793
    %v6639 = vunpack.c.h.b16 %v5793
    %v6640 = vunpack.c.l.b16 %v5794
    %v6641 = vunpack.c.h.b16 %v5794
    %v6642 = vunpack.c.l.b16 %v5795
    %v6643 = vunpack.c.h.b16 %v5795
    %v6644 = vunpack.c.l.b16 %v5796
    %v6645 = vunpack.c.h.b16 %v5796
    %v6646 = vunpack.c.l.b16 %v5797
    %v6647 = vunpack.c.h.b16 %v5797
    %v6648 = vunpack.c.l.b16 %v5798
    %v6649 = vunpack.c.h.b16 %v5798
    %v6650 = vunpack.c.l.b16 %v5799
    %v6651 = vunpack.c.h.b16 %v5799
    %v6652 = vunpack.c.l.b16 %v5800
    %v6653 = vunpack.c.h.b16 %v5800
    %v6654 = vunpack.c.l.b16 %v5801
    %v6655 = vunpack.c.h.b16 %v5801
    %v6656 = vunpack.c.l.b16 %v5802
    %v6657 = vunpack.c.h.b16 %v5802
    %v6658 = vunpack.c.l.b16 %v5803
    %v6659 = vunpack.c.h.b16 %v5803
    %v6660 = vunpack.c.l.b16 %v5804
    %v6661 = vunpack.c.h.b16 %v5804
    %v6662 = vunpack.c.l.b16 %v5805
    %v6663 = vunpack.c.h.b16 %v5805
    %v6664 = vunpack.c.l.b16 %v5806
    %v6665 = vunpack.c.h.b16 %v5806
    %v6666 = vunpack.c.l.b16 %v5807
    %v6667 = vunpack.c.h.b16 %v5807
    %v6668 = vunpack.c.l.b16 %v5808
    %v6669 = vunpack.c.h.b16 %v5808
    %v6670 = vunpack.c.l.b16 %v5809
    %v6671 = vunpack.c.h.b16 %v5809
    %v6672 = vunpack.c.l.b16 %v5810
    %v6673 = vunpack.c.h.b16 %v5810
    %v6674 = vunpack.c.l.b16 %v5811
    %v6675 = vunpack.c.h.b16 %v5811
    %v6676 = vpack.c.b16 %v6106, %v6100
    %v6677 = vpack.c.b16 %v6107, %v6101
    %v6678 = vpack.c.b16 %v6108, %v6102
    %v6679 = vpack.c.b16 %v6109, %v6103
    %v6680 = vpack.c.b16 %v6110, %v6104
    %v6681 = vpack.c.b16 %v6111, %v6105
    %v6682 = vpack.c.b16 %v6118, %v6112
    %v6683 = vpack.c.b16 %v6119, %v6113
    %v6684 = vpack.c.b16 %v6120, %v6114
    %v6685 = vpack.c.b16 %v6121, %v6115
    %v6686 = vpack.c.b16 %v6122, %v6116
    %v6687 = vpack.c.b16 %v6123, %v6117
    %v6688 = vpack.c.b16 %v6130, %v6124
    %v6689 = vpack.c.b16 %v6131, %v6125
    %v6690 = vpack.c.b16 %v6132, %v6126
    %v6691 = vpack.c.b16 %v6133, %v6127
    %v6692 = vpack.c.b16 %v6134, %v6128
    %v6693 = vpack.c.b16 %v6135, %v6129
    %v6694 = vpack.c.b16 %v6142, %v6136
    %v6695 = vpack.c.b16 %v6143, %v6137
    %v6696 = vpack.c.b16 %v6144, %v6138
    %v6697 = vpack.c.b16 %v6145, %v6139
    %v6698 = vpack.c.b16 %v6146, %v6140
    %v6699 = vpack.c.b16 %v6147, %v6141
    %v6700 = vpack.c.b16 %v6154, %v6148
    %v6701 = vpack.c.b16 %v6155, %v6149
    %v6702 = vpack.c.b16 %v6156, %v6150
    %v6703 = vpack.c.b16 %v6157, %v6151
    %v6704 = vpack.c.b16 %v6158, %v6152
    %v6705 = vpack.c.b16 %v6159, %v6153
    %v6706 = vpack.c.b16 %v6166, %v6160
    %v6707 = vpack.c.b16 %v6167, %v6161
    %v6708 = vpack.c.b16 %v6168, %v6162
    %v6709 = vpack.c.b16 %v6169, %v6163
    %v6710 = vpack.c.b16 %v6170, %v6164
    %v6711 = vpack.c.b16 %v6171, %v6165
    %v6712 = vpack.c.b16 %v6178, %v6172
    %v6713 = vpack.c.b16 %v6179, %v6173
    %v6714 = vpack.c.b16 %v6180, %v6174
    %v6715 = vpack.c.b16 %v6181, %v6175
    %v6716 = vpack.c.b16 %v6182, %v6176
    %v6717 = vpack.c.b16 %v6183, %v6177
    %v6718 = vpack.c.b16 %v6190, %v6184
    %v6719 = vpack.c.b16 %v6191, %v6185
    %v6720 = vpack.c.b16 %v6192, %v6186
    %v6721 = vpack.c.b16 %v6193, %v6187
    %v6722 = vpack.c.b16 %v6194, %v6188
    %v6723 = vpack.c.b16 %v6195, %v6189
    %v6724 = vpack.c.b16 %v6202, %v6196
    %v6725 = vpack.c.b16 %v6203, %v6197
    %v6726 = vpack.c.b16 %v6204, %v6198
    %v6727 = vpack.c.b16 %v6205, %v6199
    %v6728 = vpack.c.b16 %v6206, %v6200
    %v6729 = vpack.c.b16 %v6207, %v6201
    %v6730 = vpack.c.b16 %v6214, %v6208
    %v6731 = vpack.c.b16 %v6215, %v6209
    %v6732 = vpack.c.b16 %v6216, %v6210
    %v6733 = vpack.c.b16 %v6217, %v6211
    %v6734 = vpack.c.b16 %v6218, %v6212
    %v6735 = vpack.c.b16 %v6219, %v6213
    %v6736 = vpack.c.b16 %v6226, %v6220
    %v6737 = vpack.c.b16 %v6227, %v6221
    %v6738 = vpack.c.b16 %v6228, %v6222
    %v6739 = vpack.c.b16 %v6229, %v6223
    %v6740 = vpack.c.b16 %v6230, %v6224
    %v6741 = vpack.c.b16 %v6231, %v6225
    %v6742 = vpack.c.b16 %v6238, %v6232
    %v6743 = vpack.c.b16 %v6239, %v6233
    %v6744 = vpack.c.b16 %v6240, %v6234
    %v6745 = vpack.c.b16 %v6241, %v6235
    %v6746 = vpack.c.b16 %v6242, %v6236
    %v6747 = vpack.c.b16 %v6243, %v6237
    %v6748 = vpack.c.b16 %v6250, %v6244
    %v6749 = vpack.c.b16 %v6251, %v6245
    %v6750 = vpack.c.b16 %v6252, %v6246
    %v6751 = vpack.c.b16 %v6253, %v6247
    %v6752 = vpack.c.b16 %v6254, %v6248
    %v6753 = vpack.c.b16 %v6255, %v6249
    %v6754 = vpack.c.b16 %v6262, %v6256
    %v6755 = vpack.c.b16 %v6263, %v6257
    %v6756 = vpack.c.b16 %v6264, %v6258
    %v6757 = vpack.c.b16 %v6265, %v6259
    %v6758 = vpack.c.b16 %v6266, %v6260
    %v6759 = vpack.c.b16 %v6267, %v6261
    %v6760 = vpack.c.b16 %v6274, %v6268
    %v6761 = vpack.c.b16 %v6275, %v6269
    %v6762 = vpack.c.b16 %v6276, %v6270
    %v6763 = vpack.c.b16 %v6277, %v6271
    %v6764 = vpack.c.b16 %v6278, %v6272
    %v6765 = vpack.c.b16 %v6279, %v6273
    %v6766 = vpack.c.b16 %v6286, %v6280
    %v6767 = vpack.c.b16 %v6287, %v6281
    %v6768 = vpack.c.b16 %v6288, %v6282
    %v6769 = vpack.c.b16 %v6289, %v6283
    %v6770 = vpack.c.b16 %v6290, %v6284
    %v6771 = vpack.c.b16 %v6291, %v6285
    %v6772 = vpack.c.b16 %v6298, %v6292
    %v6773 = vpack.c.b16 %v6299, %v6293
    %v6774 = vpack.c.b16 %v6300, %v6294
    %v6775 = vpack.c.b16 %v6301, %v6295
    %v6776 = vpack.c.b16 %v6302, %v6296
    %v6777 = vpack.c.b16 %v6303, %v6297
    %v6778 = vpack.c.b16 %v6310, %v6304
    %v6779 = vpack.c.b16 %v6311, %v6305
    %v6780 = vpack.c.b16 %v6312, %v6306
    %v6781 = vpack.c.b16 %v6313, %v6307
    %v6782 = vpack.c.b16 %v6314, %v6308
    %v6783 = vpack.c.b16 %v6315, %v6309
    %v6784 = vpack.c.b16 %v6322, %v6316
    %v6785 = vpack.c.b16 %v6323, %v6317
    %v6786 = vpack.c.b16 %v6324, %v6318
    %v6787 = vpack.c.b16 %v6325, %v6319
    %v6788 = vpack.c.b16 %v6326, %v6320
    %v6789 = vpack.c.b16 %v6327, %v6321
    %v6790 = vpack.c.b16 %v6334, %v6328
    %v6791 = vpack.c.b16 %v6335, %v6329
    %v6792 = vpack.c.b16 %v6336, %v6330
    %v6793 = vpack.c.b16 %v6337, %v6331
    %v6794 = vpack.c.b16 %v6338, %v6332
    %v6795 = vpack.c.b16 %v6339, %v6333
    %v6796 = vpack.c.b16 %v6346, %v6340
    %v6797 = vpack.c.b16 %v6347, %v6341
    %v6798 = vpack.c.b16 %v6348, %v6342
    %v6799 = vpack.c.b16 %v6349, %v6343
    %v6800 = vpack.c.b16 %v6350, %v6344
    %v6801 = vpack.c.b16 %v6351, %v6345
    %v6802 = vpack.c.b16 %v6358, %v6352
    %v6803 = vpack.c.b16 %v6359, %v6353
    %v6804 = vpack.c.b16 %v6360, %v6354
    %v6805 = vpack.c.b16 %v6361, %v6355
    %v6806 = vpack.c.b16 %v6362, %v6356
    %v6807 = vpack.c.b16 %v6363, %v6357
    %v6808 = vpack.c.b16 %v6370, %v6364
    %v6809 = vpack.c.b16 %v6371, %v6365
    %v6810 = vpack.c.b16 %v6372, %v6366
    %v6811 = vpack.c.b16 %v6373, %v6367
    %v6812 = vpack.c.b16 %v6374, %v6368
    %v6813 = vpack.c.b16 %v6375, %v6369
    %v6814 = vpack.c.b16 %v6382, %v6376
    %v6815 = vpack.c.b16 %v6383, %v6377
    %v6816 = vpack.c.b16 %v6384, %v6378
    %v6817 = vpack.c.b16 %v6385, %v6379
    %v6818 = vpack.c.b16 %v6386, %v6380
    %v6819 = vpack.c.b16 %v6387, %v6381
    %v6820 = vpack.c.b16 %v6394, %v6388
    %v6821 = vpack.c.b16 %v6395, %v6389
    %v6822 = vpack.c.b16 %v6396, %v6390
    %v6823 = vpack.c.b16 %v6397, %v6391
    %v6824 = vpack.c.b16 %v6398, %v6392
    %v6825 = vpack.c.b16 %v6399, %v6393
    %v6826 = vpack.c.b16 %v6406, %v6400
    %v6827 = vpack.c.b16 %v6407, %v6401
    %v6828 = vpack.c.b16 %v6408, %v6402
    %v6829 = vpack.c.b16 %v6409, %v6403
    %v6830 = vpack.c.b16 %v6410, %v6404
    %v6831 = vpack.c.b16 %v6411, %v6405
    %v6832 = vpack.c.b16 %v6418, %v6412
    %v6833 = vpack.c.b16 %v6419, %v6413
    %v6834 = vpack.c.b16 %v6420, %v6414
    %v6835 = vpack.c.b16 %v6421, %v6415
    %v6836 = vpack.c.b16 %v6422, %v6416
    %v6837 = vpack.c.b16 %v6423, %v6417
    %v6838 = vpack.c.b16 %v6430, %v6424
    %v6839 = vpack.c.b16 %v6431, %v6425
    %v6840 = vpack.c.b16 %v6432, %v6426
    %v6841 = vpack.c.b16 %v6433, %v6427
    %v6842 = vpack.c.b16 %v6434, %v6428
    %v6843 = vpack.c.b16 %v6435, %v6429
    %v6844 = vpack.c.b16 %v6442, %v6436
    %v6845 = vpack.c.b16 %v6443, %v6437
    %v6846 = vpack.c.b16 %v6444, %v6438
    %v6847 = vpack.c.b16 %v6445, %v6439
    %v6848 = vpack.c.b16 %v6446, %v6440
    %v6849 = vpack.c.b16 %v6447, %v6441
    %v6850 = vpack.c.b16 %v6454, %v6448
    %v6851 = vpack.c.b16 %v6455, %v6449
    %v6852 = vpack.c.b16 %v6456, %v6450
    %v6853 = vpack.c.b16 %v6457, %v6451
    %v6854 = vpack.c.b16 %v6458, %v6452
    %v6855 = vpack.c.b16 %v6459, %v6453
    %v6856 = vpack.c.b16 %v6466, %v6460
    %v6857 = vpack.c.b16 %v6467, %v6461
    %v6858 = vpack.c.b16 %v6468, %v6462
    %v6859 = vpack.c.b16 %v6469, %v6463
    %v6860 = vpack.c.b16 %v6470, %v6464
    %v6861 = vpack.c.b16 %v6471, %v6465
    %v6862 = vpack.c.b16 %v6478, %v6472
    %v6863 = vpack.c.b16 %v6479, %v6473
    %v6864 = vpack.c.b16 %v6480, %v6474
    %v6865 = vpack.c.b16 %v6481, %v6475
    %v6866 = vpack.c.b16 %v6482, %v6476
    %v6867 = vpack.c.b16 %v6483, %v6477
    %v6868 = vpack.c.b16 %v6490, %v6484
    %v6869 = vpack.c.b16 %v6491, %v6485
    %v6870 = vpack.c.b16 %v6492, %v6486
    %v6871 = vpack.c.b16 %v6493, %v6487
    %v6872 = vpack.c.b16 %v6494, %v6488
    %v6873 = vpack.c.b16 %v6495, %v6489
    %v6874 = vpack.c.b16 %v6502, %v6496
    %v6875 = vpack.c.b16 %v6503, %v6497
    %v6876 = vpack.c.b16 %v6504, %v6498
    %v6877 = vpack.c.b16 %v6505, %v6499
    %v6878 = vpack.c.b16 %v6506, %v6500
    %v6879 = vpack.c.b16 %v6507, %v6501
    %v6880 = vpack.c.b16 %v6514, %v6508
    %v6881 = vpack.c.b16 %v6515, %v6509
    %v6882 = vpack.c.b16 %v6516, %v6510
    %v6883 = vpack.c.b16 %v6517, %v6511
    %v6884 = vpack.c.b16 %v6518, %v6512
    %v6885 = vpack.c.b16 %v6519, %v6513
    %v6886 = vpack.c.b16 %v6526, %v6520
    %v6887 = vpack.c.b16 %v6527, %v6521
    %v6888 = vpack.c.b16 %v6528, %v6522
    %v6889 = vpack.c.b16 %v6529, %v6523
    %v6890 = vpack.c.b16 %v6530, %v6524
    %v6891 = vpack.c.b16 %v6531, %v6525
    %v6892 = vpack.c.b16 %v6538, %v6532
    %v6893 = vpack.c.b16 %v6539, %v6533
    %v6894 = vpack.c.b16 %v6540, %v6534
    %v6895 = vpack.c.b16 %v6541, %v6535
    %v6896 = vpack.c.b16 %v6542, %v6536
    %v6897 = vpack.c.b16 %v6543, %v6537
    %v6898 = vpack.c.b16 %v6550, %v6544
    %v6899 = vpack.c.b16 %v6551, %v6545
    %v6900 = vpack.c.b16 %v6552, %v6546
    %v6901 = vpack.c.b16 %v6553, %v6547
    %v6902 = vpack.c.b16 %v6554, %v6548
    %v6903 = vpack.c.b16 %v6555, %v6549
    %v6904 = vpack.c.b16 %v6562, %v6556
    %v6905 = vpack.c.b16 %v6563, %v6557
    %v6906 = vpack.c.b16 %v6564, %v6558
    %v6907 = vpack.c.b16 %v6565, %v6559
    %v6908 = vpack.c.b16 %v6566, %v6560
    %v6909 = vpack.c.b16 %v6567, %v6561
    %v6910 = vpack.c.b16 %v6574, %v6568
    %v6911 = vpack.c.b16 %v6575, %v6569
    %v6912 = vpack.c.b16 %v6576, %v6570
    %v6913 = vpack.c.b16 %v6577, %v6571
    %v6914 = vpack.c.b16 %v6578, %v6572
    %v6915 = vpack.c.b16 %v6579, %v6573
    %v6916 = vpack.c.b16 %v6586, %v6580
    %v6917 = vpack.c.b16 %v6587, %v6581
    %v6918 = vpack.c.b16 %v6588, %v6582
    %v6919 = vpack.c.b16 %v6589, %v6583
    %v6920 = vpack.c.b16 %v6590, %v6584
    %v6921 = vpack.c.b16 %v6591, %v6585
    %v6922 = vpack.c.b16 %v6598, %v6592
    %v6923 = vpack.c.b16 %v6599, %v6593
    %v6924 = vpack.c.b16 %v6600, %v6594
    %v6925 = vpack.c.b16 %v6601, %v6595
    %v6926 = vpack.c.b16 %v6602, %v6596
    %v6927 = vpack.c.b16 %v6603, %v6597
    %v6928 = vpack.c.b16 %v6610, %v6604
    %v6929 = vpack.c.b16 %v6611, %v6605
    %v6930 = vpack.c.b16 %v6612, %v6606
    %v6931 = vpack.c.b16 %v6613, %v6607
    %v6932 = vpack.c.b16 %v6614, %v6608
    %v6933 = vpack.c.b16 %v6615, %v6609
    %v6934 = vpack.c.b16 %v6622, %v6616
    %v6935 = vpack.c.b16 %v6623, %v6617
    %v6936 = vpack.c.b16 %v6624, %v6618
    %v6937 = vpack.c.b16 %v6625, %v6619
    %v6938 = vpack.c.b16 %v6626, %v6620
    %v6939 = vpack.c.b16 %v6627, %v6621
    %v6940 = vpack.c.b16 %v6634, %v6628
    %v6941 = vpack.c.b16 %v6635, %v6629
    %v6942 = vpack.c.b16 %v6636, %v6630
    %v6943 = vpack.c.b16 %v6637, %v6631
    %v6944 = vpack.c.b16 %v6638, %v6632
    %v6945 = vpack.c.b16 %v6639, %v6633
    %v6946 = vpack.c.b16 %v6646, %v6640
    %v6947 = vpack.c.b16 %v6647, %v6641
    %v6948 = vpack.c.b16 %v6648, %v6642
    %v6949 = vpack.c.b16 %v6649, %v6643
    %v6950 = vpack.c.b16 %v6650, %v6644
    %v6951 = vpack.c.b16 %v6651, %v6645
    %v6952 = vpack.c.b16 %v6658, %v6652
    %v6953 = vpack.c.b16 %v6659, %v6653
    %v6954 = vpack.c.b16 %v6660, %v6654
    %v6955 = vpack.c.b16 %v6661, %v6655
    %v6956 = vpack.c.b16 %v6662, %v6656
    %v6957 = vpack.c.b16 %v6663, %v6657
    %v6958 = vpack.c.b16 %v6670, %v6664
    %v6959 = vpack.c.b16 %v6671, %v6665
    %v6960 = vpack.c.b16 %v6672, %v6666
    %v6961 = vpack.c.b16 %v6673, %v6667
    %v6962 = vpack.c.b16 %v6674, %v6668
    %v6963 = vpack.c.b16 %v6675, %v6669
    %7252 = vmatprep.subr.bf16.mxu0 %v6677
    %7253 = vmatpush1.bf16.msra.mxu0 %v6676
    %7254 = vmatprep.subr.bf16.mxu0 %v6683
    %7255 = vmatpush1.bf16.msra.mxu0 %v6682
    %7256 = vmatprep.subr.bf16.mxu0 %v6689
    %7257 = vmatpush1.bf16.msra.mxu0 %v6688
    %7258 = vmatprep.subr.bf16.mxu0 %v6695
    %7259 = vmatpush1.bf16.msra.mxu0 %v6694
    %7260 = vmatprep.subr.bf16.mxu0 %v6701
    %7261 = vmatpush1.bf16.msra.mxu0 %v6700
    %7262 = vmatprep.subr.bf16.mxu0 %v6707
    %7263 = vmatpush1.bf16.msra.mxu0 %v6706
    %7264 = vmatprep.subr.bf16.mxu0 %v6713
    %7265 = vmatpush1.bf16.msra.mxu0 %v6712
    %7266 = vmatprep.subr.bf16.mxu0 %v6719
    %7267 = vmatpush1.bf16.msra.mxu0 %v6718
    %7268 = vmatprep.subr.bf16.mxu0 %v6725
    %7269 = vmatpush1.bf16.msra.mxu0 %v6724
    %7270 = vmatprep.subr.bf16.mxu0 %v6731
    %7271 = vmatpush1.bf16.msra.mxu0 %v6730
    %7272 = vmatprep.subr.bf16.mxu0 %v6737
    %7273 = vmatpush1.bf16.msra.mxu0 %v6736
    %7274 = vmatprep.subr.bf16.mxu0 %v6743
    %7275 = vmatpush1.bf16.msra.mxu0 %v6742
    %7276 = vmatprep.subr.bf16.mxu0 %v6749
    %7277 = vmatpush1.bf16.msra.mxu0 %v6748
    %7278 = vmatprep.subr.bf16.mxu0 %v6755
    %7279 = vmatpush1.bf16.msra.mxu0 %v6754
    %7280 = vmatprep.subr.bf16.mxu0 %v6761
    %7281 = vmatpush1.bf16.msra.mxu0 %v6760
    %7282 = vmatprep.subr.bf16.mxu0 %v6767
    %7283 = vmatpush1.bf16.msra.mxu0 %v6766
    %7284 = vmatprep.mubr.bf16.mxu0 %v5518
    %7285 = vmatmul.mubr.bf16.gmra.mrb[0].mxu0 %v5517
    %v7286 = vpop.f32.mrb[0].mxu0
    %v7287 = vadd.f32 0.0, %v7286
    %v7288 = vpop.f32.mrb[0].mxu0
    %v7289 = vadd.f32 0.0, %v7288
    %v7290 = vpop.f32.mrb[0].mxu0
    %v7291 = vpop.f32.mrb[0].mxu0
    %7292 = vdwg.mxu0
    %7293 = vmatprep.subr.bf16.mxu0 %v6773
    %7294 = vmatpush1.bf16.msra.mxu0 %v6772
    %7295 = vmatprep.subr.bf16.mxu0 %v6779
    %7296 = vmatpush1.bf16.msra.mxu0 %v6778
    %7297 = vmatprep.subr.bf16.mxu0 %v6785
    %7298 = vmatpush1.bf16.msra.mxu0 %v6784
    %7299 = vmatprep.subr.bf16.mxu0 %v6791
    %7300 = vmatpush1.bf16.msra.mxu0 %v6790
    %7301 = vmatprep.subr.bf16.mxu0 %v6797
    %7302 = vmatpush1.bf16.msra.mxu0 %v6796
    %7303 = vmatprep.subr.bf16.mxu0 %v6803
    %7304 = vmatpush1.bf16.msra.mxu0 %v6802
    %7305 = vmatprep.subr.bf16.mxu0 %v6809
    %7306 = vmatpush1.bf16.msra.mxu0 %v6808
    %7307 = vmatprep.subr.bf16.mxu0 %v6815
    %7308 = vmatpush1.bf16.msra.mxu0 %v6814
    %7309 = vmatprep.subr.bf16.mxu0 %v6821
    %7310 = vmatpush1.bf16.msra.mxu0 %v6820
    %7311 = vmatprep.subr.bf16.mxu0 %v6827
    %7312 = vmatpush1.bf16.msra.mxu0 %v6826
    %7313 = vmatprep.subr.bf16.mxu0 %v6833
    %7314 = vmatpush1.bf16.msra.mxu0 %v6832
    %7315 = vmatprep.subr.bf16.mxu0 %v6839
    %7316 = vmatpush1.bf16.msra.mxu0 %v6838
    %7317 = vmatprep.subr.bf16.mxu0 %v6845
    %7318 = vmatpush1.bf16.msra.mxu0 %v6844
    %7319 = vmatprep.subr.bf16.mxu0 %v6851
    %7320 = vmatpush1.bf16.msra.mxu0 %v6850
    %7321 = vmatprep.subr.bf16.mxu0 %v6857
    %7322 = vmatpush1.bf16.msra.mxu0 %v6856
    %7323 = vmatprep.subr.bf16.mxu0 %v6863
    %7324 = vmatpush1.bf16.msra.mxu0 %v6862
    %7325 = vmatprep.mubr.bf16.mxu0 %v5520
    %7326 = vmatmul.mubr.bf16.gmra.mrb[0].mxu0 %v5519
    %v7327 = vpop.f32.mrb[0].mxu0
    %v7328 = vadd.f32 %v7287, %v7327
    %v7329 = vpop.f32.mrb[0].mxu0
    %v7330 = vadd.f32 %v7289, %v7329
    %v7331 = vpop.f32.mrb[0].mxu0
    %v7332 = vpop.f32.mrb[0].mxu0
    %7333 = vdwg.mxu0
    %7334 = vmatprep.subr.bf16.mxu0 %v6869
    %7335 = vmatpush1.bf16.msra.mxu0 %v6868
    %7336 = vmatprep.subr.bf16.mxu0 %v6875
    %7337 = vmatpush1.bf16.msra.mxu0 %v6874
    %7338 = vmatprep.subr.bf16.mxu0 %v6881
    %7339 = vmatpush1.bf16.msra.mxu0 %v6880
    %7340 = vmatprep.subr.bf16.mxu0 %v6887
    %7341 = vmatpush1.bf16.msra.mxu0 %v6886
    %7342 = vmatprep.subr.bf16.mxu0 %v6893
    %7343 = vmatpush1.bf16.msra.mxu0 %v6892
    %7344 = vmatprep.subr.bf16.mxu0 %v6899
    %7345 = vmatpush1.bf16.msra.mxu0 %v6898
    %7346 = vmatprep.subr.bf16.mxu0 %v6905
    %7347 = vmatpush1.bf16.msra.mxu0 %v6904
    %7348 = vmatprep.subr.bf16.mxu0 %v6911
    %7349 = vmatpush1.bf16.msra.mxu0 %v6910
    %7350 = vmatprep.subr.bf16.mxu0 %v6917
    %7351 = vmatpush1.bf16.msra.mxu0 %v6916
    %7352 = vmatprep.subr.bf16.mxu0 %v6923
    %7353 = vmatpush1.bf16.msra.mxu0 %v6922
    %7354 = vmatprep.subr.bf16.mxu0 %v6929
    %7355 = vmatpush1.bf16.msra.mxu0 %v6928
    %7356 = vmatprep.subr.bf16.mxu0 %v6935
    %7357 = vmatpush1.bf16.msra.mxu0 %v6934
    %7358 = vmatprep.subr.bf16.mxu0 %v6941
    %7359 = vmatpush1.bf16.msra.mxu0 %v6940
    %7360 = vmatprep.subr.bf16.mxu0 %v6947
    %7361 = vmatpush1.bf16.msra.mxu0 %v6946
    %7362 = vmatprep.subr.bf16.mxu0 %v6953
    %7363 = vmatpush1.bf16.msra.mxu0 %v6952
    %7364 = vmatprep.subr.bf16.mxu0 %v6959
    %7365 = vmatpush1.bf16.msra.mxu0 %v6958
    %7366 = vmatprep.mubr.bf16.mxu0 %v5522
    %7367 = vmatmul.mubr.bf16.gmra.mrb[0].mxu0 %v5521
    %v7368 = vpop.f32.mrb[0].mxu0
    %v7369 = vadd.f32 %v7328, %v7368
    %v7370 = vpop.f32.mrb[0].mxu0
    %v7371 = vadd.f32 %v7330, %v7370
    %v7372 = vpop.f32.mrb[0].mxu0
    %v7373 = vpop.f32.mrb[0].mxu0
    %7374 = vdwg.mxu0
    %7375 = vmatprep.subr.bf16.mxu0 %v6679
    %7376 = vmatpush1.bf16.msra.mxu0 %v6678
    %7377 = vmatprep.subr.bf16.mxu0 %v6685
    %7378 = vmatpush1.bf16.msra.mxu0 %v6684
    %7379 = vmatprep.subr.bf16.mxu0 %v6691
    %7380 = vmatpush1.bf16.msra.mxu0 %v6690
    %7381 = vmatprep.subr.bf16.mxu0 %v6697
    %7382 = vmatpush1.bf16.msra.mxu0 %v6696
    %7383 = vmatprep.subr.bf16.mxu0 %v6703
    %7384 = vmatpush1.bf16.msra.mxu0 %v6702
    %7385 = vmatprep.subr.bf16.mxu0 %v6709
    %7386 = vmatpush1.bf16.msra.mxu0 %v6708
    %7387 = vmatprep.subr.bf16.mxu0 %v6715
    %7388 = vmatpush1.bf16.msra.mxu0 %v6714
    %7389 = vmatprep.subr.bf16.mxu0 %v6721
    %7390 = vmatpush1.bf16.msra.mxu0 %v6720
    %7391 = vmatprep.subr.bf16.mxu0 %v6727
    %7392 = vmatpush1.bf16.msra.mxu0 %v6726
    %7393 = vmatprep.subr.bf16.mxu0 %v6733
    %7394 = vmatpush1.bf16.msra.mxu0 %v6732
    %7395 = vmatprep.subr.bf16.mxu0 %v6739
    %7396 = vmatpush1.bf16.msra.mxu0 %v6738
    %7397 = vmatprep.subr.bf16.mxu0 %v6745
    %7398 = vmatpush1.bf16.msra.mxu0 %v6744
    %7399 = vmatprep.subr.bf16.mxu0 %v6751
    %7400 = vmatpush1.bf16.msra.mxu0 %v6750
    %7401 = vmatprep.subr.bf16.mxu0 %v6757
    %7402 = vmatpush1.bf16.msra.mxu0 %v6756
    %7403 = vmatprep.subr.bf16.mxu0 %v6763
    %7404 = vmatpush1.bf16.msra.mxu0 %v6762
    %7405 = vmatprep.subr.bf16.mxu0 %v6769
    %7406 = vmatpush1.bf16.msra.mxu0 %v6768
    %7407 = vmatprep.mubr.bf16.mxu0 %v5518
    %7408 = vmatmul.mubr.bf16.gmra.mrb[0].mxu0 %v5517
    %v7409 = vpop.f32.mrb[0].mxu0
    %v7410 = vadd.f32 0.0, %v7409
    %v7411 = vpop.f32.mrb[0].mxu0
    %v7412 = vadd.f32 0.0, %v7411
    %v7413 = vpop.f32.mrb[0].mxu0
    %v7414 = vpop.f32.mrb[0].mxu0
    %7415 = vdwg.mxu0
    %7416 = vmatprep.subr.bf16.mxu0 %v6775
    %7417 = vmatpush1.bf16.msra.mxu0 %v6774
    %7418 = vmatprep.subr.bf16.mxu0 %v6781
    %7419 = vmatpush1.bf16.msra.mxu0 %v6780
    %7420 = vmatprep.subr.bf16.mxu0 %v6787
    %7421 = vmatpush1.bf16.msra.mxu0 %v6786
    %7422 = vmatprep.subr.bf16.mxu0 %v6793
    %7423 = vmatpush1.bf16.msra.mxu0 %v6792
    %7424 = vmatprep.subr.bf16.mxu0 %v6799
    %7425 = vmatpush1.bf16.msra.mxu0 %v6798
    %7426 = vmatprep.subr.bf16.mxu0 %v6805
    %7427 = vmatpush1.bf16.msra.mxu0 %v6804
    %7428 = vmatprep.subr.bf16.mxu0 %v6811
    %7429 = vmatpush1.bf16.msra.mxu0 %v6810
    %7430 = vmatprep.subr.bf16.mxu0 %v6817
    %7431 = vmatpush1.bf16.msra.mxu0 %v6816
    %7432 = vmatprep.subr.bf16.mxu0 %v6823
    %7433 = vmatpush1.bf16.msra.mxu0 %v6822
    %7434 = vmatprep.subr.bf16.mxu0 %v6829
    %7435 = vmatpush1.bf16.msra.mxu0 %v6828
    %7436 = vmatprep.subr.bf16.mxu0 %v6835
    %7437 = vmatpush1.bf16.msra.mxu0 %v6834
    %7438 = vmatprep.subr.bf16.mxu0 %v6841
    %7439 = vmatpush1.bf16.msra.mxu0 %v6840
    %7440 = vmatprep.subr.bf16.mxu0 %v6847
    %7441 = vmatpush1.bf16.msra.mxu0 %v6846
    %7442 = vmatprep.subr.bf16.mxu0 %v6853
    %7443 = vmatpush1.bf16.msra.mxu0 %v6852
    %7444 = vmatprep.subr.bf16.mxu0 %v6859
    %7445 = vmatpush1.bf16.msra.mxu0 %v6858
    %7446 = vmatprep.subr.bf16.mxu0 %v6865
    %7447 = vmatpush1.bf16.msra.mxu0 %v6864
    %7448 = vmatprep.mubr.bf16.mxu0 %v5520
    %7449 = vmatmul.mubr.bf16.gmra.mrb[0].mxu0 %v5519
    %v7450 = vpop.f32.mrb[0].mxu0
    %v7451 = vadd.f32 %v7410, %v7450
    %v7452 = vpop.f32.mrb[0].mxu0
    %v7453 = vadd.f32 %v7412, %v7452
    %v7454 = vpop.f32.mrb[0].mxu0
    %v7455 = vpop.f32.mrb[0].mxu0
    %7456 = vdwg.mxu0
    %7457 = vmatprep.subr.bf16.mxu0 %v6871
    %7458 = vmatpush1.bf16.msra.mxu0 %v6870
    %7459 = vmatprep.subr.bf16.mxu0 %v6877
    %7460 = vmatpush1.bf16.msra.mxu0 %v6876
    %7461 = vmatprep.subr.bf16.mxu0 %v6883
    %7462 = vmatpush1.bf16.msra.mxu0 %v6882
    %7463 = vmatprep.subr.bf16.mxu0 %v6889
    %7464 = vmatpush1.bf16.msra.mxu0 %v6888
    %7465 = vmatprep.subr.bf16.mxu0 %v6895
    %7466 = vmatpush1.bf16.msra.mxu0 %v6894
    %7467 = vmatprep.subr.bf16.mxu0 %v6901
    %7468 = vmatpush1.bf16.msra.mxu0 %v6900
    %7469 = vmatprep.subr.bf16.mxu0 %v6907
    %7470 = vmatpush1.bf16.msra.mxu0 %v6906
    %7471 = vmatprep.subr.bf16.mxu0 %v6913
    %7472 = vmatpush1.bf16.msra.mxu0 %v6912
    %7473 = vmatprep.subr.bf16.mxu0 %v6919
    %7474 = vmatpush1.bf16.msra.mxu0 %v6918
    %7475 = vmatprep.subr.bf16.mxu0 %v6925
    %7476 = vmatpush1.bf16.msra.mxu0 %v6924
    %7477 = vmatprep.subr.bf16.mxu0 %v6931
    %7478 = vmatpush1.bf16.msra.mxu0 %v6930
    %7479 = vmatprep.subr.bf16.mxu0 %v6937
    %7480 = vmatpush1.bf16.msra.mxu0 %v6936
    %7481 = vmatprep.subr.bf16.mxu0 %v6943
    %7482 = vmatpush1.bf16.msra.mxu0 %v6942
    %7483 = vmatprep.subr.bf16.mxu0 %v6949
    %7484 = vmatpush1.bf16.msra.mxu0 %v6948
    %7485 = vmatprep.subr.bf16.mxu0 %v6955
    %7486 = vmatpush1.bf16.msra.mxu0 %v6954
    %7487 = vmatprep.subr.bf16.mxu0 %v6961
    %7488 = vmatpush1.bf16.msra.mxu0 %v6960
    %7489 = vmatprep.mubr.bf16.mxu0 %v5522
    %7490 = vmatmul.mubr.bf16.gmra.mrb[0].mxu0 %v5521
    %v7491 = vpop.f32.mrb[0].mxu0
    %v7492 = vadd.f32 %v7451, %v7491
    %v7493 = vpop.f32.mrb[0].mxu0
    %v7494 = vadd.f32 %v7453, %v7493
    %v7495 = vpop.f32.mrb[0].mxu0
    %v7496 = vpop.f32.mrb[0].mxu0
    %7497 = vdwg.mxu0
    %7498 = vmatprep.subr.bf16.mxu0 %v6681
    %7499 = vmatpush1.bf16.msra.mxu0 %v6680
    %7500 = vmatprep.subr.bf16.mxu0 %v6687
    %7501 = vmatpush1.bf16.msra.mxu0 %v6686
    %7502 = vmatprep.subr.bf16.mxu0 %v6693
    %7503 = vmatpush1.bf16.msra.mxu0 %v6692
    %7504 = vmatprep.subr.bf16.mxu0 %v6699
    %7505 = vmatpush1.bf16.msra.mxu0 %v6698
    %7506 = vmatprep.subr.bf16.mxu0 %v6705
    %7507 = vmatpush1.bf16.msra.mxu0 %v6704
    %7508 = vmatprep.subr.bf16.mxu0 %v6711
    %7509 = vmatpush1.bf16.msra.mxu0 %v6710
    %7510 = vmatprep.subr.bf16.mxu0 %v6717
    %7511 = vmatpush1.bf16.msra.mxu0 %v6716
    %7512 = vmatprep.subr.bf16.mxu0 %v6723
    %7513 = vmatpush1.bf16.msra.mxu0 %v6722
    %7514 = vmatprep.subr.bf16.mxu0 %v6729
    %7515 = vmatpush1.bf16.msra.mxu0 %v6728
    %7516 = vmatprep.subr.bf16.mxu0 %v6735
    %7517 = vmatpush1.bf16.msra.mxu0 %v6734
    %7518 = vmatprep.subr.bf16.mxu0 %v6741
    %7519 = vmatpush1.bf16.msra.mxu0 %v6740
    %7520 = vmatprep.subr.bf16.mxu0 %v6747
    %7521 = vmatpush1.bf16.msra.mxu0 %v6746
    %7522 = vmatprep.subr.bf16.mxu0 %v6753
    %7523 = vmatpush1.bf16.msra.mxu0 %v6752
    %7524 = vmatprep.subr.bf16.mxu0 %v6759
    %7525 = vmatpush1.bf16.msra.mxu0 %v6758
    %7526 = vmatprep.subr.bf16.mxu0 %v6765
    %7527 = vmatpush1.bf16.msra.mxu0 %v6764
    %7528 = vmatprep.subr.bf16.mxu0 %v6771
    %7529 = vmatpush1.bf16.msra.mxu0 %v6770
    %7530 = vmatprep.mubr.bf16.mxu0 %v5518
    %7531 = vmatmul.mubr.bf16.gmra.mrb[0].mxu0 %v5517
    %v7532 = vpop.f32.mrb[0].mxu0
    %v7533 = vadd.f32 0.0, %v7532
    %v7534 = vpop.f32.mrb[0].mxu0
    %v7535 = vadd.f32 0.0, %v7534
    %v7536 = vpop.f32.mrb[0].mxu0
    %v7537 = vpop.f32.mrb[0].mxu0
    %7538 = vdwg.mxu0
    %7539 = vmatprep.subr.bf16.mxu0 %v6777
    %7540 = vmatpush1.bf16.msra.mxu0 %v6776
    %7541 = vmatprep.subr.bf16.mxu0 %v6783
    %7542 = vmatpush1.bf16.msra.mxu0 %v6782
    %7543 = vmatprep.subr.bf16.mxu0 %v6789
    %7544 = vmatpush1.bf16.msra.mxu0 %v6788
    %7545 = vmatprep.subr.bf16.mxu0 %v6795
    %7546 = vmatpush1.bf16.msra.mxu0 %v6794
    %7547 = vmatprep.subr.bf16.mxu0 %v6801
    %7548 = vmatpush1.bf16.msra.mxu0 %v6800
    %7549 = vmatprep.subr.bf16.mxu0 %v6807
    %7550 = vmatpush1.bf16.msra.mxu0 %v6806
    %7551 = vmatprep.subr.bf16.mxu0 %v6813
    %7552 = vmatpush1.bf16.msra.mxu0 %v6812
    %7553 = vmatprep.subr.bf16.mxu0 %v6819
    %7554 = vmatpush1.bf16.msra.mxu0 %v6818
    %7555 = vmatprep.subr.bf16.mxu0 %v6825
    %7556 = vmatpush1.bf16.msra.mxu0 %v6824
    %7557 = vmatprep.subr.bf16.mxu0 %v6831
    %7558 = vmatpush1.bf16.msra.mxu0 %v6830
    %7559 = vmatprep.subr.bf16.mxu0 %v6837
    %7560 = vmatpush1.bf16.msra.mxu0 %v6836
    %7561 = vmatprep.subr.bf16.mxu0 %v6843
    %7562 = vmatpush1.bf16.msra.mxu0 %v6842
    %7563 = vmatprep.subr.bf16.mxu0 %v6849
    %7564 = vmatpush1.bf16.msra.mxu0 %v6848
    %7565 = vmatprep.subr.bf16.mxu0 %v6855
    %7566 = vmatpush1.bf16.msra.mxu0 %v6854
    %7567 = vmatprep.subr.bf16.mxu0 %v6861
    %7568 = vmatpush1.bf16.msra.mxu0 %v6860
    %7569 = vmatprep.subr.bf16.mxu0 %v6867
    %7570 = vmatpush1.bf16.msra.mxu0 %v6866
    %7571 = vmatprep.mubr.bf16.mxu0 %v5520
    %7572 = vmatmul.mubr.bf16.gmra.mrb[0].mxu0 %v5519
    %v7573 = vpop.f32.mrb[0].mxu0
    %v7574 = vadd.f32 %v7533, %v7573
    %v7575 = vpop.f32.mrb[0].mxu0
    %v7576 = vadd.f32 %v7535, %v7575
    %v7577 = vpop.f32.mrb[0].mxu0
    %v7578 = vpop.f32.mrb[0].mxu0
    %7579 = vdwg.mxu0
    %7580 = vmatprep.subr.bf16.mxu0 %v6873
    %7581 = vmatpush1.bf16.msra.mxu0 %v6872
    %7582 = vmatprep.subr.bf16.mxu0 %v6879
    %7583 = vmatpush1.bf16.msra.mxu0 %v6878
    %7584 = vmatprep.subr.bf16.mxu0 %v6885
    %7585 = vmatpush1.bf16.msra.mxu0 %v6884
    %7586 = vmatprep.subr.bf16.mxu0 %v6891
    %7587 = vmatpush1.bf16.msra.mxu0 %v6890
    %7588 = vmatprep.subr.bf16.mxu0 %v6897
    %7589 = vmatpush1.bf16.msra.mxu0 %v6896
    %7590 = vmatprep.subr.bf16.mxu0 %v6903
    %7591 = vmatpush1.bf16.msra.mxu0 %v6902
    %7592 = vmatprep.subr.bf16.mxu0 %v6909
    %7593 = vmatpush1.bf16.msra.mxu0 %v6908
    %7594 = vmatprep.subr.bf16.mxu0 %v6915
    %7595 = vmatpush1.bf16.msra.mxu0 %v6914
    %7596 = vmatprep.subr.bf16.mxu0 %v6921
    %7597 = vmatpush1.bf16.msra.mxu0 %v6920
    %7598 = vmatprep.subr.bf16.mxu0 %v6927
    %7599 = vmatpush1.bf16.msra.mxu0 %v6926
    %7600 = vmatprep.subr.bf16.mxu0 %v6933
    %7601 = vmatpush1.bf16.msra.mxu0 %v6932
    %7602 = vmatprep.subr.bf16.mxu0 %v6939
    %7603 = vmatpush1.bf16.msra.mxu0 %v6938
    %7604 = vmatprep.subr.bf16.mxu0 %v6945
    %7605 = vmatpush1.bf16.msra.mxu0 %v6944
    %7606 = vmatprep.subr.bf16.mxu0 %v6951
    %7607 = vmatpush1.bf16.msra.mxu0 %v6950
    %7608 = vmatprep.subr.bf16.mxu0 %v6957
    %7609 = vmatpush1.bf16.msra.mxu0 %v6956
    %7610 = vmatprep.subr.bf16.mxu0 %v6963
    %7611 = vmatpush1.bf16.msra.mxu0 %v6962
    %7612 = vmatprep.mubr.bf16.mxu0 %v5522
    %7613 = vmatmul.mubr.bf16.gmra.mrb[0].mxu0 %v5521
    %v7614 = vpop.f32.mrb[0].mxu0
    %v7615 = vadd.f32 %v7574, %v7614
    %v7616 = vpop.f32.mrb[0].mxu0
    %v7617 = vadd.f32 %v7576, %v7616
    %v7618 = vpop.f32.mrb[0].mxu0
    %v7619 = vpop.f32.mrb[0].mxu0
    %7620 = vdwg.mxu0
    %v7621 = vadd.f32 %v5429, %v7369
    %v7622 = vadd.f32 %v5431, %v7371
    %v7623 = vadd.f32 %v5470, %v7492
    %v7624 = vadd.f32 %v5472, %v7494
    %v7625 = vadd.f32 %v5511, %v7615
    %v7626 = vadd.f32 %v5513, %v7617
    %v7627 = vlaneseq
    %v7628 = vshrl.u32 %v7627, 7
    %v7629 = vsub.s32 2, %v7628
    %v7630 = vrot.slane %v128, %v7629
    %v7631 = vlaneseq
    %v7632 = vshrl.u32 %v7631, 7
    %v7633 = vsub.s32 6, %v7632
    %v7634 = vrot.slane %v128, %v7633
    %v7635 = vlaneseq
    %v7636 = vshrl.u32 %v7635, 7
    %v7637 = vsub.s32 2, %v7636
    %v7638 = vrot.slane %v129, %v7637
    %v7639 = vlaneseq
    %v7640 = vshrl.u32 %v7639, 7
    %v7641 = vsub.s32 6, %v7640
    %v7642 = vrot.slane %v129, %v7641
    %v7643 = vlaneseq
    %v7644 = vshrl.u32 %v7643, 7
    %v7645 = vsub.s32 2, %v7644
    %v7646 = vrot.slane %v130, %v7645
    %v7647 = vlaneseq
    %v7648 = vshrl.u32 %v7647, 7
    %v7649 = vsub.s32 6, %v7648
    %v7650 = vrot.slane %v130, %v7649
    %v7657 = vlaneseq
    %v7658 = vshrl.u32 %v7657, 7
    %v7659 = vsub.s32 2, %v7658
    %v7660 = vrot.slane %v7630, %v7659
    %v7661 = vlaneseq
    %v7662 = vshrl.u32 %v7661, 7
    %v7663 = vsub.s32 2, %v7662
    %v7664 = vrot.slane %v7634, %v7663
    %v7665 = vlaneseq
    %v7666 = vshrl.u32 %v7665, 7
    %v7667 = vsub.s32 2, %v7666
    %v7668 = vrot.slane %v7638, %v7667
    %v7669 = vlaneseq
    %v7670 = vshrl.u32 %v7669, 7
    %v7671 = vsub.s32 2, %v7670
    %v7672 = vrot.slane %v7642, %v7671
    %v7673 = vlaneseq
    %v7674 = vshrl.u32 %v7673, 7
    %v7675 = vsub.s32 2, %v7674
    %v7676 = vrot.slane %v7646, %v7675
    %v7677 = vlaneseq
    %v7678 = vshrl.u32 %v7677, 7
    %v7679 = vsub.s32 2, %v7678
    %v7680 = vrot.slane %v7650, %v7679
    %v7681 = vadd.f32 %v7621, %v7660
    %v7682 = vadd.f32 %v7622, %v7664
    %v7683 = vadd.f32 %v7623, %v7668
    %v7684 = vadd.f32 %v7624, %v7672
    %v7685 = vadd.f32 %v7625, %v7676
    %v7686 = vadd.f32 %v7626, %v7680
    %v7687 = vpack.c.bf16 %v7681, %v7681
    %v7688 = vpack.c.bf16 %v7682, %v7682
    %v7689 = vpack.c.bf16 %v7683, %v7683
    %v7690 = vpack.c.bf16 %v7684, %v7684
    %v7691 = vpack.c.bf16 %v7685, %v7685
    %v7692 = vpack.c.bf16 %v7686, %v7686
    %s7693 = scalar_lea.vmem [#allocation10], 6912
    %v7694 = vld [vmem:[%s7693] sm:$0xff]
    %v7695 = vld [vmem:[%s7693 + $0x8] sm:$0xff]
    %v7696 = vld [vmem:[%s7693 + $0x10] sm:$0xff]
    %v7697 = vld [vmem:[%s7693 + $0x18] sm:$0xff]
    %v7698 = vld [vmem:[%s7693 + $0x20] sm:$0xff]
    %v7699 = vld [vmem:[%s7693 + $0x28] sm:$0xff]
    %v7700 = vld [vmem:[%s7693 + $0x30] sm:$0xff]
    %v7701 = vld [vmem:[%s7693 + $0x38] sm:$0xff]
    %v7702 = vld [vmem:[%s7693 + $0x40] sm:$0xff]
    %v7703 = vld [vmem:[%s7693 + $0x48] sm:$0xff]
    %v7704 = vld [vmem:[%s7693 + $0x50] sm:$0xff]
    %v7705 = vld [vmem:[%s7693 + $0x58] sm:$0xff]
    %v7706 = vld [vmem:[%s7693 + $0x60] sm:$0xff]
    %v7707 = vld [vmem:[%s7693 + $0x68] sm:$0xff]
    %v7708 = vld [vmem:[%s7693 + $0x70] sm:$0xff]
    %v7709 = vld [vmem:[%s7693 + $0x78] sm:$0xff]
    %v7710 = vld [vmem:[%s7693 + $0x80] sm:$0xff]
    %v7711 = vld [vmem:[%s7693 + $0x88] sm:$0xff]
    %v7712 = vld [vmem:[%s7693 + $0x90] sm:$0xff]
    %v7713 = vld [vmem:[%s7693 + $0x98] sm:$0xff]
    %v7714 = vld [vmem:[%s7693 + $0xa0] sm:$0xff]
    %v7715 = vld [vmem:[%s7693 + $0xa8] sm:$0xff]
    %v7716 = vld [vmem:[%s7693 + $0xb0] sm:$0xff]
    %v7717 = vld [vmem:[%s7693 + $0xb8] sm:$0xff]
    %v7718 = vld [vmem:[%s7693 + $0xc0] sm:$0xff]
    %v7719 = vld [vmem:[%s7693 + $0xc8] sm:$0xff]
    %v7720 = vld [vmem:[%s7693 + $0xd0] sm:$0xff]
    %v7721 = vld [vmem:[%s7693 + $0xd8] sm:$0xff]
    %v7722 = vld [vmem:[%s7693 + $0xe0] sm:$0xff]
    %v7723 = vld [vmem:[%s7693 + $0xe8] sm:$0xff]
    %v7724 = vld [vmem:[%s7693 + $0xf0] sm:$0xff]
    %v7725 = vld [vmem:[%s7693 + $0xf8] sm:$0xff]
    %v7726 = vld [vmem:[%s7693 + $0x100] sm:$0xff]
    %v7727 = vld [vmem:[%s7693 + $0x108] sm:$0xff]
    %v7728 = vld [vmem:[%s7693 + $0x110] sm:$0xff]
    %v7729 = vld [vmem:[%s7693 + $0x118] sm:$0xff]
    %v7730 = vld [vmem:[%s7693 + $0x120] sm:$0xff]
    %v7731 = vld [vmem:[%s7693 + $0x128] sm:$0xff]
    %v7732 = vld [vmem:[%s7693 + $0x130] sm:$0xff]
    %v7733 = vld [vmem:[%s7693 + $0x138] sm:$0xff]
    %v7734 = vld [vmem:[%s7693 + $0x140] sm:$0xff]
    %v7735 = vld [vmem:[%s7693 + $0x148] sm:$0xff]
    %v7736 = vld [vmem:[%s7693 + $0x150] sm:$0xff]
    %v7737 = vld [vmem:[%s7693 + $0x158] sm:$0xff]
    %v7738 = vld [vmem:[%s7693 + $0x160] sm:$0xff]
    %v7739 = vld [vmem:[%s7693 + $0x168] sm:$0xff]
    %v7740 = vld [vmem:[%s7693 + $0x170] sm:$0xff]
    %v7741 = vld [vmem:[%s7693 + $0x178] sm:$0xff]
    %v7742 = vld [vmem:[%s7693 + $0x180] sm:$0xff]
    %v7743 = vld [vmem:[%s7693 + $0x188] sm:$0xff]
    %v7744 = vld [vmem:[%s7693 + $0x190] sm:$0xff]
    %v7745 = vld [vmem:[%s7693 + $0x198] sm:$0xff]
    %v7746 = vld [vmem:[%s7693 + $0x1a0] sm:$0xff]
    %v7747 = vld [vmem:[%s7693 + $0x1a8] sm:$0xff]
    %v7748 = vld [vmem:[%s7693 + $0x1b0] sm:$0xff]
    %v7749 = vld [vmem:[%s7693 + $0x1b8] sm:$0xff]
    %v7750 = vld [vmem:[%s7693 + $0x1c0] sm:$0xff]
    %v7751 = vld [vmem:[%s7693 + $0x1c8] sm:$0xff]
    %v7752 = vld [vmem:[%s7693 + $0x1d0] sm:$0xff]
    %v7753 = vld [vmem:[%s7693 + $0x1d8] sm:$0xff]
    %v7754 = vld [vmem:[%s7693 + $0x1e0] sm:$0xff]
    %v7755 = vld [vmem:[%s7693 + $0x1e8] sm:$0xff]
    %v7756 = vld [vmem:[%s7693 + $0x1f0] sm:$0xff]
    %v7757 = vld [vmem:[%s7693 + $0x1f8] sm:$0xff]
    %v7758 = vld [vmem:[%s7693 + $0x200] sm:$0xff]
    %v7759 = vld [vmem:[%s7693 + $0x208] sm:$0xff]
    %v7760 = vld [vmem:[%s7693 + $0x210] sm:$0xff]
    %v7761 = vld [vmem:[%s7693 + $0x218] sm:$0xff]
    %v7762 = vld [vmem:[%s7693 + $0x220] sm:$0xff]
    %v7763 = vld [vmem:[%s7693 + $0x228] sm:$0xff]
    %v7764 = vld [vmem:[%s7693 + $0x230] sm:$0xff]
    %v7765 = vld [vmem:[%s7693 + $0x238] sm:$0xff]
    %v7766 = vld [vmem:[%s7693 + $0x240] sm:$0xff]
    %v7767 = vld [vmem:[%s7693 + $0x248] sm:$0xff]
    %v7768 = vld [vmem:[%s7693 + $0x250] sm:$0xff]
    %v7769 = vld [vmem:[%s7693 + $0x258] sm:$0xff]
    %v7770 = vld [vmem:[%s7693 + $0x260] sm:$0xff]
    %v7771 = vld [vmem:[%s7693 + $0x268] sm:$0xff]
    %v7772 = vld [vmem:[%s7693 + $0x270] sm:$0xff]
    %v7773 = vld [vmem:[%s7693 + $0x278] sm:$0xff]
    %v7774 = vld [vmem:[%s7693 + $0x280] sm:$0xff]
    %v7775 = vld [vmem:[%s7693 + $0x288] sm:$0xff]
    %v7776 = vld [vmem:[%s7693 + $0x290] sm:$0xff]
    %v7777 = vld [vmem:[%s7693 + $0x298] sm:$0xff]
    %v7778 = vld [vmem:[%s7693 + $0x2a0] sm:$0xff]
    %v7779 = vld [vmem:[%s7693 + $0x2a8] sm:$0xff]
    %v7780 = vld [vmem:[%s7693 + $0x2b0] sm:$0xff]
    %v7781 = vld [vmem:[%s7693 + $0x2b8] sm:$0xff]
    %v7782 = vld [vmem:[%s7693 + $0x2c0] sm:$0xff]
    %v7783 = vld [vmem:[%s7693 + $0x2c8] sm:$0xff]
    %v7784 = vld [vmem:[%s7693 + $0x2d0] sm:$0xff]
    %v7785 = vld [vmem:[%s7693 + $0x2d8] sm:$0xff]
    %v7786 = vld [vmem:[%s7693 + $0x2e0] sm:$0xff]
    %v7787 = vld [vmem:[%s7693 + $0x2e8] sm:$0xff]
    %v7788 = vld [vmem:[%s7693 + $0x2f0] sm:$0xff]
    %v7789 = vld [vmem:[%s7693 + $0x2f8] sm:$0xff]
    %v7790 = vld [vmem:[%s7693 + $0x300] sm:$0xff]
    %v7791 = vld [vmem:[%s7693 + $0x308] sm:$0xff]
    %v7792 = vld [vmem:[%s7693 + $0x310] sm:$0xff]
    %v7793 = vld [vmem:[%s7693 + $0x318] sm:$0xff]
    %v7794 = vld [vmem:[%s7693 + $0x320] sm:$0xff]
    %v7795 = vld [vmem:[%s7693 + $0x328] sm:$0xff]
    %v7796 = vld [vmem:[%s7693 + $0x330] sm:$0xff]
    %v7797 = vld [vmem:[%s7693 + $0x338] sm:$0xff]
    %v7798 = vld [vmem:[%s7693 + $0x340] sm:$0xff]
    %v7799 = vld [vmem:[%s7693 + $0x348] sm:$0xff]
    %v7800 = vld [vmem:[%s7693 + $0x350] sm:$0xff]
    %v7801 = vld [vmem:[%s7693 + $0x358] sm:$0xff]
    %v7802 = vld [vmem:[%s7693 + $0x360] sm:$0xff]
    %v7803 = vld [vmem:[%s7693 + $0x368] sm:$0xff]
    %v7804 = vld [vmem:[%s7693 + $0x370] sm:$0xff]
    %v7805 = vld [vmem:[%s7693 + $0x378] sm:$0xff]
    %v7806 = vld [vmem:[%s7693 + $0x380] sm:$0xff]
    %v7807 = vld [vmem:[%s7693 + $0x388] sm:$0xff]
    %v7808 = vld [vmem:[%s7693 + $0x390] sm:$0xff]
    %v7809 = vld [vmem:[%s7693 + $0x398] sm:$0xff]
    %v7810 = vld [vmem:[%s7693 + $0x3a0] sm:$0xff]
    %v7811 = vld [vmem:[%s7693 + $0x3a8] sm:$0xff]
    %v7812 = vld [vmem:[%s7693 + $0x3b0] sm:$0xff]
    %v7813 = vld [vmem:[%s7693 + $0x3b8] sm:$0xff]
    %v7814 = vld [vmem:[%s7693 + $0x3c0] sm:$0xff]
    %v7815 = vld [vmem:[%s7693 + $0x3c8] sm:$0xff]
    %v7816 = vld [vmem:[%s7693 + $0x3d0] sm:$0xff]
    %v7817 = vld [vmem:[%s7693 + $0x3d8] sm:$0xff]
    %v7818 = vld [vmem:[%s7693 + $0x3e0] sm:$0xff]
    %v7819 = vld [vmem:[%s7693 + $0x3e8] sm:$0xff]
    %v7820 = vld [vmem:[%s7693 + $0x3f0] sm:$0xff]
    %v7821 = vld [vmem:[%s7693 + $0x3f8] sm:$0xff]
    %v7822 = vld [vmem:[%s7693 + $0x400] sm:$0xff]
    %v7823 = vld [vmem:[%s7693 + $0x408] sm:$0xff]
    %v7824 = vld [vmem:[%s7693 + $0x410] sm:$0xff]
    %v7825 = vld [vmem:[%s7693 + $0x418] sm:$0xff]
    %v7826 = vld [vmem:[%s7693 + $0x420] sm:$0xff]
    %v7827 = vld [vmem:[%s7693 + $0x428] sm:$0xff]
    %v7828 = vld [vmem:[%s7693 + $0x430] sm:$0xff]
    %v7829 = vld [vmem:[%s7693 + $0x438] sm:$0xff]
    %v7830 = vld [vmem:[%s7693 + $0x440] sm:$0xff]
    %v7831 = vld [vmem:[%s7693 + $0x448] sm:$0xff]
    %v7832 = vld [vmem:[%s7693 + $0x450] sm:$0xff]
    %v7833 = vld [vmem:[%s7693 + $0x458] sm:$0xff]
    %v7834 = vld [vmem:[%s7693 + $0x460] sm:$0xff]
    %v7835 = vld [vmem:[%s7693 + $0x468] sm:$0xff]
    %v7836 = vld [vmem:[%s7693 + $0x470] sm:$0xff]
    %v7837 = vld [vmem:[%s7693 + $0x478] sm:$0xff]
    %v7838 = vld [vmem:[%s7693 + $0x480] sm:$0xff]
    %v7839 = vld [vmem:[%s7693 + $0x488] sm:$0xff]
    %v7840 = vld [vmem:[%s7693 + $0x490] sm:$0xff]
    %v7841 = vld [vmem:[%s7693 + $0x498] sm:$0xff]
    %v7842 = vld [vmem:[%s7693 + $0x4a0] sm:$0xff]
    %v7843 = vld [vmem:[%s7693 + $0x4a8] sm:$0xff]
    %v7844 = vld [vmem:[%s7693 + $0x4b0] sm:$0xff]
    %v7845 = vld [vmem:[%s7693 + $0x4b8] sm:$0xff]
    %v7846 = vld [vmem:[%s7693 + $0x4c0] sm:$0xff]
    %v7847 = vld [vmem:[%s7693 + $0x4c8] sm:$0xff]
    %v7848 = vld [vmem:[%s7693 + $0x4d0] sm:$0xff]
    %v7849 = vld [vmem:[%s7693 + $0x4d8] sm:$0xff]
    %v7850 = vld [vmem:[%s7693 + $0x4e0] sm:$0xff]
    %v7851 = vld [vmem:[%s7693 + $0x4e8] sm:$0xff]
    %v7852 = vld [vmem:[%s7693 + $0x4f0] sm:$0xff]
    %v7853 = vld [vmem:[%s7693 + $0x4f8] sm:$0xff]
    %v7854 = vld [vmem:[%s7693 + $0x500] sm:$0xff]
    %v7855 = vld [vmem:[%s7693 + $0x508] sm:$0xff]
    %v7856 = vld [vmem:[%s7693 + $0x510] sm:$0xff]
    %v7857 = vld [vmem:[%s7693 + $0x518] sm:$0xff]
    %v7858 = vld [vmem:[%s7693 + $0x520] sm:$0xff]
    %v7859 = vld [vmem:[%s7693 + $0x528] sm:$0xff]
    %v7860 = vld [vmem:[%s7693 + $0x530] sm:$0xff]
    %v7861 = vld [vmem:[%s7693 + $0x538] sm:$0xff]
    %v7862 = vld [vmem:[%s7693 + $0x540] sm:$0xff]
    %v7863 = vld [vmem:[%s7693 + $0x548] sm:$0xff]
    %v7864 = vld [vmem:[%s7693 + $0x550] sm:$0xff]
    %v7865 = vld [vmem:[%s7693 + $0x558] sm:$0xff]
    %v7866 = vld [vmem:[%s7693 + $0x560] sm:$0xff]
    %v7867 = vld [vmem:[%s7693 + $0x568] sm:$0xff]
    %v7868 = vld [vmem:[%s7693 + $0x570] sm:$0xff]
    %v7869 = vld [vmem:[%s7693 + $0x578] sm:$0xff]
    %v7870 = vld [vmem:[%s7693 + $0x580] sm:$0xff]
    %v7871 = vld [vmem:[%s7693 + $0x588] sm:$0xff]
    %v7872 = vld [vmem:[%s7693 + $0x590] sm:$0xff]
    %v7873 = vld [vmem:[%s7693 + $0x598] sm:$0xff]
    %v7874 = vld [vmem:[%s7693 + $0x5a0] sm:$0xff]
    %v7875 = vld [vmem:[%s7693 + $0x5a8] sm:$0xff]
    %v7876 = vld [vmem:[%s7693 + $0x5b0] sm:$0xff]
    %v7877 = vld [vmem:[%s7693 + $0x5b8] sm:$0xff]
    %v7878 = vld [vmem:[%s7693 + $0x5c0] sm:$0xff]
    %v7879 = vld [vmem:[%s7693 + $0x5c8] sm:$0xff]
    %v7880 = vld [vmem:[%s7693 + $0x5d0] sm:$0xff]
    %v7881 = vld [vmem:[%s7693 + $0x5d8] sm:$0xff]
    %v7882 = vld [vmem:[%s7693 + $0x5e0] sm:$0xff]
    %v7883 = vld [vmem:[%s7693 + $0x5e8] sm:$0xff]
    %v7884 = vld [vmem:[%s7693 + $0x5f0] sm:$0xff]
    %v7885 = vld [vmem:[%s7693 + $0x5f8] sm:$0xff]
    %v7886 = vld [vmem:[%s7693 + $0x600] sm:$0xff]
    %v7887 = vld [vmem:[%s7693 + $0x608] sm:$0xff]
    %v7888 = vld [vmem:[%s7693 + $0x610] sm:$0xff]
    %v7889 = vld [vmem:[%s7693 + $0x618] sm:$0xff]
    %v7890 = vld [vmem:[%s7693 + $0x620] sm:$0xff]
    %v7891 = vld [vmem:[%s7693 + $0x628] sm:$0xff]
    %v7892 = vld [vmem:[%s7693 + $0x630] sm:$0xff]
    %v7893 = vld [vmem:[%s7693 + $0x638] sm:$0xff]
    %v7894 = vld [vmem:[%s7693 + $0x640] sm:$0xff]
    %v7895 = vld [vmem:[%s7693 + $0x648] sm:$0xff]
    %v7896 = vld [vmem:[%s7693 + $0x650] sm:$0xff]
    %v7897 = vld [vmem:[%s7693 + $0x658] sm:$0xff]
    %v7898 = vld [vmem:[%s7693 + $0x660] sm:$0xff]
    %v7899 = vld [vmem:[%s7693 + $0x668] sm:$0xff]
    %v7900 = vld [vmem:[%s7693 + $0x670] sm:$0xff]
    %v7901 = vld [vmem:[%s7693 + $0x678] sm:$0xff]
    %v7902 = vld [vmem:[%s7693 + $0x680] sm:$0xff]
    %v7903 = vld [vmem:[%s7693 + $0x688] sm:$0xff]
    %v7904 = vld [vmem:[%s7693 + $0x690] sm:$0xff]
    %v7905 = vld [vmem:[%s7693 + $0x698] sm:$0xff]
    %v7906 = vld [vmem:[%s7693 + $0x6a0] sm:$0xff]
    %v7907 = vld [vmem:[%s7693 + $0x6a8] sm:$0xff]
    %v7908 = vld [vmem:[%s7693 + $0x6b0] sm:$0xff]
    %v7909 = vld [vmem:[%s7693 + $0x6b8] sm:$0xff]
    %v7910 = vld [vmem:[%s7693 + $0x6c0] sm:$0xff]
    %v7911 = vld [vmem:[%s7693 + $0x6c8] sm:$0xff]
    %v7912 = vld [vmem:[%s7693 + $0x6d0] sm:$0xff]
    %v7913 = vld [vmem:[%s7693 + $0x6d8] sm:$0xff]
    %v7914 = vld [vmem:[%s7693 + $0x6e0] sm:$0xff]
    %v7915 = vld [vmem:[%s7693 + $0x6e8] sm:$0xff]
    %v7916 = vld [vmem:[%s7693 + $0x6f0] sm:$0xff]
    %v7917 = vld [vmem:[%s7693 + $0x6f8] sm:$0xff]
    %v7918 = vld [vmem:[%s7693 + $0x700] sm:$0xff]
    %v7919 = vld [vmem:[%s7693 + $0x708] sm:$0xff]
    %v7920 = vld [vmem:[%s7693 + $0x710] sm:$0xff]
    %v7921 = vld [vmem:[%s7693 + $0x718] sm:$0xff]
    %v7922 = vld [vmem:[%s7693 + $0x720] sm:$0xff]
    %v7923 = vld [vmem:[%s7693 + $0x728] sm:$0xff]
    %v7924 = vld [vmem:[%s7693 + $0x730] sm:$0xff]
    %v7925 = vld [vmem:[%s7693 + $0x738] sm:$0xff]
    %v7926 = vld [vmem:[%s7693 + $0x740] sm:$0xff]
    %v7927 = vld [vmem:[%s7693 + $0x748] sm:$0xff]
    %v7928 = vld [vmem:[%s7693 + $0x750] sm:$0xff]
    %v7929 = vld [vmem:[%s7693 + $0x758] sm:$0xff]
    %v7930 = vld [vmem:[%s7693 + $0x760] sm:$0xff]
    %v7931 = vld [vmem:[%s7693 + $0x768] sm:$0xff]
    %v7932 = vld [vmem:[%s7693 + $0x770] sm:$0xff]
    %v7933 = vld [vmem:[%s7693 + $0x778] sm:$0xff]
    %v7934 = vld [vmem:[%s7693 + $0x780] sm:$0xff]
    %v7935 = vld [vmem:[%s7693 + $0x788] sm:$0xff]
    %v7936 = vld [vmem:[%s7693 + $0x790] sm:$0xff]
    %v7937 = vld [vmem:[%s7693 + $0x798] sm:$0xff]
    %v7938 = vld [vmem:[%s7693 + $0x7a0] sm:$0xff]
    %v7939 = vld [vmem:[%s7693 + $0x7a8] sm:$0xff]
    %v7940 = vld [vmem:[%s7693 + $0x7b0] sm:$0xff]
    %v7941 = vld [vmem:[%s7693 + $0x7b8] sm:$0xff]
    %v7942 = vld [vmem:[%s7693 + $0x7c0] sm:$0xff]
    %v7943 = vld [vmem:[%s7693 + $0x7c8] sm:$0xff]
    %v7944 = vld [vmem:[%s7693 + $0x7d0] sm:$0xff]
    %v7945 = vld [vmem:[%s7693 + $0x7d8] sm:$0xff]
    %v7946 = vld [vmem:[%s7693 + $0x7e0] sm:$0xff]
    %v7947 = vld [vmem:[%s7693 + $0x7e8] sm:$0xff]
    %v7948 = vld [vmem:[%s7693 + $0x7f0] sm:$0xff]
    %v7949 = vld [vmem:[%s7693 + $0x7f8] sm:$0xff]
    %v7950 = vld [vmem:[%s7693 + $0x800] sm:$0xff]
    %v7951 = vld [vmem:[%s7693 + $0x808] sm:$0xff]
    %v7952 = vld [vmem:[%s7693 + $0x810] sm:$0xff]
    %v7953 = vld [vmem:[%s7693 + $0x818] sm:$0xff]
    %v7954 = vld [vmem:[%s7693 + $0x820] sm:$0xff]
    %v7955 = vld [vmem:[%s7693 + $0x828] sm:$0xff]
    %v7956 = vld [vmem:[%s7693 + $0x830] sm:$0xff]
    %v7957 = vld [vmem:[%s7693 + $0x838] sm:$0xff]
    %v7958 = vld [vmem:[%s7693 + $0x840] sm:$0xff]
    %v7959 = vld [vmem:[%s7693 + $0x848] sm:$0xff]
    %v7960 = vld [vmem:[%s7693 + $0x850] sm:$0xff]
    %v7961 = vld [vmem:[%s7693 + $0x858] sm:$0xff]
    %v7962 = vld [vmem:[%s7693 + $0x860] sm:$0xff]
    %v7963 = vld [vmem:[%s7693 + $0x868] sm:$0xff]
    %v7964 = vld [vmem:[%s7693 + $0x870] sm:$0xff]
    %v7965 = vld [vmem:[%s7693 + $0x878] sm:$0xff]
    %v7966 = vld [vmem:[%s7693 + $0x880] sm:$0xff]
    %v7967 = vld [vmem:[%s7693 + $0x888] sm:$0xff]
    %v7968 = vld [vmem:[%s7693 + $0x890] sm:$0xff]
    %v7969 = vld [vmem:[%s7693 + $0x898] sm:$0xff]
    %v7970 = vld [vmem:[%s7693 + $0x8a0] sm:$0xff]
    %v7971 = vld [vmem:[%s7693 + $0x8a8] sm:$0xff]
    %v7972 = vld [vmem:[%s7693 + $0x8b0] sm:$0xff]
    %v7973 = vld [vmem:[%s7693 + $0x8b8] sm:$0xff]
    %v7974 = vld [vmem:[%s7693 + $0x8c0] sm:$0xff]
    %v7975 = vld [vmem:[%s7693 + $0x8c8] sm:$0xff]
    %v7976 = vld [vmem:[%s7693 + $0x8d0] sm:$0xff]
    %v7977 = vld [vmem:[%s7693 + $0x8d8] sm:$0xff]
    %v7978 = vld [vmem:[%s7693 + $0x8e0] sm:$0xff]
    %v7979 = vld [vmem:[%s7693 + $0x8e8] sm:$0xff]
    %v7980 = vld [vmem:[%s7693 + $0x8f0] sm:$0xff]
    %v7981 = vld [vmem:[%s7693 + $0x8f8] sm:$0xff]
    %v8270 = vunpack.c.l.b16 %v7694
    %v8271 = vunpack.c.h.b16 %v7694
    %v8272 = vunpack.c.l.b16 %v7695
    %v8273 = vunpack.c.h.b16 %v7695
    %v8274 = vunpack.c.l.b16 %v7696
    %v8275 = vunpack.c.h.b16 %v7696
    %v8276 = vunpack.c.l.b16 %v7697
    %v8277 = vunpack.c.h.b16 %v7697
    %v8278 = vunpack.c.l.b16 %v7698
    %v8279 = vunpack.c.h.b16 %v7698
    %v8280 = vunpack.c.l.b16 %v7699
    %v8281 = vunpack.c.h.b16 %v7699
    %v8282 = vunpack.c.l.b16 %v7700
    %v8283 = vunpack.c.h.b16 %v7700
    %v8284 = vunpack.c.l.b16 %v7701
    %v8285 = vunpack.c.h.b16 %v7701
    %v8286 = vunpack.c.l.b16 %v7702
    %v8287 = vunpack.c.h.b16 %v7702
    %v8288 = vunpack.c.l.b16 %v7703
    %v8289 = vunpack.c.h.b16 %v7703
    %v8290 = vunpack.c.l.b16 %v7704
    %v8291 = vunpack.c.h.b16 %v7704
    %v8292 = vunpack.c.l.b16 %v7705
    %v8293 = vunpack.c.h.b16 %v7705
    %v8294 = vunpack.c.l.b16 %v7706
    %v8295 = vunpack.c.h.b16 %v7706
    %v8296 = vunpack.c.l.b16 %v7707
    %v8297 = vunpack.c.h.b16 %v7707
    %v8298 = vunpack.c.l.b16 %v7708
    %v8299 = vunpack.c.h.b16 %v7708
    %v8300 = vunpack.c.l.b16 %v7709
    %v8301 = vunpack.c.h.b16 %v7709
    %v8302 = vunpack.c.l.b16 %v7710
    %v8303 = vunpack.c.h.b16 %v7710
    %v8304 = vunpack.c.l.b16 %v7711
    %v8305 = vunpack.c.h.b16 %v7711
    %v8306 = vunpack.c.l.b16 %v7712
    %v8307 = vunpack.c.h.b16 %v7712
    %v8308 = vunpack.c.l.b16 %v7713
    %v8309 = vunpack.c.h.b16 %v7713
    %v8310 = vunpack.c.l.b16 %v7714
    %v8311 = vunpack.c.h.b16 %v7714
    %v8312 = vunpack.c.l.b16 %v7715
    %v8313 = vunpack.c.h.b16 %v7715
    %v8314 = vunpack.c.l.b16 %v7716
    %v8315 = vunpack.c.h.b16 %v7716
    %v8316 = vunpack.c.l.b16 %v7717
    %v8317 = vunpack.c.h.b16 %v7717
    %v8318 = vunpack.c.l.b16 %v7718
    %v8319 = vunpack.c.h.b16 %v7718
    %v8320 = vunpack.c.l.b16 %v7719
    %v8321 = vunpack.c.h.b16 %v7719
    %v8322 = vunpack.c.l.b16 %v7720
    %v8323 = vunpack.c.h.b16 %v7720
    %v8324 = vunpack.c.l.b16 %v7721
    %v8325 = vunpack.c.h.b16 %v7721
    %v8326 = vunpack.c.l.b16 %v7722
    %v8327 = vunpack.c.h.b16 %v7722
    %v8328 = vunpack.c.l.b16 %v7723
    %v8329 = vunpack.c.h.b16 %v7723
    %v8330 = vunpack.c.l.b16 %v7724
    %v8331 = vunpack.c.h.b16 %v7724
    %v8332 = vunpack.c.l.b16 %v7725
    %v8333 = vunpack.c.h.b16 %v7725
    %v8334 = vunpack.c.l.b16 %v7726
    %v8335 = vunpack.c.h.b16 %v7726
    %v8336 = vunpack.c.l.b16 %v7727
    %v8337 = vunpack.c.h.b16 %v7727
    %v8338 = vunpack.c.l.b16 %v7728
    %v8339 = vunpack.c.h.b16 %v7728
    %v8340 = vunpack.c.l.b16 %v7729
    %v8341 = vunpack.c.h.b16 %v7729
    %v8342 = vunpack.c.l.b16 %v7730
    %v8343 = vunpack.c.h.b16 %v7730
    %v8344 = vunpack.c.l.b16 %v7731
    %v8345 = vunpack.c.h.b16 %v7731
    %v8346 = vunpack.c.l.b16 %v7732
    %v8347 = vunpack.c.h.b16 %v7732
    %v8348 = vunpack.c.l.b16 %v7733
    %v8349 = vunpack.c.h.b16 %v7733
    %v8350 = vunpack.c.l.b16 %v7734
    %v8351 = vunpack.c.h.b16 %v7734
    %v8352 = vunpack.c.l.b16 %v7735
    %v8353 = vunpack.c.h.b16 %v7735
    %v8354 = vunpack.c.l.b16 %v7736
    %v8355 = vunpack.c.h.b16 %v7736
    %v8356 = vunpack.c.l.b16 %v7737
    %v8357 = vunpack.c.h.b16 %v7737
    %v8358 = vunpack.c.l.b16 %v7738
    %v8359 = vunpack.c.h.b16 %v7738
    %v8360 = vunpack.c.l.b16 %v7739
    %v8361 = vunpack.c.h.b16 %v7739
    %v8362 = vunpack.c.l.b16 %v7740
    %v8363 = vunpack.c.h.b16 %v7740
    %v8364 = vunpack.c.l.b16 %v7741
    %v8365 = vunpack.c.h.b16 %v7741
    %v8366 = vunpack.c.l.b16 %v7742
    %v8367 = vunpack.c.h.b16 %v7742
    %v8368 = vunpack.c.l.b16 %v7743
    %v8369 = vunpack.c.h.b16 %v7743
    %v8370 = vunpack.c.l.b16 %v7744
    %v8371 = vunpack.c.h.b16 %v7744
    %v8372 = vunpack.c.l.b16 %v7745
    %v8373 = vunpack.c.h.b16 %v7745
    %v8374 = vunpack.c.l.b16 %v7746
    %v8375 = vunpack.c.h.b16 %v7746
    %v8376 = vunpack.c.l.b16 %v7747
    %v8377 = vunpack.c.h.b16 %v7747
    %v8378 = vunpack.c.l.b16 %v7748
    %v8379 = vunpack.c.h.b16 %v7748
    %v8380 = vunpack.c.l.b16 %v7749
    %v8381 = vunpack.c.h.b16 %v7749
    %v8382 = vunpack.c.l.b16 %v7750
    %v8383 = vunpack.c.h.b16 %v7750
    %v8384 = vunpack.c.l.b16 %v7751
    %v8385 = vunpack.c.h.b16 %v7751
    %v8386 = vunpack.c.l.b16 %v7752
    %v8387 = vunpack.c.h.b16 %v7752
    %v8388 = vunpack.c.l.b16 %v7753
    %v8389 = vunpack.c.h.b16 %v7753
    %v8390 = vunpack.c.l.b16 %v7754
    %v8391 = vunpack.c.h.b16 %v7754
    %v8392 = vunpack.c.l.b16 %v7755
    %v8393 = vunpack.c.h.b16 %v7755
    %v8394 = vunpack.c.l.b16 %v7756
    %v8395 = vunpack.c.h.b16 %v7756
    %v8396 = vunpack.c.l.b16 %v7757
    %v8397 = vunpack.c.h.b16 %v7757
    %v8398 = vunpack.c.l.b16 %v7758
    %v8399 = vunpack.c.h.b16 %v7758
    %v8400 = vunpack.c.l.b16 %v7759
    %v8401 = vunpack.c.h.b16 %v7759
    %v8402 = vunpack.c.l.b16 %v7760
    %v8403 = vunpack.c.h.b16 %v7760
    %v8404 = vunpack.c.l.b16 %v7761
    %v8405 = vunpack.c.h.b16 %v7761
    %v8406 = vunpack.c.l.b16 %v7762
    %v8407 = vunpack.c.h.b16 %v7762
    %v8408 = vunpack.c.l.b16 %v7763
    %v8409 = vunpack.c.h.b16 %v7763
    %v8410 = vunpack.c.l.b16 %v7764
    %v8411 = vunpack.c.h.b16 %v7764
    %v8412 = vunpack.c.l.b16 %v7765
    %v8413 = vunpack.c.h.b16 %v7765
    %v8414 = vunpack.c.l.b16 %v7766
    %v8415 = vunpack.c.h.b16 %v7766
    %v8416 = vunpack.c.l.b16 %v7767
    %v8417 = vunpack.c.h.b16 %v7767
    %v8418 = vunpack.c.l.b16 %v7768
    %v8419 = vunpack.c.h.b16 %v7768
    %v8420 = vunpack.c.l.b16 %v7769
    %v8421 = vunpack.c.h.b16 %v7769
    %v8422 = vunpack.c.l.b16 %v7770
    %v8423 = vunpack.c.h.b16 %v7770
    %v8424 = vunpack.c.l.b16 %v7771
    %v8425 = vunpack.c.h.b16 %v7771
    %v8426 = vunpack.c.l.b16 %v7772
    %v8427 = vunpack.c.h.b16 %v7772
    %v8428 = vunpack.c.l.b16 %v7773
    %v8429 = vunpack.c.h.b16 %v7773
    %v8430 = vunpack.c.l.b16 %v7774
    %v8431 = vunpack.c.h.b16 %v7774
    %v8432 = vunpack.c.l.b16 %v7775
    %v8433 = vunpack.c.h.b16 %v7775
    %v8434 = vunpack.c.l.b16 %v7776
    %v8435 = vunpack.c.h.b16 %v7776
    %v8436 = vunpack.c.l.b16 %v7777
    %v8437 = vunpack.c.h.b16 %v7777
    %v8438 = vunpack.c.l.b16 %v7778
    %v8439 = vunpack.c.h.b16 %v7778
    %v8440 = vunpack.c.l.b16 %v7779
    %v8441 = vunpack.c.h.b16 %v7779
    %v8442 = vunpack.c.l.b16 %v7780
    %v8443 = vunpack.c.h.b16 %v7780
    %v8444 = vunpack.c.l.b16 %v7781
    %v8445 = vunpack.c.h.b16 %v7781
    %v8446 = vunpack.c.l.b16 %v7782
    %v8447 = vunpack.c.h.b16 %v7782
    %v8448 = vunpack.c.l.b16 %v7783
    %v8449 = vunpack.c.h.b16 %v7783
    %v8450 = vunpack.c.l.b16 %v7784
    %v8451 = vunpack.c.h.b16 %v7784
    %v8452 = vunpack.c.l.b16 %v7785
    %v8453 = vunpack.c.h.b16 %v7785
    %v8454 = vunpack.c.l.b16 %v7786
    %v8455 = vunpack.c.h.b16 %v7786
    %v8456 = vunpack.c.l.b16 %v7787
    %v8457 = vunpack.c.h.b16 %v7787
    %v8458 = vunpack.c.l.b16 %v7788
    %v8459 = vunpack.c.h.b16 %v7788
    %v8460 = vunpack.c.l.b16 %v7789
    %v8461 = vunpack.c.h.b16 %v7789
    %v8462 = vunpack.c.l.b16 %v7790
    %v8463 = vunpack.c.h.b16 %v7790
    %v8464 = vunpack.c.l.b16 %v7791
    %v8465 = vunpack.c.h.b16 %v7791
    %v8466 = vunpack.c.l.b16 %v7792
    %v8467 = vunpack.c.h.b16 %v7792
    %v8468 = vunpack.c.l.b16 %v7793
    %v8469 = vunpack.c.h.b16 %v7793
    %v8470 = vunpack.c.l.b16 %v7794
    %v8471 = vunpack.c.h.b16 %v7794
    %v8472 = vunpack.c.l.b16 %v7795
    %v8473 = vunpack.c.h.b16 %v7795
    %v8474 = vunpack.c.l.b16 %v7796
    %v8475 = vunpack.c.h.b16 %v7796
    %v8476 = vunpack.c.l.b16 %v7797
    %v8477 = vunpack.c.h.b16 %v7797
    %v8478 = vunpack.c.l.b16 %v7798
    %v8479 = vunpack.c.h.b16 %v7798
    %v8480 = vunpack.c.l.b16 %v7799
    %v8481 = vunpack.c.h.b16 %v7799
    %v8482 = vunpack.c.l.b16 %v7800
    %v8483 = vunpack.c.h.b16 %v7800
    %v8484 = vunpack.c.l.b16 %v7801
    %v8485 = vunpack.c.h.b16 %v7801
    %v8486 = vunpack.c.l.b16 %v7802
    %v8487 = vunpack.c.h.b16 %v7802
    %v8488 = vunpack.c.l.b16 %v7803
    %v8489 = vunpack.c.h.b16 %v7803
    %v8490 = vunpack.c.l.b16 %v7804
    %v8491 = vunpack.c.h.b16 %v7804
    %v8492 = vunpack.c.l.b16 %v7805
    %v8493 = vunpack.c.h.b16 %v7805
    %v8494 = vunpack.c.l.b16 %v7806
    %v8495 = vunpack.c.h.b16 %v7806
    %v8496 = vunpack.c.l.b16 %v7807
    %v8497 = vunpack.c.h.b16 %v7807
    %v8498 = vunpack.c.l.b16 %v7808
    %v8499 = vunpack.c.h.b16 %v7808
    %v8500 = vunpack.c.l.b16 %v7809
    %v8501 = vunpack.c.h.b16 %v7809
    %v8502 = vunpack.c.l.b16 %v7810
    %v8503 = vunpack.c.h.b16 %v7810
    %v8504 = vunpack.c.l.b16 %v7811
    %v8505 = vunpack.c.h.b16 %v7811
    %v8506 = vunpack.c.l.b16 %v7812
    %v8507 = vunpack.c.h.b16 %v7812
    %v8508 = vunpack.c.l.b16 %v7813
    %v8509 = vunpack.c.h.b16 %v7813
    %v8510 = vunpack.c.l.b16 %v7814
    %v8511 = vunpack.c.h.b16 %v7814
    %v8512 = vunpack.c.l.b16 %v7815
    %v8513 = vunpack.c.h.b16 %v7815
    %v8514 = vunpack.c.l.b16 %v7816
    %v8515 = vunpack.c.h.b16 %v7816
    %v8516 = vunpack.c.l.b16 %v7817
    %v8517 = vunpack.c.h.b16 %v7817
    %v8518 = vunpack.c.l.b16 %v7818
    %v8519 = vunpack.c.h.b16 %v7818
    %v8520 = vunpack.c.l.b16 %v7819
    %v8521 = vunpack.c.h.b16 %v7819
    %v8522 = vunpack.c.l.b16 %v7820
    %v8523 = vunpack.c.h.b16 %v7820
    %v8524 = vunpack.c.l.b16 %v7821
    %v8525 = vunpack.c.h.b16 %v7821
    %v8526 = vunpack.c.l.b16 %v7822
    %v8527 = vunpack.c.h.b16 %v7822
    %v8528 = vunpack.c.l.b16 %v7823
    %v8529 = vunpack.c.h.b16 %v7823
    %v8530 = vunpack.c.l.b16 %v7824
    %v8531 = vunpack.c.h.b16 %v7824
    %v8532 = vunpack.c.l.b16 %v7825
    %v8533 = vunpack.c.h.b16 %v7825
    %v8534 = vunpack.c.l.b16 %v7826
    %v8535 = vunpack.c.h.b16 %v7826
    %v8536 = vunpack.c.l.b16 %v7827
    %v8537 = vunpack.c.h.b16 %v7827
    %v8538 = vunpack.c.l.b16 %v7828
    %v8539 = vunpack.c.h.b16 %v7828
    %v8540 = vunpack.c.l.b16 %v7829
    %v8541 = vunpack.c.h.b16 %v7829
    %v8542 = vunpack.c.l.b16 %v7830
    %v8543 = vunpack.c.h.b16 %v7830
    %v8544 = vunpack.c.l.b16 %v7831
    %v8545 = vunpack.c.h.b16 %v7831
    %v8546 = vunpack.c.l.b16 %v7832
    %v8547 = vunpack.c.h.b16 %v7832
    %v8548 = vunpack.c.l.b16 %v7833
    %v8549 = vunpack.c.h.b16 %v7833
    %v8550 = vunpack.c.l.b16 %v7834
    %v8551 = vunpack.c.h.b16 %v7834
    %v8552 = vunpack.c.l.b16 %v7835
    %v8553 = vunpack.c.h.b16 %v7835
    %v8554 = vunpack.c.l.b16 %v7836
    %v8555 = vunpack.c.h.b16 %v7836
    %v8556 = vunpack.c.l.b16 %v7837
    %v8557 = vunpack.c.h.b16 %v7837
    %v8558 = vunpack.c.l.b16 %v7838
    %v8559 = vunpack.c.h.b16 %v7838
    %v8560 = vunpack.c.l.b16 %v7839
    %v8561 = vunpack.c.h.b16 %v7839
    %v8562 = vunpack.c.l.b16 %v7840
    %v8563 = vunpack.c.h.b16 %v7840
    %v8564 = vunpack.c.l.b16 %v7841
    %v8565 = vunpack.c.h.b16 %v7841
    %v8566 = vunpack.c.l.b16 %v7842
    %v8567 = vunpack.c.h.b16 %v7842
    %v8568 = vunpack.c.l.b16 %v7843
    %v8569 = vunpack.c.h.b16 %v7843
    %v8570 = vunpack.c.l.b16 %v7844
    %v8571 = vunpack.c.h.b16 %v7844
    %v8572 = vunpack.c.l.b16 %v7845
    %v8573 = vunpack.c.h.b16 %v7845
    %v8574 = vunpack.c.l.b16 %v7846
    %v8575 = vunpack.c.h.b16 %v7846
    %v8576 = vunpack.c.l.b16 %v7847
    %v8577 = vunpack.c.h.b16 %v7847
    %v8578 = vunpack.c.l.b16 %v7848
    %v8579 = vunpack.c.h.b16 %v7848
    %v8580 = vunpack.c.l.b16 %v7849
    %v8581 = vunpack.c.h.b16 %v7849
    %v8582 = vunpack.c.l.b16 %v7850
    %v8583 = vunpack.c.h.b16 %v7850
    %v8584 = vunpack.c.l.b16 %v7851
    %v8585 = vunpack.c.h.b16 %v7851
    %v8586 = vunpack.c.l.b16 %v7852
    %v8587 = vunpack.c.h.b16 %v7852
    %v8588 = vunpack.c.l.b16 %v7853
    %v8589 = vunpack.c.h.b16 %v7853
    %v8590 = vunpack.c.l.b16 %v7854
    %v8591 = vunpack.c.h.b16 %v7854
    %v8592 = vunpack.c.l.b16 %v7855
    %v8593 = vunpack.c.h.b16 %v7855
    %v8594 = vunpack.c.l.b16 %v7856
    %v8595 = vunpack.c.h.b16 %v7856
    %v8596 = vunpack.c.l.b16 %v7857
    %v8597 = vunpack.c.h.b16 %v7857
    %v8598 = vunpack.c.l.b16 %v7858
    %v8599 = vunpack.c.h.b16 %v7858
    %v8600 = vunpack.c.l.b16 %v7859
    %v8601 = vunpack.c.h.b16 %v7859
    %v8602 = vunpack.c.l.b16 %v7860
    %v8603 = vunpack.c.h.b16 %v7860
    %v8604 = vunpack.c.l.b16 %v7861
    %v8605 = vunpack.c.h.b16 %v7861
    %v8606 = vunpack.c.l.b16 %v7862
    %v8607 = vunpack.c.h.b16 %v7862
    %v8608 = vunpack.c.l.b16 %v7863
    %v8609 = vunpack.c.h.b16 %v7863
    %v8610 = vunpack.c.l.b16 %v7864
    %v8611 = vunpack.c.h.b16 %v7864
    %v8612 = vunpack.c.l.b16 %v7865
    %v8613 = vunpack.c.h.b16 %v7865
    %v8614 = vunpack.c.l.b16 %v7866
    %v8615 = vunpack.c.h.b16 %v7866
    %v8616 = vunpack.c.l.b16 %v7867
    %v8617 = vunpack.c.h.b16 %v7867
    %v8618 = vunpack.c.l.b16 %v7868
    %v8619 = vunpack.c.h.b16 %v7868
    %v8620 = vunpack.c.l.b16 %v7869
    %v8621 = vunpack.c.h.b16 %v7869
    %v8622 = vunpack.c.l.b16 %v7870
    %v8623 = vunpack.c.h.b16 %v7870
    %v8624 = vunpack.c.l.b16 %v7871
    %v8625 = vunpack.c.h.b16 %v7871
    %v8626 = vunpack.c.l.b16 %v7872
    %v8627 = vunpack.c.h.b16 %v7872
    %v8628 = vunpack.c.l.b16 %v7873
    %v8629 = vunpack.c.h.b16 %v7873
    %v8630 = vunpack.c.l.b16 %v7874
    %v8631 = vunpack.c.h.b16 %v7874
    %v8632 = vunpack.c.l.b16 %v7875
    %v8633 = vunpack.c.h.b16 %v7875
    %v8634 = vunpack.c.l.b16 %v7876
    %v8635 = vunpack.c.h.b16 %v7876
    %v8636 = vunpack.c.l.b16 %v7877
    %v8637 = vunpack.c.h.b16 %v7877
    %v8638 = vunpack.c.l.b16 %v7878
    %v8639 = vunpack.c.h.b16 %v7878
    %v8640 = vunpack.c.l.b16 %v7879
    %v8641 = vunpack.c.h.b16 %v7879
    %v8642 = vunpack.c.l.b16 %v7880
    %v8643 = vunpack.c.h.b16 %v7880
    %v8644 = vunpack.c.l.b16 %v7881
    %v8645 = vunpack.c.h.b16 %v7881
    %v8646 = vunpack.c.l.b16 %v7882
    %v8647 = vunpack.c.h.b16 %v7882
    %v8648 = vunpack.c.l.b16 %v7883
    %v8649 = vunpack.c.h.b16 %v7883
    %v8650 = vunpack.c.l.b16 %v7884
    %v8651 = vunpack.c.h.b16 %v7884
    %v8652 = vunpack.c.l.b16 %v7885
    %v8653 = vunpack.c.h.b16 %v7885
    %v8654 = vunpack.c.l.b16 %v7886
    %v8655 = vunpack.c.h.b16 %v7886
    %v8656 = vunpack.c.l.b16 %v7887
    %v8657 = vunpack.c.h.b16 %v7887
    %v8658 = vunpack.c.l.b16 %v7888
    %v8659 = vunpack.c.h.b16 %v7888
    %v8660 = vunpack.c.l.b16 %v7889
    %v8661 = vunpack.c.h.b16 %v7889
    %v8662 = vunpack.c.l.b16 %v7890
    %v8663 = vunpack.c.h.b16 %v7890
    %v8664 = vunpack.c.l.b16 %v7891
    %v8665 = vunpack.c.h.b16 %v7891
    %v8666 = vunpack.c.l.b16 %v7892
    %v8667 = vunpack.c.h.b16 %v7892
    %v8668 = vunpack.c.l.b16 %v7893
    %v8669 = vunpack.c.h.b16 %v7893
    %v8670 = vunpack.c.l.b16 %v7894
    %v8671 = vunpack.c.h.b16 %v7894
    %v8672 = vunpack.c.l.b16 %v7895
    %v8673 = vunpack.c.h.b16 %v7895
    %v8674 = vunpack.c.l.b16 %v7896
    %v8675 = vunpack.c.h.b16 %v7896
    %v8676 = vunpack.c.l.b16 %v7897
    %v8677 = vunpack.c.h.b16 %v7897
    %v8678 = vunpack.c.l.b16 %v7898
    %v8679 = vunpack.c.h.b16 %v7898
    %v8680 = vunpack.c.l.b16 %v7899
    %v8681 = vunpack.c.h.b16 %v7899
    %v8682 = vunpack.c.l.b16 %v7900
    %v8683 = vunpack.c.h.b16 %v7900
    %v8684 = vunpack.c.l.b16 %v7901
    %v8685 = vunpack.c.h.b16 %v7901
    %v8686 = vunpack.c.l.b16 %v7902
    %v8687 = vunpack.c.h.b16 %v7902
    %v8688 = vunpack.c.l.b16 %v7903
    %v8689 = vunpack.c.h.b16 %v7903
    %v8690 = vunpack.c.l.b16 %v7904
    %v8691 = vunpack.c.h.b16 %v7904
    %v8692 = vunpack.c.l.b16 %v7905
    %v8693 = vunpack.c.h.b16 %v7905
    %v8694 = vunpack.c.l.b16 %v7906
    %v8695 = vunpack.c.h.b16 %v7906
    %v8696 = vunpack.c.l.b16 %v7907
    %v8697 = vunpack.c.h.b16 %v7907
    %v8698 = vunpack.c.l.b16 %v7908
    %v8699 = vunpack.c.h.b16 %v7908
    %v8700 = vunpack.c.l.b16 %v7909
    %v8701 = vunpack.c.h.b16 %v7909
    %v8702 = vunpack.c.l.b16 %v7910
    %v8703 = vunpack.c.h.b16 %v7910
    %v8704 = vunpack.c.l.b16 %v7911
    %v8705 = vunpack.c.h.b16 %v7911
    %v8706 = vunpack.c.l.b16 %v7912
    %v8707 = vunpack.c.h.b16 %v7912
    %v8708 = vunpack.c.l.b16 %v7913
    %v8709 = vunpack.c.h.b16 %v7913
    %v8710 = vunpack.c.l.b16 %v7914
    %v8711 = vunpack.c.h.b16 %v7914
    %v8712 = vunpack.c.l.b16 %v7915
    %v8713 = vunpack.c.h.b16 %v7915
    %v8714 = vunpack.c.l.b16 %v7916
    %v8715 = vunpack.c.h.b16 %v7916
    %v8716 = vunpack.c.l.b16 %v7917
    %v8717 = vunpack.c.h.b16 %v7917
    %v8718 = vunpack.c.l.b16 %v7918
    %v8719 = vunpack.c.h.b16 %v7918
    %v8720 = vunpack.c.l.b16 %v7919
    %v8721 = vunpack.c.h.b16 %v7919
    %v8722 = vunpack.c.l.b16 %v7920
    %v8723 = vunpack.c.h.b16 %v7920
    %v8724 = vunpack.c.l.b16 %v7921
    %v8725 = vunpack.c.h.b16 %v7921
    %v8726 = vunpack.c.l.b16 %v7922
    %v8727 = vunpack.c.h.b16 %v7922
    %v8728 = vunpack.c.l.b16 %v7923
    %v8729 = vunpack.c.h.b16 %v7923
    %v8730 = vunpack.c.l.b16 %v7924
    %v8731 = vunpack.c.h.b16 %v7924
    %v8732 = vunpack.c.l.b16 %v7925
    %v8733 = vunpack.c.h.b16 %v7925
    %v8734 = vunpack.c.l.b16 %v7926
    %v8735 = vunpack.c.h.b16 %v7926
    %v8736 = vunpack.c.l.b16 %v7927
    %v8737 = vunpack.c.h.b16 %v7927
    %v8738 = vunpack.c.l.b16 %v7928
    %v8739 = vunpack.c.h.b16 %v7928
    %v8740 = vunpack.c.l.b16 %v7929
    %v8741 = vunpack.c.h.b16 %v7929
    %v8742 = vunpack.c.l.b16 %v7930
    %v8743 = vunpack.c.h.b16 %v7930
    %v8744 = vunpack.c.l.b16 %v7931
    %v8745 = vunpack.c.h.b16 %v7931
    %v8746 = vunpack.c.l.b16 %v7932
    %v8747 = vunpack.c.h.b16 %v7932
    %v8748 = vunpack.c.l.b16 %v7933
    %v8749 = vunpack.c.h.b16 %v7933
    %v8750 = vunpack.c.l.b16 %v7934
    %v8751 = vunpack.c.h.b16 %v7934
    %v8752 = vunpack.c.l.b16 %v7935
    %v8753 = vunpack.c.h.b16 %v7935
    %v8754 = vunpack.c.l.b16 %v7936
    %v8755 = vunpack.c.h.b16 %v7936
    %v8756 = vunpack.c.l.b16 %v7937
    %v8757 = vunpack.c.h.b16 %v7937
    %v8758 = vunpack.c.l.b16 %v7938
    %v8759 = vunpack.c.h.b16 %v7938
    %v8760 = vunpack.c.l.b16 %v7939
    %v8761 = vunpack.c.h.b16 %v7939
    %v8762 = vunpack.c.l.b16 %v7940
    %v8763 = vunpack.c.h.b16 %v7940
    %v8764 = vunpack.c.l.b16 %v7941
    %v8765 = vunpack.c.h.b16 %v7941
    %v8766 = vunpack.c.l.b16 %v7942
    %v8767 = vunpack.c.h.b16 %v7942
    %v8768 = vunpack.c.l.b16 %v7943
    %v8769 = vunpack.c.h.b16 %v7943
    %v8770 = vunpack.c.l.b16 %v7944
    %v8771 = vunpack.c.h.b16 %v7944
    %v8772 = vunpack.c.l.b16 %v7945
    %v8773 = vunpack.c.h.b16 %v7945
    %v8774 = vunpack.c.l.b16 %v7946
    %v8775 = vunpack.c.h.b16 %v7946
    %v8776 = vunpack.c.l.b16 %v7947
    %v8777 = vunpack.c.h.b16 %v7947
    %v8778 = vunpack.c.l.b16 %v7948
    %v8779 = vunpack.c.h.b16 %v7948
    %v8780 = vunpack.c.l.b16 %v7949
    %v8781 = vunpack.c.h.b16 %v7949
    %v8782 = vunpack.c.l.b16 %v7950
    %v8783 = vunpack.c.h.b16 %v7950
    %v8784 = vunpack.c.l.b16 %v7951
    %v8785 = vunpack.c.h.b16 %v7951
    %v8786 = vunpack.c.l.b16 %v7952
    %v8787 = vunpack.c.h.b16 %v7952
    %v8788 = vunpack.c.l.b16 %v7953
    %v8789 = vunpack.c.h.b16 %v7953
    %v8790 = vunpack.c.l.b16 %v7954
    %v8791 = vunpack.c.h.b16 %v7954
    %v8792 = vunpack.c.l.b16 %v7955
    %v8793 = vunpack.c.h.b16 %v7955
    %v8794 = vunpack.c.l.b16 %v7956
    %v8795 = vunpack.c.h.b16 %v7956
    %v8796 = vunpack.c.l.b16 %v7957
    %v8797 = vunpack.c.h.b16 %v7957
    %v8798 = vunpack.c.l.b16 %v7958
    %v8799 = vunpack.c.h.b16 %v7958
    %v8800 = vunpack.c.l.b16 %v7959
    %v8801 = vunpack.c.h.b16 %v7959
    %v8802 = vunpack.c.l.b16 %v7960
    %v8803 = vunpack.c.h.b16 %v7960
    %v8804 = vunpack.c.l.b16 %v7961
    %v8805 = vunpack.c.h.b16 %v7961
    %v8806 = vunpack.c.l.b16 %v7962
    %v8807 = vunpack.c.h.b16 %v7962
    %v8808 = vunpack.c.l.b16 %v7963
    %v8809 = vunpack.c.h.b16 %v7963
    %v8810 = vunpack.c.l.b16 %v7964
    %v8811 = vunpack.c.h.b16 %v7964
    %v8812 = vunpack.c.l.b16 %v7965
    %v8813 = vunpack.c.h.b16 %v7965
    %v8814 = vunpack.c.l.b16 %v7966
    %v8815 = vunpack.c.h.b16 %v7966
    %v8816 = vunpack.c.l.b16 %v7967
    %v8817 = vunpack.c.h.b16 %v7967
    %v8818 = vunpack.c.l.b16 %v7968
    %v8819 = vunpack.c.h.b16 %v7968
    %v8820 = vunpack.c.l.b16 %v7969
    %v8821 = vunpack.c.h.b16 %v7969
    %v8822 = vunpack.c.l.b16 %v7970
    %v8823 = vunpack.c.h.b16 %v7970
    %v8824 = vunpack.c.l.b16 %v7971
    %v8825 = vunpack.c.h.b16 %v7971
    %v8826 = vunpack.c.l.b16 %v7972
    %v8827 = vunpack.c.h.b16 %v7972
    %v8828 = vunpack.c.l.b16 %v7973
    %v8829 = vunpack.c.h.b16 %v7973
    %v8830 = vunpack.c.l.b16 %v7974
    %v8831 = vunpack.c.h.b16 %v7974
    %v8832 = vunpack.c.l.b16 %v7975
    %v8833 = vunpack.c.h.b16 %v7975
    %v8834 = vunpack.c.l.b16 %v7976
    %v8835 = vunpack.c.h.b16 %v7976
    %v8836 = vunpack.c.l.b16 %v7977
    %v8837 = vunpack.c.h.b16 %v7977
    %v8838 = vunpack.c.l.b16 %v7978
    %v8839 = vunpack.c.h.b16 %v7978
    %v8840 = vunpack.c.l.b16 %v7979
    %v8841 = vunpack.c.h.b16 %v7979
    %v8842 = vunpack.c.l.b16 %v7980
    %v8843 = vunpack.c.h.b16 %v7980
    %v8844 = vunpack.c.l.b16 %v7981
    %v8845 = vunpack.c.h.b16 %v7981
    %v8846 = vpack.c.b16 %v8276, %v8270
    %v8847 = vpack.c.b16 %v8277, %v8271
    %v8848 = vpack.c.b16 %v8278, %v8272
    %v8849 = vpack.c.b16 %v8279, %v8273
    %v8850 = vpack.c.b16 %v8280, %v8274
    %v8851 = vpack.c.b16 %v8281, %v8275
    %v8852 = vpack.c.b16 %v8288, %v8282
    %v8853 = vpack.c.b16 %v8289, %v8283
    %v8854 = vpack.c.b16 %v8290, %v8284
    %v8855 = vpack.c.b16 %v8291, %v8285
    %v8856 = vpack.c.b16 %v8292, %v8286
    %v8857 = vpack.c.b16 %v8293, %v8287
    %v8858 = vpack.c.b16 %v8300, %v8294
    %v8859 = vpack.c.b16 %v8301, %v8295
    %v8860 = vpack.c.b16 %v8302, %v8296
    %v8861 = vpack.c.b16 %v8303, %v8297
    %v8862 = vpack.c.b16 %v8304, %v8298
    %v8863 = vpack.c.b16 %v8305, %v8299
    %v8864 = vpack.c.b16 %v8312, %v8306
    %v8865 = vpack.c.b16 %v8313, %v8307
    %v8866 = vpack.c.b16 %v8314, %v8308
    %v8867 = vpack.c.b16 %v8315, %v8309
    %v8868 = vpack.c.b16 %v8316, %v8310
    %v8869 = vpack.c.b16 %v8317, %v8311
    %v8870 = vpack.c.b16 %v8324, %v8318
    %v8871 = vpack.c.b16 %v8325, %v8319
    %v8872 = vpack.c.b16 %v8326, %v8320
    %v8873 = vpack.c.b16 %v8327, %v8321
    %v8874 = vpack.c.b16 %v8328, %v8322
    %v8875 = vpack.c.b16 %v8329, %v8323
    %v8876 = vpack.c.b16 %v8336, %v8330
    %v8877 = vpack.c.b16 %v8337, %v8331
    %v8878 = vpack.c.b16 %v8338, %v8332
    %v8879 = vpack.c.b16 %v8339, %v8333
    %v8880 = vpack.c.b16 %v8340, %v8334
    %v8881 = vpack.c.b16 %v8341, %v8335
    %v8882 = vpack.c.b16 %v8348, %v8342
    %v8883 = vpack.c.b16 %v8349, %v8343
    %v8884 = vpack.c.b16 %v8350, %v8344
    %v8885 = vpack.c.b16 %v8351, %v8345
    %v8886 = vpack.c.b16 %v8352, %v8346
    %v8887 = vpack.c.b16 %v8353, %v8347
    %v8888 = vpack.c.b16 %v8360, %v8354
    %v8889 = vpack.c.b16 %v8361, %v8355
    %v8890 = vpack.c.b16 %v8362, %v8356
    %v8891 = vpack.c.b16 %v8363, %v8357
    %v8892 = vpack.c.b16 %v8364, %v8358
    %v8893 = vpack.c.b16 %v8365, %v8359
    %v8894 = vpack.c.b16 %v8372, %v8366
    %v8895 = vpack.c.b16 %v8373, %v8367
    %v8896 = vpack.c.b16 %v8374, %v8368
    %v8897 = vpack.c.b16 %v8375, %v8369
    %v8898 = vpack.c.b16 %v8376, %v8370
    %v8899 = vpack.c.b16 %v8377, %v8371
    %v8900 = vpack.c.b16 %v8384, %v8378
    %v8901 = vpack.c.b16 %v8385, %v8379
    %v8902 = vpack.c.b16 %v8386, %v8380
    %v8903 = vpack.c.b16 %v8387, %v8381
    %v8904 = vpack.c.b16 %v8388, %v8382
    %v8905 = vpack.c.b16 %v8389, %v8383
    %v8906 = vpack.c.b16 %v8396, %v8390
    %v8907 = vpack.c.b16 %v8397, %v8391
    %v8908 = vpack.c.b16 %v8398, %v8392
    %v8909 = vpack.c.b16 %v8399, %v8393
    %v8910 = vpack.c.b16 %v8400, %v8394
    %v8911 = vpack.c.b16 %v8401, %v8395
    %v8912 = vpack.c.b16 %v8408, %v8402
    %v8913 = vpack.c.b16 %v8409, %v8403
    %v8914 = vpack.c.b16 %v8410, %v8404
    %v8915 = vpack.c.b16 %v8411, %v8405
    %v8916 = vpack.c.b16 %v8412, %v8406
    %v8917 = vpack.c.b16 %v8413, %v8407
    %v8918 = vpack.c.b16 %v8420, %v8414
    %v8919 = vpack.c.b16 %v8421, %v8415
    %v8920 = vpack.c.b16 %v8422, %v8416
    %v8921 = vpack.c.b16 %v8423, %v8417
    %v8922 = vpack.c.b16 %v8424, %v8418
    %v8923 = vpack.c.b16 %v8425, %v8419
    %v8924 = vpack.c.b16 %v8432, %v8426
    %v8925 = vpack.c.b16 %v8433, %v8427
    %v8926 = vpack.c.b16 %v8434, %v8428
    %v8927 = vpack.c.b16 %v8435, %v8429
    %v8928 = vpack.c.b16 %v8436, %v8430
    %v8929 = vpack.c.b16 %v8437, %v8431
    %v8930 = vpack.c.b16 %v8444, %v8438
    %v8931 = vpack.c.b16 %v8445, %v8439
    %v8932 = vpack.c.b16 %v8446, %v8440
    %v8933 = vpack.c.b16 %v8447, %v8441
    %v8934 = vpack.c.b16 %v8448, %v8442
    %v8935 = vpack.c.b16 %v8449, %v8443
    %v8936 = vpack.c.b16 %v8456, %v8450
    %v8937 = vpack.c.b16 %v8457, %v8451
    %v8938 = vpack.c.b16 %v8458, %v8452
    %v8939 = vpack.c.b16 %v8459, %v8453
    %v8940 = vpack.c.b16 %v8460, %v8454
    %v8941 = vpack.c.b16 %v8461, %v8455
    %v8942 = vpack.c.b16 %v8468, %v8462
    %v8943 = vpack.c.b16 %v8469, %v8463
    %v8944 = vpack.c.b16 %v8470, %v8464
    %v8945 = vpack.c.b16 %v8471, %v8465
    %v8946 = vpack.c.b16 %v8472, %v8466
    %v8947 = vpack.c.b16 %v8473, %v8467
    %v8948 = vpack.c.b16 %v8480, %v8474
    %v8949 = vpack.c.b16 %v8481, %v8475
    %v8950 = vpack.c.b16 %v8482, %v8476
    %v8951 = vpack.c.b16 %v8483, %v8477
    %v8952 = vpack.c.b16 %v8484, %v8478
    %v8953 = vpack.c.b16 %v8485, %v8479
    %v8954 = vpack.c.b16 %v8492, %v8486
    %v8955 = vpack.c.b16 %v8493, %v8487
    %v8956 = vpack.c.b16 %v8494, %v8488
    %v8957 = vpack.c.b16 %v8495, %v8489
    %v8958 = vpack.c.b16 %v8496, %v8490
    %v8959 = vpack.c.b16 %v8497, %v8491
    %v8960 = vpack.c.b16 %v8504, %v8498
    %v8961 = vpack.c.b16 %v8505, %v8499
    %v8962 = vpack.c.b16 %v8506, %v8500
    %v8963 = vpack.c.b16 %v8507, %v8501
    %v8964 = vpack.c.b16 %v8508, %v8502
    %v8965 = vpack.c.b16 %v8509, %v8503
    %v8966 = vpack.c.b16 %v8516, %v8510
    %v8967 = vpack.c.b16 %v8517, %v8511
    %v8968 = vpack.c.b16 %v8518, %v8512
    %v8969 = vpack.c.b16 %v8519, %v8513
    %v8970 = vpack.c.b16 %v8520, %v8514
    %v8971 = vpack.c.b16 %v8521, %v8515
    %v8972 = vpack.c.b16 %v8528, %v8522
    %v8973 = vpack.c.b16 %v8529, %v8523
    %v8974 = vpack.c.b16 %v8530, %v8524
    %v8975 = vpack.c.b16 %v8531, %v8525
    %v8976 = vpack.c.b16 %v8532, %v8526
    %v8977 = vpack.c.b16 %v8533, %v8527
    %v8978 = vpack.c.b16 %v8540, %v8534
    %v8979 = vpack.c.b16 %v8541, %v8535
    %v8980 = vpack.c.b16 %v8542, %v8536
    %v8981 = vpack.c.b16 %v8543, %v8537
    %v8982 = vpack.c.b16 %v8544, %v8538
    %v8983 = vpack.c.b16 %v8545, %v8539
    %v8984 = vpack.c.b16 %v8552, %v8546
    %v8985 = vpack.c.b16 %v8553, %v8547
    %v8986 = vpack.c.b16 %v8554, %v8548
    %v8987 = vpack.c.b16 %v8555, %v8549
    %v8988 = vpack.c.b16 %v8556, %v8550
    %v8989 = vpack.c.b16 %v8557, %v8551
    %v8990 = vpack.c.b16 %v8564, %v8558
    %v8991 = vpack.c.b16 %v8565, %v8559
    %v8992 = vpack.c.b16 %v8566, %v8560
    %v8993 = vpack.c.b16 %v8567, %v8561
    %v8994 = vpack.c.b16 %v8568, %v8562
    %v8995 = vpack.c.b16 %v8569, %v8563
    %v8996 = vpack.c.b16 %v8576, %v8570
    %v8997 = vpack.c.b16 %v8577, %v8571
    %v8998 = vpack.c.b16 %v8578, %v8572
    %v8999 = vpack.c.b16 %v8579, %v8573
    %v9000 = vpack.c.b16 %v8580, %v8574
    %v9001 = vpack.c.b16 %v8581, %v8575
    %v9002 = vpack.c.b16 %v8588, %v8582
    %v9003 = vpack.c.b16 %v8589, %v8583
    %v9004 = vpack.c.b16 %v8590, %v8584
    %v9005 = vpack.c.b16 %v8591, %v8585
    %v9006 = vpack.c.b16 %v8592, %v8586
    %v9007 = vpack.c.b16 %v8593, %v8587
    %v9008 = vpack.c.b16 %v8600, %v8594
    %v9009 = vpack.c.b16 %v8601, %v8595
    %v9010 = vpack.c.b16 %v8602, %v8596
    %v9011 = vpack.c.b16 %v8603, %v8597
    %v9012 = vpack.c.b16 %v8604, %v8598
    %v9013 = vpack.c.b16 %v8605, %v8599
    %v9014 = vpack.c.b16 %v8612, %v8606
    %v9015 = vpack.c.b16 %v8613, %v8607
    %v9016 = vpack.c.b16 %v8614, %v8608
    %v9017 = vpack.c.b16 %v8615, %v8609
    %v9018 = vpack.c.b16 %v8616, %v8610
    %v9019 = vpack.c.b16 %v8617, %v8611
    %v9020 = vpack.c.b16 %v8624, %v8618
    %v9021 = vpack.c.b16 %v8625, %v8619
    %v9022 = vpack.c.b16 %v8626, %v8620
    %v9023 = vpack.c.b16 %v8627, %v8621
    %v9024 = vpack.c.b16 %v8628, %v8622
    %v9025 = vpack.c.b16 %v8629, %v8623
    %v9026 = vpack.c.b16 %v8636, %v8630
    %v9027 = vpack.c.b16 %v8637, %v8631
    %v9028 = vpack.c.b16 %v8638, %v8632
    %v9029 = vpack.c.b16 %v8639, %v8633
    %v9030 = vpack.c.b16 %v8640, %v8634
    %v9031 = vpack.c.b16 %v8641, %v8635
    %v9032 = vpack.c.b16 %v8648, %v8642
    %v9033 = vpack.c.b16 %v8649, %v8643
    %v9034 = vpack.c.b16 %v8650, %v8644
    %v9035 = vpack.c.b16 %v8651, %v8645
    %v9036 = vpack.c.b16 %v8652, %v8646
    %v9037 = vpack.c.b16 %v8653, %v8647
    %v9038 = vpack.c.b16 %v8660, %v8654
    %v9039 = vpack.c.b16 %v8661, %v8655
    %v9040 = vpack.c.b16 %v8662, %v8656
    %v9041 = vpack.c.b16 %v8663, %v8657
    %v9042 = vpack.c.b16 %v8664, %v8658
    %v9043 = vpack.c.b16 %v8665, %v8659
    %v9044 = vpack.c.b16 %v8672, %v8666
    %v9045 = vpack.c.b16 %v8673, %v8667
    %v9046 = vpack.c.b16 %v8674, %v8668
    %v9047 = vpack.c.b16 %v8675, %v8669
    %v9048 = vpack.c.b16 %v8676, %v8670
    %v9049 = vpack.c.b16 %v8677, %v8671
    %v9050 = vpack.c.b16 %v8684, %v8678
    %v9051 = vpack.c.b16 %v8685, %v8679
    %v9052 = vpack.c.b16 %v8686, %v8680
    %v9053 = vpack.c.b16 %v8687, %v8681
    %v9054 = vpack.c.b16 %v8688, %v8682
    %v9055 = vpack.c.b16 %v8689, %v8683
    %v9056 = vpack.c.b16 %v8696, %v8690
    %v9057 = vpack.c.b16 %v8697, %v8691
    %v9058 = vpack.c.b16 %v8698, %v8692
    %v9059 = vpack.c.b16 %v8699, %v8693
    %v9060 = vpack.c.b16 %v8700, %v8694
    %v9061 = vpack.c.b16 %v8701, %v8695
    %v9062 = vpack.c.b16 %v8708, %v8702
    %v9063 = vpack.c.b16 %v8709, %v8703
    %v9064 = vpack.c.b16 %v8710, %v8704
    %v9065 = vpack.c.b16 %v8711, %v8705
    %v9066 = vpack.c.b16 %v8712, %v8706
    %v9067 = vpack.c.b16 %v8713, %v8707
    %v9068 = vpack.c.b16 %v8720, %v8714
    %v9069 = vpack.c.b16 %v8721, %v8715
    %v9070 = vpack.c.b16 %v8722, %v8716
    %v9071 = vpack.c.b16 %v8723, %v8717
    %v9072 = vpack.c.b16 %v8724, %v8718
    %v9073 = vpack.c.b16 %v8725, %v8719
    %v9074 = vpack.c.b16 %v8732, %v8726
    %v9075 = vpack.c.b16 %v8733, %v8727
    %v9076 = vpack.c.b16 %v8734, %v8728
    %v9077 = vpack.c.b16 %v8735, %v8729
    %v9078 = vpack.c.b16 %v8736, %v8730
    %v9079 = vpack.c.b16 %v8737, %v8731
    %v9080 = vpack.c.b16 %v8744, %v8738
    %v9081 = vpack.c.b16 %v8745, %v8739
    %v9082 = vpack.c.b16 %v8746, %v8740
    %v9083 = vpack.c.b16 %v8747, %v8741
    %v9084 = vpack.c.b16 %v8748, %v8742
    %v9085 = vpack.c.b16 %v8749, %v8743
    %v9086 = vpack.c.b16 %v8756, %v8750
    %v9087 = vpack.c.b16 %v8757, %v8751
    %v9088 = vpack.c.b16 %v8758, %v8752
    %v9089 = vpack.c.b16 %v8759, %v8753
    %v9090 = vpack.c.b16 %v8760, %v8754
    %v9091 = vpack.c.b16 %v8761, %v8755
    %v9092 = vpack.c.b16 %v8768, %v8762
    %v9093 = vpack.c.b16 %v8769, %v8763
    %v9094 = vpack.c.b16 %v8770, %v8764
    %v9095 = vpack.c.b16 %v8771, %v8765
    %v9096 = vpack.c.b16 %v8772, %v8766
    %v9097 = vpack.c.b16 %v8773, %v8767
    %v9098 = vpack.c.b16 %v8780, %v8774
    %v9099 = vpack.c.b16 %v8781, %v8775
    %v9100 = vpack.c.b16 %v8782, %v8776
    %v9101 = vpack.c.b16 %v8783, %v8777
    %v9102 = vpack.c.b16 %v8784, %v8778
    %v9103 = vpack.c.b16 %v8785, %v8779
    %v9104 = vpack.c.b16 %v8792, %v8786
    %v9105 = vpack.c.b16 %v8793, %v8787
    %v9106 = vpack.c.b16 %v8794, %v8788
    %v9107 = vpack.c.b16 %v8795, %v8789
    %v9108 = vpack.c.b16 %v8796, %v8790
    %v9109 = vpack.c.b16 %v8797, %v8791
    %v9110 = vpack.c.b16 %v8804, %v8798
    %v9111 = vpack.c.b16 %v8805, %v8799
    %v9112 = vpack.c.b16 %v8806, %v8800
    %v9113 = vpack.c.b16 %v8807, %v8801
    %v9114 = vpack.c.b16 %v8808, %v8802
    %v9115 = vpack.c.b16 %v8809, %v8803
    %v9116 = vpack.c.b16 %v8816, %v8810
    %v9117 = vpack.c.b16 %v8817, %v8811
    %v9118 = vpack.c.b16 %v8818, %v8812
    %v9119 = vpack.c.b16 %v8819, %v8813
    %v9120 = vpack.c.b16 %v8820, %v8814
    %v9121 = vpack.c.b16 %v8821, %v8815
    %v9122 = vpack.c.b16 %v8828, %v8822
    %v9123 = vpack.c.b16 %v8829, %v8823
    %v9124 = vpack.c.b16 %v8830, %v8824
    %v9125 = vpack.c.b16 %v8831, %v8825
    %v9126 = vpack.c.b16 %v8832, %v8826
    %v9127 = vpack.c.b16 %v8833, %v8827
    %v9128 = vpack.c.b16 %v8840, %v8834
    %v9129 = vpack.c.b16 %v8841, %v8835
    %v9130 = vpack.c.b16 %v8842, %v8836
    %v9131 = vpack.c.b16 %v8843, %v8837
    %v9132 = vpack.c.b16 %v8844, %v8838
    %v9133 = vpack.c.b16 %v8845, %v8839
    %9422 = vmatprep.subr.bf16.mxu0 %v8847
    %9423 = vmatpush1.bf16.msra.mxu0 %v8846
    %9424 = vmatprep.subr.bf16.mxu0 %v8853
    %9425 = vmatpush1.bf16.msra.mxu0 %v8852
    %9426 = vmatprep.subr.bf16.mxu0 %v8859
    %9427 = vmatpush1.bf16.msra.mxu0 %v8858
    %9428 = vmatprep.subr.bf16.mxu0 %v8865
    %9429 = vmatpush1.bf16.msra.mxu0 %v8864
    %9430 = vmatprep.subr.bf16.mxu0 %v8871
    %9431 = vmatpush1.bf16.msra.mxu0 %v8870
    %9432 = vmatprep.subr.bf16.mxu0 %v8877
    %9433 = vmatpush1.bf16.msra.mxu0 %v8876
    %9434 = vmatprep.subr.bf16.mxu0 %v8883
    %9435 = vmatpush1.bf16.msra.mxu0 %v8882
    %9436 = vmatprep.subr.bf16.mxu0 %v8889
    %9437 = vmatpush1.bf16.msra.mxu0 %v8888
    %9438 = vmatprep.subr.bf16.mxu0 %v8895
    %9439 = vmatpush1.bf16.msra.mxu0 %v8894
    %9440 = vmatprep.subr.bf16.mxu0 %v8901
    %9441 = vmatpush1.bf16.msra.mxu0 %v8900
    %9442 = vmatprep.subr.bf16.mxu0 %v8907
    %9443 = vmatpush1.bf16.msra.mxu0 %v8906
    %9444 = vmatprep.subr.bf16.mxu0 %v8913
    %9445 = vmatpush1.bf16.msra.mxu0 %v8912
    %9446 = vmatprep.subr.bf16.mxu0 %v8919
    %9447 = vmatpush1.bf16.msra.mxu0 %v8918
    %9448 = vmatprep.subr.bf16.mxu0 %v8925
    %9449 = vmatpush1.bf16.msra.mxu0 %v8924
    %9450 = vmatprep.subr.bf16.mxu0 %v8931
    %9451 = vmatpush1.bf16.msra.mxu0 %v8930
    %9452 = vmatprep.subr.bf16.mxu0 %v8937
    %9453 = vmatpush1.bf16.msra.mxu0 %v8936
    %9454 = vmatprep.mubr.bf16.mxu0 %v7688
    %9455 = vmatmul.mubr.bf16.gmra.mrb[0].mxu0 %v7687
    %v9456 = vpop.f32.mrb[0].mxu0
    %v9457 = vadd.f32 0.0, %v9456
    %v9458 = vpop.f32.mrb[0].mxu0
    %v9459 = vadd.f32 0.0, %v9458
    %v9460 = vpop.f32.mrb[0].mxu0
    %v9461 = vpop.f32.mrb[0].mxu0
    %9462 = vdwg.mxu0
    %9463 = vmatprep.subr.bf16.mxu0 %v8943
    %9464 = vmatpush1.bf16.msra.mxu0 %v8942
    %9465 = vmatprep.subr.bf16.mxu0 %v8949
    %9466 = vmatpush1.bf16.msra.mxu0 %v8948
    %9467 = vmatprep.subr.bf16.mxu0 %v8955
    %9468 = vmatpush1.bf16.msra.mxu0 %v8954
    %9469 = vmatprep.subr.bf16.mxu0 %v8961
    %9470 = vmatpush1.bf16.msra.mxu0 %v8960
    %9471 = vmatprep.subr.bf16.mxu0 %v8967
    %9472 = vmatpush1.bf16.msra.mxu0 %v8966
    %9473 = vmatprep.subr.bf16.mxu0 %v8973
    %9474 = vmatpush1.bf16.msra.mxu0 %v8972
    %9475 = vmatprep.subr.bf16.mxu0 %v8979
    %9476 = vmatpush1.bf16.msra.mxu0 %v8978
    %9477 = vmatprep.subr.bf16.mxu0 %v8985
    %9478 = vmatpush1.bf16.msra.mxu0 %v8984
    %9479 = vmatprep.subr.bf16.mxu0 %v8991
    %9480 = vmatpush1.bf16.msra.mxu0 %v8990
    %9481 = vmatprep.subr.bf16.mxu0 %v8997
    %9482 = vmatpush1.bf16.msra.mxu0 %v8996
    %9483 = vmatprep.subr.bf16.mxu0 %v9003
    %9484 = vmatpush1.bf16.msra.mxu0 %v9002
    %9485 = vmatprep.subr.bf16.mxu0 %v9009
    %9486 = vmatpush1.bf16.msra.mxu0 %v9008
    %9487 = vmatprep.subr.bf16.mxu0 %v9015
    %9488 = vmatpush1.bf16.msra.mxu0 %v9014
    %9489 = vmatprep.subr.bf16.mxu0 %v9021
    %9490 = vmatpush1.bf16.msra.mxu0 %v9020
    %9491 = vmatprep.subr.bf16.mxu0 %v9027
    %9492 = vmatpush1.bf16.msra.mxu0 %v9026
    %9493 = vmatprep.subr.bf16.mxu0 %v9033
    %9494 = vmatpush1.bf16.msra.mxu0 %v9032
    %9495 = vmatprep.mubr.bf16.mxu0 %v7690
    %9496 = vmatmul.mubr.bf16.gmra.mrb[0].mxu0 %v7689
    %v9497 = vpop.f32.mrb[0].mxu0
    %v9498 = vadd.f32 %v9457, %v9497
    %v9499 = vpop.f32.mrb[0].mxu0
    %v9500 = vadd.f32 %v9459, %v9499
    %v9501 = vpop.f32.mrb[0].mxu0
    %v9502 = vpop.f32.mrb[0].mxu0
    %9503 = vdwg.mxu0
    %9504 = vmatprep.subr.bf16.mxu0 %v9039
    %9505 = vmatpush1.bf16.msra.mxu0 %v9038
    %9506 = vmatprep.subr.bf16.mxu0 %v9045
    %9507 = vmatpush1.bf16.msra.mxu0 %v9044
    %9508 = vmatprep.subr.bf16.mxu0 %v9051
    %9509 = vmatpush1.bf16.msra.mxu0 %v9050
    %9510 = vmatprep.subr.bf16.mxu0 %v9057
    %9511 = vmatpush1.bf16.msra.mxu0 %v9056
    %9512 = vmatprep.subr.bf16.mxu0 %v9063
    %9513 = vmatpush1.bf16.msra.mxu0 %v9062
    %9514 = vmatprep.subr.bf16.mxu0 %v9069
    %9515 = vmatpush1.bf16.msra.mxu0 %v9068
    %9516 = vmatprep.subr.bf16.mxu0 %v9075
    %9517 = vmatpush1.bf16.msra.mxu0 %v9074
    %9518 = vmatprep.subr.bf16.mxu0 %v9081
    %9519 = vmatpush1.bf16.msra.mxu0 %v9080
    %9520 = vmatprep.subr.bf16.mxu0 %v9087
    %9521 = vmatpush1.bf16.msra.mxu0 %v9086
    %9522 = vmatprep.subr.bf16.mxu0 %v9093
    %9523 = vmatpush1.bf16.msra.mxu0 %v9092
    %9524 = vmatprep.subr.bf16.mxu0 %v9099
    %9525 = vmatpush1.bf16.msra.mxu0 %v9098
    %9526 = vmatprep.subr.bf16.mxu0 %v9105
    %9527 = vmatpush1.bf16.msra.mxu0 %v9104
    %9528 = vmatprep.subr.bf16.mxu0 %v9111
    %9529 = vmatpush1.bf16.msra.mxu0 %v9110
    %9530 = vmatprep.subr.bf16.mxu0 %v9117
    %9531 = vmatpush1.bf16.msra.mxu0 %v9116
    %9532 = vmatprep.subr.bf16.mxu0 %v9123
    %9533 = vmatpush1.bf16.msra.mxu0 %v9122
    %9534 = vmatprep.subr.bf16.mxu0 %v9129
    %9535 = vmatpush1.bf16.msra.mxu0 %v9128
    %9536 = vmatprep.mubr.bf16.mxu0 %v7692
    %9537 = vmatmul.mubr.bf16.gmra.mrb[0].mxu0 %v7691
    %v9538 = vpop.f32.mrb[0].mxu0
    %v9539 = vadd.f32 %v9498, %v9538
    %v9540 = vpop.f32.mrb[0].mxu0
    %v9541 = vadd.f32 %v9500, %v9540
    %v9542 = vpop.f32.mrb[0].mxu0
    %v9543 = vpop.f32.mrb[0].mxu0
    %9544 = vdwg.mxu0
    %9545 = vmatprep.subr.bf16.mxu0 %v8849
    %9546 = vmatpush1.bf16.msra.mxu0 %v8848
    %9547 = vmatprep.subr.bf16.mxu0 %v8855
    %9548 = vmatpush1.bf16.msra.mxu0 %v8854
    %9549 = vmatprep.subr.bf16.mxu0 %v8861
    %9550 = vmatpush1.bf16.msra.mxu0 %v8860
    %9551 = vmatprep.subr.bf16.mxu0 %v8867
    %9552 = vmatpush1.bf16.msra.mxu0 %v8866
    %9553 = vmatprep.subr.bf16.mxu0 %v8873
    %9554 = vmatpush1.bf16.msra.mxu0 %v8872
    %9555 = vmatprep.subr.bf16.mxu0 %v8879
    %9556 = vmatpush1.bf16.msra.mxu0 %v8878
    %9557 = vmatprep.subr.bf16.mxu0 %v8885
    %9558 = vmatpush1.bf16.msra.mxu0 %v8884
    %9559 = vmatprep.subr.bf16.mxu0 %v8891
    %9560 = vmatpush1.bf16.msra.mxu0 %v8890
    %9561 = vmatprep.subr.bf16.mxu0 %v8897
    %9562 = vmatpush1.bf16.msra.mxu0 %v8896
    %9563 = vmatprep.subr.bf16.mxu0 %v8903
    %9564 = vmatpush1.bf16.msra.mxu0 %v8902
    %9565 = vmatprep.subr.bf16.mxu0 %v8909
    %9566 = vmatpush1.bf16.msra.mxu0 %v8908
    %9567 = vmatprep.subr.bf16.mxu0 %v8915
    %9568 = vmatpush1.bf16.msra.mxu0 %v8914
    %9569 = vmatprep.subr.bf16.mxu0 %v8921
    %9570 = vmatpush1.bf16.msra.mxu0 %v8920
    %9571 = vmatprep.subr.bf16.mxu0 %v8927
    %9572 = vmatpush1.bf16.msra.mxu0 %v8926
    %9573 = vmatprep.subr.bf16.mxu0 %v8933
    %9574 = vmatpush1.bf16.msra.mxu0 %v8932
    %9575 = vmatprep.subr.bf16.mxu0 %v8939
    %9576 = vmatpush1.bf16.msra.mxu0 %v8938
    %9577 = vmatprep.mubr.bf16.mxu0 %v7688
    %9578 = vmatmul.mubr.bf16.gmra.mrb[0].mxu0 %v7687
    %v9579 = vpop.f32.mrb[0].mxu0
    %v9580 = vadd.f32 0.0, %v9579
    %v9581 = vpop.f32.mrb[0].mxu0
    %v9582 = vadd.f32 0.0, %v9581
    %v9583 = vpop.f32.mrb[0].mxu0
    %v9584 = vpop.f32.mrb[0].mxu0
    %9585 = vdwg.mxu0
    %9586 = vmatprep.subr.bf16.mxu0 %v8945
    %9587 = vmatpush1.bf16.msra.mxu0 %v8944
    %9588 = vmatprep.subr.bf16.mxu0 %v8951
    %9589 = vmatpush1.bf16.msra.mxu0 %v8950
    %9590 = vmatprep.subr.bf16.mxu0 %v8957
    %9591 = vmatpush1.bf16.msra.mxu0 %v8956
    %9592 = vmatprep.subr.bf16.mxu0 %v8963
    %9593 = vmatpush1.bf16.msra.mxu0 %v8962
    %9594 = vmatprep.subr.bf16.mxu0 %v8969
    %9595 = vmatpush1.bf16.msra.mxu0 %v8968
    %9596 = vmatprep.subr.bf16.mxu0 %v8975
    %9597 = vmatpush1.bf16.msra.mxu0 %v8974
    %9598 = vmatprep.subr.bf16.mxu0 %v8981
    %9599 = vmatpush1.bf16.msra.mxu0 %v8980
    %9600 = vmatprep.subr.bf16.mxu0 %v8987
    %9601 = vmatpush1.bf16.msra.mxu0 %v8986
    %9602 = vmatprep.subr.bf16.mxu0 %v8993
    %9603 = vmatpush1.bf16.msra.mxu0 %v8992
    %9604 = vmatprep.subr.bf16.mxu0 %v8999
    %9605 = vmatpush1.bf16.msra.mxu0 %v8998
    %9606 = vmatprep.subr.bf16.mxu0 %v9005
    %9607 = vmatpush1.bf16.msra.mxu0 %v9004
    %9608 = vmatprep.subr.bf16.mxu0 %v9011
    %9609 = vmatpush1.bf16.msra.mxu0 %v9010
    %9610 = vmatprep.subr.bf16.mxu0 %v9017
    %9611 = vmatpush1.bf16.msra.mxu0 %v9016
    %9612 = vmatprep.subr.bf16.mxu0 %v9023
    %9613 = vmatpush1.bf16.msra.mxu0 %v9022
    %9614 = vmatprep.subr.bf16.mxu0 %v9029
    %9615 = vmatpush1.bf16.msra.mxu0 %v9028
    %9616 = vmatprep.subr.bf16.mxu0 %v9035
    %9617 = vmatpush1.bf16.msra.mxu0 %v9034
    %9618 = vmatprep.mubr.bf16.mxu0 %v7690
    %9619 = vmatmul.mubr.bf16.gmra.mrb[0].mxu0 %v7689
    %v9620 = vpop.f32.mrb[0].mxu0
    %v9621 = vadd.f32 %v9580, %v9620
    %v9622 = vpop.f32.mrb[0].mxu0
    %v9623 = vadd.f32 %v9582, %v9622
    %v9624 = vpop.f32.mrb[0].mxu0
    %v9625 = vpop.f32.mrb[0].mxu0
    %9626 = vdwg.mxu0
    %9627 = vmatprep.subr.bf16.mxu0 %v9041
    %9628 = vmatpush1.bf16.msra.mxu0 %v9040
    %9629 = vmatprep.subr.bf16.mxu0 %v9047
    %9630 = vmatpush1.bf16.msra.mxu0 %v9046
    %9631 = vmatprep.subr.bf16.mxu0 %v9053
    %9632 = vmatpush1.bf16.msra.mxu0 %v9052
    %9633 = vmatprep.subr.bf16.mxu0 %v9059
    %9634 = vmatpush1.bf16.msra.mxu0 %v9058
    %9635 = vmatprep.subr.bf16.mxu0 %v9065
    %9636 = vmatpush1.bf16.msra.mxu0 %v9064
    %9637 = vmatprep.subr.bf16.mxu0 %v9071
    %9638 = vmatpush1.bf16.msra.mxu0 %v9070
    %9639 = vmatprep.subr.bf16.mxu0 %v9077
    %9640 = vmatpush1.bf16.msra.mxu0 %v9076
    %9641 = vmatprep.subr.bf16.mxu0 %v9083
    %9642 = vmatpush1.bf16.msra.mxu0 %v9082
    %9643 = vmatprep.subr.bf16.mxu0 %v9089
    %9644 = vmatpush1.bf16.msra.mxu0 %v9088
    %9645 = vmatprep.subr.bf16.mxu0 %v9095
    %9646 = vmatpush1.bf16.msra.mxu0 %v9094
    %9647 = vmatprep.subr.bf16.mxu0 %v9101
    %9648 = vmatpush1.bf16.msra.mxu0 %v9100
    %9649 = vmatprep.subr.bf16.mxu0 %v9107
    %9650 = vmatpush1.bf16.msra.mxu0 %v9106
    %9651 = vmatprep.subr.bf16.mxu0 %v9113
    %9652 = vmatpush1.bf16.msra.mxu0 %v9112
    %9653 = vmatprep.subr.bf16.mxu0 %v9119
    %9654 = vmatpush1.bf16.msra.mxu0 %v9118
    %9655 = vmatprep.subr.bf16.mxu0 %v9125
    %9656 = vmatpush1.bf16.msra.mxu0 %v9124
    %9657 = vmatprep.subr.bf16.mxu0 %v9131
    %9658 = vmatpush1.bf16.msra.mxu0 %v9130
    %9659 = vmatprep.mubr.bf16.mxu0 %v7692
    %9660 = vmatmul.mubr.bf16.gmra.mrb[0].mxu0 %v7691
    %v9661 = vpop.f32.mrb[0].mxu0
    %v9662 = vadd.f32 %v9621, %v9661
    %v9663 = vpop.f32.mrb[0].mxu0
    %v9664 = vadd.f32 %v9623, %v9663
    %v9665 = vpop.f32.mrb[0].mxu0
    %v9666 = vpop.f32.mrb[0].mxu0
    %9667 = vdwg.mxu0
    %9668 = vmatprep.subr.bf16.mxu0 %v8851
    %9669 = vmatpush1.bf16.msra.mxu0 %v8850
    %9670 = vmatprep.subr.bf16.mxu0 %v8857
    %9671 = vmatpush1.bf16.msra.mxu0 %v8856
    %9672 = vmatprep.subr.bf16.mxu0 %v8863
    %9673 = vmatpush1.bf16.msra.mxu0 %v8862
    %9674 = vmatprep.subr.bf16.mxu0 %v8869
    %9675 = vmatpush1.bf16.msra.mxu0 %v8868
    %9676 = vmatprep.subr.bf16.mxu0 %v8875
    %9677 = vmatpush1.bf16.msra.mxu0 %v8874
    %9678 = vmatprep.subr.bf16.mxu0 %v8881
    %9679 = vmatpush1.bf16.msra.mxu0 %v8880
    %9680 = vmatprep.subr.bf16.mxu0 %v8887
    %9681 = vmatpush1.bf16.msra.mxu0 %v8886
    %9682 = vmatprep.subr.bf16.mxu0 %v8893
    %9683 = vmatpush1.bf16.msra.mxu0 %v8892
    %9684 = vmatprep.subr.bf16.mxu0 %v8899
    %9685 = vmatpush1.bf16.msra.mxu0 %v8898
    %9686 = vmatprep.subr.bf16.mxu0 %v8905
    %9687 = vmatpush1.bf16.msra.mxu0 %v8904
    %9688 = vmatprep.subr.bf16.mxu0 %v8911
    %9689 = vmatpush1.bf16.msra.mxu0 %v8910
    %9690 = vmatprep.subr.bf16.mxu0 %v8917
    %9691 = vmatpush1.bf16.msra.mxu0 %v8916
    %9692 = vmatprep.subr.bf16.mxu0 %v8923
    %9693 = vmatpush1.bf16.msra.mxu0 %v8922
    %9694 = vmatprep.subr.bf16.mxu0 %v8929
    %9695 = vmatpush1.bf16.msra.mxu0 %v8928
    %9696 = vmatprep.subr.bf16.mxu0 %v8935
    %9697 = vmatpush1.bf16.msra.mxu0 %v8934
    %9698 = vmatprep.subr.bf16.mxu0 %v8941
    %9699 = vmatpush1.bf16.msra.mxu0 %v8940
    %9700 = vmatprep.mubr.bf16.mxu0 %v7688
    %9701 = vmatmul.mubr.bf16.gmra.mrb[0].mxu0 %v7687
    %v9702 = vpop.f32.mrb[0].mxu0
    %v9703 = vadd.f32 0.0, %v9702
    %v9704 = vpop.f32.mrb[0].mxu0
    %v9705 = vadd.f32 0.0, %v9704
    %v9706 = vpop.f32.mrb[0].mxu0
    %v9707 = vpop.f32.mrb[0].mxu0
    %9708 = vdwg.mxu0
    %9709 = vmatprep.subr.bf16.mxu0 %v8947
    %9710 = vmatpush1.bf16.msra.mxu0 %v8946
    %9711 = vmatprep.subr.bf16.mxu0 %v8953
    %9712 = vmatpush1.bf16.msra.mxu0 %v8952
    %9713 = vmatprep.subr.bf16.mxu0 %v8959
    %9714 = vmatpush1.bf16.msra.mxu0 %v8958
    %9715 = vmatprep.subr.bf16.mxu0 %v8965
    %9716 = vmatpush1.bf16.msra.mxu0 %v8964
    %9717 = vmatprep.subr.bf16.mxu0 %v8971
    %9718 = vmatpush1.bf16.msra.mxu0 %v8970
    %9719 = vmatprep.subr.bf16.mxu0 %v8977
    %9720 = vmatpush1.bf16.msra.mxu0 %v8976
    %9721 = vmatprep.subr.bf16.mxu0 %v8983
    %9722 = vmatpush1.bf16.msra.mxu0 %v8982
    %9723 = vmatprep.subr.bf16.mxu0 %v8989
    %9724 = vmatpush1.bf16.msra.mxu0 %v8988
    %9725 = vmatprep.subr.bf16.mxu0 %v8995
    %9726 = vmatpush1.bf16.msra.mxu0 %v8994
    %9727 = vmatprep.subr.bf16.mxu0 %v9001
    %9728 = vmatpush1.bf16.msra.mxu0 %v9000
    %9729 = vmatprep.subr.bf16.mxu0 %v9007
    %9730 = vmatpush1.bf16.msra.mxu0 %v9006
    %9731 = vmatprep.subr.bf16.mxu0 %v9013
    %9732 = vmatpush1.bf16.msra.mxu0 %v9012
    %9733 = vmatprep.subr.bf16.mxu0 %v9019
    %9734 = vmatpush1.bf16.msra.mxu0 %v9018
    %9735 = vmatprep.subr.bf16.mxu0 %v9025
    %9736 = vmatpush1.bf16.msra.mxu0 %v9024
    %9737 = vmatprep.subr.bf16.mxu0 %v9031
    %9738 = vmatpush1.bf16.msra.mxu0 %v9030
    %9739 = vmatprep.subr.bf16.mxu0 %v9037
    %9740 = vmatpush1.bf16.msra.mxu0 %v9036
    %9741 = vmatprep.mubr.bf16.mxu0 %v7690
    %9742 = vmatmul.mubr.bf16.gmra.mrb[0].mxu0 %v7689
    %v9743 = vpop.f32.mrb[0].mxu0
    %v9744 = vadd.f32 %v9703, %v9743
    %v9745 = vpop.f32.mrb[0].mxu0
    %v9746 = vadd.f32 %v9705, %v9745
    %v9747 = vpop.f32.mrb[0].mxu0
    %v9748 = vpop.f32.mrb[0].mxu0
    %9749 = vdwg.mxu0
    %9750 = vmatprep.subr.bf16.mxu0 %v9043
    %9751 = vmatpush1.bf16.msra.mxu0 %v9042
    %9752 = vmatprep.subr.bf16.mxu0 %v9049
    %9753 = vmatpush1.bf16.msra.mxu0 %v9048
    %9754 = vmatprep.subr.bf16.mxu0 %v9055
    %9755 = vmatpush1.bf16.msra.mxu0 %v9054
    %9756 = vmatprep.subr.bf16.mxu0 %v9061
    %9757 = vmatpush1.bf16.msra.mxu0 %v9060
    %9758 = vmatprep.subr.bf16.mxu0 %v9067
    %9759 = vmatpush1.bf16.msra.mxu0 %v9066
    %9760 = vmatprep.subr.bf16.mxu0 %v9073
    %9761 = vmatpush1.bf16.msra.mxu0 %v9072
    %9762 = vmatprep.subr.bf16.mxu0 %v9079
    %9763 = vmatpush1.bf16.msra.mxu0 %v9078
    %9764 = vmatprep.subr.bf16.mxu0 %v9085
    %9765 = vmatpush1.bf16.msra.mxu0 %v9084
    %9766 = vmatprep.subr.bf16.mxu0 %v9091
    %9767 = vmatpush1.bf16.msra.mxu0 %v9090
    %9768 = vmatprep.subr.bf16.mxu0 %v9097
    %9769 = vmatpush1.bf16.msra.mxu0 %v9096
    %9770 = vmatprep.subr.bf16.mxu0 %v9103
    %9771 = vmatpush1.bf16.msra.mxu0 %v9102
    %9772 = vmatprep.subr.bf16.mxu0 %v9109
    %9773 = vmatpush1.bf16.msra.mxu0 %v9108
    %9774 = vmatprep.subr.bf16.mxu0 %v9115
    %9775 = vmatpush1.bf16.msra.mxu0 %v9114
    %9776 = vmatprep.subr.bf16.mxu0 %v9121
    %9777 = vmatpush1.bf16.msra.mxu0 %v9120
    %9778 = vmatprep.subr.bf16.mxu0 %v9127
    %9779 = vmatpush1.bf16.msra.mxu0 %v9126
    %9780 = vmatprep.subr.bf16.mxu0 %v9133
    %9781 = vmatpush1.bf16.msra.mxu0 %v9132
    %9782 = vmatprep.mubr.bf16.mxu0 %v7692
    %9783 = vmatmul.mubr.bf16.gmra.mrb[0].mxu0 %v7691
    %v9784 = vpop.f32.mrb[0].mxu0
    %v9785 = vadd.f32 %v9744, %v9784
    %v9786 = vpop.f32.mrb[0].mxu0
    %v9787 = vadd.f32 %v9746, %v9786
    %v9788 = vpop.f32.mrb[0].mxu0
    %v9789 = vpop.f32.mrb[0].mxu0
    %9790 = vdwg.mxu0
    %v9791 = vpack.c.bf16 %v9539, %v9539
    %v9792 = vpack.c.bf16 %v9541, %v9541
    %v9793 = vpack.c.bf16 %v9662, %v9662
    %v9794 = vpack.c.bf16 %v9664, %v9664
    %v9795 = vpack.c.bf16 %v9785, %v9785
    %v9796 = vpack.c.bf16 %v9787, %v9787
    %v9797 = vld [vmem:[#allocation11] sm:$0xff]
    %v9798 = vld [vmem:[#allocation11 + $0x8] sm:$0xff]
    %v9799 = vld [vmem:[#allocation11 + $0x10] sm:$0xff]
    %v9803 = vunpack.c.l.b16 %v9797
    %v9804 = vunpack.c.h.b16 %v9797
    %v9805 = vunpack.c.l.b16 %v9798
    %v9806 = vunpack.c.h.b16 %v9798
    %v9807 = vunpack.c.l.b16 %v9799
    %v9808 = vunpack.c.h.b16 %v9799
    %v9809 = vpack.c.b16 %v9803, %v9803
    %v9810 = vpack.c.b16 %v9804, %v9804
    %v9811 = vpack.c.b16 %v9805, %v9805
    %v9812 = vpack.c.b16 %v9806, %v9806
    %v9813 = vpack.c.b16 %v9807, %v9807
    %v9814 = vpack.c.b16 %v9808, %v9808
    %9821 = vmatprep.subr.bf16.mxu0 %v9810
    %9822 = vmatpush1.bf16.xpose.msra.mxu0 %v9809
    %9823 = vmatprep.subr.bf16.mxu0 0
    %9824 = vmatpush1.bf16.xpose.msra.mxu0 0
    %9825 = vmatprep.subr.bf16.mxu0 0
    %9826 = vmatpush1.bf16.xpose.msra.mxu0 0
    %9827 = vmatprep.subr.bf16.mxu0 0
    %9828 = vmatpush1.bf16.xpose.msra.mxu0 0
    %9829 = vmatprep.subr.bf16.mxu0 0
    %9830 = vmatpush1.bf16.xpose.msra.mxu0 0
    %9831 = vmatprep.subr.bf16.mxu0 0
    %9832 = vmatpush1.bf16.xpose.msra.mxu0 0
    %9833 = vmatprep.subr.bf16.mxu0 0
    %9834 = vmatpush1.bf16.xpose.msra.mxu0 0
    %9835 = vmatprep.subr.bf16.mxu0 0
    %9836 = vmatpush1.bf16.xpose.msra.mxu0 0
    %9837 = vmatprep.subr.bf16.mxu0 0
    %9838 = vmatpush1.bf16.xpose.msra.mxu0 0
    %9839 = vmatprep.subr.bf16.mxu0 0
    %9840 = vmatpush1.bf16.xpose.msra.mxu0 0
    %9841 = vmatprep.subr.bf16.mxu0 0
    %9842 = vmatpush1.bf16.xpose.msra.mxu0 0
    %9843 = vmatprep.subr.bf16.mxu0 0
    %9844 = vmatpush1.bf16.xpose.msra.mxu0 0
    %9845 = vmatprep.subr.bf16.mxu0 0
    %9846 = vmatpush1.bf16.xpose.msra.mxu0 0
    %9847 = vmatprep.subr.bf16.mxu0 0
    %9848 = vmatpush1.bf16.xpose.msra.mxu0 0
    %9849 = vmatprep.subr.bf16.mxu0 0
    %9850 = vmatpush1.bf16.xpose.msra.mxu0 0
    %9851 = vmatprep.subr.bf16.mxu0 0
    %9852 = vmatpush1.bf16.xpose.msra.mxu0 0
    %9853 = vmatprep.mubr.bf16.mxu0 %v9792
    %9854 = vmatmul.mubr.bf16.gmra.mrb[0].mxu0 %v9791
    %v9855 = vpop.f32.mrb[0].mxu0
    %v9856 = vadd.f32 0.0, %v9855
    %v9857 = vpop.f32.mrb[0].mxu0
    %v9858 = vpop.f32.mrb[0].mxu0
    %v9859 = vpop.f32.mrb[0].mxu0
    %9860 = vdwg.mxu0
    %9861 = vmatprep.subr.bf16.mxu0 %v9812
    %9862 = vmatpush1.bf16.xpose.msra.mxu0 %v9811
    %9863 = vmatprep.subr.bf16.mxu0 0
    %9864 = vmatpush1.bf16.xpose.msra.mxu0 0
    %9865 = vmatprep.subr.bf16.mxu0 0
    %9866 = vmatpush1.bf16.xpose.msra.mxu0 0
    %9867 = vmatprep.subr.bf16.mxu0 0
    %9868 = vmatpush1.bf16.xpose.msra.mxu0 0
    %9869 = vmatprep.subr.bf16.mxu0 0
    %9870 = vmatpush1.bf16.xpose.msra.mxu0 0
    %9871 = vmatprep.subr.bf16.mxu0 0
    %9872 = vmatpush1.bf16.xpose.msra.mxu0 0
    %9873 = vmatprep.subr.bf16.mxu0 0
    %9874 = vmatpush1.bf16.xpose.msra.mxu0 0
    %9875 = vmatprep.subr.bf16.mxu0 0
    %9876 = vmatpush1.bf16.xpose.msra.mxu0 0
    %9877 = vmatprep.subr.bf16.mxu0 0
    %9878 = vmatpush1.bf16.xpose.msra.mxu0 0
    %9879 = vmatprep.subr.bf16.mxu0 0
    %9880 = vmatpush1.bf16.xpose.msra.mxu0 0
    %9881 = vmatprep.subr.bf16.mxu0 0
    %9882 = vmatpush1.bf16.xpose.msra.mxu0 0
    %9883 = vmatprep.subr.bf16.mxu0 0
    %9884 = vmatpush1.bf16.xpose.msra.mxu0 0
    %9885 = vmatprep.subr.bf16.mxu0 0
    %9886 = vmatpush1.bf16.xpose.msra.mxu0 0
    %9887 = vmatprep.subr.bf16.mxu0 0
    %9888 = vmatpush1.bf16.xpose.msra.mxu0 0
    %9889 = vmatprep.subr.bf16.mxu0 0
    %9890 = vmatpush1.bf16.xpose.msra.mxu0 0
    %9891 = vmatprep.subr.bf16.mxu0 0
    %9892 = vmatpush1.bf16.xpose.msra.mxu0 0
    %9893 = vmatprep.mubr.bf16.mxu0 %v9794
    %9894 = vmatmul.mubr.bf16.gmra.mrb[0].mxu0 %v9793
    %v9895 = vpop.f32.mrb[0].mxu0
    %v9896 = vadd.f32 %v9856, %v9895
    %v9897 = vpop.f32.mrb[0].mxu0
    %v9898 = vpop.f32.mrb[0].mxu0
    %v9899 = vpop.f32.mrb[0].mxu0
    %9900 = vdwg.mxu0
    %9901 = vmatprep.subr.bf16.mxu0 %v9814
    %9902 = vmatpush1.bf16.xpose.msra.mxu0 %v9813
    %9903 = vmatprep.subr.bf16.mxu0 0
    %9904 = vmatpush1.bf16.xpose.msra.mxu0 0
    %9905 = vmatprep.subr.bf16.mxu0 0
    %9906 = vmatpush1.bf16.xpose.msra.mxu0 0
    %9907 = vmatprep.subr.bf16.mxu0 0
    %9908 = vmatpush1.bf16.xpose.msra.mxu0 0
    %9909 = vmatprep.subr.bf16.mxu0 0
    %9910 = vmatpush1.bf16.xpose.msra.mxu0 0
    %9911 = vmatprep.subr.bf16.mxu0 0
    %9912 = vmatpush1.bf16.xpose.msra.mxu0 0
    %9913 = vmatprep.subr.bf16.mxu0 0
    %9914 = vmatpush1.bf16.xpose.msra.mxu0 0
    %9915 = vmatprep.subr.bf16.mxu0 0
    %9916 = vmatpush1.bf16.xpose.msra.mxu0 0
    %9917 = vmatprep.subr.bf16.mxu0 0
    %9918 = vmatpush1.bf16.xpose.msra.mxu0 0
    %9919 = vmatprep.subr.bf16.mxu0 0
    %9920 = vmatpush1.bf16.xpose.msra.mxu0 0
    %9921 = vmatprep.subr.bf16.mxu0 0
    %9922 = vmatpush1.bf16.xpose.msra.mxu0 0
    %9923 = vmatprep.subr.bf16.mxu0 0
    %9924 = vmatpush1.bf16.xpose.msra.mxu0 0
    %9925 = vmatprep.subr.bf16.mxu0 0
    %9926 = vmatpush1.bf16.xpose.msra.mxu0 0
    %9927 = vmatprep.subr.bf16.mxu0 0
    %9928 = vmatpush1.bf16.xpose.msra.mxu0 0
    %9929 = vmatprep.subr.bf16.mxu0 0
    %9930 = vmatpush1.bf16.xpose.msra.mxu0 0
    %9931 = vmatprep.subr.bf16.mxu0 0
    %9932 = vmatpush1.bf16.xpose.msra.mxu0 0
    %9933 = vmatprep.mubr.bf16.mxu0 %v9796
    %9934 = vmatmul.mubr.bf16.gmra.mrb[0].mxu0 %v9795
    %v9935 = vpop.f32.mrb[0].mxu0
    %v9936 = vadd.f32 %v9896, %v9935
    %v9937 = vpop.f32.mrb[0].mxu0
    %v9938 = vpop.f32.mrb[0].mxu0
    %v9939 = vpop.f32.mrb[0].mxu0
    %9940 = vdwg.mxu0
    %vm9941 = vcmask 58368
    %v9942 = vsel %vm9941, %v9936, -inf
    %9943 = vmax.xlane.f32.xlu0 %v9942
    %v9944 = vpop.xlane.xlu0 %9943
    %v9945 = vsub.f32 %v9936, %v9944
    %v9946 = vmul.f32 %v9945, 1.442695
    %v9947 = vpow.pop %v9946
    %v9948 = vsel %vm9941, %v9947, 0.0
    %9949 = vadd.xlane.f32.xlu0 %v9948
    %v9950 = vpop.xlane.xlu0 %9949
    %v9951 = vrcp.pop %v9950
    %v9952 = vmul.f32 %v9947, %v9951
    %v9953 = vpack.c.bf16 %v9952, %v9952
    %s9954 = scalar_lea.vmem [#allocation11], 24
    %v9955 = vld [vmem:[%s9954] sm:$0xff]
    %v9956 = vld [vmem:[%s9954 + $0x8] sm:$0xff]
    %v9957 = vld [vmem:[%s9954 + $0x10] sm:$0xff]
    %v9961 = vunpack.c.l.b16 %v9955
    %v9962 = vunpack.c.h.b16 %v9955
    %v9963 = vunpack.c.l.b16 %v9956
    %v9964 = vunpack.c.h.b16 %v9956
    %v9965 = vunpack.c.l.b16 %v9957
    %v9966 = vunpack.c.h.b16 %v9957
    %v9967 = vpack.c.b16 %v9961, %v9961
    %v9968 = vpack.c.b16 %v9962, %v9962
    %v9969 = vpack.c.b16 %v9963, %v9963
    %v9970 = vpack.c.b16 %v9964, %v9964
    %v9971 = vpack.c.b16 %v9965, %v9965
    %v9972 = vpack.c.b16 %v9966, %v9966
    %vm9973 = vcmask 64512
    %v9975 = vsel %vm9973, %v9953, 0
    %vm9977 = vcmask 1043456
    %v9979 = vsel %vm9977, %v9967, 0
    %v9982 = vsel %vm9977, %v9968, 0
    %v9985 = vsel %vm9977, %v9969, 0
    %v9988 = vsel %vm9977, %v9970, 0
    %v9991 = vsel %vm9977, %v9971, 0
    %v9994 = vsel %vm9977, %v9972, 0
    %9996 = vmatprep.subr.bf16.mxu0 %v9982
    %9997 = vmatpush1.bf16.msra.mxu0 %v9979
    %9998 = vmatprep.subr.bf16.mxu0 0
    %9999 = vmatpush1.bf16.msra.mxu0 0
    %10000 = vmatprep.subr.bf16.mxu0 0
    %10001 = vmatpush1.bf16.msra.mxu0 0
    %10002 = vmatprep.subr.bf16.mxu0 0
    %10003 = vmatpush1.bf16.msra.mxu0 0
    %10004 = vmatprep.subr.bf16.mxu0 0
    %10005 = vmatpush1.bf16.msra.mxu0 0
    %10006 = vmatprep.subr.bf16.mxu0 0
    %10007 = vmatpush1.bf16.msra.mxu0 0
    %10008 = vmatprep.subr.bf16.mxu0 0
    %10009 = vmatpush1.bf16.msra.mxu0 0
    %10010 = vmatprep.subr.bf16.mxu0 0
    %10011 = vmatpush1.bf16.msra.mxu0 0
    %10012 = vmatprep.subr.bf16.mxu0 0
    %10013 = vmatpush1.bf16.msra.mxu0 0
    %10014 = vmatprep.subr.bf16.mxu0 0
    %10015 = vmatpush1.bf16.msra.mxu0 0
    %10016 = vmatprep.subr.bf16.mxu0 0
    %10017 = vmatpush1.bf16.msra.mxu0 0
    %10018 = vmatprep.subr.bf16.mxu0 0
    %10019 = vmatpush1.bf16.msra.mxu0 0
    %10020 = vmatprep.subr.bf16.mxu0 0
    %10021 = vmatpush1.bf16.msra.mxu0 0
    %10022 = vmatprep.subr.bf16.mxu0 0
    %10023 = vmatpush1.bf16.msra.mxu0 0
    %10024 = vmatprep.subr.bf16.mxu0 0
    %10025 = vmatpush1.bf16.msra.mxu0 0
    %10026 = vmatprep.subr.bf16.mxu0 0
    %10027 = vmatpush1.bf16.msra.mxu0 0
    %10028 = vmatprep.mubr.bf16.mxu0 0
    %10029 = vmatmul.mubr.bf16.gmra.mrb[0].mxu0 %v9975
    %v10030 = vpop.f32.mrb[0].mxu0
    %v10031 = vadd.f32 0.0, %v10030
    %v10032 = vpop.f32.mrb[0].mxu0
    %v10033 = vadd.f32 0.0, %v10032
    %v10034 = vpop.f32.mrb[0].mxu0
    %v10035 = vpop.f32.mrb[0].mxu0
    %10036 = vdwg.mxu0
    %10037 = vmatprep.subr.bf16.mxu0 %v9988
    %10038 = vmatpush1.bf16.msra.mxu0 %v9985
    %10039 = vmatprep.subr.bf16.mxu0 0
    %10040 = vmatpush1.bf16.msra.mxu0 0
    %10041 = vmatprep.subr.bf16.mxu0 0
    %10042 = vmatpush1.bf16.msra.mxu0 0
    %10043 = vmatprep.subr.bf16.mxu0 0
    %10044 = vmatpush1.bf16.msra.mxu0 0
    %10045 = vmatprep.subr.bf16.mxu0 0
    %10046 = vmatpush1.bf16.msra.mxu0 0
    %10047 = vmatprep.subr.bf16.mxu0 0
    %10048 = vmatpush1.bf16.msra.mxu0 0
    %10049 = vmatprep.subr.bf16.mxu0 0
    %10050 = vmatpush1.bf16.msra.mxu0 0
    %10051 = vmatprep.subr.bf16.mxu0 0
    %10052 = vmatpush1.bf16.msra.mxu0 0
    %10053 = vmatprep.subr.bf16.mxu0 0
    %10054 = vmatpush1.bf16.msra.mxu0 0
    %10055 = vmatprep.subr.bf16.mxu0 0
    %10056 = vmatpush1.bf16.msra.mxu0 0
    %10057 = vmatprep.subr.bf16.mxu0 0
    %10058 = vmatpush1.bf16.msra.mxu0 0
    %10059 = vmatprep.subr.bf16.mxu0 0
    %10060 = vmatpush1.bf16.msra.mxu0 0
    %10061 = vmatprep.subr.bf16.mxu0 0
    %10062 = vmatpush1.bf16.msra.mxu0 0
    %10063 = vmatprep.subr.bf16.mxu0 0
    %10064 = vmatpush1.bf16.msra.mxu0 0
    %10065 = vmatprep.subr.bf16.mxu0 0
    %10066 = vmatpush1.bf16.msra.mxu0 0
    %10067 = vmatprep.subr.bf16.mxu0 0
    %10068 = vmatpush1.bf16.msra.mxu0 0
    %10069 = vmatprep.mubr.bf16.mxu0 0
    %10070 = vmatmul.mubr.bf16.gmra.mrb[0].mxu0 %v9975
    %v10071 = vpop.f32.mrb[0].mxu0
    %v10072 = vadd.f32 0.0, %v10071
    %v10073 = vpop.f32.mrb[0].mxu0
    %v10074 = vadd.f32 0.0, %v10073
    %v10075 = vpop.f32.mrb[0].mxu0
    %v10076 = vpop.f32.mrb[0].mxu0
    %10077 = vdwg.mxu0
    %10078 = vmatprep.subr.bf16.mxu0 %v9994
    %10079 = vmatpush1.bf16.msra.mxu0 %v9991
    %10080 = vmatprep.subr.bf16.mxu0 0
    %10081 = vmatpush1.bf16.msra.mxu0 0
    %10082 = vmatprep.subr.bf16.mxu0 0
    %10083 = vmatpush1.bf16.msra.mxu0 0
    %10084 = vmatprep.subr.bf16.mxu0 0
    %10085 = vmatpush1.bf16.msra.mxu0 0
    %10086 = vmatprep.subr.bf16.mxu0 0
    %10087 = vmatpush1.bf16.msra.mxu0 0
    %10088 = vmatprep.subr.bf16.mxu0 0
    %10089 = vmatpush1.bf16.msra.mxu0 0
    %10090 = vmatprep.subr.bf16.mxu0 0
    %10091 = vmatpush1.bf16.msra.mxu0 0
    %10092 = vmatprep.subr.bf16.mxu0 0
    %10093 = vmatpush1.bf16.msra.mxu0 0
    %10094 = vmatprep.subr.bf16.mxu0 0
    %10095 = vmatpush1.bf16.msra.mxu0 0
    %10096 = vmatprep.subr.bf16.mxu0 0
    %10097 = vmatpush1.bf16.msra.mxu0 0
    %10098 = vmatprep.subr.bf16.mxu0 0
    %10099 = vmatpush1.bf16.msra.mxu0 0
    %10100 = vmatprep.subr.bf16.mxu0 0
    %10101 = vmatpush1.bf16.msra.mxu0 0
    %10102 = vmatprep.subr.bf16.mxu0 0
    %10103 = vmatpush1.bf16.msra.mxu0 0
    %10104 = vmatprep.subr.bf16.mxu0 0
    %10105 = vmatpush1.bf16.msra.mxu0 0
    %10106 = vmatprep.subr.bf16.mxu0 0
    %10107 = vmatpush1.bf16.msra.mxu0 0
    %10108 = vmatprep.subr.bf16.mxu0 0
    %10109 = vmatpush1.bf16.msra.mxu0 0
    %10110 = vmatprep.mubr.bf16.mxu0 0
    %10111 = vmatmul.mubr.bf16.gmra.mrb[0].mxu0 %v9975
    %v10112 = vpop.f32.mrb[0].mxu0
    %v10113 = vadd.f32 0.0, %v10112
    %v10114 = vpop.f32.mrb[0].mxu0
    %v10115 = vadd.f32 0.0, %v10114
    %v10116 = vpop.f32.mrb[0].mxu0
    %v10117 = vpop.f32.mrb[0].mxu0
    %10118 = vdwg.mxu0
    %v10119 = vpack.c.bf16 %v10031, %v10031
    %v10120 = vpack.c.bf16 %v10033, %v10033
    %v10121 = vpack.c.bf16 %v10072, %v10072
    %v10122 = vpack.c.bf16 %v10074, %v10074
    %v10123 = vpack.c.bf16 %v10113, %v10113
    %v10124 = vpack.c.bf16 %v10115, %v10115
    %s10125 = scalar_lea.vmem [#allocation10], 9216
    %v10126 = vld [vmem:[%s10125] sm:$0xff]
    %v10127 = vld [vmem:[%s10125 + $0x8] sm:$0xff]
    %v10128 = vld [vmem:[%s10125 + $0x10] sm:$0xff]
    %v10129 = vld [vmem:[%s10125 + $0x18] sm:$0xff]
    %v10130 = vld [vmem:[%s10125 + $0x20] sm:$0xff]
    %v10131 = vld [vmem:[%s10125 + $0x28] sm:$0xff]
    %v10132 = vld [vmem:[%s10125 + $0x30] sm:$0xff]
    %v10133 = vld [vmem:[%s10125 + $0x38] sm:$0xff]
    %v10134 = vld [vmem:[%s10125 + $0x40] sm:$0xff]
    %v10135 = vld [vmem:[%s10125 + $0x48] sm:$0xff]
    %v10136 = vld [vmem:[%s10125 + $0x50] sm:$0xff]
    %v10137 = vld [vmem:[%s10125 + $0x58] sm:$0xff]
    %v10138 = vld [vmem:[%s10125 + $0x60] sm:$0xff]
    %v10139 = vld [vmem:[%s10125 + $0x68] sm:$0xff]
    %v10140 = vld [vmem:[%s10125 + $0x70] sm:$0xff]
    %v10141 = vld [vmem:[%s10125 + $0x78] sm:$0xff]
    %v10142 = vld [vmem:[%s10125 + $0x80] sm:$0xff]
    %v10143 = vld [vmem:[%s10125 + $0x88] sm:$0xff]
    %v10144 = vld [vmem:[%s10125 + $0x90] sm:$0xff]
    %v10145 = vld [vmem:[%s10125 + $0x98] sm:$0xff]
    %v10146 = vld [vmem:[%s10125 + $0xa0] sm:$0xff]
    %v10147 = vld [vmem:[%s10125 + $0xa8] sm:$0xff]
    %v10148 = vld [vmem:[%s10125 + $0xb0] sm:$0xff]
    %v10149 = vld [vmem:[%s10125 + $0xb8] sm:$0xff]
    %v10150 = vld [vmem:[%s10125 + $0xc0] sm:$0xff]
    %v10151 = vld [vmem:[%s10125 + $0xc8] sm:$0xff]
    %v10152 = vld [vmem:[%s10125 + $0xd0] sm:$0xff]
    %v10153 = vld [vmem:[%s10125 + $0xd8] sm:$0xff]
    %v10154 = vld [vmem:[%s10125 + $0xe0] sm:$0xff]
    %v10155 = vld [vmem:[%s10125 + $0xe8] sm:$0xff]
    %v10156 = vld [vmem:[%s10125 + $0xf0] sm:$0xff]
    %v10157 = vld [vmem:[%s10125 + $0xf8] sm:$0xff]
    %v10158 = vld [vmem:[%s10125 + $0x100] sm:$0xff]
    %v10159 = vld [vmem:[%s10125 + $0x108] sm:$0xff]
    %v10160 = vld [vmem:[%s10125 + $0x110] sm:$0xff]
    %v10161 = vld [vmem:[%s10125 + $0x118] sm:$0xff]
    %v10162 = vld [vmem:[%s10125 + $0x120] sm:$0xff]
    %v10163 = vld [vmem:[%s10125 + $0x128] sm:$0xff]
    %v10164 = vld [vmem:[%s10125 + $0x130] sm:$0xff]
    %v10165 = vld [vmem:[%s10125 + $0x138] sm:$0xff]
    %v10166 = vld [vmem:[%s10125 + $0x140] sm:$0xff]
    %v10167 = vld [vmem:[%s10125 + $0x148] sm:$0xff]
    %v10168 = vld [vmem:[%s10125 + $0x150] sm:$0xff]
    %v10169 = vld [vmem:[%s10125 + $0x158] sm:$0xff]
    %v10170 = vld [vmem:[%s10125 + $0x160] sm:$0xff]
    %v10171 = vld [vmem:[%s10125 + $0x168] sm:$0xff]
    %v10172 = vld [vmem:[%s10125 + $0x170] sm:$0xff]
    %v10173 = vld [vmem:[%s10125 + $0x178] sm:$0xff]
    %v10174 = vld [vmem:[%s10125 + $0x180] sm:$0xff]
    %v10175 = vld [vmem:[%s10125 + $0x188] sm:$0xff]
    %v10176 = vld [vmem:[%s10125 + $0x190] sm:$0xff]
    %v10177 = vld [vmem:[%s10125 + $0x198] sm:$0xff]
    %v10178 = vld [vmem:[%s10125 + $0x1a0] sm:$0xff]
    %v10179 = vld [vmem:[%s10125 + $0x1a8] sm:$0xff]
    %v10180 = vld [vmem:[%s10125 + $0x1b0] sm:$0xff]
    %v10181 = vld [vmem:[%s10125 + $0x1b8] sm:$0xff]
    %v10182 = vld [vmem:[%s10125 + $0x1c0] sm:$0xff]
    %v10183 = vld [vmem:[%s10125 + $0x1c8] sm:$0xff]
    %v10184 = vld [vmem:[%s10125 + $0x1d0] sm:$0xff]
    %v10185 = vld [vmem:[%s10125 + $0x1d8] sm:$0xff]
    %v10186 = vld [vmem:[%s10125 + $0x1e0] sm:$0xff]
    %v10187 = vld [vmem:[%s10125 + $0x1e8] sm:$0xff]
    %v10188 = vld [vmem:[%s10125 + $0x1f0] sm:$0xff]
    %v10189 = vld [vmem:[%s10125 + $0x1f8] sm:$0xff]
    %v10190 = vld [vmem:[%s10125 + $0x200] sm:$0xff]
    %v10191 = vld [vmem:[%s10125 + $0x208] sm:$0xff]
    %v10192 = vld [vmem:[%s10125 + $0x210] sm:$0xff]
    %v10193 = vld [vmem:[%s10125 + $0x218] sm:$0xff]
    %v10194 = vld [vmem:[%s10125 + $0x220] sm:$0xff]
    %v10195 = vld [vmem:[%s10125 + $0x228] sm:$0xff]
    %v10196 = vld [vmem:[%s10125 + $0x230] sm:$0xff]
    %v10197 = vld [vmem:[%s10125 + $0x238] sm:$0xff]
    %v10198 = vld [vmem:[%s10125 + $0x240] sm:$0xff]
    %v10199 = vld [vmem:[%s10125 + $0x248] sm:$0xff]
    %v10200 = vld [vmem:[%s10125 + $0x250] sm:$0xff]
    %v10201 = vld [vmem:[%s10125 + $0x258] sm:$0xff]
    %v10202 = vld [vmem:[%s10125 + $0x260] sm:$0xff]
    %v10203 = vld [vmem:[%s10125 + $0x268] sm:$0xff]
    %v10204 = vld [vmem:[%s10125 + $0x270] sm:$0xff]
    %v10205 = vld [vmem:[%s10125 + $0x278] sm:$0xff]
    %v10206 = vld [vmem:[%s10125 + $0x280] sm:$0xff]
    %v10207 = vld [vmem:[%s10125 + $0x288] sm:$0xff]
    %v10208 = vld [vmem:[%s10125 + $0x290] sm:$0xff]
    %v10209 = vld [vmem:[%s10125 + $0x298] sm:$0xff]
    %v10210 = vld [vmem:[%s10125 + $0x2a0] sm:$0xff]
    %v10211 = vld [vmem:[%s10125 + $0x2a8] sm:$0xff]
    %v10212 = vld [vmem:[%s10125 + $0x2b0] sm:$0xff]
    %v10213 = vld [vmem:[%s10125 + $0x2b8] sm:$0xff]
    %v10214 = vld [vmem:[%s10125 + $0x2c0] sm:$0xff]
    %v10215 = vld [vmem:[%s10125 + $0x2c8] sm:$0xff]
    %v10216 = vld [vmem:[%s10125 + $0x2d0] sm:$0xff]
    %v10217 = vld [vmem:[%s10125 + $0x2d8] sm:$0xff]
    %v10218 = vld [vmem:[%s10125 + $0x2e0] sm:$0xff]
    %v10219 = vld [vmem:[%s10125 + $0x2e8] sm:$0xff]
    %v10220 = vld [vmem:[%s10125 + $0x2f0] sm:$0xff]
    %v10221 = vld [vmem:[%s10125 + $0x2f8] sm:$0xff]
    %v10222 = vld [vmem:[%s10125 + $0x300] sm:$0xff]
    %v10223 = vld [vmem:[%s10125 + $0x308] sm:$0xff]
    %v10224 = vld [vmem:[%s10125 + $0x310] sm:$0xff]
    %v10225 = vld [vmem:[%s10125 + $0x318] sm:$0xff]
    %v10226 = vld [vmem:[%s10125 + $0x320] sm:$0xff]
    %v10227 = vld [vmem:[%s10125 + $0x328] sm:$0xff]
    %v10228 = vld [vmem:[%s10125 + $0x330] sm:$0xff]
    %v10229 = vld [vmem:[%s10125 + $0x338] sm:$0xff]
    %v10230 = vld [vmem:[%s10125 + $0x340] sm:$0xff]
    %v10231 = vld [vmem:[%s10125 + $0x348] sm:$0xff]
    %v10232 = vld [vmem:[%s10125 + $0x350] sm:$0xff]
    %v10233 = vld [vmem:[%s10125 + $0x358] sm:$0xff]
    %v10234 = vld [vmem:[%s10125 + $0x360] sm:$0xff]
    %v10235 = vld [vmem:[%s10125 + $0x368] sm:$0xff]
    %v10236 = vld [vmem:[%s10125 + $0x370] sm:$0xff]
    %v10237 = vld [vmem:[%s10125 + $0x378] sm:$0xff]
    %v10238 = vld [vmem:[%s10125 + $0x380] sm:$0xff]
    %v10239 = vld [vmem:[%s10125 + $0x388] sm:$0xff]
    %v10240 = vld [vmem:[%s10125 + $0x390] sm:$0xff]
    %v10241 = vld [vmem:[%s10125 + $0x398] sm:$0xff]
    %v10242 = vld [vmem:[%s10125 + $0x3a0] sm:$0xff]
    %v10243 = vld [vmem:[%s10125 + $0x3a8] sm:$0xff]
    %v10244 = vld [vmem:[%s10125 + $0x3b0] sm:$0xff]
    %v10245 = vld [vmem:[%s10125 + $0x3b8] sm:$0xff]
    %v10246 = vld [vmem:[%s10125 + $0x3c0] sm:$0xff]
    %v10247 = vld [vmem:[%s10125 + $0x3c8] sm:$0xff]
    %v10248 = vld [vmem:[%s10125 + $0x3d0] sm:$0xff]
    %v10249 = vld [vmem:[%s10125 + $0x3d8] sm:$0xff]
    %v10250 = vld [vmem:[%s10125 + $0x3e0] sm:$0xff]
    %v10251 = vld [vmem:[%s10125 + $0x3e8] sm:$0xff]
    %v10252 = vld [vmem:[%s10125 + $0x3f0] sm:$0xff]
    %v10253 = vld [vmem:[%s10125 + $0x3f8] sm:$0xff]
    %v10254 = vld [vmem:[%s10125 + $0x400] sm:$0xff]
    %v10255 = vld [vmem:[%s10125 + $0x408] sm:$0xff]
    %v10256 = vld [vmem:[%s10125 + $0x410] sm:$0xff]
    %v10257 = vld [vmem:[%s10125 + $0x418] sm:$0xff]
    %v10258 = vld [vmem:[%s10125 + $0x420] sm:$0xff]
    %v10259 = vld [vmem:[%s10125 + $0x428] sm:$0xff]
    %v10260 = vld [vmem:[%s10125 + $0x430] sm:$0xff]
    %v10261 = vld [vmem:[%s10125 + $0x438] sm:$0xff]
    %v10262 = vld [vmem:[%s10125 + $0x440] sm:$0xff]
    %v10263 = vld [vmem:[%s10125 + $0x448] sm:$0xff]
    %v10264 = vld [vmem:[%s10125 + $0x450] sm:$0xff]
    %v10265 = vld [vmem:[%s10125 + $0x458] sm:$0xff]
    %v10266 = vld [vmem:[%s10125 + $0x460] sm:$0xff]
    %v10267 = vld [vmem:[%s10125 + $0x468] sm:$0xff]
    %v10268 = vld [vmem:[%s10125 + $0x470] sm:$0xff]
    %v10269 = vld [vmem:[%s10125 + $0x478] sm:$0xff]
    %v10270 = vld [vmem:[%s10125 + $0x480] sm:$0xff]
    %v10271 = vld [vmem:[%s10125 + $0x488] sm:$0xff]
    %v10272 = vld [vmem:[%s10125 + $0x490] sm:$0xff]
    %v10273 = vld [vmem:[%s10125 + $0x498] sm:$0xff]
    %v10274 = vld [vmem:[%s10125 + $0x4a0] sm:$0xff]
    %v10275 = vld [vmem:[%s10125 + $0x4a8] sm:$0xff]
    %v10276 = vld [vmem:[%s10125 + $0x4b0] sm:$0xff]
    %v10277 = vld [vmem:[%s10125 + $0x4b8] sm:$0xff]
    %v10278 = vld [vmem:[%s10125 + $0x4c0] sm:$0xff]
    %v10279 = vld [vmem:[%s10125 + $0x4c8] sm:$0xff]
    %v10280 = vld [vmem:[%s10125 + $0x4d0] sm:$0xff]
    %v10281 = vld [vmem:[%s10125 + $0x4d8] sm:$0xff]
    %v10282 = vld [vmem:[%s10125 + $0x4e0] sm:$0xff]
    %v10283 = vld [vmem:[%s10125 + $0x4e8] sm:$0xff]
    %v10284 = vld [vmem:[%s10125 + $0x4f0] sm:$0xff]
    %v10285 = vld [vmem:[%s10125 + $0x4f8] sm:$0xff]
    %v10286 = vld [vmem:[%s10125 + $0x500] sm:$0xff]
    %v10287 = vld [vmem:[%s10125 + $0x508] sm:$0xff]
    %v10288 = vld [vmem:[%s10125 + $0x510] sm:$0xff]
    %v10289 = vld [vmem:[%s10125 + $0x518] sm:$0xff]
    %v10290 = vld [vmem:[%s10125 + $0x520] sm:$0xff]
    %v10291 = vld [vmem:[%s10125 + $0x528] sm:$0xff]
    %v10292 = vld [vmem:[%s10125 + $0x530] sm:$0xff]
    %v10293 = vld [vmem:[%s10125 + $0x538] sm:$0xff]
    %v10294 = vld [vmem:[%s10125 + $0x540] sm:$0xff]
    %v10295 = vld [vmem:[%s10125 + $0x548] sm:$0xff]
    %v10296 = vld [vmem:[%s10125 + $0x550] sm:$0xff]
    %v10297 = vld [vmem:[%s10125 + $0x558] sm:$0xff]
    %v10298 = vld [vmem:[%s10125 + $0x560] sm:$0xff]
    %v10299 = vld [vmem:[%s10125 + $0x568] sm:$0xff]
    %v10300 = vld [vmem:[%s10125 + $0x570] sm:$0xff]
    %v10301 = vld [vmem:[%s10125 + $0x578] sm:$0xff]
    %v10302 = vld [vmem:[%s10125 + $0x580] sm:$0xff]
    %v10303 = vld [vmem:[%s10125 + $0x588] sm:$0xff]
    %v10304 = vld [vmem:[%s10125 + $0x590] sm:$0xff]
    %v10305 = vld [vmem:[%s10125 + $0x598] sm:$0xff]
    %v10306 = vld [vmem:[%s10125 + $0x5a0] sm:$0xff]
    %v10307 = vld [vmem:[%s10125 + $0x5a8] sm:$0xff]
    %v10308 = vld [vmem:[%s10125 + $0x5b0] sm:$0xff]
    %v10309 = vld [vmem:[%s10125 + $0x5b8] sm:$0xff]
    %v10310 = vld [vmem:[%s10125 + $0x5c0] sm:$0xff]
    %v10311 = vld [vmem:[%s10125 + $0x5c8] sm:$0xff]
    %v10312 = vld [vmem:[%s10125 + $0x5d0] sm:$0xff]
    %v10313 = vld [vmem:[%s10125 + $0x5d8] sm:$0xff]
    %v10314 = vld [vmem:[%s10125 + $0x5e0] sm:$0xff]
    %v10315 = vld [vmem:[%s10125 + $0x5e8] sm:$0xff]
    %v10316 = vld [vmem:[%s10125 + $0x5f0] sm:$0xff]
    %v10317 = vld [vmem:[%s10125 + $0x5f8] sm:$0xff]
    %v10318 = vld [vmem:[%s10125 + $0x600] sm:$0xff]
    %v10319 = vld [vmem:[%s10125 + $0x608] sm:$0xff]
    %v10320 = vld [vmem:[%s10125 + $0x610] sm:$0xff]
    %v10321 = vld [vmem:[%s10125 + $0x618] sm:$0xff]
    %v10322 = vld [vmem:[%s10125 + $0x620] sm:$0xff]
    %v10323 = vld [vmem:[%s10125 + $0x628] sm:$0xff]
    %v10324 = vld [vmem:[%s10125 + $0x630] sm:$0xff]
    %v10325 = vld [vmem:[%s10125 + $0x638] sm:$0xff]
    %v10326 = vld [vmem:[%s10125 + $0x640] sm:$0xff]
    %v10327 = vld [vmem:[%s10125 + $0x648] sm:$0xff]
    %v10328 = vld [vmem:[%s10125 + $0x650] sm:$0xff]
    %v10329 = vld [vmem:[%s10125 + $0x658] sm:$0xff]
    %v10330 = vld [vmem:[%s10125 + $0x660] sm:$0xff]
    %v10331 = vld [vmem:[%s10125 + $0x668] sm:$0xff]
    %v10332 = vld [vmem:[%s10125 + $0x670] sm:$0xff]
    %v10333 = vld [vmem:[%s10125 + $0x678] sm:$0xff]
    %v10334 = vld [vmem:[%s10125 + $0x680] sm:$0xff]
    %v10335 = vld [vmem:[%s10125 + $0x688] sm:$0xff]
    %v10336 = vld [vmem:[%s10125 + $0x690] sm:$0xff]
    %v10337 = vld [vmem:[%s10125 + $0x698] sm:$0xff]
    %v10338 = vld [vmem:[%s10125 + $0x6a0] sm:$0xff]
    %v10339 = vld [vmem:[%s10125 + $0x6a8] sm:$0xff]
    %v10340 = vld [vmem:[%s10125 + $0x6b0] sm:$0xff]
    %v10341 = vld [vmem:[%s10125 + $0x6b8] sm:$0xff]
    %v10342 = vld [vmem:[%s10125 + $0x6c0] sm:$0xff]
    %v10343 = vld [vmem:[%s10125 + $0x6c8] sm:$0xff]
    %v10344 = vld [vmem:[%s10125 + $0x6d0] sm:$0xff]
    %v10345 = vld [vmem:[%s10125 + $0x6d8] sm:$0xff]
    %v10346 = vld [vmem:[%s10125 + $0x6e0] sm:$0xff]
    %v10347 = vld [vmem:[%s10125 + $0x6e8] sm:$0xff]
    %v10348 = vld [vmem:[%s10125 + $0x6f0] sm:$0xff]
    %v10349 = vld [vmem:[%s10125 + $0x6f8] sm:$0xff]
    %v10350 = vld [vmem:[%s10125 + $0x700] sm:$0xff]
    %v10351 = vld [vmem:[%s10125 + $0x708] sm:$0xff]
    %v10352 = vld [vmem:[%s10125 + $0x710] sm:$0xff]
    %v10353 = vld [vmem:[%s10125 + $0x718] sm:$0xff]
    %v10354 = vld [vmem:[%s10125 + $0x720] sm:$0xff]
    %v10355 = vld [vmem:[%s10125 + $0x728] sm:$0xff]
    %v10356 = vld [vmem:[%s10125 + $0x730] sm:$0xff]
    %v10357 = vld [vmem:[%s10125 + $0x738] sm:$0xff]
    %v10358 = vld [vmem:[%s10125 + $0x740] sm:$0xff]
    %v10359 = vld [vmem:[%s10125 + $0x748] sm:$0xff]
    %v10360 = vld [vmem:[%s10125 + $0x750] sm:$0xff]
    %v10361 = vld [vmem:[%s10125 + $0x758] sm:$0xff]
    %v10362 = vld [vmem:[%s10125 + $0x760] sm:$0xff]
    %v10363 = vld [vmem:[%s10125 + $0x768] sm:$0xff]
    %v10364 = vld [vmem:[%s10125 + $0x770] sm:$0xff]
    %v10365 = vld [vmem:[%s10125 + $0x778] sm:$0xff]
    %v10366 = vld [vmem:[%s10125 + $0x780] sm:$0xff]
    %v10367 = vld [vmem:[%s10125 + $0x788] sm:$0xff]
    %v10368 = vld [vmem:[%s10125 + $0x790] sm:$0xff]
    %v10369 = vld [vmem:[%s10125 + $0x798] sm:$0xff]
    %v10370 = vld [vmem:[%s10125 + $0x7a0] sm:$0xff]
    %v10371 = vld [vmem:[%s10125 + $0x7a8] sm:$0xff]
    %v10372 = vld [vmem:[%s10125 + $0x7b0] sm:$0xff]
    %v10373 = vld [vmem:[%s10125 + $0x7b8] sm:$0xff]
    %v10374 = vld [vmem:[%s10125 + $0x7c0] sm:$0xff]
    %v10375 = vld [vmem:[%s10125 + $0x7c8] sm:$0xff]
    %v10376 = vld [vmem:[%s10125 + $0x7d0] sm:$0xff]
    %v10377 = vld [vmem:[%s10125 + $0x7d8] sm:$0xff]
    %v10378 = vld [vmem:[%s10125 + $0x7e0] sm:$0xff]
    %v10379 = vld [vmem:[%s10125 + $0x7e8] sm:$0xff]
    %v10380 = vld [vmem:[%s10125 + $0x7f0] sm:$0xff]
    %v10381 = vld [vmem:[%s10125 + $0x7f8] sm:$0xff]
    %v10382 = vld [vmem:[%s10125 + $0x800] sm:$0xff]
    %v10383 = vld [vmem:[%s10125 + $0x808] sm:$0xff]
    %v10384 = vld [vmem:[%s10125 + $0x810] sm:$0xff]
    %v10385 = vld [vmem:[%s10125 + $0x818] sm:$0xff]
    %v10386 = vld [vmem:[%s10125 + $0x820] sm:$0xff]
    %v10387 = vld [vmem:[%s10125 + $0x828] sm:$0xff]
    %v10388 = vld [vmem:[%s10125 + $0x830] sm:$0xff]
    %v10389 = vld [vmem:[%s10125 + $0x838] sm:$0xff]
    %v10390 = vld [vmem:[%s10125 + $0x840] sm:$0xff]
    %v10391 = vld [vmem:[%s10125 + $0x848] sm:$0xff]
    %v10392 = vld [vmem:[%s10125 + $0x850] sm:$0xff]
    %v10393 = vld [vmem:[%s10125 + $0x858] sm:$0xff]
    %v10394 = vld [vmem:[%s10125 + $0x860] sm:$0xff]
    %v10395 = vld [vmem:[%s10125 + $0x868] sm:$0xff]
    %v10396 = vld [vmem:[%s10125 + $0x870] sm:$0xff]
    %v10397 = vld [vmem:[%s10125 + $0x878] sm:$0xff]
    %v10398 = vld [vmem:[%s10125 + $0x880] sm:$0xff]
    %v10399 = vld [vmem:[%s10125 + $0x888] sm:$0xff]
    %v10400 = vld [vmem:[%s10125 + $0x890] sm:$0xff]
    %v10401 = vld [vmem:[%s10125 + $0x898] sm:$0xff]
    %v10402 = vld [vmem:[%s10125 + $0x8a0] sm:$0xff]
    %v10403 = vld [vmem:[%s10125 + $0x8a8] sm:$0xff]
    %v10404 = vld [vmem:[%s10125 + $0x8b0] sm:$0xff]
    %v10405 = vld [vmem:[%s10125 + $0x8b8] sm:$0xff]
    %v10406 = vld [vmem:[%s10125 + $0x8c0] sm:$0xff]
    %v10407 = vld [vmem:[%s10125 + $0x8c8] sm:$0xff]
    %v10408 = vld [vmem:[%s10125 + $0x8d0] sm:$0xff]
    %v10409 = vld [vmem:[%s10125 + $0x8d8] sm:$0xff]
    %v10410 = vld [vmem:[%s10125 + $0x8e0] sm:$0xff]
    %v10411 = vld [vmem:[%s10125 + $0x8e8] sm:$0xff]
    %v10412 = vld [vmem:[%s10125 + $0x8f0] sm:$0xff]
    %v10413 = vld [vmem:[%s10125 + $0x8f8] sm:$0xff]
    %s10414 = scalar_lea.vmem [#allocation10], 11520
    %v10415 = vld [vmem:[%s10414] sm:$0xff]
    %v10416 = vld [vmem:[%s10414 + $0x8] sm:$0xff]
    %v10417 = vld [vmem:[%s10414 + $0x10] sm:$0xff]
    %v10418 = vld [vmem:[%s10414 + $0x18] sm:$0xff]
    %v10419 = vld [vmem:[%s10414 + $0x20] sm:$0xff]
    %v10420 = vld [vmem:[%s10414 + $0x28] sm:$0xff]
    %v10421 = vld [vmem:[%s10414 + $0x30] sm:$0xff]
    %v10422 = vld [vmem:[%s10414 + $0x38] sm:$0xff]
    %v10423 = vld [vmem:[%s10414 + $0x40] sm:$0xff]
    %v10424 = vld [vmem:[%s10414 + $0x48] sm:$0xff]
    %v10425 = vld [vmem:[%s10414 + $0x50] sm:$0xff]
    %v10426 = vld [vmem:[%s10414 + $0x58] sm:$0xff]
    %v10427 = vld [vmem:[%s10414 + $0x60] sm:$0xff]
    %v10428 = vld [vmem:[%s10414 + $0x68] sm:$0xff]
    %v10429 = vld [vmem:[%s10414 + $0x70] sm:$0xff]
    %v10430 = vld [vmem:[%s10414 + $0x78] sm:$0xff]
    %v10431 = vld [vmem:[%s10414 + $0x80] sm:$0xff]
    %v10432 = vld [vmem:[%s10414 + $0x88] sm:$0xff]
    %v10433 = vld [vmem:[%s10414 + $0x90] sm:$0xff]
    %v10434 = vld [vmem:[%s10414 + $0x98] sm:$0xff]
    %v10435 = vld [vmem:[%s10414 + $0xa0] sm:$0xff]
    %v10436 = vld [vmem:[%s10414 + $0xa8] sm:$0xff]
    %v10437 = vld [vmem:[%s10414 + $0xb0] sm:$0xff]
    %v10438 = vld [vmem:[%s10414 + $0xb8] sm:$0xff]
    %v10439 = vld [vmem:[%s10414 + $0xc0] sm:$0xff]
    %v10440 = vld [vmem:[%s10414 + $0xc8] sm:$0xff]
    %v10441 = vld [vmem:[%s10414 + $0xd0] sm:$0xff]
    %v10442 = vld [vmem:[%s10414 + $0xd8] sm:$0xff]
    %v10443 = vld [vmem:[%s10414 + $0xe0] sm:$0xff]
    %v10444 = vld [vmem:[%s10414 + $0xe8] sm:$0xff]
    %v10445 = vld [vmem:[%s10414 + $0xf0] sm:$0xff]
    %v10446 = vld [vmem:[%s10414 + $0xf8] sm:$0xff]
    %v10447 = vld [vmem:[%s10414 + $0x100] sm:$0xff]
    %v10448 = vld [vmem:[%s10414 + $0x108] sm:$0xff]
    %v10449 = vld [vmem:[%s10414 + $0x110] sm:$0xff]
    %v10450 = vld [vmem:[%s10414 + $0x118] sm:$0xff]
    %v10451 = vld [vmem:[%s10414 + $0x120] sm:$0xff]
    %v10452 = vld [vmem:[%s10414 + $0x128] sm:$0xff]
    %v10453 = vld [vmem:[%s10414 + $0x130] sm:$0xff]
    %v10454 = vld [vmem:[%s10414 + $0x138] sm:$0xff]
    %v10455 = vld [vmem:[%s10414 + $0x140] sm:$0xff]
    %v10456 = vld [vmem:[%s10414 + $0x148] sm:$0xff]
    %v10457 = vld [vmem:[%s10414 + $0x150] sm:$0xff]
    %v10458 = vld [vmem:[%s10414 + $0x158] sm:$0xff]
    %v10459 = vld [vmem:[%s10414 + $0x160] sm:$0xff]
    %v10460 = vld [vmem:[%s10414 + $0x168] sm:$0xff]
    %v10461 = vld [vmem:[%s10414 + $0x170] sm:$0xff]
    %v10462 = vld [vmem:[%s10414 + $0x178] sm:$0xff]
    %v10463 = vld [vmem:[%s10414 + $0x180] sm:$0xff]
    %v10464 = vld [vmem:[%s10414 + $0x188] sm:$0xff]
    %v10465 = vld [vmem:[%s10414 + $0x190] sm:$0xff]
    %v10466 = vld [vmem:[%s10414 + $0x198] sm:$0xff]
    %v10467 = vld [vmem:[%s10414 + $0x1a0] sm:$0xff]
    %v10468 = vld [vmem:[%s10414 + $0x1a8] sm:$0xff]
    %v10469 = vld [vmem:[%s10414 + $0x1b0] sm:$0xff]
    %v10470 = vld [vmem:[%s10414 + $0x1b8] sm:$0xff]
    %v10471 = vld [vmem:[%s10414 + $0x1c0] sm:$0xff]
    %v10472 = vld [vmem:[%s10414 + $0x1c8] sm:$0xff]
    %v10473 = vld [vmem:[%s10414 + $0x1d0] sm:$0xff]
    %v10474 = vld [vmem:[%s10414 + $0x1d8] sm:$0xff]
    %v10475 = vld [vmem:[%s10414 + $0x1e0] sm:$0xff]
    %v10476 = vld [vmem:[%s10414 + $0x1e8] sm:$0xff]
    %v10477 = vld [vmem:[%s10414 + $0x1f0] sm:$0xff]
    %v10478 = vld [vmem:[%s10414 + $0x1f8] sm:$0xff]
    %v10479 = vld [vmem:[%s10414 + $0x200] sm:$0xff]
    %v10480 = vld [vmem:[%s10414 + $0x208] sm:$0xff]
    %v10481 = vld [vmem:[%s10414 + $0x210] sm:$0xff]
    %v10482 = vld [vmem:[%s10414 + $0x218] sm:$0xff]
    %v10483 = vld [vmem:[%s10414 + $0x220] sm:$0xff]
    %v10484 = vld [vmem:[%s10414 + $0x228] sm:$0xff]
    %v10485 = vld [vmem:[%s10414 + $0x230] sm:$0xff]
    %v10486 = vld [vmem:[%s10414 + $0x238] sm:$0xff]
    %v10487 = vld [vmem:[%s10414 + $0x240] sm:$0xff]
    %v10488 = vld [vmem:[%s10414 + $0x248] sm:$0xff]
    %v10489 = vld [vmem:[%s10414 + $0x250] sm:$0xff]
    %v10490 = vld [vmem:[%s10414 + $0x258] sm:$0xff]
    %v10491 = vld [vmem:[%s10414 + $0x260] sm:$0xff]
    %v10492 = vld [vmem:[%s10414 + $0x268] sm:$0xff]
    %v10493 = vld [vmem:[%s10414 + $0x270] sm:$0xff]
    %v10494 = vld [vmem:[%s10414 + $0x278] sm:$0xff]
    %v10495 = vld [vmem:[%s10414 + $0x280] sm:$0xff]
    %v10496 = vld [vmem:[%s10414 + $0x288] sm:$0xff]
    %v10497 = vld [vmem:[%s10414 + $0x290] sm:$0xff]
    %v10498 = vld [vmem:[%s10414 + $0x298] sm:$0xff]
    %v10499 = vld [vmem:[%s10414 + $0x2a0] sm:$0xff]
    %v10500 = vld [vmem:[%s10414 + $0x2a8] sm:$0xff]
    %v10501 = vld [vmem:[%s10414 + $0x2b0] sm:$0xff]
    %v10502 = vld [vmem:[%s10414 + $0x2b8] sm:$0xff]
    %v10503 = vld [vmem:[%s10414 + $0x2c0] sm:$0xff]
    %v10504 = vld [vmem:[%s10414 + $0x2c8] sm:$0xff]
    %v10505 = vld [vmem:[%s10414 + $0x2d0] sm:$0xff]
    %v10506 = vld [vmem:[%s10414 + $0x2d8] sm:$0xff]
    %v10507 = vld [vmem:[%s10414 + $0x2e0] sm:$0xff]
    %v10508 = vld [vmem:[%s10414 + $0x2e8] sm:$0xff]
    %v10509 = vld [vmem:[%s10414 + $0x2f0] sm:$0xff]
    %v10510 = vld [vmem:[%s10414 + $0x2f8] sm:$0xff]
    %v10511 = vld [vmem:[%s10414 + $0x300] sm:$0xff]
    %v10512 = vld [vmem:[%s10414 + $0x308] sm:$0xff]
    %v10513 = vld [vmem:[%s10414 + $0x310] sm:$0xff]
    %v10514 = vld [vmem:[%s10414 + $0x318] sm:$0xff]
    %v10515 = vld [vmem:[%s10414 + $0x320] sm:$0xff]
    %v10516 = vld [vmem:[%s10414 + $0x328] sm:$0xff]
    %v10517 = vld [vmem:[%s10414 + $0x330] sm:$0xff]
    %v10518 = vld [vmem:[%s10414 + $0x338] sm:$0xff]
    %v10519 = vld [vmem:[%s10414 + $0x340] sm:$0xff]
    %v10520 = vld [vmem:[%s10414 + $0x348] sm:$0xff]
    %v10521 = vld [vmem:[%s10414 + $0x350] sm:$0xff]
    %v10522 = vld [vmem:[%s10414 + $0x358] sm:$0xff]
    %v10523 = vld [vmem:[%s10414 + $0x360] sm:$0xff]
    %v10524 = vld [vmem:[%s10414 + $0x368] sm:$0xff]
    %v10525 = vld [vmem:[%s10414 + $0x370] sm:$0xff]
    %v10526 = vld [vmem:[%s10414 + $0x378] sm:$0xff]
    %v10527 = vld [vmem:[%s10414 + $0x380] sm:$0xff]
    %v10528 = vld [vmem:[%s10414 + $0x388] sm:$0xff]
    %v10529 = vld [vmem:[%s10414 + $0x390] sm:$0xff]
    %v10530 = vld [vmem:[%s10414 + $0x398] sm:$0xff]
    %v10531 = vld [vmem:[%s10414 + $0x3a0] sm:$0xff]
    %v10532 = vld [vmem:[%s10414 + $0x3a8] sm:$0xff]
    %v10533 = vld [vmem:[%s10414 + $0x3b0] sm:$0xff]
    %v10534 = vld [vmem:[%s10414 + $0x3b8] sm:$0xff]
    %v10535 = vld [vmem:[%s10414 + $0x3c0] sm:$0xff]
    %v10536 = vld [vmem:[%s10414 + $0x3c8] sm:$0xff]
    %v10537 = vld [vmem:[%s10414 + $0x3d0] sm:$0xff]
    %v10538 = vld [vmem:[%s10414 + $0x3d8] sm:$0xff]
    %v10539 = vld [vmem:[%s10414 + $0x3e0] sm:$0xff]
    %v10540 = vld [vmem:[%s10414 + $0x3e8] sm:$0xff]
    %v10541 = vld [vmem:[%s10414 + $0x3f0] sm:$0xff]
    %v10542 = vld [vmem:[%s10414 + $0x3f8] sm:$0xff]
    %v10543 = vld [vmem:[%s10414 + $0x400] sm:$0xff]
    %v10544 = vld [vmem:[%s10414 + $0x408] sm:$0xff]
    %v10545 = vld [vmem:[%s10414 + $0x410] sm:$0xff]
    %v10546 = vld [vmem:[%s10414 + $0x418] sm:$0xff]
    %v10547 = vld [vmem:[%s10414 + $0x420] sm:$0xff]
    %v10548 = vld [vmem:[%s10414 + $0x428] sm:$0xff]
    %v10549 = vld [vmem:[%s10414 + $0x430] sm:$0xff]
    %v10550 = vld [vmem:[%s10414 + $0x438] sm:$0xff]
    %v10551 = vld [vmem:[%s10414 + $0x440] sm:$0xff]
    %v10552 = vld [vmem:[%s10414 + $0x448] sm:$0xff]
    %v10553 = vld [vmem:[%s10414 + $0x450] sm:$0xff]
    %v10554 = vld [vmem:[%s10414 + $0x458] sm:$0xff]
    %v10555 = vld [vmem:[%s10414 + $0x460] sm:$0xff]
    %v10556 = vld [vmem:[%s10414 + $0x468] sm:$0xff]
    %v10557 = vld [vmem:[%s10414 + $0x470] sm:$0xff]
    %v10558 = vld [vmem:[%s10414 + $0x478] sm:$0xff]
    %v10559 = vld [vmem:[%s10414 + $0x480] sm:$0xff]
    %v10560 = vld [vmem:[%s10414 + $0x488] sm:$0xff]
    %v10561 = vld [vmem:[%s10414 + $0x490] sm:$0xff]
    %v10562 = vld [vmem:[%s10414 + $0x498] sm:$0xff]
    %v10563 = vld [vmem:[%s10414 + $0x4a0] sm:$0xff]
    %v10564 = vld [vmem:[%s10414 + $0x4a8] sm:$0xff]
    %v10565 = vld [vmem:[%s10414 + $0x4b0] sm:$0xff]
    %v10566 = vld [vmem:[%s10414 + $0x4b8] sm:$0xff]
    %v10567 = vld [vmem:[%s10414 + $0x4c0] sm:$0xff]
    %v10568 = vld [vmem:[%s10414 + $0x4c8] sm:$0xff]
    %v10569 = vld [vmem:[%s10414 + $0x4d0] sm:$0xff]
    %v10570 = vld [vmem:[%s10414 + $0x4d8] sm:$0xff]
    %v10571 = vld [vmem:[%s10414 + $0x4e0] sm:$0xff]
    %v10572 = vld [vmem:[%s10414 + $0x4e8] sm:$0xff]
    %v10573 = vld [vmem:[%s10414 + $0x4f0] sm:$0xff]
    %v10574 = vld [vmem:[%s10414 + $0x4f8] sm:$0xff]
    %v10575 = vld [vmem:[%s10414 + $0x500] sm:$0xff]
    %v10576 = vld [vmem:[%s10414 + $0x508] sm:$0xff]
    %v10577 = vld [vmem:[%s10414 + $0x510] sm:$0xff]
    %v10578 = vld [vmem:[%s10414 + $0x518] sm:$0xff]
    %v10579 = vld [vmem:[%s10414 + $0x520] sm:$0xff]
    %v10580 = vld [vmem:[%s10414 + $0x528] sm:$0xff]
    %v10581 = vld [vmem:[%s10414 + $0x530] sm:$0xff]
    %v10582 = vld [vmem:[%s10414 + $0x538] sm:$0xff]
    %v10583 = vld [vmem:[%s10414 + $0x540] sm:$0xff]
    %v10584 = vld [vmem:[%s10414 + $0x548] sm:$0xff]
    %v10585 = vld [vmem:[%s10414 + $0x550] sm:$0xff]
    %v10586 = vld [vmem:[%s10414 + $0x558] sm:$0xff]
    %v10587 = vld [vmem:[%s10414 + $0x560] sm:$0xff]
    %v10588 = vld [vmem:[%s10414 + $0x568] sm:$0xff]
    %v10589 = vld [vmem:[%s10414 + $0x570] sm:$0xff]
    %v10590 = vld [vmem:[%s10414 + $0x578] sm:$0xff]
    %v10591 = vld [vmem:[%s10414 + $0x580] sm:$0xff]
    %v10592 = vld [vmem:[%s10414 + $0x588] sm:$0xff]
    %v10593 = vld [vmem:[%s10414 + $0x590] sm:$0xff]
    %v10594 = vld [vmem:[%s10414 + $0x598] sm:$0xff]
    %v10595 = vld [vmem:[%s10414 + $0x5a0] sm:$0xff]
    %v10596 = vld [vmem:[%s10414 + $0x5a8] sm:$0xff]
    %v10597 = vld [vmem:[%s10414 + $0x5b0] sm:$0xff]
    %v10598 = vld [vmem:[%s10414 + $0x5b8] sm:$0xff]
    %v10599 = vld [vmem:[%s10414 + $0x5c0] sm:$0xff]
    %v10600 = vld [vmem:[%s10414 + $0x5c8] sm:$0xff]
    %v10601 = vld [vmem:[%s10414 + $0x5d0] sm:$0xff]
    %v10602 = vld [vmem:[%s10414 + $0x5d8] sm:$0xff]
    %v10603 = vld [vmem:[%s10414 + $0x5e0] sm:$0xff]
    %v10604 = vld [vmem:[%s10414 + $0x5e8] sm:$0xff]
    %v10605 = vld [vmem:[%s10414 + $0x5f0] sm:$0xff]
    %v10606 = vld [vmem:[%s10414 + $0x5f8] sm:$0xff]
    %v10607 = vld [vmem:[%s10414 + $0x600] sm:$0xff]
    %v10608 = vld [vmem:[%s10414 + $0x608] sm:$0xff]
    %v10609 = vld [vmem:[%s10414 + $0x610] sm:$0xff]
    %v10610 = vld [vmem:[%s10414 + $0x618] sm:$0xff]
    %v10611 = vld [vmem:[%s10414 + $0x620] sm:$0xff]
    %v10612 = vld [vmem:[%s10414 + $0x628] sm:$0xff]
    %v10613 = vld [vmem:[%s10414 + $0x630] sm:$0xff]
    %v10614 = vld [vmem:[%s10414 + $0x638] sm:$0xff]
    %v10615 = vld [vmem:[%s10414 + $0x640] sm:$0xff]
    %v10616 = vld [vmem:[%s10414 + $0x648] sm:$0xff]
    %v10617 = vld [vmem:[%s10414 + $0x650] sm:$0xff]
    %v10618 = vld [vmem:[%s10414 + $0x658] sm:$0xff]
    %v10619 = vld [vmem:[%s10414 + $0x660] sm:$0xff]
    %v10620 = vld [vmem:[%s10414 + $0x668] sm:$0xff]
    %v10621 = vld [vmem:[%s10414 + $0x670] sm:$0xff]
    %v10622 = vld [vmem:[%s10414 + $0x678] sm:$0xff]
    %v10623 = vld [vmem:[%s10414 + $0x680] sm:$0xff]
    %v10624 = vld [vmem:[%s10414 + $0x688] sm:$0xff]
    %v10625 = vld [vmem:[%s10414 + $0x690] sm:$0xff]
    %v10626 = vld [vmem:[%s10414 + $0x698] sm:$0xff]
    %v10627 = vld [vmem:[%s10414 + $0x6a0] sm:$0xff]
    %v10628 = vld [vmem:[%s10414 + $0x6a8] sm:$0xff]
    %v10629 = vld [vmem:[%s10414 + $0x6b0] sm:$0xff]
    %v10630 = vld [vmem:[%s10414 + $0x6b8] sm:$0xff]
    %v10631 = vld [vmem:[%s10414 + $0x6c0] sm:$0xff]
    %v10632 = vld [vmem:[%s10414 + $0x6c8] sm:$0xff]
    %v10633 = vld [vmem:[%s10414 + $0x6d0] sm:$0xff]
    %v10634 = vld [vmem:[%s10414 + $0x6d8] sm:$0xff]
    %v10635 = vld [vmem:[%s10414 + $0x6e0] sm:$0xff]
    %v10636 = vld [vmem:[%s10414 + $0x6e8] sm:$0xff]
    %v10637 = vld [vmem:[%s10414 + $0x6f0] sm:$0xff]
    %v10638 = vld [vmem:[%s10414 + $0x6f8] sm:$0xff]
    %v10639 = vld [vmem:[%s10414 + $0x700] sm:$0xff]
    %v10640 = vld [vmem:[%s10414 + $0x708] sm:$0xff]
    %v10641 = vld [vmem:[%s10414 + $0x710] sm:$0xff]
    %v10642 = vld [vmem:[%s10414 + $0x718] sm:$0xff]
    %v10643 = vld [vmem:[%s10414 + $0x720] sm:$0xff]
    %v10644 = vld [vmem:[%s10414 + $0x728] sm:$0xff]
    %v10645 = vld [vmem:[%s10414 + $0x730] sm:$0xff]
    %v10646 = vld [vmem:[%s10414 + $0x738] sm:$0xff]
    %v10647 = vld [vmem:[%s10414 + $0x740] sm:$0xff]
    %v10648 = vld [vmem:[%s10414 + $0x748] sm:$0xff]
    %v10649 = vld [vmem:[%s10414 + $0x750] sm:$0xff]
    %v10650 = vld [vmem:[%s10414 + $0x758] sm:$0xff]
    %v10651 = vld [vmem:[%s10414 + $0x760] sm:$0xff]
    %v10652 = vld [vmem:[%s10414 + $0x768] sm:$0xff]
    %v10653 = vld [vmem:[%s10414 + $0x770] sm:$0xff]
    %v10654 = vld [vmem:[%s10414 + $0x778] sm:$0xff]
    %v10655 = vld [vmem:[%s10414 + $0x780] sm:$0xff]
    %v10656 = vld [vmem:[%s10414 + $0x788] sm:$0xff]
    %v10657 = vld [vmem:[%s10414 + $0x790] sm:$0xff]
    %v10658 = vld [vmem:[%s10414 + $0x798] sm:$0xff]
    %v10659 = vld [vmem:[%s10414 + $0x7a0] sm:$0xff]
    %v10660 = vld [vmem:[%s10414 + $0x7a8] sm:$0xff]
    %v10661 = vld [vmem:[%s10414 + $0x7b0] sm:$0xff]
    %v10662 = vld [vmem:[%s10414 + $0x7b8] sm:$0xff]
    %v10663 = vld [vmem:[%s10414 + $0x7c0] sm:$0xff]
    %v10664 = vld [vmem:[%s10414 + $0x7c8] sm:$0xff]
    %v10665 = vld [vmem:[%s10414 + $0x7d0] sm:$0xff]
    %v10666 = vld [vmem:[%s10414 + $0x7d8] sm:$0xff]
    %v10667 = vld [vmem:[%s10414 + $0x7e0] sm:$0xff]
    %v10668 = vld [vmem:[%s10414 + $0x7e8] sm:$0xff]
    %v10669 = vld [vmem:[%s10414 + $0x7f0] sm:$0xff]
    %v10670 = vld [vmem:[%s10414 + $0x7f8] sm:$0xff]
    %v10671 = vld [vmem:[%s10414 + $0x800] sm:$0xff]
    %v10672 = vld [vmem:[%s10414 + $0x808] sm:$0xff]
    %v10673 = vld [vmem:[%s10414 + $0x810] sm:$0xff]
    %v10674 = vld [vmem:[%s10414 + $0x818] sm:$0xff]
    %v10675 = vld [vmem:[%s10414 + $0x820] sm:$0xff]
    %v10676 = vld [vmem:[%s10414 + $0x828] sm:$0xff]
    %v10677 = vld [vmem:[%s10414 + $0x830] sm:$0xff]
    %v10678 = vld [vmem:[%s10414 + $0x838] sm:$0xff]
    %v10679 = vld [vmem:[%s10414 + $0x840] sm:$0xff]
    %v10680 = vld [vmem:[%s10414 + $0x848] sm:$0xff]
    %v10681 = vld [vmem:[%s10414 + $0x850] sm:$0xff]
    %v10682 = vld [vmem:[%s10414 + $0x858] sm:$0xff]
    %v10683 = vld [vmem:[%s10414 + $0x860] sm:$0xff]
    %v10684 = vld [vmem:[%s10414 + $0x868] sm:$0xff]
    %v10685 = vld [vmem:[%s10414 + $0x870] sm:$0xff]
    %v10686 = vld [vmem:[%s10414 + $0x878] sm:$0xff]
    %v10687 = vld [vmem:[%s10414 + $0x880] sm:$0xff]
    %v10688 = vld [vmem:[%s10414 + $0x888] sm:$0xff]
    %v10689 = vld [vmem:[%s10414 + $0x890] sm:$0xff]
    %v10690 = vld [vmem:[%s10414 + $0x898] sm:$0xff]
    %v10691 = vld [vmem:[%s10414 + $0x8a0] sm:$0xff]
    %v10692 = vld [vmem:[%s10414 + $0x8a8] sm:$0xff]
    %v10693 = vld [vmem:[%s10414 + $0x8b0] sm:$0xff]
    %v10694 = vld [vmem:[%s10414 + $0x8b8] sm:$0xff]
    %v10695 = vld [vmem:[%s10414 + $0x8c0] sm:$0xff]
    %v10696 = vld [vmem:[%s10414 + $0x8c8] sm:$0xff]
    %v10697 = vld [vmem:[%s10414 + $0x8d0] sm:$0xff]
    %v10698 = vld [vmem:[%s10414 + $0x8d8] sm:$0xff]
    %v10699 = vld [vmem:[%s10414 + $0x8e0] sm:$0xff]
    %v10700 = vld [vmem:[%s10414 + $0x8e8] sm:$0xff]
    %v10701 = vld [vmem:[%s10414 + $0x8f0] sm:$0xff]
    %v10702 = vld [vmem:[%s10414 + $0x8f8] sm:$0xff]
    %v10991 = vunpack.c.l.b16 %v10415
    %v10992 = vunpack.c.h.b16 %v10415
    %v10993 = vunpack.c.l.b16 %v10416
    %v10994 = vunpack.c.h.b16 %v10416
    %v10995 = vunpack.c.l.b16 %v10417
    %v10996 = vunpack.c.h.b16 %v10417
    %v10997 = vunpack.c.l.b16 %v10418
    %v10998 = vunpack.c.h.b16 %v10418
    %v10999 = vunpack.c.l.b16 %v10419
    %v11000 = vunpack.c.h.b16 %v10419
    %v11001 = vunpack.c.l.b16 %v10420
    %v11002 = vunpack.c.h.b16 %v10420
    %v11003 = vunpack.c.l.b16 %v10421
    %v11004 = vunpack.c.h.b16 %v10421
    %v11005 = vunpack.c.l.b16 %v10422
    %v11006 = vunpack.c.h.b16 %v10422
    %v11007 = vunpack.c.l.b16 %v10423
    %v11008 = vunpack.c.h.b16 %v10423
    %v11009 = vunpack.c.l.b16 %v10424
    %v11010 = vunpack.c.h.b16 %v10424
    %v11011 = vunpack.c.l.b16 %v10425
    %v11012 = vunpack.c.h.b16 %v10425
    %v11013 = vunpack.c.l.b16 %v10426
    %v11014 = vunpack.c.h.b16 %v10426
    %v11015 = vunpack.c.l.b16 %v10427
    %v11016 = vunpack.c.h.b16 %v10427
    %v11017 = vunpack.c.l.b16 %v10428
    %v11018 = vunpack.c.h.b16 %v10428
    %v11019 = vunpack.c.l.b16 %v10429
    %v11020 = vunpack.c.h.b16 %v10429
    %v11021 = vunpack.c.l.b16 %v10430
    %v11022 = vunpack.c.h.b16 %v10430
    %v11023 = vunpack.c.l.b16 %v10431
    %v11024 = vunpack.c.h.b16 %v10431
    %v11025 = vunpack.c.l.b16 %v10432
    %v11026 = vunpack.c.h.b16 %v10432
    %v11027 = vunpack.c.l.b16 %v10433
    %v11028 = vunpack.c.h.b16 %v10433
    %v11029 = vunpack.c.l.b16 %v10434
    %v11030 = vunpack.c.h.b16 %v10434
    %v11031 = vunpack.c.l.b16 %v10435
    %v11032 = vunpack.c.h.b16 %v10435
    %v11033 = vunpack.c.l.b16 %v10436
    %v11034 = vunpack.c.h.b16 %v10436
    %v11035 = vunpack.c.l.b16 %v10437
    %v11036 = vunpack.c.h.b16 %v10437
    %v11037 = vunpack.c.l.b16 %v10438
    %v11038 = vunpack.c.h.b16 %v10438
    %v11039 = vunpack.c.l.b16 %v10439
    %v11040 = vunpack.c.h.b16 %v10439
    %v11041 = vunpack.c.l.b16 %v10440
    %v11042 = vunpack.c.h.b16 %v10440
    %v11043 = vunpack.c.l.b16 %v10441
    %v11044 = vunpack.c.h.b16 %v10441
    %v11045 = vunpack.c.l.b16 %v10442
    %v11046 = vunpack.c.h.b16 %v10442
    %v11047 = vunpack.c.l.b16 %v10443
    %v11048 = vunpack.c.h.b16 %v10443
    %v11049 = vunpack.c.l.b16 %v10444
    %v11050 = vunpack.c.h.b16 %v10444
    %v11051 = vunpack.c.l.b16 %v10445
    %v11052 = vunpack.c.h.b16 %v10445
    %v11053 = vunpack.c.l.b16 %v10446
    %v11054 = vunpack.c.h.b16 %v10446
    %v11055 = vunpack.c.l.b16 %v10447
    %v11056 = vunpack.c.h.b16 %v10447
    %v11057 = vunpack.c.l.b16 %v10448
    %v11058 = vunpack.c.h.b16 %v10448
    %v11059 = vunpack.c.l.b16 %v10449
    %v11060 = vunpack.c.h.b16 %v10449
    %v11061 = vunpack.c.l.b16 %v10450
    %v11062 = vunpack.c.h.b16 %v10450
    %v11063 = vunpack.c.l.b16 %v10451
    %v11064 = vunpack.c.h.b16 %v10451
    %v11065 = vunpack.c.l.b16 %v10452
    %v11066 = vunpack.c.h.b16 %v10452
    %v11067 = vunpack.c.l.b16 %v10453
    %v11068 = vunpack.c.h.b16 %v10453
    %v11069 = vunpack.c.l.b16 %v10454
    %v11070 = vunpack.c.h.b16 %v10454
    %v11071 = vunpack.c.l.b16 %v10455
    %v11072 = vunpack.c.h.b16 %v10455
    %v11073 = vunpack.c.l.b16 %v10456
    %v11074 = vunpack.c.h.b16 %v10456
    %v11075 = vunpack.c.l.b16 %v10457
    %v11076 = vunpack.c.h.b16 %v10457
    %v11077 = vunpack.c.l.b16 %v10458
    %v11078 = vunpack.c.h.b16 %v10458
    %v11079 = vunpack.c.l.b16 %v10459
    %v11080 = vunpack.c.h.b16 %v10459
    %v11081 = vunpack.c.l.b16 %v10460
    %v11082 = vunpack.c.h.b16 %v10460
    %v11083 = vunpack.c.l.b16 %v10461
    %v11084 = vunpack.c.h.b16 %v10461
    %v11085 = vunpack.c.l.b16 %v10462
    %v11086 = vunpack.c.h.b16 %v10462
    %v11087 = vunpack.c.l.b16 %v10463
    %v11088 = vunpack.c.h.b16 %v10463
    %v11089 = vunpack.c.l.b16 %v10464
    %v11090 = vunpack.c.h.b16 %v10464
    %v11091 = vunpack.c.l.b16 %v10465
    %v11092 = vunpack.c.h.b16 %v10465
    %v11093 = vunpack.c.l.b16 %v10466
    %v11094 = vunpack.c.h.b16 %v10466
    %v11095 = vunpack.c.l.b16 %v10467
    %v11096 = vunpack.c.h.b16 %v10467
    %v11097 = vunpack.c.l.b16 %v10468
    %v11098 = vunpack.c.h.b16 %v10468
    %v11099 = vunpack.c.l.b16 %v10469
    %v11100 = vunpack.c.h.b16 %v10469
    %v11101 = vunpack.c.l.b16 %v10470
    %v11102 = vunpack.c.h.b16 %v10470
    %v11103 = vunpack.c.l.b16 %v10471
    %v11104 = vunpack.c.h.b16 %v10471
    %v11105 = vunpack.c.l.b16 %v10472
    %v11106 = vunpack.c.h.b16 %v10472
    %v11107 = vunpack.c.l.b16 %v10473
    %v11108 = vunpack.c.h.b16 %v10473
    %v11109 = vunpack.c.l.b16 %v10474
    %v11110 = vunpack.c.h.b16 %v10474
    %v11111 = vunpack.c.l.b16 %v10475
    %v11112 = vunpack.c.h.b16 %v10475
    %v11113 = vunpack.c.l.b16 %v10476
    %v11114 = vunpack.c.h.b16 %v10476
    %v11115 = vunpack.c.l.b16 %v10477
    %v11116 = vunpack.c.h.b16 %v10477
    %v11117 = vunpack.c.l.b16 %v10478
    %v11118 = vunpack.c.h.b16 %v10478
    %v11119 = vunpack.c.l.b16 %v10479
    %v11120 = vunpack.c.h.b16 %v10479
    %v11121 = vunpack.c.l.b16 %v10480
    %v11122 = vunpack.c.h.b16 %v10480
    %v11123 = vunpack.c.l.b16 %v10481
    %v11124 = vunpack.c.h.b16 %v10481
    %v11125 = vunpack.c.l.b16 %v10482
    %v11126 = vunpack.c.h.b16 %v10482
    %v11127 = vunpack.c.l.b16 %v10483
    %v11128 = vunpack.c.h.b16 %v10483
    %v11129 = vunpack.c.l.b16 %v10484
    %v11130 = vunpack.c.h.b16 %v10484
    %v11131 = vunpack.c.l.b16 %v10485
    %v11132 = vunpack.c.h.b16 %v10485
    %v11133 = vunpack.c.l.b16 %v10486
    %v11134 = vunpack.c.h.b16 %v10486
    %v11135 = vunpack.c.l.b16 %v10487
    %v11136 = vunpack.c.h.b16 %v10487
    %v11137 = vunpack.c.l.b16 %v10488
    %v11138 = vunpack.c.h.b16 %v10488
    %v11139 = vunpack.c.l.b16 %v10489
    %v11140 = vunpack.c.h.b16 %v10489
    %v11141 = vunpack.c.l.b16 %v10490
    %v11142 = vunpack.c.h.b16 %v10490
    %v11143 = vunpack.c.l.b16 %v10491
    %v11144 = vunpack.c.h.b16 %v10491
    %v11145 = vunpack.c.l.b16 %v10492
    %v11146 = vunpack.c.h.b16 %v10492
    %v11147 = vunpack.c.l.b16 %v10493
    %v11148 = vunpack.c.h.b16 %v10493
    %v11149 = vunpack.c.l.b16 %v10494
    %v11150 = vunpack.c.h.b16 %v10494
    %v11151 = vunpack.c.l.b16 %v10495
    %v11152 = vunpack.c.h.b16 %v10495
    %v11153 = vunpack.c.l.b16 %v10496
    %v11154 = vunpack.c.h.b16 %v10496
    %v11155 = vunpack.c.l.b16 %v10497
    %v11156 = vunpack.c.h.b16 %v10497
    %v11157 = vunpack.c.l.b16 %v10498
    %v11158 = vunpack.c.h.b16 %v10498
    %v11159 = vunpack.c.l.b16 %v10499
    %v11160 = vunpack.c.h.b16 %v10499
    %v11161 = vunpack.c.l.b16 %v10500
    %v11162 = vunpack.c.h.b16 %v10500
    %v11163 = vunpack.c.l.b16 %v10501
    %v11164 = vunpack.c.h.b16 %v10501
    %v11165 = vunpack.c.l.b16 %v10502
    %v11166 = vunpack.c.h.b16 %v10502
    %v11167 = vunpack.c.l.b16 %v10503
    %v11168 = vunpack.c.h.b16 %v10503
    %v11169 = vunpack.c.l.b16 %v10504
    %v11170 = vunpack.c.h.b16 %v10504
    %v11171 = vunpack.c.l.b16 %v10505
    %v11172 = vunpack.c.h.b16 %v10505
    %v11173 = vunpack.c.l.b16 %v10506
    %v11174 = vunpack.c.h.b16 %v10506
    %v11175 = vunpack.c.l.b16 %v10507
    %v11176 = vunpack.c.h.b16 %v10507
    %v11177 = vunpack.c.l.b16 %v10508
    %v11178 = vunpack.c.h.b16 %v10508
    %v11179 = vunpack.c.l.b16 %v10509
    %v11180 = vunpack.c.h.b16 %v10509
    %v11181 = vunpack.c.l.b16 %v10510
    %v11182 = vunpack.c.h.b16 %v10510
    %v11183 = vunpack.c.l.b16 %v10511
    %v11184 = vunpack.c.h.b16 %v10511
    %v11185 = vunpack.c.l.b16 %v10512
    %v11186 = vunpack.c.h.b16 %v10512
    %v11187 = vunpack.c.l.b16 %v10513
    %v11188 = vunpack.c.h.b16 %v10513
    %v11189 = vunpack.c.l.b16 %v10514
    %v11190 = vunpack.c.h.b16 %v10514
    %v11191 = vunpack.c.l.b16 %v10515
    %v11192 = vunpack.c.h.b16 %v10515
    %v11193 = vunpack.c.l.b16 %v10516
    %v11194 = vunpack.c.h.b16 %v10516
    %v11195 = vunpack.c.l.b16 %v10517
    %v11196 = vunpack.c.h.b16 %v10517
    %v11197 = vunpack.c.l.b16 %v10518
    %v11198 = vunpack.c.h.b16 %v10518
    %v11199 = vunpack.c.l.b16 %v10519
    %v11200 = vunpack.c.h.b16 %v10519
    %v11201 = vunpack.c.l.b16 %v10520
    %v11202 = vunpack.c.h.b16 %v10520
    %v11203 = vunpack.c.l.b16 %v10521
    %v11204 = vunpack.c.h.b16 %v10521
    %v11205 = vunpack.c.l.b16 %v10522
    %v11206 = vunpack.c.h.b16 %v10522
    %v11207 = vunpack.c.l.b16 %v10523
    %v11208 = vunpack.c.h.b16 %v10523
    %v11209 = vunpack.c.l.b16 %v10524
    %v11210 = vunpack.c.h.b16 %v10524
    %v11211 = vunpack.c.l.b16 %v10525
    %v11212 = vunpack.c.h.b16 %v10525
    %v11213 = vunpack.c.l.b16 %v10526
    %v11214 = vunpack.c.h.b16 %v10526
    %v11215 = vunpack.c.l.b16 %v10527
    %v11216 = vunpack.c.h.b16 %v10527
    %v11217 = vunpack.c.l.b16 %v10528
    %v11218 = vunpack.c.h.b16 %v10528
    %v11219 = vunpack.c.l.b16 %v10529
    %v11220 = vunpack.c.h.b16 %v10529
    %v11221 = vunpack.c.l.b16 %v10530
    %v11222 = vunpack.c.h.b16 %v10530
    %v11223 = vunpack.c.l.b16 %v10531
    %v11224 = vunpack.c.h.b16 %v10531
    %v11225 = vunpack.c.l.b16 %v10532
    %v11226 = vunpack.c.h.b16 %v10532
    %v11227 = vunpack.c.l.b16 %v10533
    %v11228 = vunpack.c.h.b16 %v10533
    %v11229 = vunpack.c.l.b16 %v10534
    %v11230 = vunpack.c.h.b16 %v10534
    %v11231 = vunpack.c.l.b16 %v10535
    %v11232 = vunpack.c.h.b16 %v10535
    %v11233 = vunpack.c.l.b16 %v10536
    %v11234 = vunpack.c.h.b16 %v10536
    %v11235 = vunpack.c.l.b16 %v10537
    %v11236 = vunpack.c.h.b16 %v10537
    %v11237 = vunpack.c.l.b16 %v10538
    %v11238 = vunpack.c.h.b16 %v10538
    %v11239 = vunpack.c.l.b16 %v10539
    %v11240 = vunpack.c.h.b16 %v10539
    %v11241 = vunpack.c.l.b16 %v10540
    %v11242 = vunpack.c.h.b16 %v10540
    %v11243 = vunpack.c.l.b16 %v10541
    %v11244 = vunpack.c.h.b16 %v10541
    %v11245 = vunpack.c.l.b16 %v10542
    %v11246 = vunpack.c.h.b16 %v10542
    %v11247 = vunpack.c.l.b16 %v10543
    %v11248 = vunpack.c.h.b16 %v10543
    %v11249 = vunpack.c.l.b16 %v10544
    %v11250 = vunpack.c.h.b16 %v10544
    %v11251 = vunpack.c.l.b16 %v10545
    %v11252 = vunpack.c.h.b16 %v10545
    %v11253 = vunpack.c.l.b16 %v10546
    %v11254 = vunpack.c.h.b16 %v10546
    %v11255 = vunpack.c.l.b16 %v10547
    %v11256 = vunpack.c.h.b16 %v10547
    %v11257 = vunpack.c.l.b16 %v10548
    %v11258 = vunpack.c.h.b16 %v10548
    %v11259 = vunpack.c.l.b16 %v10549
    %v11260 = vunpack.c.h.b16 %v10549
    %v11261 = vunpack.c.l.b16 %v10550
    %v11262 = vunpack.c.h.b16 %v10550
    %v11263 = vunpack.c.l.b16 %v10551
    %v11264 = vunpack.c.h.b16 %v10551
    %v11265 = vunpack.c.l.b16 %v10552
    %v11266 = vunpack.c.h.b16 %v10552
    %v11267 = vunpack.c.l.b16 %v10553
    %v11268 = vunpack.c.h.b16 %v10553
    %v11269 = vunpack.c.l.b16 %v10554
    %v11270 = vunpack.c.h.b16 %v10554
    %v11271 = vunpack.c.l.b16 %v10555
    %v11272 = vunpack.c.h.b16 %v10555
    %v11273 = vunpack.c.l.b16 %v10556
    %v11274 = vunpack.c.h.b16 %v10556
    %v11275 = vunpack.c.l.b16 %v10557
    %v11276 = vunpack.c.h.b16 %v10557
    %v11277 = vunpack.c.l.b16 %v10558
    %v11278 = vunpack.c.h.b16 %v10558
    %v11279 = vunpack.c.l.b16 %v10559
    %v11280 = vunpack.c.h.b16 %v10559
    %v11281 = vunpack.c.l.b16 %v10560
    %v11282 = vunpack.c.h.b16 %v10560
    %v11283 = vunpack.c.l.b16 %v10561
    %v11284 = vunpack.c.h.b16 %v10561
    %v11285 = vunpack.c.l.b16 %v10562
    %v11286 = vunpack.c.h.b16 %v10562
    %v11287 = vunpack.c.l.b16 %v10563
    %v11288 = vunpack.c.h.b16 %v10563
    %v11289 = vunpack.c.l.b16 %v10564
    %v11290 = vunpack.c.h.b16 %v10564
    %v11291 = vunpack.c.l.b16 %v10565
    %v11292 = vunpack.c.h.b16 %v10565
    %v11293 = vunpack.c.l.b16 %v10566
    %v11294 = vunpack.c.h.b16 %v10566
    %v11295 = vunpack.c.l.b16 %v10567
    %v11296 = vunpack.c.h.b16 %v10567
    %v11297 = vunpack.c.l.b16 %v10568
    %v11298 = vunpack.c.h.b16 %v10568
    %v11299 = vunpack.c.l.b16 %v10569
    %v11300 = vunpack.c.h.b16 %v10569
    %v11301 = vunpack.c.l.b16 %v10570
    %v11302 = vunpack.c.h.b16 %v10570
    %v11303 = vunpack.c.l.b16 %v10571
    %v11304 = vunpack.c.h.b16 %v10571
    %v11305 = vunpack.c.l.b16 %v10572
    %v11306 = vunpack.c.h.b16 %v10572
    %v11307 = vunpack.c.l.b16 %v10573
    %v11308 = vunpack.c.h.b16 %v10573
    %v11309 = vunpack.c.l.b16 %v10574
    %v11310 = vunpack.c.h.b16 %v10574
    %v11311 = vunpack.c.l.b16 %v10575
    %v11312 = vunpack.c.h.b16 %v10575
    %v11313 = vunpack.c.l.b16 %v10576
    %v11314 = vunpack.c.h.b16 %v10576
    %v11315 = vunpack.c.l.b16 %v10577
    %v11316 = vunpack.c.h.b16 %v10577
    %v11317 = vunpack.c.l.b16 %v10578
    %v11318 = vunpack.c.h.b16 %v10578
    %v11319 = vunpack.c.l.b16 %v10579
    %v11320 = vunpack.c.h.b16 %v10579
    %v11321 = vunpack.c.l.b16 %v10580
    %v11322 = vunpack.c.h.b16 %v10580
    %v11323 = vunpack.c.l.b16 %v10581
    %v11324 = vunpack.c.h.b16 %v10581
    %v11325 = vunpack.c.l.b16 %v10582
    %v11326 = vunpack.c.h.b16 %v10582
    %v11327 = vunpack.c.l.b16 %v10583
    %v11328 = vunpack.c.h.b16 %v10583
    %v11329 = vunpack.c.l.b16 %v10584
    %v11330 = vunpack.c.h.b16 %v10584
    %v11331 = vunpack.c.l.b16 %v10585
    %v11332 = vunpack.c.h.b16 %v10585
    %v11333 = vunpack.c.l.b16 %v10586
    %v11334 = vunpack.c.h.b16 %v10586
    %v11335 = vunpack.c.l.b16 %v10587
    %v11336 = vunpack.c.h.b16 %v10587
    %v11337 = vunpack.c.l.b16 %v10588
    %v11338 = vunpack.c.h.b16 %v10588
    %v11339 = vunpack.c.l.b16 %v10589
    %v11340 = vunpack.c.h.b16 %v10589
    %v11341 = vunpack.c.l.b16 %v10590
    %v11342 = vunpack.c.h.b16 %v10590
    %v11343 = vunpack.c.l.b16 %v10591
    %v11344 = vunpack.c.h.b16 %v10591
    %v11345 = vunpack.c.l.b16 %v10592
    %v11346 = vunpack.c.h.b16 %v10592
    %v11347 = vunpack.c.l.b16 %v10593
    %v11348 = vunpack.c.h.b16 %v10593
    %v11349 = vunpack.c.l.b16 %v10594
    %v11350 = vunpack.c.h.b16 %v10594
    %v11351 = vunpack.c.l.b16 %v10595
    %v11352 = vunpack.c.h.b16 %v10595
    %v11353 = vunpack.c.l.b16 %v10596
    %v11354 = vunpack.c.h.b16 %v10596
    %v11355 = vunpack.c.l.b16 %v10597
    %v11356 = vunpack.c.h.b16 %v10597
    %v11357 = vunpack.c.l.b16 %v10598
    %v11358 = vunpack.c.h.b16 %v10598
    %v11359 = vunpack.c.l.b16 %v10599
    %v11360 = vunpack.c.h.b16 %v10599
    %v11361 = vunpack.c.l.b16 %v10600
    %v11362 = vunpack.c.h.b16 %v10600
    %v11363 = vunpack.c.l.b16 %v10601
    %v11364 = vunpack.c.h.b16 %v10601
    %v11365 = vunpack.c.l.b16 %v10602
    %v11366 = vunpack.c.h.b16 %v10602
    %v11367 = vunpack.c.l.b16 %v10603
    %v11368 = vunpack.c.h.b16 %v10603
    %v11369 = vunpack.c.l.b16 %v10604
    %v11370 = vunpack.c.h.b16 %v10604
    %v11371 = vunpack.c.l.b16 %v10605
    %v11372 = vunpack.c.h.b16 %v10605
    %v11373 = vunpack.c.l.b16 %v10606
    %v11374 = vunpack.c.h.b16 %v10606
    %v11375 = vunpack.c.l.b16 %v10607
    %v11376 = vunpack.c.h.b16 %v10607
    %v11377 = vunpack.c.l.b16 %v10608
    %v11378 = vunpack.c.h.b16 %v10608
    %v11379 = vunpack.c.l.b16 %v10609
    %v11380 = vunpack.c.h.b16 %v10609
    %v11381 = vunpack.c.l.b16 %v10610
    %v11382 = vunpack.c.h.b16 %v10610
    %v11383 = vunpack.c.l.b16 %v10611
    %v11384 = vunpack.c.h.b16 %v10611
    %v11385 = vunpack.c.l.b16 %v10612
    %v11386 = vunpack.c.h.b16 %v10612
    %v11387 = vunpack.c.l.b16 %v10613
    %v11388 = vunpack.c.h.b16 %v10613
    %v11389 = vunpack.c.l.b16 %v10614
    %v11390 = vunpack.c.h.b16 %v10614
    %v11391 = vunpack.c.l.b16 %v10615
    %v11392 = vunpack.c.h.b16 %v10615
    %v11393 = vunpack.c.l.b16 %v10616
    %v11394 = vunpack.c.h.b16 %v10616
    %v11395 = vunpack.c.l.b16 %v10617
    %v11396 = vunpack.c.h.b16 %v10617
    %v11397 = vunpack.c.l.b16 %v10618
    %v11398 = vunpack.c.h.b16 %v10618
    %v11399 = vunpack.c.l.b16 %v10619
    %v11400 = vunpack.c.h.b16 %v10619
    %v11401 = vunpack.c.l.b16 %v10620
    %v11402 = vunpack.c.h.b16 %v10620
    %v11403 = vunpack.c.l.b16 %v10621
    %v11404 = vunpack.c.h.b16 %v10621
    %v11405 = vunpack.c.l.b16 %v10622
    %v11406 = vunpack.c.h.b16 %v10622
    %v11407 = vunpack.c.l.b16 %v10623
    %v11408 = vunpack.c.h.b16 %v10623
    %v11409 = vunpack.c.l.b16 %v10624
    %v11410 = vunpack.c.h.b16 %v10624
    %v11411 = vunpack.c.l.b16 %v10625
    %v11412 = vunpack.c.h.b16 %v10625
    %v11413 = vunpack.c.l.b16 %v10626
    %v11414 = vunpack.c.h.b16 %v10626
    %v11415 = vunpack.c.l.b16 %v10627
    %v11416 = vunpack.c.h.b16 %v10627
    %v11417 = vunpack.c.l.b16 %v10628
    %v11418 = vunpack.c.h.b16 %v10628
    %v11419 = vunpack.c.l.b16 %v10629
    %v11420 = vunpack.c.h.b16 %v10629
    %v11421 = vunpack.c.l.b16 %v10630
    %v11422 = vunpack.c.h.b16 %v10630
    %v11423 = vunpack.c.l.b16 %v10631
    %v11424 = vunpack.c.h.b16 %v10631
    %v11425 = vunpack.c.l.b16 %v10632
    %v11426 = vunpack.c.h.b16 %v10632
    %v11427 = vunpack.c.l.b16 %v10633
    %v11428 = vunpack.c.h.b16 %v10633
    %v11429 = vunpack.c.l.b16 %v10634
    %v11430 = vunpack.c.h.b16 %v10634
    %v11431 = vunpack.c.l.b16 %v10635
    %v11432 = vunpack.c.h.b16 %v10635
    %v11433 = vunpack.c.l.b16 %v10636
    %v11434 = vunpack.c.h.b16 %v10636
    %v11435 = vunpack.c.l.b16 %v10637
    %v11436 = vunpack.c.h.b16 %v10637
    %v11437 = vunpack.c.l.b16 %v10638
    %v11438 = vunpack.c.h.b16 %v10638
    %v11439 = vunpack.c.l.b16 %v10639
    %v11440 = vunpack.c.h.b16 %v10639
    %v11441 = vunpack.c.l.b16 %v10640
    %v11442 = vunpack.c.h.b16 %v10640
    %v11443 = vunpack.c.l.b16 %v10641
    %v11444 = vunpack.c.h.b16 %v10641
    %v11445 = vunpack.c.l.b16 %v10642
    %v11446 = vunpack.c.h.b16 %v10642
    %v11447 = vunpack.c.l.b16 %v10643
    %v11448 = vunpack.c.h.b16 %v10643
    %v11449 = vunpack.c.l.b16 %v10644
    %v11450 = vunpack.c.h.b16 %v10644
    %v11451 = vunpack.c.l.b16 %v10645
    %v11452 = vunpack.c.h.b16 %v10645
    %v11453 = vunpack.c.l.b16 %v10646
    %v11454 = vunpack.c.h.b16 %v10646
    %v11455 = vunpack.c.l.b16 %v10647
    %v11456 = vunpack.c.h.b16 %v10647
    %v11457 = vunpack.c.l.b16 %v10648
    %v11458 = vunpack.c.h.b16 %v10648
    %v11459 = vunpack.c.l.b16 %v10649
    %v11460 = vunpack.c.h.b16 %v10649
    %v11461 = vunpack.c.l.b16 %v10650
    %v11462 = vunpack.c.h.b16 %v10650
    %v11463 = vunpack.c.l.b16 %v10651
    %v11464 = vunpack.c.h.b16 %v10651
    %v11465 = vunpack.c.l.b16 %v10652
    %v11466 = vunpack.c.h.b16 %v10652
    %v11467 = vunpack.c.l.b16 %v10653
    %v11468 = vunpack.c.h.b16 %v10653
    %v11469 = vunpack.c.l.b16 %v10654
    %v11470 = vunpack.c.h.b16 %v10654
    %v11471 = vunpack.c.l.b16 %v10655
    %v11472 = vunpack.c.h.b16 %v10655
    %v11473 = vunpack.c.l.b16 %v10656
    %v11474 = vunpack.c.h.b16 %v10656
    %v11475 = vunpack.c.l.b16 %v10657
    %v11476 = vunpack.c.h.b16 %v10657
    %v11477 = vunpack.c.l.b16 %v10658
    %v11478 = vunpack.c.h.b16 %v10658
    %v11479 = vunpack.c.l.b16 %v10659
    %v11480 = vunpack.c.h.b16 %v10659
    %v11481 = vunpack.c.l.b16 %v10660
    %v11482 = vunpack.c.h.b16 %v10660
    %v11483 = vunpack.c.l.b16 %v10661
    %v11484 = vunpack.c.h.b16 %v10661
    %v11485 = vunpack.c.l.b16 %v10662
    %v11486 = vunpack.c.h.b16 %v10662
    %v11487 = vunpack.c.l.b16 %v10663
    %v11488 = vunpack.c.h.b16 %v10663
    %v11489 = vunpack.c.l.b16 %v10664
    %v11490 = vunpack.c.h.b16 %v10664
    %v11491 = vunpack.c.l.b16 %v10665
    %v11492 = vunpack.c.h.b16 %v10665
    %v11493 = vunpack.c.l.b16 %v10666
    %v11494 = vunpack.c.h.b16 %v10666
    %v11495 = vunpack.c.l.b16 %v10667
    %v11496 = vunpack.c.h.b16 %v10667
    %v11497 = vunpack.c.l.b16 %v10668
    %v11498 = vunpack.c.h.b16 %v10668
    %v11499 = vunpack.c.l.b16 %v10669
    %v11500 = vunpack.c.h.b16 %v10669
    %v11501 = vunpack.c.l.b16 %v10670
    %v11502 = vunpack.c.h.b16 %v10670
    %v11503 = vunpack.c.l.b16 %v10671
    %v11504 = vunpack.c.h.b16 %v10671
    %v11505 = vunpack.c.l.b16 %v10672
    %v11506 = vunpack.c.h.b16 %v10672
    %v11507 = vunpack.c.l.b16 %v10673
    %v11508 = vunpack.c.h.b16 %v10673
    %v11509 = vunpack.c.l.b16 %v10674
    %v11510 = vunpack.c.h.b16 %v10674
    %v11511 = vunpack.c.l.b16 %v10675
    %v11512 = vunpack.c.h.b16 %v10675
    %v11513 = vunpack.c.l.b16 %v10676
    %v11514 = vunpack.c.h.b16 %v10676
    %v11515 = vunpack.c.l.b16 %v10677
    %v11516 = vunpack.c.h.b16 %v10677
    %v11517 = vunpack.c.l.b16 %v10678
    %v11518 = vunpack.c.h.b16 %v10678
    %v11519 = vunpack.c.l.b16 %v10679
    %v11520 = vunpack.c.h.b16 %v10679
    %v11521 = vunpack.c.l.b16 %v10680
    %v11522 = vunpack.c.h.b16 %v10680
    %v11523 = vunpack.c.l.b16 %v10681
    %v11524 = vunpack.c.h.b16 %v10681
    %v11525 = vunpack.c.l.b16 %v10682
    %v11526 = vunpack.c.h.b16 %v10682
    %v11527 = vunpack.c.l.b16 %v10683
    %v11528 = vunpack.c.h.b16 %v10683
    %v11529 = vunpack.c.l.b16 %v10684
    %v11530 = vunpack.c.h.b16 %v10684
    %v11531 = vunpack.c.l.b16 %v10685
    %v11532 = vunpack.c.h.b16 %v10685
    %v11533 = vunpack.c.l.b16 %v10686
    %v11534 = vunpack.c.h.b16 %v10686
    %v11535 = vunpack.c.l.b16 %v10687
    %v11536 = vunpack.c.h.b16 %v10687
    %v11537 = vunpack.c.l.b16 %v10688
    %v11538 = vunpack.c.h.b16 %v10688
    %v11539 = vunpack.c.l.b16 %v10689
    %v11540 = vunpack.c.h.b16 %v10689
    %v11541 = vunpack.c.l.b16 %v10690
    %v11542 = vunpack.c.h.b16 %v10690
    %v11543 = vunpack.c.l.b16 %v10691
    %v11544 = vunpack.c.h.b16 %v10691
    %v11545 = vunpack.c.l.b16 %v10692
    %v11546 = vunpack.c.h.b16 %v10692
    %v11547 = vunpack.c.l.b16 %v10693
    %v11548 = vunpack.c.h.b16 %v10693
    %v11549 = vunpack.c.l.b16 %v10694
    %v11550 = vunpack.c.h.b16 %v10694
    %v11551 = vunpack.c.l.b16 %v10695
    %v11552 = vunpack.c.h.b16 %v10695
    %v11553 = vunpack.c.l.b16 %v10696
    %v11554 = vunpack.c.h.b16 %v10696
    %v11555 = vunpack.c.l.b16 %v10697
    %v11556 = vunpack.c.h.b16 %v10697
    %v11557 = vunpack.c.l.b16 %v10698
    %v11558 = vunpack.c.h.b16 %v10698
    %v11559 = vunpack.c.l.b16 %v10699
    %v11560 = vunpack.c.h.b16 %v10699
    %v11561 = vunpack.c.l.b16 %v10700
    %v11562 = vunpack.c.h.b16 %v10700
    %v11563 = vunpack.c.l.b16 %v10701
    %v11564 = vunpack.c.h.b16 %v10701
    %v11565 = vunpack.c.l.b16 %v10702
    %v11566 = vunpack.c.h.b16 %v10702
    %v11567 = vpack.c.b16 %v10997, %v10991
    %v11568 = vpack.c.b16 %v10998, %v10992
    %v11569 = vpack.c.b16 %v10999, %v10993
    %v11570 = vpack.c.b16 %v11000, %v10994
    %v11571 = vpack.c.b16 %v11001, %v10995
    %v11572 = vpack.c.b16 %v11002, %v10996
    %v11573 = vpack.c.b16 %v11009, %v11003
    %v11574 = vpack.c.b16 %v11010, %v11004
    %v11575 = vpack.c.b16 %v11011, %v11005
    %v11576 = vpack.c.b16 %v11012, %v11006
    %v11577 = vpack.c.b16 %v11013, %v11007
    %v11578 = vpack.c.b16 %v11014, %v11008
    %v11579 = vpack.c.b16 %v11021, %v11015
    %v11580 = vpack.c.b16 %v11022, %v11016
    %v11581 = vpack.c.b16 %v11023, %v11017
    %v11582 = vpack.c.b16 %v11024, %v11018
    %v11583 = vpack.c.b16 %v11025, %v11019
    %v11584 = vpack.c.b16 %v11026, %v11020
    %v11585 = vpack.c.b16 %v11033, %v11027
    %v11586 = vpack.c.b16 %v11034, %v11028
    %v11587 = vpack.c.b16 %v11035, %v11029
    %v11588 = vpack.c.b16 %v11036, %v11030
    %v11589 = vpack.c.b16 %v11037, %v11031
    %v11590 = vpack.c.b16 %v11038, %v11032
    %v11591 = vpack.c.b16 %v11045, %v11039
    %v11592 = vpack.c.b16 %v11046, %v11040
    %v11593 = vpack.c.b16 %v11047, %v11041
    %v11594 = vpack.c.b16 %v11048, %v11042
    %v11595 = vpack.c.b16 %v11049, %v11043
    %v11596 = vpack.c.b16 %v11050, %v11044
    %v11597 = vpack.c.b16 %v11057, %v11051
    %v11598 = vpack.c.b16 %v11058, %v11052
    %v11599 = vpack.c.b16 %v11059, %v11053
    %v11600 = vpack.c.b16 %v11060, %v11054
    %v11601 = vpack.c.b16 %v11061, %v11055
    %v11602 = vpack.c.b16 %v11062, %v11056
    %v11603 = vpack.c.b16 %v11069, %v11063
    %v11604 = vpack.c.b16 %v11070, %v11064
    %v11605 = vpack.c.b16 %v11071, %v11065
    %v11606 = vpack.c.b16 %v11072, %v11066
    %v11607 = vpack.c.b16 %v11073, %v11067
    %v11608 = vpack.c.b16 %v11074, %v11068
    %v11609 = vpack.c.b16 %v11081, %v11075
    %v11610 = vpack.c.b16 %v11082, %v11076
    %v11611 = vpack.c.b16 %v11083, %v11077
    %v11612 = vpack.c.b16 %v11084, %v11078
    %v11613 = vpack.c.b16 %v11085, %v11079
    %v11614 = vpack.c.b16 %v11086, %v11080
    %v11615 = vpack.c.b16 %v11093, %v11087
    %v11616 = vpack.c.b16 %v11094, %v11088
    %v11617 = vpack.c.b16 %v11095, %v11089
    %v11618 = vpack.c.b16 %v11096, %v11090
    %v11619 = vpack.c.b16 %v11097, %v11091
    %v11620 = vpack.c.b16 %v11098, %v11092
    %v11621 = vpack.c.b16 %v11105, %v11099
    %v11622 = vpack.c.b16 %v11106, %v11100
    %v11623 = vpack.c.b16 %v11107, %v11101
    %v11624 = vpack.c.b16 %v11108, %v11102
    %v11625 = vpack.c.b16 %v11109, %v11103
    %v11626 = vpack.c.b16 %v11110, %v11104
    %v11627 = vpack.c.b16 %v11117, %v11111
    %v11628 = vpack.c.b16 %v11118, %v11112
    %v11629 = vpack.c.b16 %v11119, %v11113
    %v11630 = vpack.c.b16 %v11120, %v11114
    %v11631 = vpack.c.b16 %v11121, %v11115
    %v11632 = vpack.c.b16 %v11122, %v11116
    %v11633 = vpack.c.b16 %v11129, %v11123
    %v11634 = vpack.c.b16 %v11130, %v11124
    %v11635 = vpack.c.b16 %v11131, %v11125
    %v11636 = vpack.c.b16 %v11132, %v11126
    %v11637 = vpack.c.b16 %v11133, %v11127
    %v11638 = vpack.c.b16 %v11134, %v11128
    %v11639 = vpack.c.b16 %v11141, %v11135
    %v11640 = vpack.c.b16 %v11142, %v11136
    %v11641 = vpack.c.b16 %v11143, %v11137
    %v11642 = vpack.c.b16 %v11144, %v11138
    %v11643 = vpack.c.b16 %v11145, %v11139
    %v11644 = vpack.c.b16 %v11146, %v11140
    %v11645 = vpack.c.b16 %v11153, %v11147
    %v11646 = vpack.c.b16 %v11154, %v11148
    %v11647 = vpack.c.b16 %v11155, %v11149
    %v11648 = vpack.c.b16 %v11156, %v11150
    %v11649 = vpack.c.b16 %v11157, %v11151
    %v11650 = vpack.c.b16 %v11158, %v11152
    %v11651 = vpack.c.b16 %v11165, %v11159
    %v11652 = vpack.c.b16 %v11166, %v11160
    %v11653 = vpack.c.b16 %v11167, %v11161
    %v11654 = vpack.c.b16 %v11168, %v11162
    %v11655 = vpack.c.b16 %v11169, %v11163
    %v11656 = vpack.c.b16 %v11170, %v11164
    %v11657 = vpack.c.b16 %v11177, %v11171
    %v11658 = vpack.c.b16 %v11178, %v11172
    %v11659 = vpack.c.b16 %v11179, %v11173
    %v11660 = vpack.c.b16 %v11180, %v11174
    %v11661 = vpack.c.b16 %v11181, %v11175
    %v11662 = vpack.c.b16 %v11182, %v11176
    %v11663 = vpack.c.b16 %v11189, %v11183
    %v11664 = vpack.c.b16 %v11190, %v11184
    %v11665 = vpack.c.b16 %v11191, %v11185
    %v11666 = vpack.c.b16 %v11192, %v11186
    %v11667 = vpack.c.b16 %v11193, %v11187
    %v11668 = vpack.c.b16 %v11194, %v11188
    %v11669 = vpack.c.b16 %v11201, %v11195
    %v11670 = vpack.c.b16 %v11202, %v11196
    %v11671 = vpack.c.b16 %v11203, %v11197
    %v11672 = vpack.c.b16 %v11204, %v11198
    %v11673 = vpack.c.b16 %v11205, %v11199
    %v11674 = vpack.c.b16 %v11206, %v11200
    %v11675 = vpack.c.b16 %v11213, %v11207
    %v11676 = vpack.c.b16 %v11214, %v11208
    %v11677 = vpack.c.b16 %v11215, %v11209
    %v11678 = vpack.c.b16 %v11216, %v11210
    %v11679 = vpack.c.b16 %v11217, %v11211
    %v11680 = vpack.c.b16 %v11218, %v11212
    %v11681 = vpack.c.b16 %v11225, %v11219
    %v11682 = vpack.c.b16 %v11226, %v11220
    %v11683 = vpack.c.b16 %v11227, %v11221
    %v11684 = vpack.c.b16 %v11228, %v11222
    %v11685 = vpack.c.b16 %v11229, %v11223
    %v11686 = vpack.c.b16 %v11230, %v11224
    %v11687 = vpack.c.b16 %v11237, %v11231
    %v11688 = vpack.c.b16 %v11238, %v11232
    %v11689 = vpack.c.b16 %v11239, %v11233
    %v11690 = vpack.c.b16 %v11240, %v11234
    %v11691 = vpack.c.b16 %v11241, %v11235
    %v11692 = vpack.c.b16 %v11242, %v11236
    %v11693 = vpack.c.b16 %v11249, %v11243
    %v11694 = vpack.c.b16 %v11250, %v11244
    %v11695 = vpack.c.b16 %v11251, %v11245
    %v11696 = vpack.c.b16 %v11252, %v11246
    %v11697 = vpack.c.b16 %v11253, %v11247
    %v11698 = vpack.c.b16 %v11254, %v11248
    %v11699 = vpack.c.b16 %v11261, %v11255
    %v11700 = vpack.c.b16 %v11262, %v11256
    %v11701 = vpack.c.b16 %v11263, %v11257
    %v11702 = vpack.c.b16 %v11264, %v11258
    %v11703 = vpack.c.b16 %v11265, %v11259
    %v11704 = vpack.c.b16 %v11266, %v11260
    %v11705 = vpack.c.b16 %v11273, %v11267
    %v11706 = vpack.c.b16 %v11274, %v11268
    %v11707 = vpack.c.b16 %v11275, %v11269
    %v11708 = vpack.c.b16 %v11276, %v11270
    %v11709 = vpack.c.b16 %v11277, %v11271
    %v11710 = vpack.c.b16 %v11278, %v11272
    %v11711 = vpack.c.b16 %v11285, %v11279
    %v11712 = vpack.c.b16 %v11286, %v11280
    %v11713 = vpack.c.b16 %v11287, %v11281
    %v11714 = vpack.c.b16 %v11288, %v11282
    %v11715 = vpack.c.b16 %v11289, %v11283
    %v11716 = vpack.c.b16 %v11290, %v11284
    %v11717 = vpack.c.b16 %v11297, %v11291
    %v11718 = vpack.c.b16 %v11298, %v11292
    %v11719 = vpack.c.b16 %v11299, %v11293
    %v11720 = vpack.c.b16 %v11300, %v11294
    %v11721 = vpack.c.b16 %v11301, %v11295
    %v11722 = vpack.c.b16 %v11302, %v11296
    %v11723 = vpack.c.b16 %v11309, %v11303
    %v11724 = vpack.c.b16 %v11310, %v11304
    %v11725 = vpack.c.b16 %v11311, %v11305
    %v11726 = vpack.c.b16 %v11312, %v11306
    %v11727 = vpack.c.b16 %v11313, %v11307
    %v11728 = vpack.c.b16 %v11314, %v11308
    %v11729 = vpack.c.b16 %v11321, %v11315
    %v11730 = vpack.c.b16 %v11322, %v11316
    %v11731 = vpack.c.b16 %v11323, %v11317
    %v11732 = vpack.c.b16 %v11324, %v11318
    %v11733 = vpack.c.b16 %v11325, %v11319
    %v11734 = vpack.c.b16 %v11326, %v11320
    %v11735 = vpack.c.b16 %v11333, %v11327
    %v11736 = vpack.c.b16 %v11334, %v11328
    %v11737 = vpack.c.b16 %v11335, %v11329
    %v11738 = vpack.c.b16 %v11336, %v11330
    %v11739 = vpack.c.b16 %v11337, %v11331
    %v11740 = vpack.c.b16 %v11338, %v11332
    %v11741 = vpack.c.b16 %v11345, %v11339
    %v11742 = vpack.c.b16 %v11346, %v11340
    %v11743 = vpack.c.b16 %v11347, %v11341
    %v11744 = vpack.c.b16 %v11348, %v11342
    %v11745 = vpack.c.b16 %v11349, %v11343
    %v11746 = vpack.c.b16 %v11350, %v11344
    %v11747 = vpack.c.b16 %v11357, %v11351
    %v11748 = vpack.c.b16 %v11358, %v11352
    %v11749 = vpack.c.b16 %v11359, %v11353
    %v11750 = vpack.c.b16 %v11360, %v11354
    %v11751 = vpack.c.b16 %v11361, %v11355
    %v11752 = vpack.c.b16 %v11362, %v11356
    %v11753 = vpack.c.b16 %v11369, %v11363
    %v11754 = vpack.c.b16 %v11370, %v11364
    %v11755 = vpack.c.b16 %v11371, %v11365
    %v11756 = vpack.c.b16 %v11372, %v11366
    %v11757 = vpack.c.b16 %v11373, %v11367
    %v11758 = vpack.c.b16 %v11374, %v11368
    %v11759 = vpack.c.b16 %v11381, %v11375
    %v11760 = vpack.c.b16 %v11382, %v11376
    %v11761 = vpack.c.b16 %v11383, %v11377
    %v11762 = vpack.c.b16 %v11384, %v11378
    %v11763 = vpack.c.b16 %v11385, %v11379
    %v11764 = vpack.c.b16 %v11386, %v11380
    %v11765 = vpack.c.b16 %v11393, %v11387
    %v11766 = vpack.c.b16 %v11394, %v11388
    %v11767 = vpack.c.b16 %v11395, %v11389
    %v11768 = vpack.c.b16 %v11396, %v11390
    %v11769 = vpack.c.b16 %v11397, %v11391
    %v11770 = vpack.c.b16 %v11398, %v11392
    %v11771 = vpack.c.b16 %v11405, %v11399
    %v11772 = vpack.c.b16 %v11406, %v11400
    %v11773 = vpack.c.b16 %v11407, %v11401
    %v11774 = vpack.c.b16 %v11408, %v11402
    %v11775 = vpack.c.b16 %v11409, %v11403
    %v11776 = vpack.c.b16 %v11410, %v11404
    %v11777 = vpack.c.b16 %v11417, %v11411
    %v11778 = vpack.c.b16 %v11418, %v11412
    %v11779 = vpack.c.b16 %v11419, %v11413
    %v11780 = vpack.c.b16 %v11420, %v11414
    %v11781 = vpack.c.b16 %v11421, %v11415
    %v11782 = vpack.c.b16 %v11422, %v11416
    %v11783 = vpack.c.b16 %v11429, %v11423
    %v11784 = vpack.c.b16 %v11430, %v11424
    %v11785 = vpack.c.b16 %v11431, %v11425
    %v11786 = vpack.c.b16 %v11432, %v11426
    %v11787 = vpack.c.b16 %v11433, %v11427
    %v11788 = vpack.c.b16 %v11434, %v11428
    %v11789 = vpack.c.b16 %v11441, %v11435
    %v11790 = vpack.c.b16 %v11442, %v11436
    %v11791 = vpack.c.b16 %v11443, %v11437
    %v11792 = vpack.c.b16 %v11444, %v11438
    %v11793 = vpack.c.b16 %v11445, %v11439
    %v11794 = vpack.c.b16 %v11446, %v11440
    %v11795 = vpack.c.b16 %v11453, %v11447
    %v11796 = vpack.c.b16 %v11454, %v11448
    %v11797 = vpack.c.b16 %v11455, %v11449
    %v11798 = vpack.c.b16 %v11456, %v11450
    %v11799 = vpack.c.b16 %v11457, %v11451
    %v11800 = vpack.c.b16 %v11458, %v11452
    %v11801 = vpack.c.b16 %v11465, %v11459
    %v11802 = vpack.c.b16 %v11466, %v11460
    %v11803 = vpack.c.b16 %v11467, %v11461
    %v11804 = vpack.c.b16 %v11468, %v11462
    %v11805 = vpack.c.b16 %v11469, %v11463
    %v11806 = vpack.c.b16 %v11470, %v11464
    %v11807 = vpack.c.b16 %v11477, %v11471
    %v11808 = vpack.c.b16 %v11478, %v11472
    %v11809 = vpack.c.b16 %v11479, %v11473
    %v11810 = vpack.c.b16 %v11480, %v11474
    %v11811 = vpack.c.b16 %v11481, %v11475
    %v11812 = vpack.c.b16 %v11482, %v11476
    %v11813 = vpack.c.b16 %v11489, %v11483
    %v11814 = vpack.c.b16 %v11490, %v11484
    %v11815 = vpack.c.b16 %v11491, %v11485
    %v11816 = vpack.c.b16 %v11492, %v11486
    %v11817 = vpack.c.b16 %v11493, %v11487
    %v11818 = vpack.c.b16 %v11494, %v11488
    %v11819 = vpack.c.b16 %v11501, %v11495
    %v11820 = vpack.c.b16 %v11502, %v11496
    %v11821 = vpack.c.b16 %v11503, %v11497
    %v11822 = vpack.c.b16 %v11504, %v11498
    %v11823 = vpack.c.b16 %v11505, %v11499
    %v11824 = vpack.c.b16 %v11506, %v11500
    %v11825 = vpack.c.b16 %v11513, %v11507
    %v11826 = vpack.c.b16 %v11514, %v11508
    %v11827 = vpack.c.b16 %v11515, %v11509
    %v11828 = vpack.c.b16 %v11516, %v11510
    %v11829 = vpack.c.b16 %v11517, %v11511
    %v11830 = vpack.c.b16 %v11518, %v11512
    %v11831 = vpack.c.b16 %v11525, %v11519
    %v11832 = vpack.c.b16 %v11526, %v11520
    %v11833 = vpack.c.b16 %v11527, %v11521
    %v11834 = vpack.c.b16 %v11528, %v11522
    %v11835 = vpack.c.b16 %v11529, %v11523
    %v11836 = vpack.c.b16 %v11530, %v11524
    %v11837 = vpack.c.b16 %v11537, %v11531
    %v11838 = vpack.c.b16 %v11538, %v11532
    %v11839 = vpack.c.b16 %v11539, %v11533
    %v11840 = vpack.c.b16 %v11540, %v11534
    %v11841 = vpack.c.b16 %v11541, %v11535
    %v11842 = vpack.c.b16 %v11542, %v11536
    %v11843 = vpack.c.b16 %v11549, %v11543
    %v11844 = vpack.c.b16 %v11550, %v11544
    %v11845 = vpack.c.b16 %v11551, %v11545
    %v11846 = vpack.c.b16 %v11552, %v11546
    %v11847 = vpack.c.b16 %v11553, %v11547
    %v11848 = vpack.c.b16 %v11554, %v11548
    %v11849 = vpack.c.b16 %v11561, %v11555
    %v11850 = vpack.c.b16 %v11562, %v11556
    %v11851 = vpack.c.b16 %v11563, %v11557
    %v11852 = vpack.c.b16 %v11564, %v11558
    %v11853 = vpack.c.b16 %v11565, %v11559
    %v11854 = vpack.c.b16 %v11566, %v11560
    %12143 = vmatprep.subr.bf16.mxu0 %v11568
    %12144 = vmatpush1.bf16.msra.mxu0 %v11567
    %12145 = vmatprep.subr.bf16.mxu0 %v11574
    %12146 = vmatpush1.bf16.msra.mxu0 %v11573
    %12147 = vmatprep.subr.bf16.mxu0 %v11580
    %12148 = vmatpush1.bf16.msra.mxu0 %v11579
    %12149 = vmatprep.subr.bf16.mxu0 %v11586
    %12150 = vmatpush1.bf16.msra.mxu0 %v11585
    %12151 = vmatprep.subr.bf16.mxu0 %v11592
    %12152 = vmatpush1.bf16.msra.mxu0 %v11591
    %12153 = vmatprep.subr.bf16.mxu0 %v11598
    %12154 = vmatpush1.bf16.msra.mxu0 %v11597
    %12155 = vmatprep.subr.bf16.mxu0 %v11604
    %12156 = vmatpush1.bf16.msra.mxu0 %v11603
    %12157 = vmatprep.subr.bf16.mxu0 %v11610
    %12158 = vmatpush1.bf16.msra.mxu0 %v11609
    %12159 = vmatprep.subr.bf16.mxu0 %v11616
    %12160 = vmatpush1.bf16.msra.mxu0 %v11615
    %12161 = vmatprep.subr.bf16.mxu0 %v11622
    %12162 = vmatpush1.bf16.msra.mxu0 %v11621
    %12163 = vmatprep.subr.bf16.mxu0 %v11628
    %12164 = vmatpush1.bf16.msra.mxu0 %v11627
    %12165 = vmatprep.subr.bf16.mxu0 %v11634
    %12166 = vmatpush1.bf16.msra.mxu0 %v11633
    %12167 = vmatprep.subr.bf16.mxu0 %v11640
    %12168 = vmatpush1.bf16.msra.mxu0 %v11639
    %12169 = vmatprep.subr.bf16.mxu0 %v11646
    %12170 = vmatpush1.bf16.msra.mxu0 %v11645
    %12171 = vmatprep.subr.bf16.mxu0 %v11652
    %12172 = vmatpush1.bf16.msra.mxu0 %v11651
    %12173 = vmatprep.subr.bf16.mxu0 %v11658
    %12174 = vmatpush1.bf16.msra.mxu0 %v11657
    %12175 = vmatprep.mubr.bf16.mxu0 %v7688
    %12176 = vmatmul.mubr.bf16.gmra.mrb[0].mxu0 %v7687
    %v12177 = vpop.f32.mrb[0].mxu0
    %v12178 = vadd.f32 0.0, %v12177
    %v12179 = vpop.f32.mrb[0].mxu0
    %v12180 = vadd.f32 0.0, %v12179
    %v12181 = vpop.f32.mrb[0].mxu0
    %v12182 = vpop.f32.mrb[0].mxu0
    %12183 = vdwg.mxu0
    %12184 = vmatprep.subr.bf16.mxu0 %v11664
    %12185 = vmatpush1.bf16.msra.mxu0 %v11663
    %12186 = vmatprep.subr.bf16.mxu0 %v11670
    %12187 = vmatpush1.bf16.msra.mxu0 %v11669
    %12188 = vmatprep.subr.bf16.mxu0 %v11676
    %12189 = vmatpush1.bf16.msra.mxu0 %v11675
    %12190 = vmatprep.subr.bf16.mxu0 %v11682
    %12191 = vmatpush1.bf16.msra.mxu0 %v11681
    %12192 = vmatprep.subr.bf16.mxu0 %v11688
    %12193 = vmatpush1.bf16.msra.mxu0 %v11687
    %12194 = vmatprep.subr.bf16.mxu0 %v11694
    %12195 = vmatpush1.bf16.msra.mxu0 %v11693
    %12196 = vmatprep.subr.bf16.mxu0 %v11700
    %12197 = vmatpush1.bf16.msra.mxu0 %v11699
    %12198 = vmatprep.subr.bf16.mxu0 %v11706
    %12199 = vmatpush1.bf16.msra.mxu0 %v11705
    %12200 = vmatprep.subr.bf16.mxu0 %v11712
    %12201 = vmatpush1.bf16.msra.mxu0 %v11711
    %12202 = vmatprep.subr.bf16.mxu0 %v11718
    %12203 = vmatpush1.bf16.msra.mxu0 %v11717
    %12204 = vmatprep.subr.bf16.mxu0 %v11724
    %12205 = vmatpush1.bf16.msra.mxu0 %v11723
    %12206 = vmatprep.subr.bf16.mxu0 %v11730
    %12207 = vmatpush1.bf16.msra.mxu0 %v11729
    %12208 = vmatprep.subr.bf16.mxu0 %v11736
    %12209 = vmatpush1.bf16.msra.mxu0 %v11735
    %12210 = vmatprep.subr.bf16.mxu0 %v11742
    %12211 = vmatpush1.bf16.msra.mxu0 %v11741
    %12212 = vmatprep.subr.bf16.mxu0 %v11748
    %12213 = vmatpush1.bf16.msra.mxu0 %v11747
    %12214 = vmatprep.subr.bf16.mxu0 %v11754
    %12215 = vmatpush1.bf16.msra.mxu0 %v11753
    %12216 = vmatprep.mubr.bf16.mxu0 %v7690
    %12217 = vmatmul.mubr.bf16.gmra.mrb[0].mxu0 %v7689
    %v12218 = vpop.f32.mrb[0].mxu0
    %v12219 = vadd.f32 %v12178, %v12218
    %v12220 = vpop.f32.mrb[0].mxu0
    %v12221 = vadd.f32 %v12180, %v12220
    %v12222 = vpop.f32.mrb[0].mxu0
    %v12223 = vpop.f32.mrb[0].mxu0
    %12224 = vdwg.mxu0
    %12225 = vmatprep.subr.bf16.mxu0 %v11760
    %12226 = vmatpush1.bf16.msra.mxu0 %v11759
    %12227 = vmatprep.subr.bf16.mxu0 %v11766
    %12228 = vmatpush1.bf16.msra.mxu0 %v11765
    %12229 = vmatprep.subr.bf16.mxu0 %v11772
    %12230 = vmatpush1.bf16.msra.mxu0 %v11771
    %12231 = vmatprep.subr.bf16.mxu0 %v11778
    %12232 = vmatpush1.bf16.msra.mxu0 %v11777
    %12233 = vmatprep.subr.bf16.mxu0 %v11784
    %12234 = vmatpush1.bf16.msra.mxu0 %v11783
    %12235 = vmatprep.subr.bf16.mxu0 %v11790
    %12236 = vmatpush1.bf16.msra.mxu0 %v11789
    %12237 = vmatprep.subr.bf16.mxu0 %v11796
    %12238 = vmatpush1.bf16.msra.mxu0 %v11795
    %12239 = vmatprep.subr.bf16.mxu0 %v11802
    %12240 = vmatpush1.bf16.msra.mxu0 %v11801
    %12241 = vmatprep.subr.bf16.mxu0 %v11808
    %12242 = vmatpush1.bf16.msra.mxu0 %v11807
    %12243 = vmatprep.subr.bf16.mxu0 %v11814
    %12244 = vmatpush1.bf16.msra.mxu0 %v11813
    %12245 = vmatprep.subr.bf16.mxu0 %v11820
    %12246 = vmatpush1.bf16.msra.mxu0 %v11819
    %12247 = vmatprep.subr.bf16.mxu0 %v11826
    %12248 = vmatpush1.bf16.msra.mxu0 %v11825
    %12249 = vmatprep.subr.bf16.mxu0 %v11832
    %12250 = vmatpush1.bf16.msra.mxu0 %v11831
    %12251 = vmatprep.subr.bf16.mxu0 %v11838
    %12252 = vmatpush1.bf16.msra.mxu0 %v11837
    %12253 = vmatprep.subr.bf16.mxu0 %v11844
    %12254 = vmatpush1.bf16.msra.mxu0 %v11843
    %12255 = vmatprep.subr.bf16.mxu0 %v11850
    %12256 = vmatpush1.bf16.msra.mxu0 %v11849
    %12257 = vmatprep.mubr.bf16.mxu0 %v7692
    %12258 = vmatmul.mubr.bf16.gmra.mrb[0].mxu0 %v7691
    %v12259 = vpop.f32.mrb[0].mxu0
    %v12260 = vadd.f32 %v12219, %v12259
    %v12261 = vpop.f32.mrb[0].mxu0
    %v12262 = vadd.f32 %v12221, %v12261
    %v12263 = vpop.f32.mrb[0].mxu0
    %v12264 = vpop.f32.mrb[0].mxu0
    %12265 = vdwg.mxu0
    %12266 = vmatprep.subr.bf16.mxu0 %v11570
    %12267 = vmatpush1.bf16.msra.mxu0 %v11569
    %12268 = vmatprep.subr.bf16.mxu0 %v11576
    %12269 = vmatpush1.bf16.msra.mxu0 %v11575
    %12270 = vmatprep.subr.bf16.mxu0 %v11582
    %12271 = vmatpush1.bf16.msra.mxu0 %v11581
    %12272 = vmatprep.subr.bf16.mxu0 %v11588
    %12273 = vmatpush1.bf16.msra.mxu0 %v11587
    %12274 = vmatprep.subr.bf16.mxu0 %v11594
    %12275 = vmatpush1.bf16.msra.mxu0 %v11593
    %12276 = vmatprep.subr.bf16.mxu0 %v11600
    %12277 = vmatpush1.bf16.msra.mxu0 %v11599
    %12278 = vmatprep.subr.bf16.mxu0 %v11606
    %12279 = vmatpush1.bf16.msra.mxu0 %v11605
    %12280 = vmatprep.subr.bf16.mxu0 %v11612
    %12281 = vmatpush1.bf16.msra.mxu0 %v11611
    %12282 = vmatprep.subr.bf16.mxu0 %v11618
    %12283 = vmatpush1.bf16.msra.mxu0 %v11617
    %12284 = vmatprep.subr.bf16.mxu0 %v11624
    %12285 = vmatpush1.bf16.msra.mxu0 %v11623
    %12286 = vmatprep.subr.bf16.mxu0 %v11630
    %12287 = vmatpush1.bf16.msra.mxu0 %v11629
    %12288 = vmatprep.subr.bf16.mxu0 %v11636
    %12289 = vmatpush1.bf16.msra.mxu0 %v11635
    %12290 = vmatprep.subr.bf16.mxu0 %v11642
    %12291 = vmatpush1.bf16.msra.mxu0 %v11641
    %12292 = vmatprep.subr.bf16.mxu0 %v11648
    %12293 = vmatpush1.bf16.msra.mxu0 %v11647
    %12294 = vmatprep.subr.bf16.mxu0 %v11654
    %12295 = vmatpush1.bf16.msra.mxu0 %v11653
    %12296 = vmatprep.subr.bf16.mxu0 %v11660
    %12297 = vmatpush1.bf16.msra.mxu0 %v11659
    %12298 = vmatprep.mubr.bf16.mxu0 %v7688
    %12299 = vmatmul.mubr.bf16.gmra.mrb[0].mxu0 %v7687
    %v12300 = vpop.f32.mrb[0].mxu0
    %v12301 = vadd.f32 0.0, %v12300
    %v12302 = vpop.f32.mrb[0].mxu0
    %v12303 = vadd.f32 0.0, %v12302
    %v12304 = vpop.f32.mrb[0].mxu0
    %v12305 = vpop.f32.mrb[0].mxu0
    %12306 = vdwg.mxu0
    %12307 = vmatprep.subr.bf16.mxu0 %v11666
    %12308 = vmatpush1.bf16.msra.mxu0 %v11665
    %12309 = vmatprep.subr.bf16.mxu0 %v11672
    %12310 = vmatpush1.bf16.msra.mxu0 %v11671
    %12311 = vmatprep.subr.bf16.mxu0 %v11678
    %12312 = vmatpush1.bf16.msra.mxu0 %v11677
    %12313 = vmatprep.subr.bf16.mxu0 %v11684
    %12314 = vmatpush1.bf16.msra.mxu0 %v11683
    %12315 = vmatprep.subr.bf16.mxu0 %v11690
    %12316 = vmatpush1.bf16.msra.mxu0 %v11689
    %12317 = vmatprep.subr.bf16.mxu0 %v11696
    %12318 = vmatpush1.bf16.msra.mxu0 %v11695
    %12319 = vmatprep.subr.bf16.mxu0 %v11702
    %12320 = vmatpush1.bf16.msra.mxu0 %v11701
    %12321 = vmatprep.subr.bf16.mxu0 %v11708
    %12322 = vmatpush1.bf16.msra.mxu0 %v11707
    %12323 = vmatprep.subr.bf16.mxu0 %v11714
    %12324 = vmatpush1.bf16.msra.mxu0 %v11713
    %12325 = vmatprep.subr.bf16.mxu0 %v11720
    %12326 = vmatpush1.bf16.msra.mxu0 %v11719
    %12327 = vmatprep.subr.bf16.mxu0 %v11726
    %12328 = vmatpush1.bf16.msra.mxu0 %v11725
    %12329 = vmatprep.subr.bf16.mxu0 %v11732
    %12330 = vmatpush1.bf16.msra.mxu0 %v11731
    %12331 = vmatprep.subr.bf16.mxu0 %v11738
    %12332 = vmatpush1.bf16.msra.mxu0 %v11737
    %12333 = vmatprep.subr.bf16.mxu0 %v11744
    %12334 = vmatpush1.bf16.msra.mxu0 %v11743
    %12335 = vmatprep.subr.bf16.mxu0 %v11750
    %12336 = vmatpush1.bf16.msra.mxu0 %v11749
    %12337 = vmatprep.subr.bf16.mxu0 %v11756
    %12338 = vmatpush1.bf16.msra.mxu0 %v11755
    %12339 = vmatprep.mubr.bf16.mxu0 %v7690
    %12340 = vmatmul.mubr.bf16.gmra.mrb[0].mxu0 %v7689
    %v12341 = vpop.f32.mrb[0].mxu0
    %v12342 = vadd.f32 %v12301, %v12341
    %v12343 = vpop.f32.mrb[0].mxu0
    %v12344 = vadd.f32 %v12303, %v12343
    %v12345 = vpop.f32.mrb[0].mxu0
    %v12346 = vpop.f32.mrb[0].mxu0
    %12347 = vdwg.mxu0
    %12348 = vmatprep.subr.bf16.mxu0 %v11762
    %12349 = vmatpush1.bf16.msra.mxu0 %v11761
    %12350 = vmatprep.subr.bf16.mxu0 %v11768
    %12351 = vmatpush1.bf16.msra.mxu0 %v11767
    %12352 = vmatprep.subr.bf16.mxu0 %v11774
    %12353 = vmatpush1.bf16.msra.mxu0 %v11773
    %12354 = vmatprep.subr.bf16.mxu0 %v11780
    %12355 = vmatpush1.bf16.msra.mxu0 %v11779
    %12356 = vmatprep.subr.bf16.mxu0 %v11786
    %12357 = vmatpush1.bf16.msra.mxu0 %v11785
    %12358 = vmatprep.subr.bf16.mxu0 %v11792
    %12359 = vmatpush1.bf16.msra.mxu0 %v11791
    %12360 = vmatprep.subr.bf16.mxu0 %v11798
    %12361 = vmatpush1.bf16.msra.mxu0 %v11797
    %12362 = vmatprep.subr.bf16.mxu0 %v11804
    %12363 = vmatpush1.bf16.msra.mxu0 %v11803
    %12364 = vmatprep.subr.bf16.mxu0 %v11810
    %12365 = vmatpush1.bf16.msra.mxu0 %v11809
    %12366 = vmatprep.subr.bf16.mxu0 %v11816
    %12367 = vmatpush1.bf16.msra.mxu0 %v11815
    %12368 = vmatprep.subr.bf16.mxu0 %v11822
    %12369 = vmatpush1.bf16.msra.mxu0 %v11821
    %12370 = vmatprep.subr.bf16.mxu0 %v11828
    %12371 = vmatpush1.bf16.msra.mxu0 %v11827
    %12372 = vmatprep.subr.bf16.mxu0 %v11834
    %12373 = vmatpush1.bf16.msra.mxu0 %v11833
    %12374 = vmatprep.subr.bf16.mxu0 %v11840
    %12375 = vmatpush1.bf16.msra.mxu0 %v11839
    %12376 = vmatprep.subr.bf16.mxu0 %v11846
    %12377 = vmatpush1.bf16.msra.mxu0 %v11845
    %12378 = vmatprep.subr.bf16.mxu0 %v11852
    %12379 = vmatpush1.bf16.msra.mxu0 %v11851
    %12380 = vmatprep.mubr.bf16.mxu0 %v7692
    %12381 = vmatmul.mubr.bf16.gmra.mrb[0].mxu0 %v7691
    %v12382 = vpop.f32.mrb[0].mxu0
    %v12383 = vadd.f32 %v12342, %v12382
    %v12384 = vpop.f32.mrb[0].mxu0
    %v12385 = vadd.f32 %v12344, %v12384
    %v12386 = vpop.f32.mrb[0].mxu0
    %v12387 = vpop.f32.mrb[0].mxu0
    %12388 = vdwg.mxu0
    %12389 = vmatprep.subr.bf16.mxu0 %v11572
    %12390 = vmatpush1.bf16.msra.mxu0 %v11571
    %12391 = vmatprep.subr.bf16.mxu0 %v11578
    %12392 = vmatpush1.bf16.msra.mxu0 %v11577
    %12393 = vmatprep.subr.bf16.mxu0 %v11584
    %12394 = vmatpush1.bf16.msra.mxu0 %v11583
    %12395 = vmatprep.subr.bf16.mxu0 %v11590
    %12396 = vmatpush1.bf16.msra.mxu0 %v11589
    %12397 = vmatprep.subr.bf16.mxu0 %v11596
    %12398 = vmatpush1.bf16.msra.mxu0 %v11595
    %12399 = vmatprep.subr.bf16.mxu0 %v11602
    %12400 = vmatpush1.bf16.msra.mxu0 %v11601
    %12401 = vmatprep.subr.bf16.mxu0 %v11608
    %12402 = vmatpush1.bf16.msra.mxu0 %v11607
    %12403 = vmatprep.subr.bf16.mxu0 %v11614
    %12404 = vmatpush1.bf16.msra.mxu0 %v11613
    %12405 = vmatprep.subr.bf16.mxu0 %v11620
    %12406 = vmatpush1.bf16.msra.mxu0 %v11619
    %12407 = vmatprep.subr.bf16.mxu0 %v11626
    %12408 = vmatpush1.bf16.msra.mxu0 %v11625
    %12409 = vmatprep.subr.bf16.mxu0 %v11632
    %12410 = vmatpush1.bf16.msra.mxu0 %v11631
    %12411 = vmatprep.subr.bf16.mxu0 %v11638
    %12412 = vmatpush1.bf16.msra.mxu0 %v11637
    %12413 = vmatprep.subr.bf16.mxu0 %v11644
    %12414 = vmatpush1.bf16.msra.mxu0 %v11643
    %12415 = vmatprep.subr.bf16.mxu0 %v11650
    %12416 = vmatpush1.bf16.msra.mxu0 %v11649
    %12417 = vmatprep.subr.bf16.mxu0 %v11656
    %12418 = vmatpush1.bf16.msra.mxu0 %v11655
    %12419 = vmatprep.subr.bf16.mxu0 %v11662
    %12420 = vmatpush1.bf16.msra.mxu0 %v11661
    %12421 = vmatprep.mubr.bf16.mxu0 %v7688
    %12422 = vmatmul.mubr.bf16.gmra.mrb[0].mxu0 %v7687
    %v12423 = vpop.f32.mrb[0].mxu0
    %v12424 = vadd.f32 0.0, %v12423
    %v12425 = vpop.f32.mrb[0].mxu0
    %v12426 = vadd.f32 0.0, %v12425
    %v12427 = vpop.f32.mrb[0].mxu0
    %v12428 = vpop.f32.mrb[0].mxu0
    %12429 = vdwg.mxu0
    %12430 = vmatprep.subr.bf16.mxu0 %v11668
    %12431 = vmatpush1.bf16.msra.mxu0 %v11667
    %12432 = vmatprep.subr.bf16.mxu0 %v11674
    %12433 = vmatpush1.bf16.msra.mxu0 %v11673
    %12434 = vmatprep.subr.bf16.mxu0 %v11680
    %12435 = vmatpush1.bf16.msra.mxu0 %v11679
    %12436 = vmatprep.subr.bf16.mxu0 %v11686
    %12437 = vmatpush1.bf16.msra.mxu0 %v11685
    %12438 = vmatprep.subr.bf16.mxu0 %v11692
    %12439 = vmatpush1.bf16.msra.mxu0 %v11691
    %12440 = vmatprep.subr.bf16.mxu0 %v11698
    %12441 = vmatpush1.bf16.msra.mxu0 %v11697
    %12442 = vmatprep.subr.bf16.mxu0 %v11704
    %12443 = vmatpush1.bf16.msra.mxu0 %v11703
    %12444 = vmatprep.subr.bf16.mxu0 %v11710
    %12445 = vmatpush1.bf16.msra.mxu0 %v11709
    %12446 = vmatprep.subr.bf16.mxu0 %v11716
    %12447 = vmatpush1.bf16.msra.mxu0 %v11715
    %12448 = vmatprep.subr.bf16.mxu0 %v11722
    %12449 = vmatpush1.bf16.msra.mxu0 %v11721
    %12450 = vmatprep.subr.bf16.mxu0 %v11728
    %12451 = vmatpush1.bf16.msra.mxu0 %v11727
    %12452 = vmatprep.subr.bf16.mxu0 %v11734
    %12453 = vmatpush1.bf16.msra.mxu0 %v11733
    %12454 = vmatprep.subr.bf16.mxu0 %v11740
    %12455 = vmatpush1.bf16.msra.mxu0 %v11739
    %12456 = vmatprep.subr.bf16.mxu0 %v11746
    %12457 = vmatpush1.bf16.msra.mxu0 %v11745
    %12458 = vmatprep.subr.bf16.mxu0 %v11752
    %12459 = vmatpush1.bf16.msra.mxu0 %v11751
    %12460 = vmatprep.subr.bf16.mxu0 %v11758
    %12461 = vmatpush1.bf16.msra.mxu0 %v11757
    %12462 = vmatprep.mubr.bf16.mxu0 %v7690
    %12463 = vmatmul.mubr.bf16.gmra.mrb[0].mxu0 %v7689
    %v12464 = vpop.f32.mrb[0].mxu0
    %v12465 = vadd.f32 %v12424, %v12464
    %v12466 = vpop.f32.mrb[0].mxu0
    %v12467 = vadd.f32 %v12426, %v12466
    %v12468 = vpop.f32.mrb[0].mxu0
    %v12469 = vpop.f32.mrb[0].mxu0
    %12470 = vdwg.mxu0
    %12471 = vmatprep.subr.bf16.mxu0 %v11764
    %12472 = vmatpush1.bf16.msra.mxu0 %v11763
    %12473 = vmatprep.subr.bf16.mxu0 %v11770
    %12474 = vmatpush1.bf16.msra.mxu0 %v11769
    %12475 = vmatprep.subr.bf16.mxu0 %v11776
    %12476 = vmatpush1.bf16.msra.mxu0 %v11775
    %12477 = vmatprep.subr.bf16.mxu0 %v11782
    %12478 = vmatpush1.bf16.msra.mxu0 %v11781
    %12479 = vmatprep.subr.bf16.mxu0 %v11788
    %12480 = vmatpush1.bf16.msra.mxu0 %v11787
    %12481 = vmatprep.subr.bf16.mxu0 %v11794
    %12482 = vmatpush1.bf16.msra.mxu0 %v11793
    %12483 = vmatprep.subr.bf16.mxu0 %v11800
    %12484 = vmatpush1.bf16.msra.mxu0 %v11799
    %12485 = vmatprep.subr.bf16.mxu0 %v11806
    %12486 = vmatpush1.bf16.msra.mxu0 %v11805
    %12487 = vmatprep.subr.bf16.mxu0 %v11812
    %12488 = vmatpush1.bf16.msra.mxu0 %v11811
    %12489 = vmatprep.subr.bf16.mxu0 %v11818
    %12490 = vmatpush1.bf16.msra.mxu0 %v11817
    %12491 = vmatprep.subr.bf16.mxu0 %v11824
    %12492 = vmatpush1.bf16.msra.mxu0 %v11823
    %12493 = vmatprep.subr.bf16.mxu0 %v11830
    %12494 = vmatpush1.bf16.msra.mxu0 %v11829
    %12495 = vmatprep.subr.bf16.mxu0 %v11836
    %12496 = vmatpush1.bf16.msra.mxu0 %v11835
    %12497 = vmatprep.subr.bf16.mxu0 %v11842
    %12498 = vmatpush1.bf16.msra.mxu0 %v11841
    %12499 = vmatprep.subr.bf16.mxu0 %v11848
    %12500 = vmatpush1.bf16.msra.mxu0 %v11847
    %12501 = vmatprep.subr.bf16.mxu0 %v11854
    %12502 = vmatpush1.bf16.msra.mxu0 %v11853
    %12503 = vmatprep.mubr.bf16.mxu0 %v7692
    %12504 = vmatmul.mubr.bf16.gmra.mrb[0].mxu0 %v7691
    %v12505 = vpop.f32.mrb[0].mxu0
    %v12506 = vadd.f32 %v12465, %v12505
    %v12507 = vpop.f32.mrb[0].mxu0
    %v12508 = vadd.f32 %v12467, %v12507
    %v12509 = vpop.f32.mrb[0].mxu0
    %v12510 = vpop.f32.mrb[0].mxu0
    %12511 = vdwg.mxu0
    %v12800 = vunpack.c.l.b16 %v10126
    %v12801 = vunpack.c.h.b16 %v10126
    %v12802 = vunpack.c.l.b16 %v10127
    %v12803 = vunpack.c.h.b16 %v10127
    %v12804 = vunpack.c.l.b16 %v10128
    %v12805 = vunpack.c.h.b16 %v10128
    %v12806 = vunpack.c.l.b16 %v10129
    %v12807 = vunpack.c.h.b16 %v10129
    %v12808 = vunpack.c.l.b16 %v10130
    %v12809 = vunpack.c.h.b16 %v10130
    %v12810 = vunpack.c.l.b16 %v10131
    %v12811 = vunpack.c.h.b16 %v10131
    %v12812 = vunpack.c.l.b16 %v10132
    %v12813 = vunpack.c.h.b16 %v10132
    %v12814 = vunpack.c.l.b16 %v10133
    %v12815 = vunpack.c.h.b16 %v10133
    %v12816 = vunpack.c.l.b16 %v10134
    %v12817 = vunpack.c.h.b16 %v10134
    %v12818 = vunpack.c.l.b16 %v10135
    %v12819 = vunpack.c.h.b16 %v10135
    %v12820 = vunpack.c.l.b16 %v10136
    %v12821 = vunpack.c.h.b16 %v10136
    %v12822 = vunpack.c.l.b16 %v10137
    %v12823 = vunpack.c.h.b16 %v10137
    %v12824 = vunpack.c.l.b16 %v10138
    %v12825 = vunpack.c.h.b16 %v10138
    %v12826 = vunpack.c.l.b16 %v10139
    %v12827 = vunpack.c.h.b16 %v10139
    %v12828 = vunpack.c.l.b16 %v10140
    %v12829 = vunpack.c.h.b16 %v10140
    %v12830 = vunpack.c.l.b16 %v10141
    %v12831 = vunpack.c.h.b16 %v10141
    %v12832 = vunpack.c.l.b16 %v10142
    %v12833 = vunpack.c.h.b16 %v10142
    %v12834 = vunpack.c.l.b16 %v10143
    %v12835 = vunpack.c.h.b16 %v10143
    %v12836 = vunpack.c.l.b16 %v10144
    %v12837 = vunpack.c.h.b16 %v10144
    %v12838 = vunpack.c.l.b16 %v10145
    %v12839 = vunpack.c.h.b16 %v10145
    %v12840 = vunpack.c.l.b16 %v10146
    %v12841 = vunpack.c.h.b16 %v10146
    %v12842 = vunpack.c.l.b16 %v10147
    %v12843 = vunpack.c.h.b16 %v10147
    %v12844 = vunpack.c.l.b16 %v10148
    %v12845 = vunpack.c.h.b16 %v10148
    %v12846 = vunpack.c.l.b16 %v10149
    %v12847 = vunpack.c.h.b16 %v10149
    %v12848 = vunpack.c.l.b16 %v10150
    %v12849 = vunpack.c.h.b16 %v10150
    %v12850 = vunpack.c.l.b16 %v10151
    %v12851 = vunpack.c.h.b16 %v10151
    %v12852 = vunpack.c.l.b16 %v10152
    %v12853 = vunpack.c.h.b16 %v10152
    %v12854 = vunpack.c.l.b16 %v10153
    %v12855 = vunpack.c.h.b16 %v10153
    %v12856 = vunpack.c.l.b16 %v10154
    %v12857 = vunpack.c.h.b16 %v10154
    %v12858 = vunpack.c.l.b16 %v10155
    %v12859 = vunpack.c.h.b16 %v10155
    %v12860 = vunpack.c.l.b16 %v10156
    %v12861 = vunpack.c.h.b16 %v10156
    %v12862 = vunpack.c.l.b16 %v10157
    %v12863 = vunpack.c.h.b16 %v10157
    %v12864 = vunpack.c.l.b16 %v10158
    %v12865 = vunpack.c.h.b16 %v10158
    %v12866 = vunpack.c.l.b16 %v10159
    %v12867 = vunpack.c.h.b16 %v10159
    %v12868 = vunpack.c.l.b16 %v10160
    %v12869 = vunpack.c.h.b16 %v10160
    %v12870 = vunpack.c.l.b16 %v10161
    %v12871 = vunpack.c.h.b16 %v10161
    %v12872 = vunpack.c.l.b16 %v10162
    %v12873 = vunpack.c.h.b16 %v10162
    %v12874 = vunpack.c.l.b16 %v10163
    %v12875 = vunpack.c.h.b16 %v10163
    %v12876 = vunpack.c.l.b16 %v10164
    %v12877 = vunpack.c.h.b16 %v10164
    %v12878 = vunpack.c.l.b16 %v10165
    %v12879 = vunpack.c.h.b16 %v10165
    %v12880 = vunpack.c.l.b16 %v10166
    %v12881 = vunpack.c.h.b16 %v10166
    %v12882 = vunpack.c.l.b16 %v10167
    %v12883 = vunpack.c.h.b16 %v10167
    %v12884 = vunpack.c.l.b16 %v10168
    %v12885 = vunpack.c.h.b16 %v10168
    %v12886 = vunpack.c.l.b16 %v10169
    %v12887 = vunpack.c.h.b16 %v10169
    %v12888 = vunpack.c.l.b16 %v10170
    %v12889 = vunpack.c.h.b16 %v10170
    %v12890 = vunpack.c.l.b16 %v10171
    %v12891 = vunpack.c.h.b16 %v10171
    %v12892 = vunpack.c.l.b16 %v10172
    %v12893 = vunpack.c.h.b16 %v10172
    %v12894 = vunpack.c.l.b16 %v10173
    %v12895 = vunpack.c.h.b16 %v10173
    %v12896 = vunpack.c.l.b16 %v10174
    %v12897 = vunpack.c.h.b16 %v10174
    %v12898 = vunpack.c.l.b16 %v10175
    %v12899 = vunpack.c.h.b16 %v10175
    %v12900 = vunpack.c.l.b16 %v10176
    %v12901 = vunpack.c.h.b16 %v10176
    %v12902 = vunpack.c.l.b16 %v10177
    %v12903 = vunpack.c.h.b16 %v10177
    %v12904 = vunpack.c.l.b16 %v10178
    %v12905 = vunpack.c.h.b16 %v10178
    %v12906 = vunpack.c.l.b16 %v10179
    %v12907 = vunpack.c.h.b16 %v10179
    %v12908 = vunpack.c.l.b16 %v10180
    %v12909 = vunpack.c.h.b16 %v10180
    %v12910 = vunpack.c.l.b16 %v10181
    %v12911 = vunpack.c.h.b16 %v10181
    %v12912 = vunpack.c.l.b16 %v10182
    %v12913 = vunpack.c.h.b16 %v10182
    %v12914 = vunpack.c.l.b16 %v10183
    %v12915 = vunpack.c.h.b16 %v10183
    %v12916 = vunpack.c.l.b16 %v10184
    %v12917 = vunpack.c.h.b16 %v10184
    %v12918 = vunpack.c.l.b16 %v10185
    %v12919 = vunpack.c.h.b16 %v10185
    %v12920 = vunpack.c.l.b16 %v10186
    %v12921 = vunpack.c.h.b16 %v10186
    %v12922 = vunpack.c.l.b16 %v10187
    %v12923 = vunpack.c.h.b16 %v10187
    %v12924 = vunpack.c.l.b16 %v10188
    %v12925 = vunpack.c.h.b16 %v10188
    %v12926 = vunpack.c.l.b16 %v10189
    %v12927 = vunpack.c.h.b16 %v10189
    %v12928 = vunpack.c.l.b16 %v10190
    %v12929 = vunpack.c.h.b16 %v10190
    %v12930 = vunpack.c.l.b16 %v10191
    %v12931 = vunpack.c.h.b16 %v10191
    %v12932 = vunpack.c.l.b16 %v10192
    %v12933 = vunpack.c.h.b16 %v10192
    %v12934 = vunpack.c.l.b16 %v10193
    %v12935 = vunpack.c.h.b16 %v10193
    %v12936 = vunpack.c.l.b16 %v10194
    %v12937 = vunpack.c.h.b16 %v10194
    %v12938 = vunpack.c.l.b16 %v10195
    %v12939 = vunpack.c.h.b16 %v10195
    %v12940 = vunpack.c.l.b16 %v10196
    %v12941 = vunpack.c.h.b16 %v10196
    %v12942 = vunpack.c.l.b16 %v10197
    %v12943 = vunpack.c.h.b16 %v10197
    %v12944 = vunpack.c.l.b16 %v10198
    %v12945 = vunpack.c.h.b16 %v10198
    %v12946 = vunpack.c.l.b16 %v10199
    %v12947 = vunpack.c.h.b16 %v10199
    %v12948 = vunpack.c.l.b16 %v10200
    %v12949 = vunpack.c.h.b16 %v10200
    %v12950 = vunpack.c.l.b16 %v10201
    %v12951 = vunpack.c.h.b16 %v10201
    %v12952 = vunpack.c.l.b16 %v10202
    %v12953 = vunpack.c.h.b16 %v10202
    %v12954 = vunpack.c.l.b16 %v10203
    %v12955 = vunpack.c.h.b16 %v10203
    %v12956 = vunpack.c.l.b16 %v10204
    %v12957 = vunpack.c.h.b16 %v10204
    %v12958 = vunpack.c.l.b16 %v10205
    %v12959 = vunpack.c.h.b16 %v10205
    %v12960 = vunpack.c.l.b16 %v10206
    %v12961 = vunpack.c.h.b16 %v10206
    %v12962 = vunpack.c.l.b16 %v10207
    %v12963 = vunpack.c.h.b16 %v10207
    %v12964 = vunpack.c.l.b16 %v10208
    %v12965 = vunpack.c.h.b16 %v10208
    %v12966 = vunpack.c.l.b16 %v10209
    %v12967 = vunpack.c.h.b16 %v10209
    %v12968 = vunpack.c.l.b16 %v10210
    %v12969 = vunpack.c.h.b16 %v10210
    %v12970 = vunpack.c.l.b16 %v10211
    %v12971 = vunpack.c.h.b16 %v10211
    %v12972 = vunpack.c.l.b16 %v10212
    %v12973 = vunpack.c.h.b16 %v10212
    %v12974 = vunpack.c.l.b16 %v10213
    %v12975 = vunpack.c.h.b16 %v10213
    %v12976 = vunpack.c.l.b16 %v10214
    %v12977 = vunpack.c.h.b16 %v10214
    %v12978 = vunpack.c.l.b16 %v10215
    %v12979 = vunpack.c.h.b16 %v10215
    %v12980 = vunpack.c.l.b16 %v10216
    %v12981 = vunpack.c.h.b16 %v10216
    %v12982 = vunpack.c.l.b16 %v10217
    %v12983 = vunpack.c.h.b16 %v10217
    %v12984 = vunpack.c.l.b16 %v10218
    %v12985 = vunpack.c.h.b16 %v10218
    %v12986 = vunpack.c.l.b16 %v10219
    %v12987 = vunpack.c.h.b16 %v10219
    %v12988 = vunpack.c.l.b16 %v10220
    %v12989 = vunpack.c.h.b16 %v10220
    %v12990 = vunpack.c.l.b16 %v10221
    %v12991 = vunpack.c.h.b16 %v10221
    %v12992 = vunpack.c.l.b16 %v10222
    %v12993 = vunpack.c.h.b16 %v10222
    %v12994 = vunpack.c.l.b16 %v10223
    %v12995 = vunpack.c.h.b16 %v10223
    %v12996 = vunpack.c.l.b16 %v10224
    %v12997 = vunpack.c.h.b16 %v10224
    %v12998 = vunpack.c.l.b16 %v10225
    %v12999 = vunpack.c.h.b16 %v10225
    %v13000 = vunpack.c.l.b16 %v10226
    %v13001 = vunpack.c.h.b16 %v10226
    %v13002 = vunpack.c.l.b16 %v10227
    %v13003 = vunpack.c.h.b16 %v10227
    %v13004 = vunpack.c.l.b16 %v10228
    %v13005 = vunpack.c.h.b16 %v10228
    %v13006 = vunpack.c.l.b16 %v10229
    %v13007 = vunpack.c.h.b16 %v10229
    %v13008 = vunpack.c.l.b16 %v10230
    %v13009 = vunpack.c.h.b16 %v10230
    %v13010 = vunpack.c.l.b16 %v10231
    %v13011 = vunpack.c.h.b16 %v10231
    %v13012 = vunpack.c.l.b16 %v10232
    %v13013 = vunpack.c.h.b16 %v10232
    %v13014 = vunpack.c.l.b16 %v10233
    %v13015 = vunpack.c.h.b16 %v10233
    %v13016 = vunpack.c.l.b16 %v10234
    %v13017 = vunpack.c.h.b16 %v10234
    %v13018 = vunpack.c.l.b16 %v10235
    %v13019 = vunpack.c.h.b16 %v10235
    %v13020 = vunpack.c.l.b16 %v10236
    %v13021 = vunpack.c.h.b16 %v10236
    %v13022 = vunpack.c.l.b16 %v10237
    %v13023 = vunpack.c.h.b16 %v10237
    %v13024 = vunpack.c.l.b16 %v10238
    %v13025 = vunpack.c.h.b16 %v10238
    %v13026 = vunpack.c.l.b16 %v10239
    %v13027 = vunpack.c.h.b16 %v10239
    %v13028 = vunpack.c.l.b16 %v10240
    %v13029 = vunpack.c.h.b16 %v10240
    %v13030 = vunpack.c.l.b16 %v10241
    %v13031 = vunpack.c.h.b16 %v10241
    %v13032 = vunpack.c.l.b16 %v10242
    %v13033 = vunpack.c.h.b16 %v10242
    %v13034 = vunpack.c.l.b16 %v10243
    %v13035 = vunpack.c.h.b16 %v10243
    %v13036 = vunpack.c.l.b16 %v10244
    %v13037 = vunpack.c.h.b16 %v10244
    %v13038 = vunpack.c.l.b16 %v10245
    %v13039 = vunpack.c.h.b16 %v10245
    %v13040 = vunpack.c.l.b16 %v10246
    %v13041 = vunpack.c.h.b16 %v10246
    %v13042 = vunpack.c.l.b16 %v10247
    %v13043 = vunpack.c.h.b16 %v10247
    %v13044 = vunpack.c.l.b16 %v10248
    %v13045 = vunpack.c.h.b16 %v10248
    %v13046 = vunpack.c.l.b16 %v10249
    %v13047 = vunpack.c.h.b16 %v10249
    %v13048 = vunpack.c.l.b16 %v10250
    %v13049 = vunpack.c.h.b16 %v10250
    %v13050 = vunpack.c.l.b16 %v10251
    %v13051 = vunpack.c.h.b16 %v10251
    %v13052 = vunpack.c.l.b16 %v10252
    %v13053 = vunpack.c.h.b16 %v10252
    %v13054 = vunpack.c.l.b16 %v10253
    %v13055 = vunpack.c.h.b16 %v10253
    %v13056 = vunpack.c.l.b16 %v10254
    %v13057 = vunpack.c.h.b16 %v10254
    %v13058 = vunpack.c.l.b16 %v10255
    %v13059 = vunpack.c.h.b16 %v10255
    %v13060 = vunpack.c.l.b16 %v10256
    %v13061 = vunpack.c.h.b16 %v10256
    %v13062 = vunpack.c.l.b16 %v10257
    %v13063 = vunpack.c.h.b16 %v10257
    %v13064 = vunpack.c.l.b16 %v10258
    %v13065 = vunpack.c.h.b16 %v10258
    %v13066 = vunpack.c.l.b16 %v10259
    %v13067 = vunpack.c.h.b16 %v10259
    %v13068 = vunpack.c.l.b16 %v10260
    %v13069 = vunpack.c.h.b16 %v10260
    %v13070 = vunpack.c.l.b16 %v10261
    %v13071 = vunpack.c.h.b16 %v10261
    %v13072 = vunpack.c.l.b16 %v10262
    %v13073 = vunpack.c.h.b16 %v10262
    %v13074 = vunpack.c.l.b16 %v10263
    %v13075 = vunpack.c.h.b16 %v10263
    %v13076 = vunpack.c.l.b16 %v10264
    %v13077 = vunpack.c.h.b16 %v10264
    %v13078 = vunpack.c.l.b16 %v10265
    %v13079 = vunpack.c.h.b16 %v10265
    %v13080 = vunpack.c.l.b16 %v10266
    %v13081 = vunpack.c.h.b16 %v10266
    %v13082 = vunpack.c.l.b16 %v10267
    %v13083 = vunpack.c.h.b16 %v10267
    %v13084 = vunpack.c.l.b16 %v10268
    %v13085 = vunpack.c.h.b16 %v10268
    %v13086 = vunpack.c.l.b16 %v10269
    %v13087 = vunpack.c.h.b16 %v10269
    %v13088 = vunpack.c.l.b16 %v10270
    %v13089 = vunpack.c.h.b16 %v10270
    %v13090 = vunpack.c.l.b16 %v10271
    %v13091 = vunpack.c.h.b16 %v10271
    %v13092 = vunpack.c.l.b16 %v10272
    %v13093 = vunpack.c.h.b16 %v10272
    %v13094 = vunpack.c.l.b16 %v10273
    %v13095 = vunpack.c.h.b16 %v10273
    %v13096 = vunpack.c.l.b16 %v10274
    %v13097 = vunpack.c.h.b16 %v10274
    %v13098 = vunpack.c.l.b16 %v10275
    %v13099 = vunpack.c.h.b16 %v10275
    %v13100 = vunpack.c.l.b16 %v10276
    %v13101 = vunpack.c.h.b16 %v10276
    %v13102 = vunpack.c.l.b16 %v10277
    %v13103 = vunpack.c.h.b16 %v10277
    %v13104 = vunpack.c.l.b16 %v10278
    %v13105 = vunpack.c.h.b16 %v10278
    %v13106 = vunpack.c.l.b16 %v10279
    %v13107 = vunpack.c.h.b16 %v10279
    %v13108 = vunpack.c.l.b16 %v10280
    %v13109 = vunpack.c.h.b16 %v10280
    %v13110 = vunpack.c.l.b16 %v10281
    %v13111 = vunpack.c.h.b16 %v10281
    %v13112 = vunpack.c.l.b16 %v10282
    %v13113 = vunpack.c.h.b16 %v10282
    %v13114 = vunpack.c.l.b16 %v10283
    %v13115 = vunpack.c.h.b16 %v10283
    %v13116 = vunpack.c.l.b16 %v10284
    %v13117 = vunpack.c.h.b16 %v10284
    %v13118 = vunpack.c.l.b16 %v10285
    %v13119 = vunpack.c.h.b16 %v10285
    %v13120 = vunpack.c.l.b16 %v10286
    %v13121 = vunpack.c.h.b16 %v10286
    %v13122 = vunpack.c.l.b16 %v10287
    %v13123 = vunpack.c.h.b16 %v10287
    %v13124 = vunpack.c.l.b16 %v10288
    %v13125 = vunpack.c.h.b16 %v10288
    %v13126 = vunpack.c.l.b16 %v10289
    %v13127 = vunpack.c.h.b16 %v10289
    %v13128 = vunpack.c.l.b16 %v10290
    %v13129 = vunpack.c.h.b16 %v10290
    %v13130 = vunpack.c.l.b16 %v10291
    %v13131 = vunpack.c.h.b16 %v10291
    %v13132 = vunpack.c.l.b16 %v10292
    %v13133 = vunpack.c.h.b16 %v10292
    %v13134 = vunpack.c.l.b16 %v10293
    %v13135 = vunpack.c.h.b16 %v10293
    %v13136 = vunpack.c.l.b16 %v10294
    %v13137 = vunpack.c.h.b16 %v10294
    %v13138 = vunpack.c.l.b16 %v10295
    %v13139 = vunpack.c.h.b16 %v10295
    %v13140 = vunpack.c.l.b16 %v10296
    %v13141 = vunpack.c.h.b16 %v10296
    %v13142 = vunpack.c.l.b16 %v10297
    %v13143 = vunpack.c.h.b16 %v10297
    %v13144 = vunpack.c.l.b16 %v10298
    %v13145 = vunpack.c.h.b16 %v10298
    %v13146 = vunpack.c.l.b16 %v10299
    %v13147 = vunpack.c.h.b16 %v10299
    %v13148 = vunpack.c.l.b16 %v10300
    %v13149 = vunpack.c.h.b16 %v10300
    %v13150 = vunpack.c.l.b16 %v10301
    %v13151 = vunpack.c.h.b16 %v10301
    %v13152 = vunpack.c.l.b16 %v10302
    %v13153 = vunpack.c.h.b16 %v10302
    %v13154 = vunpack.c.l.b16 %v10303
    %v13155 = vunpack.c.h.b16 %v10303
    %v13156 = vunpack.c.l.b16 %v10304
    %v13157 = vunpack.c.h.b16 %v10304
    %v13158 = vunpack.c.l.b16 %v10305
    %v13159 = vunpack.c.h.b16 %v10305
    %v13160 = vunpack.c.l.b16 %v10306
    %v13161 = vunpack.c.h.b16 %v10306
    %v13162 = vunpack.c.l.b16 %v10307
    %v13163 = vunpack.c.h.b16 %v10307
    %v13164 = vunpack.c.l.b16 %v10308
    %v13165 = vunpack.c.h.b16 %v10308
    %v13166 = vunpack.c.l.b16 %v10309
    %v13167 = vunpack.c.h.b16 %v10309
    %v13168 = vunpack.c.l.b16 %v10310
    %v13169 = vunpack.c.h.b16 %v10310
    %v13170 = vunpack.c.l.b16 %v10311
    %v13171 = vunpack.c.h.b16 %v10311
    %v13172 = vunpack.c.l.b16 %v10312
    %v13173 = vunpack.c.h.b16 %v10312
    %v13174 = vunpack.c.l.b16 %v10313
    %v13175 = vunpack.c.h.b16 %v10313
    %v13176 = vunpack.c.l.b16 %v10314
    %v13177 = vunpack.c.h.b16 %v10314
    %v13178 = vunpack.c.l.b16 %v10315
    %v13179 = vunpack.c.h.b16 %v10315
    %v13180 = vunpack.c.l.b16 %v10316
    %v13181 = vunpack.c.h.b16 %v10316
    %v13182 = vunpack.c.l.b16 %v10317
    %v13183 = vunpack.c.h.b16 %v10317
    %v13184 = vunpack.c.l.b16 %v10318
    %v13185 = vunpack.c.h.b16 %v10318
    %v13186 = vunpack.c.l.b16 %v10319
    %v13187 = vunpack.c.h.b16 %v10319
    %v13188 = vunpack.c.l.b16 %v10320
    %v13189 = vunpack.c.h.b16 %v10320
    %v13190 = vunpack.c.l.b16 %v10321
    %v13191 = vunpack.c.h.b16 %v10321
    %v13192 = vunpack.c.l.b16 %v10322
    %v13193 = vunpack.c.h.b16 %v10322
    %v13194 = vunpack.c.l.b16 %v10323
    %v13195 = vunpack.c.h.b16 %v10323
    %v13196 = vunpack.c.l.b16 %v10324
    %v13197 = vunpack.c.h.b16 %v10324
    %v13198 = vunpack.c.l.b16 %v10325
    %v13199 = vunpack.c.h.b16 %v10325
    %v13200 = vunpack.c.l.b16 %v10326
    %v13201 = vunpack.c.h.b16 %v10326
    %v13202 = vunpack.c.l.b16 %v10327
    %v13203 = vunpack.c.h.b16 %v10327
    %v13204 = vunpack.c.l.b16 %v10328
    %v13205 = vunpack.c.h.b16 %v10328
    %v13206 = vunpack.c.l.b16 %v10329
    %v13207 = vunpack.c.h.b16 %v10329
    %v13208 = vunpack.c.l.b16 %v10330
    %v13209 = vunpack.c.h.b16 %v10330
    %v13210 = vunpack.c.l.b16 %v10331
    %v13211 = vunpack.c.h.b16 %v10331
    %v13212 = vunpack.c.l.b16 %v10332
    %v13213 = vunpack.c.h.b16 %v10332
    %v13214 = vunpack.c.l.b16 %v10333
    %v13215 = vunpack.c.h.b16 %v10333
    %v13216 = vunpack.c.l.b16 %v10334
    %v13217 = vunpack.c.h.b16 %v10334
    %v13218 = vunpack.c.l.b16 %v10335
    %v13219 = vunpack.c.h.b16 %v10335
    %v13220 = vunpack.c.l.b16 %v10336
    %v13221 = vunpack.c.h.b16 %v10336
    %v13222 = vunpack.c.l.b16 %v10337
    %v13223 = vunpack.c.h.b16 %v10337
    %v13224 = vunpack.c.l.b16 %v10338
    %v13225 = vunpack.c.h.b16 %v10338
    %v13226 = vunpack.c.l.b16 %v10339
    %v13227 = vunpack.c.h.b16 %v10339
    %v13228 = vunpack.c.l.b16 %v10340
    %v13229 = vunpack.c.h.b16 %v10340
    %v13230 = vunpack.c.l.b16 %v10341
    %v13231 = vunpack.c.h.b16 %v10341
    %v13232 = vunpack.c.l.b16 %v10342
    %v13233 = vunpack.c.h.b16 %v10342
    %v13234 = vunpack.c.l.b16 %v10343
    %v13235 = vunpack.c.h.b16 %v10343
    %v13236 = vunpack.c.l.b16 %v10344
    %v13237 = vunpack.c.h.b16 %v10344
    %v13238 = vunpack.c.l.b16 %v10345
    %v13239 = vunpack.c.h.b16 %v10345
    %v13240 = vunpack.c.l.b16 %v10346
    %v13241 = vunpack.c.h.b16 %v10346
    %v13242 = vunpack.c.l.b16 %v10347
    %v13243 = vunpack.c.h.b16 %v10347
    %v13244 = vunpack.c.l.b16 %v10348
    %v13245 = vunpack.c.h.b16 %v10348
    %v13246 = vunpack.c.l.b16 %v10349
    %v13247 = vunpack.c.h.b16 %v10349
    %v13248 = vunpack.c.l.b16 %v10350
    %v13249 = vunpack.c.h.b16 %v10350
    %v13250 = vunpack.c.l.b16 %v10351
    %v13251 = vunpack.c.h.b16 %v10351
    %v13252 = vunpack.c.l.b16 %v10352
    %v13253 = vunpack.c.h.b16 %v10352
    %v13254 = vunpack.c.l.b16 %v10353
    %v13255 = vunpack.c.h.b16 %v10353
    %v13256 = vunpack.c.l.b16 %v10354
    %v13257 = vunpack.c.h.b16 %v10354
    %v13258 = vunpack.c.l.b16 %v10355
    %v13259 = vunpack.c.h.b16 %v10355
    %v13260 = vunpack.c.l.b16 %v10356
    %v13261 = vunpack.c.h.b16 %v10356
    %v13262 = vunpack.c.l.b16 %v10357
    %v13263 = vunpack.c.h.b16 %v10357
    %v13264 = vunpack.c.l.b16 %v10358
    %v13265 = vunpack.c.h.b16 %v10358
    %v13266 = vunpack.c.l.b16 %v10359
    %v13267 = vunpack.c.h.b16 %v10359
    %v13268 = vunpack.c.l.b16 %v10360
    %v13269 = vunpack.c.h.b16 %v10360
    %v13270 = vunpack.c.l.b16 %v10361
    %v13271 = vunpack.c.h.b16 %v10361
    %v13272 = vunpack.c.l.b16 %v10362
    %v13273 = vunpack.c.h.b16 %v10362
    %v13274 = vunpack.c.l.b16 %v10363
    %v13275 = vunpack.c.h.b16 %v10363
    %v13276 = vunpack.c.l.b16 %v10364
    %v13277 = vunpack.c.h.b16 %v10364
    %v13278 = vunpack.c.l.b16 %v10365
    %v13279 = vunpack.c.h.b16 %v10365
    %v13280 = vunpack.c.l.b16 %v10366
    %v13281 = vunpack.c.h.b16 %v10366
    %v13282 = vunpack.c.l.b16 %v10367
    %v13283 = vunpack.c.h.b16 %v10367
    %v13284 = vunpack.c.l.b16 %v10368
    %v13285 = vunpack.c.h.b16 %v10368
    %v13286 = vunpack.c.l.b16 %v10369
    %v13287 = vunpack.c.h.b16 %v10369
    %v13288 = vunpack.c.l.b16 %v10370
    %v13289 = vunpack.c.h.b16 %v10370
    %v13290 = vunpack.c.l.b16 %v10371
    %v13291 = vunpack.c.h.b16 %v10371
    %v13292 = vunpack.c.l.b16 %v10372
    %v13293 = vunpack.c.h.b16 %v10372
    %v13294 = vunpack.c.l.b16 %v10373
    %v13295 = vunpack.c.h.b16 %v10373
    %v13296 = vunpack.c.l.b16 %v10374
    %v13297 = vunpack.c.h.b16 %v10374
    %v13298 = vunpack.c.l.b16 %v10375
    %v13299 = vunpack.c.h.b16 %v10375
    %v13300 = vunpack.c.l.b16 %v10376
    %v13301 = vunpack.c.h.b16 %v10376
    %v13302 = vunpack.c.l.b16 %v10377
    %v13303 = vunpack.c.h.b16 %v10377
    %v13304 = vunpack.c.l.b16 %v10378
    %v13305 = vunpack.c.h.b16 %v10378
    %v13306 = vunpack.c.l.b16 %v10379
    %v13307 = vunpack.c.h.b16 %v10379
    %v13308 = vunpack.c.l.b16 %v10380
    %v13309 = vunpack.c.h.b16 %v10380
    %v13310 = vunpack.c.l.b16 %v10381
    %v13311 = vunpack.c.h.b16 %v10381
    %v13312 = vunpack.c.l.b16 %v10382
    %v13313 = vunpack.c.h.b16 %v10382
    %v13314 = vunpack.c.l.b16 %v10383
    %v13315 = vunpack.c.h.b16 %v10383
    %v13316 = vunpack.c.l.b16 %v10384
    %v13317 = vunpack.c.h.b16 %v10384
    %v13318 = vunpack.c.l.b16 %v10385
    %v13319 = vunpack.c.h.b16 %v10385
    %v13320 = vunpack.c.l.b16 %v10386
    %v13321 = vunpack.c.h.b16 %v10386
    %v13322 = vunpack.c.l.b16 %v10387
    %v13323 = vunpack.c.h.b16 %v10387
    %v13324 = vunpack.c.l.b16 %v10388
    %v13325 = vunpack.c.h.b16 %v10388
    %v13326 = vunpack.c.l.b16 %v10389
    %v13327 = vunpack.c.h.b16 %v10389
    %v13328 = vunpack.c.l.b16 %v10390
    %v13329 = vunpack.c.h.b16 %v10390
    %v13330 = vunpack.c.l.b16 %v10391
    %v13331 = vunpack.c.h.b16 %v10391
    %v13332 = vunpack.c.l.b16 %v10392
    %v13333 = vunpack.c.h.b16 %v10392
    %v13334 = vunpack.c.l.b16 %v10393
    %v13335 = vunpack.c.h.b16 %v10393
    %v13336 = vunpack.c.l.b16 %v10394
    %v13337 = vunpack.c.h.b16 %v10394
    %v13338 = vunpack.c.l.b16 %v10395
    %v13339 = vunpack.c.h.b16 %v10395
    %v13340 = vunpack.c.l.b16 %v10396
    %v13341 = vunpack.c.h.b16 %v10396
    %v13342 = vunpack.c.l.b16 %v10397
    %v13343 = vunpack.c.h.b16 %v10397
    %v13344 = vunpack.c.l.b16 %v10398
    %v13345 = vunpack.c.h.b16 %v10398
    %v13346 = vunpack.c.l.b16 %v10399
    %v13347 = vunpack.c.h.b16 %v10399
    %v13348 = vunpack.c.l.b16 %v10400
    %v13349 = vunpack.c.h.b16 %v10400
    %v13350 = vunpack.c.l.b16 %v10401
    %v13351 = vunpack.c.h.b16 %v10401
    %v13352 = vunpack.c.l.b16 %v10402
    %v13353 = vunpack.c.h.b16 %v10402
    %v13354 = vunpack.c.l.b16 %v10403
    %v13355 = vunpack.c.h.b16 %v10403
    %v13356 = vunpack.c.l.b16 %v10404
    %v13357 = vunpack.c.h.b16 %v10404
    %v13358 = vunpack.c.l.b16 %v10405
    %v13359 = vunpack.c.h.b16 %v10405
    %v13360 = vunpack.c.l.b16 %v10406
    %v13361 = vunpack.c.h.b16 %v10406
    %v13362 = vunpack.c.l.b16 %v10407
    %v13363 = vunpack.c.h.b16 %v10407
    %v13364 = vunpack.c.l.b16 %v10408
    %v13365 = vunpack.c.h.b16 %v10408
    %v13366 = vunpack.c.l.b16 %v10409
    %v13367 = vunpack.c.h.b16 %v10409
    %v13368 = vunpack.c.l.b16 %v10410
    %v13369 = vunpack.c.h.b16 %v10410
    %v13370 = vunpack.c.l.b16 %v10411
    %v13371 = vunpack.c.h.b16 %v10411
    %v13372 = vunpack.c.l.b16 %v10412
    %v13373 = vunpack.c.h.b16 %v10412
    %v13374 = vunpack.c.l.b16 %v10413
    %v13375 = vunpack.c.h.b16 %v10413
    %v13376 = vpack.c.b16 %v12806, %v12800
    %v13377 = vpack.c.b16 %v12807, %v12801
    %v13378 = vpack.c.b16 %v12808, %v12802
    %v13379 = vpack.c.b16 %v12809, %v12803
    %v13380 = vpack.c.b16 %v12810, %v12804
    %v13381 = vpack.c.b16 %v12811, %v12805
    %v13382 = vpack.c.b16 %v12818, %v12812
    %v13383 = vpack.c.b16 %v12819, %v12813
    %v13384 = vpack.c.b16 %v12820, %v12814
    %v13385 = vpack.c.b16 %v12821, %v12815
    %v13386 = vpack.c.b16 %v12822, %v12816
    %v13387 = vpack.c.b16 %v12823, %v12817
    %v13388 = vpack.c.b16 %v12830, %v12824
    %v13389 = vpack.c.b16 %v12831, %v12825
    %v13390 = vpack.c.b16 %v12832, %v12826
    %v13391 = vpack.c.b16 %v12833, %v12827
    %v13392 = vpack.c.b16 %v12834, %v12828
    %v13393 = vpack.c.b16 %v12835, %v12829
    %v13394 = vpack.c.b16 %v12842, %v12836
    %v13395 = vpack.c.b16 %v12843, %v12837
    %v13396 = vpack.c.b16 %v12844, %v12838
    %v13397 = vpack.c.b16 %v12845, %v12839
    %v13398 = vpack.c.b16 %v12846, %v12840
    %v13399 = vpack.c.b16 %v12847, %v12841
    %v13400 = vpack.c.b16 %v12854, %v12848
    %v13401 = vpack.c.b16 %v12855, %v12849
    %v13402 = vpack.c.b16 %v12856, %v12850
    %v13403 = vpack.c.b16 %v12857, %v12851
    %v13404 = vpack.c.b16 %v12858, %v12852
    %v13405 = vpack.c.b16 %v12859, %v12853
    %v13406 = vpack.c.b16 %v12866, %v12860
    %v13407 = vpack.c.b16 %v12867, %v12861
    %v13408 = vpack.c.b16 %v12868, %v12862
    %v13409 = vpack.c.b16 %v12869, %v12863
    %v13410 = vpack.c.b16 %v12870, %v12864
    %v13411 = vpack.c.b16 %v12871, %v12865
    %v13412 = vpack.c.b16 %v12878, %v12872
    %v13413 = vpack.c.b16 %v12879, %v12873
    %v13414 = vpack.c.b16 %v12880, %v12874
    %v13415 = vpack.c.b16 %v12881, %v12875
    %v13416 = vpack.c.b16 %v12882, %v12876
    %v13417 = vpack.c.b16 %v12883, %v12877
    %v13418 = vpack.c.b16 %v12890, %v12884
    %v13419 = vpack.c.b16 %v12891, %v12885
    %v13420 = vpack.c.b16 %v12892, %v12886
    %v13421 = vpack.c.b16 %v12893, %v12887
    %v13422 = vpack.c.b16 %v12894, %v12888
    %v13423 = vpack.c.b16 %v12895, %v12889
    %v13424 = vpack.c.b16 %v12902, %v12896
    %v13425 = vpack.c.b16 %v12903, %v12897
    %v13426 = vpack.c.b16 %v12904, %v12898
    %v13427 = vpack.c.b16 %v12905, %v12899
    %v13428 = vpack.c.b16 %v12906, %v12900
    %v13429 = vpack.c.b16 %v12907, %v12901
    %v13430 = vpack.c.b16 %v12914, %v12908
    %v13431 = vpack.c.b16 %v12915, %v12909
    %v13432 = vpack.c.b16 %v12916, %v12910
    %v13433 = vpack.c.b16 %v12917, %v12911
    %v13434 = vpack.c.b16 %v12918, %v12912
    %v13435 = vpack.c.b16 %v12919, %v12913
    %v13436 = vpack.c.b16 %v12926, %v12920
    %v13437 = vpack.c.b16 %v12927, %v12921
    %v13438 = vpack.c.b16 %v12928, %v12922
    %v13439 = vpack.c.b16 %v12929, %v12923
    %v13440 = vpack.c.b16 %v12930, %v12924
    %v13441 = vpack.c.b16 %v12931, %v12925
    %v13442 = vpack.c.b16 %v12938, %v12932
    %v13443 = vpack.c.b16 %v12939, %v12933
    %v13444 = vpack.c.b16 %v12940, %v12934
    %v13445 = vpack.c.b16 %v12941, %v12935
    %v13446 = vpack.c.b16 %v12942, %v12936
    %v13447 = vpack.c.b16 %v12943, %v12937
    %v13448 = vpack.c.b16 %v12950, %v12944
    %v13449 = vpack.c.b16 %v12951, %v12945
    %v13450 = vpack.c.b16 %v12952, %v12946
    %v13451 = vpack.c.b16 %v12953, %v12947
    %v13452 = vpack.c.b16 %v12954, %v12948
    %v13453 = vpack.c.b16 %v12955, %v12949
    %v13454 = vpack.c.b16 %v12962, %v12956
    %v13455 = vpack.c.b16 %v12963, %v12957
    %v13456 = vpack.c.b16 %v12964, %v12958
    %v13457 = vpack.c.b16 %v12965, %v12959
    %v13458 = vpack.c.b16 %v12966, %v12960
    %v13459 = vpack.c.b16 %v12967, %v12961
    %v13460 = vpack.c.b16 %v12974, %v12968
    %v13461 = vpack.c.b16 %v12975, %v12969
    %v13462 = vpack.c.b16 %v12976, %v12970
    %v13463 = vpack.c.b16 %v12977, %v12971
    %v13464 = vpack.c.b16 %v12978, %v12972
    %v13465 = vpack.c.b16 %v12979, %v12973
    %v13466 = vpack.c.b16 %v12986, %v12980
    %v13467 = vpack.c.b16 %v12987, %v12981
    %v13468 = vpack.c.b16 %v12988, %v12982
    %v13469 = vpack.c.b16 %v12989, %v12983
    %v13470 = vpack.c.b16 %v12990, %v12984
    %v13471 = vpack.c.b16 %v12991, %v12985
    %v13472 = vpack.c.b16 %v12998, %v12992
    %v13473 = vpack.c.b16 %v12999, %v12993
    %v13474 = vpack.c.b16 %v13000, %v12994
    %v13475 = vpack.c.b16 %v13001, %v12995
    %v13476 = vpack.c.b16 %v13002, %v12996
    %v13477 = vpack.c.b16 %v13003, %v12997
    %v13478 = vpack.c.b16 %v13010, %v13004
    %v13479 = vpack.c.b16 %v13011, %v13005
    %v13480 = vpack.c.b16 %v13012, %v13006
    %v13481 = vpack.c.b16 %v13013, %v13007
    %v13482 = vpack.c.b16 %v13014, %v13008
    %v13483 = vpack.c.b16 %v13015, %v13009
    %v13484 = vpack.c.b16 %v13022, %v13016
    %v13485 = vpack.c.b16 %v13023, %v13017
    %v13486 = vpack.c.b16 %v13024, %v13018
    %v13487 = vpack.c.b16 %v13025, %v13019
    %v13488 = vpack.c.b16 %v13026, %v13020
    %v13489 = vpack.c.b16 %v13027, %v13021
    %v13490 = vpack.c.b16 %v13034, %v13028
    %v13491 = vpack.c.b16 %v13035, %v13029
    %v13492 = vpack.c.b16 %v13036, %v13030
    %v13493 = vpack.c.b16 %v13037, %v13031
    %v13494 = vpack.c.b16 %v13038, %v13032
    %v13495 = vpack.c.b16 %v13039, %v13033
    %v13496 = vpack.c.b16 %v13046, %v13040
    %v13497 = vpack.c.b16 %v13047, %v13041
    %v13498 = vpack.c.b16 %v13048, %v13042
    %v13499 = vpack.c.b16 %v13049, %v13043
    %v13500 = vpack.c.b16 %v13050, %v13044
    %v13501 = vpack.c.b16 %v13051, %v13045
    %v13502 = vpack.c.b16 %v13058, %v13052
    %v13503 = vpack.c.b16 %v13059, %v13053
    %v13504 = vpack.c.b16 %v13060, %v13054
    %v13505 = vpack.c.b16 %v13061, %v13055
    %v13506 = vpack.c.b16 %v13062, %v13056
    %v13507 = vpack.c.b16 %v13063, %v13057
    %v13508 = vpack.c.b16 %v13070, %v13064
    %v13509 = vpack.c.b16 %v13071, %v13065
    %v13510 = vpack.c.b16 %v13072, %v13066
    %v13511 = vpack.c.b16 %v13073, %v13067
    %v13512 = vpack.c.b16 %v13074, %v13068
    %v13513 = vpack.c.b16 %v13075, %v13069
    %v13514 = vpack.c.b16 %v13082, %v13076
    %v13515 = vpack.c.b16 %v13083, %v13077
    %v13516 = vpack.c.b16 %v13084, %v13078
    %v13517 = vpack.c.b16 %v13085, %v13079
    %v13518 = vpack.c.b16 %v13086, %v13080
    %v13519 = vpack.c.b16 %v13087, %v13081
    %v13520 = vpack.c.b16 %v13094, %v13088
    %v13521 = vpack.c.b16 %v13095, %v13089
    %v13522 = vpack.c.b16 %v13096, %v13090
    %v13523 = vpack.c.b16 %v13097, %v13091
    %v13524 = vpack.c.b16 %v13098, %v13092
    %v13525 = vpack.c.b16 %v13099, %v13093
    %v13526 = vpack.c.b16 %v13106, %v13100
    %v13527 = vpack.c.b16 %v13107, %v13101
    %v13528 = vpack.c.b16 %v13108, %v13102
    %v13529 = vpack.c.b16 %v13109, %v13103
    %v13530 = vpack.c.b16 %v13110, %v13104
    %v13531 = vpack.c.b16 %v13111, %v13105
    %v13532 = vpack.c.b16 %v13118, %v13112
    %v13533 = vpack.c.b16 %v13119, %v13113
    %v13534 = vpack.c.b16 %v13120, %v13114
    %v13535 = vpack.c.b16 %v13121, %v13115
    %v13536 = vpack.c.b16 %v13122, %v13116
    %v13537 = vpack.c.b16 %v13123, %v13117
    %v13538 = vpack.c.b16 %v13130, %v13124
    %v13539 = vpack.c.b16 %v13131, %v13125
    %v13540 = vpack.c.b16 %v13132, %v13126
    %v13541 = vpack.c.b16 %v13133, %v13127
    %v13542 = vpack.c.b16 %v13134, %v13128
    %v13543 = vpack.c.b16 %v13135, %v13129
    %v13544 = vpack.c.b16 %v13142, %v13136
    %v13545 = vpack.c.b16 %v13143, %v13137
    %v13546 = vpack.c.b16 %v13144, %v13138
    %v13547 = vpack.c.b16 %v13145, %v13139
    %v13548 = vpack.c.b16 %v13146, %v13140
    %v13549 = vpack.c.b16 %v13147, %v13141
    %v13550 = vpack.c.b16 %v13154, %v13148
    %v13551 = vpack.c.b16 %v13155, %v13149
    %v13552 = vpack.c.b16 %v13156, %v13150
    %v13553 = vpack.c.b16 %v13157, %v13151
    %v13554 = vpack.c.b16 %v13158, %v13152
    %v13555 = vpack.c.b16 %v13159, %v13153
    %v13556 = vpack.c.b16 %v13166, %v13160
    %v13557 = vpack.c.b16 %v13167, %v13161
    %v13558 = vpack.c.b16 %v13168, %v13162
    %v13559 = vpack.c.b16 %v13169, %v13163
    %v13560 = vpack.c.b16 %v13170, %v13164
    %v13561 = vpack.c.b16 %v13171, %v13165
    %v13562 = vpack.c.b16 %v13178, %v13172
    %v13563 = vpack.c.b16 %v13179, %v13173
    %v13564 = vpack.c.b16 %v13180, %v13174
    %v13565 = vpack.c.b16 %v13181, %v13175
    %v13566 = vpack.c.b16 %v13182, %v13176
    %v13567 = vpack.c.b16 %v13183, %v13177
    %v13568 = vpack.c.b16 %v13190, %v13184
    %v13569 = vpack.c.b16 %v13191, %v13185
    %v13570 = vpack.c.b16 %v13192, %v13186
    %v13571 = vpack.c.b16 %v13193, %v13187
    %v13572 = vpack.c.b16 %v13194, %v13188
    %v13573 = vpack.c.b16 %v13195, %v13189
    %v13574 = vpack.c.b16 %v13202, %v13196
    %v13575 = vpack.c.b16 %v13203, %v13197
    %v13576 = vpack.c.b16 %v13204, %v13198
    %v13577 = vpack.c.b16 %v13205, %v13199
    %v13578 = vpack.c.b16 %v13206, %v13200
    %v13579 = vpack.c.b16 %v13207, %v13201
    %v13580 = vpack.c.b16 %v13214, %v13208
    %v13581 = vpack.c.b16 %v13215, %v13209
    %v13582 = vpack.c.b16 %v13216, %v13210
    %v13583 = vpack.c.b16 %v13217, %v13211
    %v13584 = vpack.c.b16 %v13218, %v13212
    %v13585 = vpack.c.b16 %v13219, %v13213
    %v13586 = vpack.c.b16 %v13226, %v13220
    %v13587 = vpack.c.b16 %v13227, %v13221
    %v13588 = vpack.c.b16 %v13228, %v13222
    %v13589 = vpack.c.b16 %v13229, %v13223
    %v13590 = vpack.c.b16 %v13230, %v13224
    %v13591 = vpack.c.b16 %v13231, %v13225
    %v13592 = vpack.c.b16 %v13238, %v13232
    %v13593 = vpack.c.b16 %v13239, %v13233
    %v13594 = vpack.c.b16 %v13240, %v13234
    %v13595 = vpack.c.b16 %v13241, %v13235
    %v13596 = vpack.c.b16 %v13242, %v13236
    %v13597 = vpack.c.b16 %v13243, %v13237
    %v13598 = vpack.c.b16 %v13250, %v13244
    %v13599 = vpack.c.b16 %v13251, %v13245
    %v13600 = vpack.c.b16 %v13252, %v13246
    %v13601 = vpack.c.b16 %v13253, %v13247
    %v13602 = vpack.c.b16 %v13254, %v13248
    %v13603 = vpack.c.b16 %v13255, %v13249
    %v13604 = vpack.c.b16 %v13262, %v13256
    %v13605 = vpack.c.b16 %v13263, %v13257
    %v13606 = vpack.c.b16 %v13264, %v13258
    %v13607 = vpack.c.b16 %v13265, %v13259
    %v13608 = vpack.c.b16 %v13266, %v13260
    %v13609 = vpack.c.b16 %v13267, %v13261
    %v13610 = vpack.c.b16 %v13274, %v13268
    %v13611 = vpack.c.b16 %v13275, %v13269
    %v13612 = vpack.c.b16 %v13276, %v13270
    %v13613 = vpack.c.b16 %v13277, %v13271
    %v13614 = vpack.c.b16 %v13278, %v13272
    %v13615 = vpack.c.b16 %v13279, %v13273
    %v13616 = vpack.c.b16 %v13286, %v13280
    %v13617 = vpack.c.b16 %v13287, %v13281
    %v13618 = vpack.c.b16 %v13288, %v13282
    %v13619 = vpack.c.b16 %v13289, %v13283
    %v13620 = vpack.c.b16 %v13290, %v13284
    %v13621 = vpack.c.b16 %v13291, %v13285
    %v13622 = vpack.c.b16 %v13298, %v13292
    %v13623 = vpack.c.b16 %v13299, %v13293
    %v13624 = vpack.c.b16 %v13300, %v13294
    %v13625 = vpack.c.b16 %v13301, %v13295
    %v13626 = vpack.c.b16 %v13302, %v13296
    %v13627 = vpack.c.b16 %v13303, %v13297
    %v13628 = vpack.c.b16 %v13310, %v13304
    %v13629 = vpack.c.b16 %v13311, %v13305
    %v13630 = vpack.c.b16 %v13312, %v13306
    %v13631 = vpack.c.b16 %v13313, %v13307
    %v13632 = vpack.c.b16 %v13314, %v13308
    %v13633 = vpack.c.b16 %v13315, %v13309
    %v13634 = vpack.c.b16 %v13322, %v13316
    %v13635 = vpack.c.b16 %v13323, %v13317
    %v13636 = vpack.c.b16 %v13324, %v13318
    %v13637 = vpack.c.b16 %v13325, %v13319
    %v13638 = vpack.c.b16 %v13326, %v13320
    %v13639 = vpack.c.b16 %v13327, %v13321
    %v13640 = vpack.c.b16 %v13334, %v13328
    %v13641 = vpack.c.b16 %v13335, %v13329
    %v13642 = vpack.c.b16 %v13336, %v13330
    %v13643 = vpack.c.b16 %v13337, %v13331
    %v13644 = vpack.c.b16 %v13338, %v13332
    %v13645 = vpack.c.b16 %v13339, %v13333
    %v13646 = vpack.c.b16 %v13346, %v13340
    %v13647 = vpack.c.b16 %v13347, %v13341
    %v13648 = vpack.c.b16 %v13348, %v13342
    %v13649 = vpack.c.b16 %v13349, %v13343
    %v13650 = vpack.c.b16 %v13350, %v13344
    %v13651 = vpack.c.b16 %v13351, %v13345
    %v13652 = vpack.c.b16 %v13358, %v13352
    %v13653 = vpack.c.b16 %v13359, %v13353
    %v13654 = vpack.c.b16 %v13360, %v13354
    %v13655 = vpack.c.b16 %v13361, %v13355
    %v13656 = vpack.c.b16 %v13362, %v13356
    %v13657 = vpack.c.b16 %v13363, %v13357
    %v13658 = vpack.c.b16 %v13370, %v13364
    %v13659 = vpack.c.b16 %v13371, %v13365
    %v13660 = vpack.c.b16 %v13372, %v13366
    %v13661 = vpack.c.b16 %v13373, %v13367
    %v13662 = vpack.c.b16 %v13374, %v13368
    %v13663 = vpack.c.b16 %v13375, %v13369
    %13952 = vmatprep.subr.bf16.mxu0 %v13377
    %13953 = vmatpush1.bf16.msra.mxu0 %v13376
    %13954 = vmatprep.subr.bf16.mxu0 %v13383
    %13955 = vmatpush1.bf16.msra.mxu0 %v13382
    %13956 = vmatprep.subr.bf16.mxu0 %v13389
    %13957 = vmatpush1.bf16.msra.mxu0 %v13388
    %13958 = vmatprep.subr.bf16.mxu0 %v13395
    %13959 = vmatpush1.bf16.msra.mxu0 %v13394
    %13960 = vmatprep.subr.bf16.mxu0 %v13401
    %13961 = vmatpush1.bf16.msra.mxu0 %v13400
    %13962 = vmatprep.subr.bf16.mxu0 %v13407
    %13963 = vmatpush1.bf16.msra.mxu0 %v13406
    %13964 = vmatprep.subr.bf16.mxu0 %v13413
    %13965 = vmatpush1.bf16.msra.mxu0 %v13412
    %13966 = vmatprep.subr.bf16.mxu0 %v13419
    %13967 = vmatpush1.bf16.msra.mxu0 %v13418
    %13968 = vmatprep.subr.bf16.mxu0 %v13425
    %13969 = vmatpush1.bf16.msra.mxu0 %v13424
    %13970 = vmatprep.subr.bf16.mxu0 %v13431
    %13971 = vmatpush1.bf16.msra.mxu0 %v13430
    %13972 = vmatprep.subr.bf16.mxu0 %v13437
    %13973 = vmatpush1.bf16.msra.mxu0 %v13436
    %13974 = vmatprep.subr.bf16.mxu0 %v13443
    %13975 = vmatpush1.bf16.msra.mxu0 %v13442
    %13976 = vmatprep.subr.bf16.mxu0 %v13449
    %13977 = vmatpush1.bf16.msra.mxu0 %v13448
    %13978 = vmatprep.subr.bf16.mxu0 %v13455
    %13979 = vmatpush1.bf16.msra.mxu0 %v13454
    %13980 = vmatprep.subr.bf16.mxu0 %v13461
    %13981 = vmatpush1.bf16.msra.mxu0 %v13460
    %13982 = vmatprep.subr.bf16.mxu0 %v13467
    %13983 = vmatpush1.bf16.msra.mxu0 %v13466
    %13984 = vmatprep.mubr.bf16.mxu0 %v10120
    %13985 = vmatmul.mubr.bf16.gmra.mrb[0].mxu0 %v10119
    %v13986 = vpop.f32.mrb[0].mxu0
    %v13987 = vadd.f32 %v12260, %v13986
    %v13988 = vpop.f32.mrb[0].mxu0
    %v13989 = vadd.f32 %v12262, %v13988
    %v13990 = vpop.f32.mrb[0].mxu0
    %v13991 = vpop.f32.mrb[0].mxu0
    %13992 = vdwg.mxu0
    %13993 = vmatprep.subr.bf16.mxu0 %v13473
    %13994 = vmatpush1.bf16.msra.mxu0 %v13472
    %13995 = vmatprep.subr.bf16.mxu0 %v13479
    %13996 = vmatpush1.bf16.msra.mxu0 %v13478
    %13997 = vmatprep.subr.bf16.mxu0 %v13485
    %13998 = vmatpush1.bf16.msra.mxu0 %v13484
    %13999 = vmatprep.subr.bf16.mxu0 %v13491
    %14000 = vmatpush1.bf16.msra.mxu0 %v13490
    %14001 = vmatprep.subr.bf16.mxu0 %v13497
    %14002 = vmatpush1.bf16.msra.mxu0 %v13496
    %14003 = vmatprep.subr.bf16.mxu0 %v13503
    %14004 = vmatpush1.bf16.msra.mxu0 %v13502
    %14005 = vmatprep.subr.bf16.mxu0 %v13509
    %14006 = vmatpush1.bf16.msra.mxu0 %v13508
    %14007 = vmatprep.subr.bf16.mxu0 %v13515
    %14008 = vmatpush1.bf16.msra.mxu0 %v13514
    %14009 = vmatprep.subr.bf16.mxu0 %v13521
    %14010 = vmatpush1.bf16.msra.mxu0 %v13520
    %14011 = vmatprep.subr.bf16.mxu0 %v13527
    %14012 = vmatpush1.bf16.msra.mxu0 %v13526
    %14013 = vmatprep.subr.bf16.mxu0 %v13533
    %14014 = vmatpush1.bf16.msra.mxu0 %v13532
    %14015 = vmatprep.subr.bf16.mxu0 %v13539
    %14016 = vmatpush1.bf16.msra.mxu0 %v13538
    %14017 = vmatprep.subr.bf16.mxu0 %v13545
    %14018 = vmatpush1.bf16.msra.mxu0 %v13544
    %14019 = vmatprep.subr.bf16.mxu0 %v13551
    %14020 = vmatpush1.bf16.msra.mxu0 %v13550
    %14021 = vmatprep.subr.bf16.mxu0 %v13557
    %14022 = vmatpush1.bf16.msra.mxu0 %v13556
    %14023 = vmatprep.subr.bf16.mxu0 %v13563
    %14024 = vmatpush1.bf16.msra.mxu0 %v13562
    %14025 = vmatprep.mubr.bf16.mxu0 %v10122
    %14026 = vmatmul.mubr.bf16.gmra.mrb[0].mxu0 %v10121
    %v14027 = vpop.f32.mrb[0].mxu0
    %v14028 = vadd.f32 %v13987, %v14027
    %v14029 = vpop.f32.mrb[0].mxu0
    %v14030 = vadd.f32 %v13989, %v14029
    %v14031 = vpop.f32.mrb[0].mxu0
    %v14032 = vpop.f32.mrb[0].mxu0
    %14033 = vdwg.mxu0
    %14034 = vmatprep.subr.bf16.mxu0 %v13569
    %14035 = vmatpush1.bf16.msra.mxu0 %v13568
    %14036 = vmatprep.subr.bf16.mxu0 %v13575
    %14037 = vmatpush1.bf16.msra.mxu0 %v13574
    %14038 = vmatprep.subr.bf16.mxu0 %v13581
    %14039 = vmatpush1.bf16.msra.mxu0 %v13580
    %14040 = vmatprep.subr.bf16.mxu0 %v13587
    %14041 = vmatpush1.bf16.msra.mxu0 %v13586
    %14042 = vmatprep.subr.bf16.mxu0 %v13593
    %14043 = vmatpush1.bf16.msra.mxu0 %v13592
    %14044 = vmatprep.subr.bf16.mxu0 %v13599
    %14045 = vmatpush1.bf16.msra.mxu0 %v13598
    %14046 = vmatprep.subr.bf16.mxu0 %v13605
    %14047 = vmatpush1.bf16.msra.mxu0 %v13604
    %14048 = vmatprep.subr.bf16.mxu0 %v13611
    %14049 = vmatpush1.bf16.msra.mxu0 %v13610
    %14050 = vmatprep.subr.bf16.mxu0 %v13617
    %14051 = vmatpush1.bf16.msra.mxu0 %v13616
    %14052 = vmatprep.subr.bf16.mxu0 %v13623
    %14053 = vmatpush1.bf16.msra.mxu0 %v13622
    %14054 = vmatprep.subr.bf16.mxu0 %v13629
    %14055 = vmatpush1.bf16.msra.mxu0 %v13628
    %14056 = vmatprep.subr.bf16.mxu0 %v13635
    %14057 = vmatpush1.bf16.msra.mxu0 %v13634
    %14058 = vmatprep.subr.bf16.mxu0 %v13641
    %14059 = vmatpush1.bf16.msra.mxu0 %v13640
    %14060 = vmatprep.subr.bf16.mxu0 %v13647
    %14061 = vmatpush1.bf16.msra.mxu0 %v13646
    %14062 = vmatprep.subr.bf16.mxu0 %v13653
    %14063 = vmatpush1.bf16.msra.mxu0 %v13652
    %14064 = vmatprep.subr.bf16.mxu0 %v13659
    %14065 = vmatpush1.bf16.msra.mxu0 %v13658
    %14066 = vmatprep.mubr.bf16.mxu0 %v10124
    %14067 = vmatmul.mubr.bf16.gmra.mrb[0].mxu0 %v10123
    %v14068 = vpop.f32.mrb[0].mxu0
    %v14069 = vadd.f32 %v14028, %v14068
    %v14070 = vpop.f32.mrb[0].mxu0
    %v14071 = vadd.f32 %v14030, %v14070
    %v14072 = vpop.f32.mrb[0].mxu0
    %v14073 = vpop.f32.mrb[0].mxu0
    %14074 = vdwg.mxu0
    %14075 = vmatprep.subr.bf16.mxu0 %v13379
    %14076 = vmatpush1.bf16.msra.mxu0 %v13378
    %14077 = vmatprep.subr.bf16.mxu0 %v13385
    %14078 = vmatpush1.bf16.msra.mxu0 %v13384
    %14079 = vmatprep.subr.bf16.mxu0 %v13391
    %14080 = vmatpush1.bf16.msra.mxu0 %v13390
    %14081 = vmatprep.subr.bf16.mxu0 %v13397
    %14082 = vmatpush1.bf16.msra.mxu0 %v13396
    %14083 = vmatprep.subr.bf16.mxu0 %v13403
    %14084 = vmatpush1.bf16.msra.mxu0 %v13402
    %14085 = vmatprep.subr.bf16.mxu0 %v13409
    %14086 = vmatpush1.bf16.msra.mxu0 %v13408
    %14087 = vmatprep.subr.bf16.mxu0 %v13415
    %14088 = vmatpush1.bf16.msra.mxu0 %v13414
    %14089 = vmatprep.subr.bf16.mxu0 %v13421
    %14090 = vmatpush1.bf16.msra.mxu0 %v13420
    %14091 = vmatprep.subr.bf16.mxu0 %v13427
    %14092 = vmatpush1.bf16.msra.mxu0 %v13426
    %14093 = vmatprep.subr.bf16.mxu0 %v13433
    %14094 = vmatpush1.bf16.msra.mxu0 %v13432
    %14095 = vmatprep.subr.bf16.mxu0 %v13439
    %14096 = vmatpush1.bf16.msra.mxu0 %v13438
    %14097 = vmatprep.subr.bf16.mxu0 %v13445
    %14098 = vmatpush1.bf16.msra.mxu0 %v13444
    %14099 = vmatprep.subr.bf16.mxu0 %v13451
    %14100 = vmatpush1.bf16.msra.mxu0 %v13450
    %14101 = vmatprep.subr.bf16.mxu0 %v13457
    %14102 = vmatpush1.bf16.msra.mxu0 %v13456
    %14103 = vmatprep.subr.bf16.mxu0 %v13463
    %14104 = vmatpush1.bf16.msra.mxu0 %v13462
    %14105 = vmatprep.subr.bf16.mxu0 %v13469
    %14106 = vmatpush1.bf16.msra.mxu0 %v13468
    %14107 = vmatprep.mubr.bf16.mxu0 %v10120
    %14108 = vmatmul.mubr.bf16.gmra.mrb[0].mxu0 %v10119
    %v14109 = vpop.f32.mrb[0].mxu0
    %v14110 = vadd.f32 %v12383, %v14109
    %v14111 = vpop.f32.mrb[0].mxu0
    %v14112 = vadd.f32 %v12385, %v14111
    %v14113 = vpop.f32.mrb[0].mxu0
    %v14114 = vpop.f32.mrb[0].mxu0
    %14115 = vdwg.mxu0
    %14116 = vmatprep.subr.bf16.mxu0 %v13475
    %14117 = vmatpush1.bf16.msra.mxu0 %v13474
    %14118 = vmatprep.subr.bf16.mxu0 %v13481
    %14119 = vmatpush1.bf16.msra.mxu0 %v13480
    %14120 = vmatprep.subr.bf16.mxu0 %v13487
    %14121 = vmatpush1.bf16.msra.mxu0 %v13486
    %14122 = vmatprep.subr.bf16.mxu0 %v13493
    %14123 = vmatpush1.bf16.msra.mxu0 %v13492
    %14124 = vmatprep.subr.bf16.mxu0 %v13499
    %14125 = vmatpush1.bf16.msra.mxu0 %v13498
    %14126 = vmatprep.subr.bf16.mxu0 %v13505
    %14127 = vmatpush1.bf16.msra.mxu0 %v13504
    %14128 = vmatprep.subr.bf16.mxu0 %v13511
    %14129 = vmatpush1.bf16.msra.mxu0 %v13510
    %14130 = vmatprep.subr.bf16.mxu0 %v13517
    %14131 = vmatpush1.bf16.msra.mxu0 %v13516
    %14132 = vmatprep.subr.bf16.mxu0 %v13523
    %14133 = vmatpush1.bf16.msra.mxu0 %v13522
    %14134 = vmatprep.subr.bf16.mxu0 %v13529
    %14135 = vmatpush1.bf16.msra.mxu0 %v13528
    %14136 = vmatprep.subr.bf16.mxu0 %v13535
    %14137 = vmatpush1.bf16.msra.mxu0 %v13534
    %14138 = vmatprep.subr.bf16.mxu0 %v13541
    %14139 = vmatpush1.bf16.msra.mxu0 %v13540
    %14140 = vmatprep.subr.bf16.mxu0 %v13547
    %14141 = vmatpush1.bf16.msra.mxu0 %v13546
    %14142 = vmatprep.subr.bf16.mxu0 %v13553
    %14143 = vmatpush1.bf16.msra.mxu0 %v13552
    %14144 = vmatprep.subr.bf16.mxu0 %v13559
    %14145 = vmatpush1.bf16.msra.mxu0 %v13558
    %14146 = vmatprep.subr.bf16.mxu0 %v13565
    %14147 = vmatpush1.bf16.msra.mxu0 %v13564
    %14148 = vmatprep.mubr.bf16.mxu0 %v10122
    %14149 = vmatmul.mubr.bf16.gmra.mrb[0].mxu0 %v10121
    %v14150 = vpop.f32.mrb[0].mxu0
    %v14151 = vadd.f32 %v14110, %v14150
    %v14152 = vpop.f32.mrb[0].mxu0
    %v14153 = vadd.f32 %v14112, %v14152
    %v14154 = vpop.f32.mrb[0].mxu0
    %v14155 = vpop.f32.mrb[0].mxu0
    %14156 = vdwg.mxu0
    %14157 = vmatprep.subr.bf16.mxu0 %v13571
    %14158 = vmatpush1.bf16.msra.mxu0 %v13570
    %14159 = vmatprep.subr.bf16.mxu0 %v13577
    %14160 = vmatpush1.bf16.msra.mxu0 %v13576
    %14161 = vmatprep.subr.bf16.mxu0 %v13583
    %14162 = vmatpush1.bf16.msra.mxu0 %v13582
    %14163 = vmatprep.subr.bf16.mxu0 %v13589
    %14164 = vmatpush1.bf16.msra.mxu0 %v13588
    %14165 = vmatprep.subr.bf16.mxu0 %v13595
    %14166 = vmatpush1.bf16.msra.mxu0 %v13594
    %14167 = vmatprep.subr.bf16.mxu0 %v13601
    %14168 = vmatpush1.bf16.msra.mxu0 %v13600
    %14169 = vmatprep.subr.bf16.mxu0 %v13607
    %14170 = vmatpush1.bf16.msra.mxu0 %v13606
    %14171 = vmatprep.subr.bf16.mxu0 %v13613
    %14172 = vmatpush1.bf16.msra.mxu0 %v13612
    %14173 = vmatprep.subr.bf16.mxu0 %v13619
    %14174 = vmatpush1.bf16.msra.mxu0 %v13618
    %14175 = vmatprep.subr.bf16.mxu0 %v13625
    %14176 = vmatpush1.bf16.msra.mxu0 %v13624
    %14177 = vmatprep.subr.bf16.mxu0 %v13631
    %14178 = vmatpush1.bf16.msra.mxu0 %v13630
    %14179 = vmatprep.subr.bf16.mxu0 %v13637
    %14180 = vmatpush1.bf16.msra.mxu0 %v13636
    %14181 = vmatprep.subr.bf16.mxu0 %v13643
    %14182 = vmatpush1.bf16.msra.mxu0 %v13642
    %14183 = vmatprep.subr.bf16.mxu0 %v13649
    %14184 = vmatpush1.bf16.msra.mxu0 %v13648
    %14185 = vmatprep.subr.bf16.mxu0 %v13655
    %14186 = vmatpush1.bf16.msra.mxu0 %v13654
    %14187 = vmatprep.subr.bf16.mxu0 %v13661
    %14188 = vmatpush1.bf16.msra.mxu0 %v13660
    %14189 = vmatprep.mubr.bf16.mxu0 %v10124
    %14190 = vmatmul.mubr.bf16.gmra.mrb[0].mxu0 %v10123
    %v14191 = vpop.f32.mrb[0].mxu0
    %v14192 = vadd.f32 %v14151, %v14191
    %v14193 = vpop.f32.mrb[0].mxu0
    %v14194 = vadd.f32 %v14153, %v14193
    %v14195 = vpop.f32.mrb[0].mxu0
    %v14196 = vpop.f32.mrb[0].mxu0
    %14197 = vdwg.mxu0
    %14198 = vmatprep.subr.bf16.mxu0 %v13381
    %14199 = vmatpush1.bf16.msra.mxu0 %v13380
    %14200 = vmatprep.subr.bf16.mxu0 %v13387
    %14201 = vmatpush1.bf16.msra.mxu0 %v13386
    %14202 = vmatprep.subr.bf16.mxu0 %v13393
    %14203 = vmatpush1.bf16.msra.mxu0 %v13392
    %14204 = vmatprep.subr.bf16.mxu0 %v13399
    %14205 = vmatpush1.bf16.msra.mxu0 %v13398
    %14206 = vmatprep.subr.bf16.mxu0 %v13405
    %14207 = vmatpush1.bf16.msra.mxu0 %v13404
    %14208 = vmatprep.subr.bf16.mxu0 %v13411
    %14209 = vmatpush1.bf16.msra.mxu0 %v13410
    %14210 = vmatprep.subr.bf16.mxu0 %v13417
    %14211 = vmatpush1.bf16.msra.mxu0 %v13416
    %14212 = vmatprep.subr.bf16.mxu0 %v13423
    %14213 = vmatpush1.bf16.msra.mxu0 %v13422
    %14214 = vmatprep.subr.bf16.mxu0 %v13429
    %14215 = vmatpush1.bf16.msra.mxu0 %v13428
    %14216 = vmatprep.subr.bf16.mxu0 %v13435
    %14217 = vmatpush1.bf16.msra.mxu0 %v13434
    %14218 = vmatprep.subr.bf16.mxu0 %v13441
    %14219 = vmatpush1.bf16.msra.mxu0 %v13440
    %14220 = vmatprep.subr.bf16.mxu0 %v13447
    %14221 = vmatpush1.bf16.msra.mxu0 %v13446
    %14222 = vmatprep.subr.bf16.mxu0 %v13453
    %14223 = vmatpush1.bf16.msra.mxu0 %v13452
    %14224 = vmatprep.subr.bf16.mxu0 %v13459
    %14225 = vmatpush1.bf16.msra.mxu0 %v13458
    %14226 = vmatprep.subr.bf16.mxu0 %v13465
    %14227 = vmatpush1.bf16.msra.mxu0 %v13464
    %14228 = vmatprep.subr.bf16.mxu0 %v13471
    %14229 = vmatpush1.bf16.msra.mxu0 %v13470
    %14230 = vmatprep.mubr.bf16.mxu0 %v10120
    %14231 = vmatmul.mubr.bf16.gmra.mrb[0].mxu0 %v10119
    %v14232 = vpop.f32.mrb[0].mxu0
    %v14233 = vadd.f32 %v12506, %v14232
    %v14234 = vpop.f32.mrb[0].mxu0
    %v14235 = vadd.f32 %v12508, %v14234
    %v14236 = vpop.f32.mrb[0].mxu0
    %v14237 = vpop.f32.mrb[0].mxu0
    %14238 = vdwg.mxu0
    %14239 = vmatprep.subr.bf16.mxu0 %v13477
    %14240 = vmatpush1.bf16.msra.mxu0 %v13476
    %14241 = vmatprep.subr.bf16.mxu0 %v13483
    %14242 = vmatpush1.bf16.msra.mxu0 %v13482
    %14243 = vmatprep.subr.bf16.mxu0 %v13489
    %14244 = vmatpush1.bf16.msra.mxu0 %v13488
    %14245 = vmatprep.subr.bf16.mxu0 %v13495
    %14246 = vmatpush1.bf16.msra.mxu0 %v13494
    %14247 = vmatprep.subr.bf16.mxu0 %v13501
    %14248 = vmatpush1.bf16.msra.mxu0 %v13500
    %14249 = vmatprep.subr.bf16.mxu0 %v13507
    %14250 = vmatpush1.bf16.msra.mxu0 %v13506
    %14251 = vmatprep.subr.bf16.mxu0 %v13513
    %14252 = vmatpush1.bf16.msra.mxu0 %v13512
    %14253 = vmatprep.subr.bf16.mxu0 %v13519
    %14254 = vmatpush1.bf16.msra.mxu0 %v13518
    %14255 = vmatprep.subr.bf16.mxu0 %v13525
    %14256 = vmatpush1.bf16.msra.mxu0 %v13524
    %14257 = vmatprep.subr.bf16.mxu0 %v13531
    %14258 = vmatpush1.bf16.msra.mxu0 %v13530
    %14259 = vmatprep.subr.bf16.mxu0 %v13537
    %14260 = vmatpush1.bf16.msra.mxu0 %v13536
    %14261 = vmatprep.subr.bf16.mxu0 %v13543
    %14262 = vmatpush1.bf16.msra.mxu0 %v13542
    %14263 = vmatprep.subr.bf16.mxu0 %v13549
    %14264 = vmatpush1.bf16.msra.mxu0 %v13548
    %14265 = vmatprep.subr.bf16.mxu0 %v13555
    %14266 = vmatpush1.bf16.msra.mxu0 %v13554
    %14267 = vmatprep.subr.bf16.mxu0 %v13561
    %14268 = vmatpush1.bf16.msra.mxu0 %v13560
    %14269 = vmatprep.subr.bf16.mxu0 %v13567
    %14270 = vmatpush1.bf16.msra.mxu0 %v13566
    %14271 = vmatprep.mubr.bf16.mxu0 %v10122
    %14272 = vmatmul.mubr.bf16.gmra.mrb[0].mxu0 %v10121
    %v14273 = vpop.f32.mrb[0].mxu0
    %v14274 = vadd.f32 %v14233, %v14273
    %v14275 = vpop.f32.mrb[0].mxu0
    %v14276 = vadd.f32 %v14235, %v14275
    %v14277 = vpop.f32.mrb[0].mxu0
    %v14278 = vpop.f32.mrb[0].mxu0
    %14279 = vdwg.mxu0
    %14280 = vmatprep.subr.bf16.mxu0 %v13573
    %14281 = vmatpush1.bf16.msra.mxu0 %v13572
    %14282 = vmatprep.subr.bf16.mxu0 %v13579
    %14283 = vmatpush1.bf16.msra.mxu0 %v13578
    %14284 = vmatprep.subr.bf16.mxu0 %v13585
    %14285 = vmatpush1.bf16.msra.mxu0 %v13584
    %14286 = vmatprep.subr.bf16.mxu0 %v13591
    %14287 = vmatpush1.bf16.msra.mxu0 %v13590
    %14288 = vmatprep.subr.bf16.mxu0 %v13597
    %14289 = vmatpush1.bf16.msra.mxu0 %v13596
    %14290 = vmatprep.subr.bf16.mxu0 %v13603
    %14291 = vmatpush1.bf16.msra.mxu0 %v13602
    %14292 = vmatprep.subr.bf16.mxu0 %v13609
    %14293 = vmatpush1.bf16.msra.mxu0 %v13608
    %14294 = vmatprep.subr.bf16.mxu0 %v13615
    %14295 = vmatpush1.bf16.msra.mxu0 %v13614
    %14296 = vmatprep.subr.bf16.mxu0 %v13621
    %14297 = vmatpush1.bf16.msra.mxu0 %v13620
    %14298 = vmatprep.subr.bf16.mxu0 %v13627
    %14299 = vmatpush1.bf16.msra.mxu0 %v13626
    %14300 = vmatprep.subr.bf16.mxu0 %v13633
    %14301 = vmatpush1.bf16.msra.mxu0 %v13632
    %14302 = vmatprep.subr.bf16.mxu0 %v13639
    %14303 = vmatpush1.bf16.msra.mxu0 %v13638
    %14304 = vmatprep.subr.bf16.mxu0 %v13645
    %14305 = vmatpush1.bf16.msra.mxu0 %v13644
    %14306 = vmatprep.subr.bf16.mxu0 %v13651
    %14307 = vmatpush1.bf16.msra.mxu0 %v13650
    %14308 = vmatprep.subr.bf16.mxu0 %v13657
    %14309 = vmatpush1.bf16.msra.mxu0 %v13656
    %14310 = vmatprep.subr.bf16.mxu0 %v13663
    %14311 = vmatpush1.bf16.msra.mxu0 %v13662
    %14312 = vmatprep.mubr.bf16.mxu0 %v10124
    %14313 = vmatmul.mubr.bf16.gmra.mrb[0].mxu0 %v10123
    %v14314 = vpop.f32.mrb[0].mxu0
    %v14315 = vadd.f32 %v14274, %v14314
    %v14316 = vpop.f32.mrb[0].mxu0
    %v14317 = vadd.f32 %v14276, %v14316
    %v14318 = vpop.f32.mrb[0].mxu0
    %v14319 = vpop.f32.mrb[0].mxu0
    %14320 = vdwg.mxu0
    %v14321 = vlaneseq
    %v14322 = vshrl.u32 %v14321, 7
    %v14323 = vsub.s32 3, %v14322
    %v14324 = vrot.slane %v128, %v14323
    %v14325 = vlaneseq
    %v14326 = vshrl.u32 %v14325, 7
    %v14327 = vsub.s32 7, %v14326
    %v14328 = vrot.slane %v128, %v14327
    %v14329 = vlaneseq
    %v14330 = vshrl.u32 %v14329, 7
    %v14331 = vsub.s32 3, %v14330
    %v14332 = vrot.slane %v129, %v14331
    %v14333 = vlaneseq
    %v14334 = vshrl.u32 %v14333, 7
    %v14335 = vsub.s32 7, %v14334
    %v14336 = vrot.slane %v129, %v14335
    %v14337 = vlaneseq
    %v14338 = vshrl.u32 %v14337, 7
    %v14339 = vsub.s32 3, %v14338
    %v14340 = vrot.slane %v130, %v14339
    %v14341 = vlaneseq
    %v14342 = vshrl.u32 %v14341, 7
    %v14343 = vsub.s32 7, %v14342
    %v14344 = vrot.slane %v130, %v14343
    %v14351 = vlaneseq
    %v14352 = vshrl.u32 %v14351, 7
    %v14353 = vsub.s32 3, %v14352
    %v14354 = vrot.slane %v14324, %v14353
    %v14355 = vlaneseq
    %v14356 = vshrl.u32 %v14355, 7
    %v14357 = vsub.s32 3, %v14356
    %v14358 = vrot.slane %v14328, %v14357
    %v14359 = vlaneseq
    %v14360 = vshrl.u32 %v14359, 7
    %v14361 = vsub.s32 3, %v14360
    %v14362 = vrot.slane %v14332, %v14361
    %v14363 = vlaneseq
    %v14364 = vshrl.u32 %v14363, 7
    %v14365 = vsub.s32 3, %v14364
    %v14366 = vrot.slane %v14336, %v14365
    %v14367 = vlaneseq
    %v14368 = vshrl.u32 %v14367, 7
    %v14369 = vsub.s32 3, %v14368
    %v14370 = vrot.slane %v14340, %v14369
    %v14371 = vlaneseq
    %v14372 = vshrl.u32 %v14371, 7
    %v14373 = vsub.s32 3, %v14372
    %v14374 = vrot.slane %v14344, %v14373
    %v14375 = vadd.f32 %v14069, %v14354
    %v14376 = vadd.f32 %v14071, %v14358
    %v14377 = vadd.f32 %v14192, %v14362
    %v14378 = vadd.f32 %v14194, %v14366
    %v14379 = vadd.f32 %v14315, %v14370
    %v14380 = vadd.f32 %v14317, %v14374
    %v14387 = vcombine.low %v14375, %v14376
    %v14388 = vcombine.low %v14377, %v14378
    %v14390 = vunpack.c.l.s4 1983009808
    %v14391 = vunpack.c.0.s8 %v14390
    %v14392 = vlaneseq
    %v14393 = vshrl.u32 %v14392, 7
    %v14394 = vsub.s32 %v14391, %v14393
    %v14395 = vrot.slane %v14387, %v14394
    %v14397 = vunpack.c.l.s4 1983009808
    %v14398 = vunpack.c.0.s8 %v14397
    %v14399 = vlaneseq
    %v14400 = vshrl.u32 %v14399, 7
    %v14401 = vsub.s32 %v14398, %v14400
    %v14402 = vrot.slane %v14388, %v14401
    %v14403 = vcombine.low %v14395, %v14402
    %v14404 = vcombine.low %v14379, %v14380
    %v14406 = vunpack.c.l.s4 1983009808
    %v14407 = vunpack.c.0.s8 %v14406
    %v14408 = vlaneseq
    %v14409 = vshrl.u32 %v14408, 7
    %v14410 = vsub.s32 %v14407, %v14409
    %v14411 = vrot.slane %v14404, %v14410
    %14414 = vst [vmem:[#allocation14] sm:$0xff] %v14403
    %14415 = vst [vmem:[#allocation14 + $0x8] sm:$0xf] %v14411
    // Predicated region
    $region70: #{mobtep_forward.1} parent=1 // pred_check
      _
    $region71: #{mobtep_forward.1} parent=1 // pred_check_branch
      %14417 = sbr.rel (0) target = $region73
    $region72: #{mobtep_forward.1} parent=1 // pred_region
      %s14419 = ssub.s32 192, 192
      %14420 = vsyncadd [#allocation4], %s14419
      %s14422 = sshll.u32 [#allocation14], 4
      %s14423 = int_to_ptr.vmem [resolvable:$true] %s14422
      %14425 = dma.vmem_to_hbm [thread:$0]  %s14423, 192, %s10, [#allocation4]
    $region73: #{mobtep_forward.1} parent=1 // pred_fallthru
      _
    // Predicated region
    $region74: #{mobtep_forward.1} parent=1 // pred_check
      _
    $region75: #{mobtep_forward.1} parent=1 // pred_check_branch
      %14427 = sbr.rel (0) target = $region77
    $region76: #{mobtep_forward.1} parent=1 // pred_region
      %14428 = dma.done [#allocation4], 192
    $region77: #{mobtep_forward.1} parent=1 // pred_fallthru
      _
    %14429 = vsyncpa [#allocation3], 1
    %14430 = vsyncpa [#allocation6], 1
    %14431 = vsyncpa [#allocation9], 1
    %14432 = vsyncpa [#allocation12], 1
    %14433 = vsyncpa [#allocation4], 1

</llo_original>
